<compile_context>
chip_gen: v5e
topology: v5e:2x2
jax: 0.10.0
libtpu: 0.0.40
codegen_flags: <defaults>
</compile_context>

<pallas_src>
import math

import jax
import jax.numpy as jnp
from jax.experimental import pallas as pl
from jax.experimental.pallas import tpu as pltpu

LN_EPS = 1e-5  # PyTorch nn.LayerNorm default


def _round_up(n, m):
    return ((n + m - 1) // m) * m


# ----------------------------------------------------------------------------
# Kernel 1: LayerNorm(x1), LayerNorm(x2), fused-average, 3x in_proj, SiLU gate.
# ----------------------------------------------------------------------------
def _norm_inproj_kernel(x1_ref, x2_ref, g_ref, b_ref, w_ref,
                        a1_ref, a2_ref, af_ref, z_ref):
    g = g_ref[...]
    b = b_ref[...]
    w = w_ref[...]

    def _ln(v):
        mu = jnp.mean(v, axis=-1, keepdims=True)
        c = v - mu
        var = jnp.mean(c * c, axis=-1, keepdims=True)
        return (c * jax.lax.rsqrt(var + LN_EPS)) * g + b

    n1 = _ln(x1_ref[...])
    n2 = _ln(x2_ref[...])
    nf = (n1 + n2) * 0.5

    a1 = jnp.dot(n1, w, preferred_element_type=jnp.float32)
    a2 = jnp.dot(n2, w, preferred_element_type=jnp.float32)
    af = jnp.dot(nf, w, preferred_element_type=jnp.float32)

    a1_ref[...] = a1.astype(a1_ref.dtype)
    a2_ref[...] = a2.astype(a2_ref.dtype)
    af_ref[...] = af.astype(af_ref.dtype)
    z_ref[...] = (af * (1.0 / (1.0 + jnp.exp(-af)))).astype(z_ref.dtype)


def _norm_inproj(x1_rows, x2_rows, g, b, w_t, tm=512):
    n, c = x1_rows.shape
    dinr = w_t.shape[1]
    tm = min(tm, _round_up(n, 8))
    n_pad = _round_up(n, tm)
    if n_pad != n:
        pads = ((0, n_pad - n), (0, 0))
        x1_rows = jnp.pad(x1_rows, pads)
        x2_rows = jnp.pad(x2_rows, pads)

    outs = pl.pallas_call(
        _norm_inproj_kernel,
        out_shape=tuple(jax.ShapeDtypeStruct((n_pad, dinr), jnp.float32)
                        for _ in range(4)),
        grid_spec=pltpu.PrefetchScalarGridSpec(
            num_scalar_prefetch=0,
            grid=(n_pad // tm,),
            in_specs=[
                pl.BlockSpec((tm, c), lambda i: (i, 0)),
                pl.BlockSpec((tm, c), lambda i: (i, 0)),
                pl.BlockSpec((1, c), lambda i: (0, 0)),
                pl.BlockSpec((1, c), lambda i: (0, 0)),
                pl.BlockSpec((c, dinr), lambda i: (0, 0)),
            ],
            out_specs=tuple(pl.BlockSpec((tm, dinr), lambda i: (i, 0))
                            for _ in range(4)),
        ),
        compiler_params=pltpu.CompilerParams(dimension_semantics=("parallel",)),
    )(x1_rows, x2_rows, g.reshape(1, c), b.reshape(1, c), w_t)
    return tuple(o[:n] for o in outs)


# ----------------------------------------------------------------------------
# Kernel 2: selective scan (Mamba SSM recurrence) for one (branch, direction).
# ----------------------------------------------------------------------------
def _selective_scan_kernel(u_ref, dlt_ref, a_ref, bcol_ref, ccol_ref,
                           dvec_ref, bias_ref, y_ref):
    seq_len, d_in = u_ref.shape
    n_state = a_ref.shape[0]

    a_nd = a_ref[...]        # (N, D)  A[k, n, d] (negative)
    dvec = dvec_ref[...]     # (1, D)
    bias = bias_ref[...]     # (1, D)

    def step(l, h):
        dl_raw = dlt_ref[pl.ds(l, 1), :] + bias                         # (1, D)
        dl = jnp.where(dl_raw > 20.0, dl_raw,
                       jnp.log(1.0 + jnp.exp(dl_raw)))                  # softplus
        ul = u_ref[pl.ds(l, 1), :]                                      # (1, D)
        start = pl.multiple_of(l * n_state, n_state)
        bl = bcol_ref[pl.ds(start, n_state), :]                         # (N, 1)
        cl = ccol_ref[pl.ds(start, n_state), :]                         # (N, 1)
        h = jnp.exp(dl * a_nd) * h + bl * (dl * ul)                     # (N, D)
        y = jnp.sum(cl * h, axis=0, keepdims=True) + dvec * ul          # (1, D)
        y_ref[pl.ds(l, 1), :] = y
        return h

    jax.lax.fori_loop(0, seq_len, step, jnp.zeros((n_state, d_in), jnp.float32))


def _selective_scan_pallas(u, dts, a_knd, bs, cs, dv, dt_bias):
    """u, dts: (G, K, L, D); a_knd: (K, N, D); bs, cs: (G, K, L, N);
    dv, dt_bias: (K, 1, D).  Returns ys: (G, K, L, D) float32."""
    g_dim, k_dim, seq_len, d_in = u.shape
    n_state = a_knd.shape[1]
    # Column layout so the kernel reads B_l / C_l as (N, 1) with a cheap
    # dynamic *sublane* slice (no in-kernel transposes, no lane-dynamic slices).
    b_col = bs.reshape(g_dim, k_dim, seq_len * n_state, 1)
    c_col = cs.reshape(g_dim, k_dim, seq_len * n_state, 1)

    return pl.pallas_call(
        _selective_scan_kernel,
        out_shape=jax.ShapeDtypeStruct((g_dim, k_dim, seq_len, d_in), jnp.float32),
        grid_spec=pltpu.PrefetchScalarGridSpec(
            num_scalar_prefetch=0,
            grid=(g_dim, k_dim),
            in_specs=[
                pl.BlockSpec((None, None, seq_len, d_in), lambda i, j: (i, j, 0, 0)),
                pl.BlockSpec((None, None, seq_len, d_in), lambda i, j: (i, j, 0, 0)),
                pl.BlockSpec((None, n_state, d_in), lambda i, j: (j, 0, 0)),
                pl.BlockSpec((None, None, seq_len * n_state, 1),
                             lambda i, j: (i, j, 0, 0)),
                pl.BlockSpec((None, None, seq_len * n_state, 1),
                             lambda i, j: (i, j, 0, 0)),
                pl.BlockSpec((None, 1, d_in), lambda i, j: (j, 0, 0)),
                pl.BlockSpec((None, 1, d_in), lambda i, j: (j, 0, 0)),
            ],
            out_specs=pl.BlockSpec((None, None, seq_len, d_in),
                                   lambda i, j: (i, j, 0, 0)),
        ),
        compiler_params=pltpu.CompilerParams(
            dimension_semantics=("parallel", "parallel")),
    )(u, dts, a_knd, b_col, c_col, dv, dt_bias)


# ----------------------------------------------------------------------------
# Kernel 3: out_norm on the three branches, *z, sum, out_proj, block residual.
# ----------------------------------------------------------------------------
def _out_fuse_kernel(y1_ref, y2_ref, yf_ref, z_ref, g_ref, b_ref, w_ref,
                     r1_ref, r2_ref, o_ref):
    g = g_ref[...]
    b = b_ref[...]

    def _ln(v):
        mu = jnp.mean(v, axis=-1, keepdims=True)
        c = v - mu
        var = jnp.mean(c * c, axis=-1, keepdims=True)
        return (c * jax.lax.rsqrt(var + LN_EPS)) * g + b

    z = z_ref[...]
    t = _ln(y1_ref[...]) * z + _ln(y2_ref[...]) * z + _ln(yf_ref[...]) * z
    proj = jnp.dot(t, w_ref[...], preferred_element_type=jnp.float32)
    o_ref[...] = (r1_ref[...] + r2_ref[...] + proj).astype(o_ref.dtype)


def _out_fuse(y1, y2, yf, z, g, beta, w_t, r1, r2, tm=512):
    n, dinr = y1.shape
    c = w_t.shape[1]
    tm = min(tm, _round_up(n, 8))
    n_pad = _round_up(n, tm)
    if n_pad != n:
        pads = ((0, n_pad - n), (0, 0))
        y1, y2, yf, z, r1, r2 = (jnp.pad(t, pads) for t in (y1, y2, yf, z, r1, r2))

    out = pl.pallas_call(
        _out_fuse_kernel,
        out_shape=jax.ShapeDtypeStruct((n_pad, c), jnp.float32),
        grid_spec=pltpu.PrefetchScalarGridSpec(
            num_scalar_prefetch=0,
            grid=(n_pad // tm,),
            in_specs=[
                pl.BlockSpec((tm, dinr), lambda i: (i, 0)),
                pl.BlockSpec((tm, dinr), lambda i: (i, 0)),
                pl.BlockSpec((tm, dinr), lambda i: (i, 0)),
                pl.BlockSpec((tm, dinr), lambda i: (i, 0)),
                pl.BlockSpec((1, dinr), lambda i: (0, 0)),
                pl.BlockSpec((1, dinr), lambda i: (0, 0)),
                pl.BlockSpec((dinr, c), lambda i: (0, 0)),
                pl.BlockSpec((tm, c), lambda i: (i, 0)),
                pl.BlockSpec((tm, c), lambda i: (i, 0)),
            ],
            out_specs=pl.BlockSpec((tm, c), lambda i: (i, 0)),
        ),
        compiler_params=pltpu.CompilerParams(dimension_semantics=("parallel",)),
    )(y1, y2, yf, z, g.reshape(1, dinr), beta.reshape(1, dinr), w_t, r1, r2)
    return out[:n]


# ----------------------------------------------------------------------------
# Plain-JAX glue: cross-scan/merge, grouped projections, depthwise conv.
# ----------------------------------------------------------------------------
def _cross_scan(x_cf):
    # (B, D, H, W) -> (B, 4, D, L): row-major, col-major, and their reverses.
    b, d, h, w = x_cf.shape
    r0 = x_cf.reshape(b, d, h * w)
    r1 = jnp.transpose(x_cf, (0, 1, 3, 2)).reshape(b, d, h * w)
    return jnp.stack([r0, r1, jnp.flip(r0, -1), jnp.flip(r1, -1)], axis=1)


def _cross_merge(ys, h, w):
    # ys: (B, 4, D, L) -> (B, D, L)
    b, _, d, l = ys.shape
    ys = ys[:, 0:2] + jnp.flip(ys[:, 2:4], -1)
    y1 = jnp.transpose(ys[:, 1].reshape(b, d, w, h), (0, 1, 3, 2)).reshape(b, d, l)
    return ys[:, 0] + y1


def _input_projections(xs, x_proj_w, dt_w, r_rank, n_state):
    # xs: (B, K, D, L)
    x_dbl = jnp.einsum('bkdl,kcd->bkcl', xs, x_proj_w)
    dts = x_dbl[:, :, :r_rank]
    bs = x_dbl[:, :, r_rank:r_rank + n_state]
    cs = x_dbl[:, :, r_rank + n_state:]
    dts = jnp.einsum('bkrl,kdr->bkdl', dts, dt_w)
    return dts, bs, cs


# ----------------------------------------------------------------------------
# Full forward (CSSFVSSLayer_v5 with depth=1 -> a single FusionBlock_v5).
# ----------------------------------------------------------------------------
def _fusion_block_forward(x1, x2, p):
    b, c, h, w = x1.shape
    dinr = p['in_proj_w'].shape[0]
    k_grp = p['x_proj_w'].shape[0]
    r_rank = p['dt_projs_w'].shape[2]
    n_state = p['A_logs'].shape[1]
    ntok = b * h * w

    x1_rows = jnp.transpose(x1, (0, 2, 3, 1)).reshape(ntok, c)
    x2_rows = jnp.transpose(x2, (0, 2, 3, 1)).reshape(ntok, c)

    # Kernel 1: LN(x1), LN(x2), fused average, in_proj_sec x3, SiLU gate.
    a1, a2, af, z = _norm_inproj(x1_rows, x2_rows, p['norm_g'], p['norm_b'],
                                 jnp.transpose(p['in_proj_w']))

    def to_cf(rows):
        return jnp.transpose(rows.reshape(b, h, w, dinr), (0, 3, 1, 2))

    def dwconv_silu(t):
        t = jax.lax.conv_general_dilated(
            t, p['conv_w'], window_strides=(1, 1), padding=((1, 1), (1, 1)),
            dimension_numbers=('NCHW', 'OIHW', 'NCHW'),
            feature_group_count=dinr) + p['conv_b'][None, :, None, None]
        return jax.nn.silu(t)

    u1_cf = dwconv_silu(to_cf(a1))
    u2_cf = dwconv_silu(to_cf(a2))
    uf_cf = dwconv_silu(to_cf(af))

    xs1 = _cross_scan(u1_cf)
    xs2 = _cross_scan(u2_cf)
    xsf = _cross_scan(uf_cf)
    dts1, bs1, _ = _input_projections(xs1, p['x_proj_w'], p['dt_projs_w'],
                                      r_rank, n_state)
    dts2, bs2, _ = _input_projections(xs2, p['x_proj_w'], p['dt_projs_w'],
                                      r_rank, n_state)
    dtsf, bsf, csf = _input_projections(xsf, p['x_proj_w'], p['dt_projs_w'],
                                        r_rank, n_state)

    def t_ld(v):  # (B, K, D, L) -> (B, K, L, D)
        return jnp.transpose(v, (0, 1, 3, 2))

    # Stack (x1-branch, x2-branch, fused-branch) along batch so ONE pallas_call
    # runs every branch x direction.  All branches reuse Cs from the fused one
    # (matches the reference: selective_scan(..., Cs_fuse, ...)).
    u_all = jnp.concatenate([t_ld(xs1), t_ld(xs2), t_ld(xsf)], axis=0)
    d_all = jnp.concatenate([t_ld(dts1), t_ld(dts2), t_ld(dtsf)], axis=0)
    b_all = jnp.concatenate([t_ld(bs1), t_ld(bs2), t_ld(bsf)], axis=0)
    c_fuse = t_ld(csf)
    c_all = jnp.concatenate([c_fuse, c_fuse, c_fuse], axis=0)

    a_knd = jnp.transpose((-jnp.exp(p['A_logs'])).reshape(k_grp, dinr, n_state),
                          (0, 2, 1))
    dv = p['Ds'].reshape(k_grp, 1, dinr)
    dt_bias = p['dt_projs_b'].reshape(k_grp, 1, dinr)

    ys_all = _selective_scan_pallas(u_all, d_all, a_knd, b_all, c_all, dv, dt_bias)
    ys_all = jnp.transpose(ys_all, (0, 1, 3, 2))      # (3B, K, D, L)

    y1 = _cross_merge(ys_all[:b], h, w)
    y2 = _cross_merge(ys_all[b:2 * b], h, w)
    yf = _cross_merge(ys_all[2 * b:], h, w)

    def to_rows(y):  # (B, D, L) -> (ntok, D), channel-last token rows
        return jnp.transpose(y, (0, 2, 1)).reshape(ntok, dinr)

    # Kernel 3: out_norm x3, *z, sum, out_proj, residual x1 + x2 + attn.
    out_rows = _out_fuse(to_rows(y1), to_rows(y2), to_rows(yf), z,
                         p['out_norm_g'], p['out_norm_b'],
                         jnp.transpose(p['out_proj_w']), x1_rows, x2_rows)
    return jnp.transpose(out_rows.reshape(b, h, w, c), (0, 3, 1, 2))


def cssf_vss_layer_forward(x1, x2, params):
    # depth=1, downsampling=None (the module's forward never calls downsample).
    return _fusion_block_forward(x1, x2, params)


# ----------------------------------------------------------------------------
# Pure-JAX reference (faithful translation of the PyTorch forward pass).
# ----------------------------------------------------------------------------
def _reference(x1, x2, p):
    b, c, h, w = x1.shape
    dinr = p['in_proj_w'].shape[0]
    k_grp = p['x_proj_w'].shape[0]
    r_rank = p['dt_projs_w'].shape[2]
    n_state = p['A_logs'].shape[1]

    def ln(v, g, bb):
        mu = jnp.mean(v, -1, keepdims=True)
        var = jnp.mean((v - mu) ** 2, -1, keepdims=True)
        return (v - mu) / jnp.sqrt(var + LN_EPS) * g + bb

    silu = jax.nn.silu

    x1_cl = jnp.transpose(x1, (0, 2, 3, 1))
    x2_cl = jnp.transpose(x2, (0, 2, 3, 1))
    n1 = ln(x1_cl, p['norm_g'], p['norm_b'])
    n2 = ln(x2_cl, p['norm_g'], p['norm_b'])

    nf = (n1 + n2) / 2.0
    wp = jnp.transpose(p['in_proj_w'])
    a, a2, af = n1 @ wp, n2 @ wp, nf @ wp
    z = silu(af)

    def conv_act(t_cl):
        t = jnp.transpose(t_cl, (0, 3, 1, 2))
        t = jax.lax.conv_general_dilated(
            t, p['conv_w'], window_strides=(1, 1), padding=((1, 1), (1, 1)),
            dimension_numbers=('NCHW', 'OIHW', 'NCHW'),
            feature_group_count=dinr) + p['conv_b'][None, :, None, None]
        return silu(t)

    u1, u2, uf = conv_act(a), conv_act(a2), conv_act(af)

    a_neg = -jnp.exp(p['A_logs'])               # (K*D, N)
    a_kdn = a_neg.reshape(k_grp, dinr, n_state)
    d_kd = p['Ds'].reshape(k_grp, dinr)

    def branch(x_cf):
        xs = _cross_scan(x_cf)
        x_dbl = jnp.einsum('bkdl,kcd->bkcl', xs, p['x_proj_w'])
        dts = x_dbl[:, :, :r_rank]
        bs = x_dbl[:, :, r_rank:r_rank + n_state]
        cs = x_dbl[:, :, r_rank + n_state:]
        dts = jnp.einsum('bkrl,kdr->bkdl', dts, p['dt_projs_w'])
        return xs, dts, bs, cs

    def sel_scan(u, delta, bmat, cmat):
        delta = jax.nn.softplus(delta + p['dt_projs_b'][None, :, :, None])

        def step(hc, inp):
            u_l, d_l, b_l, c_l = inp
            da = jnp.exp(d_l[..., None] * a_kdn[None])
            hc = da * hc + d_l[..., None] * u_l[..., None] * b_l[:, :, None, :]
            return hc, jnp.einsum('bkdn,bkn->bkd', hc, c_l)

        h0 = jnp.zeros((b, k_grp, dinr, n_state), jnp.float32)
        seq = (jnp.moveaxis(u, -1, 0), jnp.moveaxis(delta, -1, 0),
               jnp.moveaxis(bmat, -1, 0), jnp.moveaxis(cmat, -1, 0))
        _, ys = jax.lax.scan(step, h0, seq)
        ys = jnp.moveaxis(ys, 0, -1)
        return ys + u * d_kd[None, :, :, None]

    def branch_out(ys):
        y = _cross_merge(ys, h, w)
        y = jnp.transpose(y, (0, 2, 1)).reshape(b, h, w, dinr)
        return ln(y, p['out_norm_g'], p['out_norm_b'])

    xsf, dtsf, bsf, csf = branch(uf)
    y_fuse = branch_out(sel_scan(xsf, dtsf, bsf, csf))
    xs1, dts1, bs1, _ = branch(u1)
    y = branch_out(sel_scan(xs1, dts1, bs1, csf))
    xs2, dts2, bs2, _ = branch(u2)
    y_2 = branch_out(sel_scan(xs2, dts2, bs2, csf))

    fused = y * z + y_2 * z + y_fuse * z
    out = fused @ jnp.transpose(p['out_proj_w'])
    return x1 + x2 + jnp.transpose(out, (0, 3, 1, 2))


# ----------------------------------------------------------------------------
if __name__ == "__main__":
    B, C, H, W = 2, 32, 8, 8          # hidden_dim=32, small spatial
    d_state = 16
    d_inner = int(2.0 * C)            # ssm_ratio=2.0
    dt_rank = int(math.ceil(C / 16))  # 'auto'
    K = 4

    key = jax.random.PRNGKey(0)
    ks = jax.random.split(key, 16)
    x1 = jax.random.normal(ks[0], (B, C, H, W), dtype=jnp.float32)
    x2 = jax.random.normal(ks[1], (B, C, H, W), dtype=jnp.float32)

    params = {
        'norm_g': 1.0 + 0.02 * jax.random.normal(ks[2], (C,), jnp.float32),
        'norm_b': 0.02 * jax.random.normal(ks[3], (C,), jnp.float32),
        'in_proj_w': 0.2 * jax.random.normal(ks[4], (d_inner, C), jnp.float32),
        'conv_w': 0.2 * jax.random.normal(ks[5], (d_inner, 1, 3, 3), jnp.float32),
        'conv_b': 0.05 * jax.random.normal(ks[6], (d_inner,), jnp.float32),
        'x_proj_w': 0.2 * jax.random.normal(
            ks[7], (K, dt_rank + 2 * d_state, d_inner), jnp.float32),
        'dt_projs_w': 0.2 * jax.random.normal(
            ks[8], (K, d_inner, dt_rank), jnp.float32),
        'dt_projs_b': 0.1 * jax.random.normal(ks[9], (K, d_inner), jnp.float32),
        'A_logs': jnp.log(jnp.tile(
            jnp.arange(1, d_state + 1, dtype=jnp.float32)[None, :],
            (K * d_inner, 1))),
        'Ds': jnp.ones((K * d_inner,), jnp.float32),
        'out_norm_g': 1.0 + 0.02 * jax.random.normal(ks[10], (d_inner,), jnp.float32),
        'out_norm_b': 0.02 * jax.random.normal(ks[11], (d_inner,), jnp.float32),
        'out_proj_w': 0.2 * jax.random.normal(ks[12], (C, d_inner), jnp.float32),
    }

    # Force full-f32 matmuls on both paths so the comparison is meaningful.
    with jax.default_matmul_precision("float32"):
        out = jax.block_until_ready(jax.jit(cssf_vss_layer_forward)(x1, x2, params))
        ref = jax.block_until_ready(jax.jit(_reference)(x1, x2, params))

    assert out.shape == (B, C, H, W), out.shape
    # Tolerance covers MXU f32-emulation / accumulation-order differences
    # between Mosaic kernels and XLA; semantic errors are orders larger.
    err = float(jnp.max(jnp.abs(out - ref)))
    assert err < 3e-2, err
    print("KERNEL_OK")
</pallas_src>

<mosaic_0001>
module attributes {stable_mosaic.version = 11 : i64} {
  func.func @_norm_inproj_kernel(%arg0: i32, %arg1: memref<128x32xf32, #tpu.memory_space<vmem>>, %arg2: memref<128x32xf32, #tpu.memory_space<vmem>>, %arg3: memref<1x32xf32, #tpu.memory_space<vmem>>, %arg4: memref<1x32xf32, #tpu.memory_space<vmem>>, %arg5: memref<32x64xf32, #tpu.memory_space<vmem>>, %arg6: memref<128x64xf32, #tpu.memory_space<vmem>>, %arg7: memref<128x64xf32, #tpu.memory_space<vmem>>, %arg8: memref<128x64xf32, #tpu.memory_space<vmem>>, %arg9: memref<128x64xf32, #tpu.memory_space<vmem>>) attributes {dimension_semantics = [#tpu.dimension_semantics<parallel>], iteration_bounds = array<i64: 1>, scalar_prefetch = 0 : i64, scratch_operands = 0 : i64, tpu.core_type = #tpu.core_type<tc>, window_params = [{transform_indices = @transform_0, window_bounds = array<i64: 128, 32>}, {transform_indices = @transform_1, window_bounds = array<i64: 128, 32>}, {pipeline_mode = #tpu.pipeline_mode<synchronous>, transform_indices = @transform_2, window_bounds = array<i64: 1, 32>}, {pipeline_mode = #tpu.pipeline_mode<synchronous>, transform_indices = @transform_3, window_bounds = array<i64: 1, 32>}, {pipeline_mode = #tpu.pipeline_mode<synchronous>, transform_indices = @transform_4, window_bounds = array<i64: 32, 64>}, {transform_indices = @transform_5, window_bounds = array<i64: 128, 64>}, {transform_indices = @transform_6, window_bounds = array<i64: 128, 64>}, {transform_indices = @transform_7, window_bounds = array<i64: 128, 64>}, {transform_indices = @transform_8, window_bounds = array<i64: 128, 64>}]} {
    %c0 = arith.constant 0 : index
    %c0_0 = arith.constant 0 : index
    %0 = vector.load %arg3[%c0, %c0_0] : memref<1x32xf32, #tpu.memory_space<vmem>>, vector<1x32xf32>
    %c0_1 = arith.constant 0 : index
    %c0_2 = arith.constant 0 : index
    %1 = vector.load %arg4[%c0_1, %c0_2] : memref<1x32xf32, #tpu.memory_space<vmem>>, vector<1x32xf32>
    %c0_3 = arith.constant 0 : index
    %c0_4 = arith.constant 0 : index
    %2 = vector.load %arg5[%c0_3, %c0_4] : memref<32x64xf32, #tpu.memory_space<vmem>>, vector<32x64xf32>
    %c0_5 = arith.constant 0 : index
    %c0_6 = arith.constant 0 : index
    %3 = vector.load %arg1[%c0_5, %c0_6] : memref<128x32xf32, #tpu.memory_space<vmem>>, vector<128x32xf32>
    %cst = arith.constant dense<0.000000e+00> : vector<128xf32>
    %4 = vector.multi_reduction <add>, %3, %cst [1] : vector<128x32xf32> to vector<128xf32>
    %5 = vector.shape_cast %4 : vector<128xf32> to vector<128x1xf32>
    %cst_7 = arith.constant 3.200000e+01 : f32
    %6 = vector.broadcast %cst_7 : f32 to vector<128x1xf32>
    %7 = arith.divf %5, %6 : vector<128x1xf32>
    %8 = vector.broadcast %7 : vector<128x1xf32> to vector<128x32xf32>
    %9 = arith.subf %3, %8 : vector<128x32xf32>
    %10 = arith.mulf %9, %9 : vector<128x32xf32>
    %cst_8 = arith.constant dense<0.000000e+00> : vector<128xf32>
    %11 = vector.multi_reduction <add>, %10, %cst_8 [1] : vector<128x32xf32> to vector<128xf32>
    %12 = vector.shape_cast %11 : vector<128xf32> to vector<128x1xf32>
    %cst_9 = arith.constant 3.200000e+01 : f32
    %13 = vector.broadcast %cst_9 : f32 to vector<128x1xf32>
    %14 = arith.divf %12, %13 : vector<128x1xf32>
    %cst_10 = arith.constant 9.99999974E-6 : f32
    %15 = vector.broadcast %cst_10 : f32 to vector<128x1xf32>
    %16 = arith.addf %14, %15 : vector<128x1xf32>
    %17 = math.rsqrt %16 : vector<128x1xf32>
    %18 = vector.broadcast %17 : vector<128x1xf32> to vector<128x32xf32>
    %19 = arith.mulf %9, %18 : vector<128x32xf32>
    %20 = vector.broadcast %0 : vector<1x32xf32> to vector<128x32xf32>
    %21 = arith.mulf %19, %20 : vector<128x32xf32>
    %22 = vector.broadcast %1 : vector<1x32xf32> to vector<128x32xf32>
    %23 = arith.addf %21, %22 : vector<128x32xf32>
    %c0_11 = arith.constant 0 : index
    %c0_12 = arith.constant 0 : index
    %24 = vector.load %arg2[%c0_11, %c0_12] : memref<128x32xf32, #tpu.memory_space<vmem>>, vector<128x32xf32>
    %cst_13 = arith.constant dense<0.000000e+00> : vector<128xf32>
    %25 = vector.multi_reduction <add>, %24, %cst_13 [1] : vector<128x32xf32> to vector<128xf32>
    %26 = vector.shape_cast %25 : vector<128xf32> to vector<128x1xf32>
    %cst_14 = arith.constant 3.200000e+01 : f32
    %27 = vector.broadcast %cst_14 : f32 to vector<128x1xf32>
    %28 = arith.divf %26, %27 : vector<128x1xf32>
    %29 = vector.broadcast %28 : vector<128x1xf32> to vector<128x32xf32>
    %30 = arith.subf %24, %29 : vector<128x32xf32>
    %31 = arith.mulf %30, %30 : vector<128x32xf32>
    %cst_15 = arith.constant dense<0.000000e+00> : vector<128xf32>
    %32 = vector.multi_reduction <add>, %31, %cst_15 [1] : vector<128x32xf32> to vector<128xf32>
    %33 = vector.shape_cast %32 : vector<128xf32> to vector<128x1xf32>
    %cst_16 = arith.constant 3.200000e+01 : f32
    %34 = vector.broadcast %cst_16 : f32 to vector<128x1xf32>
    %35 = arith.divf %33, %34 : vector<128x1xf32>
    %cst_17 = arith.constant 9.99999974E-6 : f32
    %36 = vector.broadcast %cst_17 : f32 to vector<128x1xf32>
    %37 = arith.addf %35, %36 : vector<128x1xf32>
    %38 = math.rsqrt %37 : vector<128x1xf32>
    %39 = vector.broadcast %38 : vector<128x1xf32> to vector<128x32xf32>
    %40 = arith.mulf %30, %39 : vector<128x32xf32>
    %41 = vector.broadcast %0 : vector<1x32xf32> to vector<128x32xf32>
    %42 = arith.mulf %40, %41 : vector<128x32xf32>
    %43 = vector.broadcast %1 : vector<1x32xf32> to vector<128x32xf32>
    %44 = arith.addf %42, %43 : vector<128x32xf32>
    %45 = arith.addf %23, %44 : vector<128x32xf32>
    %cst_18 = arith.constant 5.000000e-01 : f32
    %46 = vector.broadcast %cst_18 : f32 to vector<128x32xf32>
    %47 = arith.mulf %45, %46 : vector<128x32xf32>
    %cst_19 = arith.constant dense<0.000000e+00> : vector<128x64xf32>
    %48 = tpu.matmul %23, %2, %cst_19 {dimension_numbers = #tpu.dot_dimension_numbers<[1], [0], [0], [1], [0, 0, 1, 1], [], []>, precision = #tpu.contract_precision<fp32>} : vector<128x32xf32>, vector<32x64xf32>, vector<128x64xf32> -> vector<128x64xf32>
    %cst_20 = arith.constant dense<0.000000e+00> : vector<128x64xf32>
    %49 = tpu.matmul %44, %2, %cst_20 {dimension_numbers = #tpu.dot_dimension_numbers<[1], [0], [0], [1], [0, 0, 1, 1], [], []>, precision = #tpu.contract_precision<fp32>} : vector<128x32xf32>, vector<32x64xf32>, vector<128x64xf32> -> vector<128x64xf32>
    %cst_21 = arith.constant dense<0.000000e+00> : vector<128x64xf32>
    %50 = tpu.matmul %47, %2, %cst_21 {dimension_numbers = #tpu.dot_dimension_numbers<[1], [0], [0], [1], [0, 0, 1, 1], [], []>, precision = #tpu.contract_precision<fp32>} : vector<128x32xf32>, vector<32x64xf32>, vector<128x64xf32> -> vector<128x64xf32>
    %c0_22 = arith.constant 0 : index
    %c0_23 = arith.constant 0 : index
    %51 = vector.load %arg6[%c0_22, %c0_23] : memref<128x64xf32, #tpu.memory_space<vmem>>, vector<128x64xf32>
    tpu.vector_store %arg6[%c0_22, %c0_23], %48 {strides = array<i32>} : memref<128x64xf32, #tpu.memory_space<vmem>>, vector<128x64xf32>,
    %c0_24 = arith.constant 0 : index
    %c0_25 = arith.constant 0 : index
    %52 = vector.load %arg7[%c0_24, %c0_25] : memref<128x64xf32, #tpu.memory_space<vmem>>, vector<128x64xf32>
    tpu.vector_store %arg7[%c0_24, %c0_25], %49 {strides = array<i32>} : memref<128x64xf32, #tpu.memory_space<vmem>>, vector<128x64xf32>,
    %c0_26 = arith.constant 0 : index
    %c0_27 = arith.constant 0 : index
    %53 = vector.load %arg8[%c0_26, %c0_27] : memref<128x64xf32, #tpu.memory_space<vmem>>, vector<128x64xf32>
    tpu.vector_store %arg8[%c0_26, %c0_27], %50 {strides = array<i32>} : memref<128x64xf32, #tpu.memory_space<vmem>>, vector<128x64xf32>,
    %cst_28 = arith.constant 0.000000e+00 : f32
    %54 = vector.broadcast %cst_28 : f32 to vector<128x64xf32>
    %55 = arith.subf %54, %50 : vector<128x64xf32>
    %56 = math.exp %55 : vector<128x64xf32>
    %cst_29 = arith.constant 1.000000e+00 : f32
    %57 = vector.broadcast %cst_29 : f32 to vector<128x64xf32>
    %58 = arith.addf %57, %56 : vector<128x64xf32>
    %cst_30 = arith.constant 1.000000e+00 : f32
    %59 = vector.broadcast %cst_30 : f32 to vector<128x64xf32>
    %60 = arith.divf %59, %58 : vector<128x64xf32>
    %61 = arith.mulf %50, %60 : vector<128x64xf32>
    %c0_31 = arith.constant 0 : index
    %c0_32 = arith.constant 0 : index
    %62 = vector.load %arg9[%c0_31, %c0_32] : memref<128x64xf32, #tpu.memory_space<vmem>>, vector<128x64xf32>
    tpu.vector_store %arg9[%c0_31, %c0_32], %61 {strides = array<i32>} : memref<128x64xf32, #tpu.memory_space<vmem>>, vector<128x64xf32>,
    return
  }
  func.func @transform_0(%arg0: i32) -> (i32, i32) {
    %c0_i32 = arith.constant 0 : i32
    %c0_i32_0 = arith.constant 0 : i32
    return %arg0, %c0_i32 : i32, i32
  }
  func.func @transform_1(%arg0: i32) -> (i32, i32) {
    %c0_i32 = arith.constant 0 : i32
    %c0_i32_0 = arith.constant 0 : i32
    return %arg0, %c0_i32 : i32, i32
  }
  func.func @transform_2(%arg0: i32) -> (i32, i32) {
    %c0_i32 = arith.constant 0 : i32
    %c0_i32_0 = arith.constant 0 : i32
    %c0_i32_1 = arith.constant 0 : i32
    return %c0_i32, %c0_i32_0 : i32, i32
  }
  func.func @transform_3(%arg0: i32) -> (i32, i32) {
    %c0_i32 = arith.constant 0 : i32
    %c0_i32_0 = arith.constant 0 : i32
    %c0_i32_1 = arith.constant 0 : i32
    return %c0_i32, %c0_i32_0 : i32, i32
  }
  func.func @transform_4(%arg0: i32) -> (i32, i32) {
    %c0_i32 = arith.constant 0 : i32
    %c0_i32_0 = arith.constant 0 : i32
    %c0_i32_1 = arith.constant 0 : i32
    return %c0_i32, %c0_i32_0 : i32, i32
  }
  func.func @transform_5(%arg0: i32) -> (i32, i32) {
    %c0_i32 = arith.constant 0 : i32
    %c0_i32_0 = arith.constant 0 : i32
    return %arg0, %c0_i32 : i32, i32
  }
  func.func @transform_6(%arg0: i32) -> (i32, i32) {
    %c0_i32 = arith.constant 0 : i32
    %c0_i32_0 = arith.constant 0 : i32
    return %arg0, %c0_i32 : i32, i32
  }
  func.func @transform_7(%arg0: i32) -> (i32, i32) {
    %c0_i32 = arith.constant 0 : i32
    %c0_i32_0 = arith.constant 0 : i32
    return %arg0, %c0_i32 : i32, i32
  }
  func.func @transform_8(%arg0: i32) -> (i32, i32) {
    %c0_i32 = arith.constant 0 : i32
    %c0_i32_0 = arith.constant 0 : i32
    return %arg0, %c0_i32 : i32, i32
  }
}

module attributes {stable_mosaic.version = 11 : i64} {
  func.func @_selective_scan_kernel(%arg0: i32, %arg1: i32, %arg2: memref<1x1x64x64xf32, #tpu.memory_space<vmem>>, %arg3: memref<1x1x64x64xf32, #tpu.memory_space<vmem>>, %arg4: memref<1x16x64xf32, #tpu.memory_space<vmem>>, %arg5: memref<1x1x1024x1xf32, #tpu.memory_space<vmem>>, %arg6: memref<1x1x1024x1xf32, #tpu.memory_space<vmem>>, %arg7: memref<1x1x64xf32, #tpu.memory_space<vmem>>, %arg8: memref<1x1x64xf32, #tpu.memory_space<vmem>>, %arg9: memref<1x1x64x64xf32, #tpu.memory_space<vmem>>) attributes {dimension_semantics = [#tpu.dimension_semantics<parallel>, #tpu.dimension_semantics<parallel>], iteration_bounds = array<i64: 6, 4>, scalar_prefetch = 0 : i64, scratch_operands = 0 : i64, tpu.core_type = #tpu.core_type<tc>, window_params = [{transform_indices = @transform_0, window_bounds = array<i64: 1, 1, 64, 64>}, {transform_indices = @transform_1, window_bounds = array<i64: 1, 1, 64, 64>}, {transform_indices = @transform_2, window_bounds = array<i64: 1, 16, 64>}, {transform_indices = @transform_3, window_bounds = array<i64: 1, 1, 1024, 1>}, {transform_indices = @transform_4, window_bounds = array<i64: 1, 1, 1024, 1>}, {transform_indices = @transform_5, window_bounds = array<i64: 1, 1, 64>}, {transform_indices = @transform_6, window_bounds = array<i64: 1, 1, 64>}, {transform_indices = @transform_7, window_bounds = array<i64: 1, 1, 64, 64>}]} {
    %c0 = arith.constant 0 : index
    %c0_0 = arith.constant 0 : index
    %c0_1 = arith.constant 0 : index
    %0 = vector.load %arg4[%c0, %c0_0, %c0_1] : memref<1x16x64xf32, #tpu.memory_space<vmem>>, vector<1x16x64xf32>
    %1 = vector.shape_cast %0 : vector<1x16x64xf32> to vector<16x64xf32>
    %c0_2 = arith.constant 0 : index
    %c0_3 = arith.constant 0 : index
    %c0_4 = arith.constant 0 : index
    %2 = vector.load %arg7[%c0_2, %c0_3, %c0_4] : memref<1x1x64xf32, #tpu.memory_space<vmem>>, vector<1x1x64xf32>
    %3 = vector.shape_cast %2 : vector<1x1x64xf32> to vector<1x64xf32>
    %c0_5 = arith.constant 0 : index
    %c0_6 = arith.constant 0 : index
    %c0_7 = arith.constant 0 : index
    %4 = vector.load %arg8[%c0_5, %c0_6, %c0_7] : memref<1x1x64xf32, #tpu.memory_space<vmem>>, vector<1x1x64xf32>
    %5 = vector.shape_cast %4 : vector<1x1x64xf32> to vector<1x64xf32>
    %cst = arith.constant 0.000000e+00 : f32
    %6 = vector.broadcast %cst : f32 to vector<16x64xf32>
    %c0_i32 = arith.constant 0 : i32
    %c64_i32 = arith.constant 64 : i32
    %7 = arith.addi %c0_i32, %c64_i32 : i32
    %c1_i32 = arith.constant 1 : i32
    %8 = scf.for %arg10 = %c0_i32 to %7 step %c1_i32 iter_args(%arg11 = %6) -> (vector<16x64xf32>)  : i32 {
      %c0_9 = arith.constant 0 : index
      %c0_10 = arith.constant 0 : index
      %9 = arith.index_cast %arg10 : i32 to index
      %c0_11 = arith.constant 0 : index
      %10 = vector.load %arg3[%c0_9, %c0_10, %9, %c0_11] : memref<1x1x64x64xf32, #tpu.memory_space<vmem>>, vector<1x1x1x64xf32>
      %11 = vector.shape_cast %10 : vector<1x1x1x64xf32> to vector<1x64xf32>
      %12 = arith.addf %11, %5 : vector<1x64xf32>
      %cst_12 = arith.constant 2.000000e+01 : f32
      %13 = vector.broadcast %cst_12 : f32 to vector<1x64xf32>
      %14 = arith.cmpf ogt, %12, %13 : vector<1x64xf32>
      %15 = math.exp %12 : vector<1x64xf32>
      %cst_13 = arith.constant 1.000000e+00 : f32
      %16 = vector.broadcast %cst_13 : f32 to vector<1x64xf32>
      %17 = arith.addf %16, %15 : vector<1x64xf32>
      %18 = math.log %17 : vector<1x64xf32>
      %19 = arith.select %14, %12, %18 : vector<1x64xi1>, vector<1x64xf32>
      %c0_14 = arith.constant 0 : index
      %c0_15 = arith.constant 0 : index
      %20 = arith.index_cast %arg10 : i32 to index
      %c0_16 = arith.constant 0 : index
      %21 = vector.load %arg2[%c0_14, %c0_15, %20, %c0_16] : memref<1x1x64x64xf32, #tpu.memory_space<vmem>>, vector<1x1x1x64xf32>
      %22 = vector.shape_cast %21 : vector<1x1x1x64xf32> to vector<1x64xf32>
      %c16_i32 = arith.constant 16 : i32
      %23 = arith.muli %arg10, %c16_i32 : i32
      %24 = tpu.assume_multiple %23, 16 : i32
      %c0_17 = arith.constant 0 : index
      %c0_18 = arith.constant 0 : index
      %25 = arith.index_cast %24 : i32 to index
      %c0_19 = arith.constant 0 : index
      %26 = vector.load %arg5[%c0_17, %c0_18, %25, %c0_19] : memref<1x1x1024x1xf32, #tpu.memory_space<vmem>>, vector<1x1x16x1xf32>
      %27 = vector.shape_cast %26 : vector<1x1x16x1xf32> to vector<16x1xf32>
      %c0_20 = arith.constant 0 : index
      %c0_21 = arith.constant 0 : index
      %28 = arith.index_cast %24 : i32 to index
      %c0_22 = arith.constant 0 : index
      %29 = vector.load %arg6[%c0_20, %c0_21, %28, %c0_22] : memref<1x1x1024x1xf32, #tpu.memory_space<vmem>>, vector<1x1x16x1xf32>
      %30 = vector.shape_cast %29 : vector<1x1x16x1xf32> to vector<16x1xf32>
      %31 = vector.broadcast %19 : vector<1x64xf32> to vector<16x64xf32>
      %32 = arith.mulf %31, %1 : vector<16x64xf32>
      %33 = math.exp %32 : vector<16x64xf32>
      %34 = arith.mulf %33, %arg11 : vector<16x64xf32>
      %35 = arith.mulf %19, %22 : vector<1x64xf32>
      %36 = vector.broadcast %27 : vector<16x1xf32> to vector<16x64xf32>
      %37 = vector.broadcast %35 : vector<1x64xf32> to vector<16x64xf32>
      %38 = arith.mulf %36, %37 : vector<16x64xf32>
      %39 = arith.addf %34, %38 : vector<16x64xf32>
      %40 = vector.broadcast %30 : vector<16x1xf32> to vector<16x64xf32>
      %41 = arith.mulf %40, %39 : vector<16x64xf32>
      %cst_23 = arith.constant dense<0.000000e+00> : vector<64xf32>
      %42 = vector.multi_reduction <add>, %41, %cst_23 [0] : vector<16x64xf32> to vector<64xf32>
      %43 = vector.shape_cast %42 : vector<64xf32> to vector<1x64xf32>
      %44 = arith.mulf %3, %22 : vector<1x64xf32>
      %45 = arith.addf %43, %44 : vector<1x64xf32>
      %c0_24 = arith.constant 0 : index
      %c0_25 = arith.constant 0 : index
      %46 = arith.index_cast %arg10 : i32 to index
      %c0_26 = arith.constant 0 : index
      %47 = vector.load %arg9[%c0_24, %c0_25, %46, %c0_26] : memref<1x1x64x64xf32, #tpu.memory_space<vmem>>, vector<1x1x1x64xf32>
      %48 = vector.shape_cast %47 : vector<1x1x1x64xf32> to vector<1x64xf32>
      %49 = vector.shape_cast %45 : vector<1x64xf32> to vector<1x1x1x64xf32>
      tpu.vector_store %arg9[%c0_24, %c0_25, %46, %c0_26], %49 {strides = array<i32>} : memref<1x1x64x64xf32, #tpu.memory_space<vmem>>, vector<1x1x1x64xf32>,
      scf.yield %39 : vector<16x64xf32>
    }
    %c64_i32_8 = arith.constant 64 : i32
    return
  }
  func.func @transform_0(%arg0: i32, %arg1: i32) -> (i32, i32, i32, i32) {
    %c0_i32 = arith.constant 0 : i32
    %c0_i32_0 = arith.constant 0 : i32
    %c0_i32_1 = arith.constant 0 : i32
    return %arg0, %arg1, %c0_i32, %c0_i32_0 : i32, i32, i32, i32
  }
  func.func @transform_1(%arg0: i32, %arg1: i32) -> (i32, i32, i32, i32) {
    %c0_i32 = arith.constant 0 : i32
    %c0_i32_0 = arith.constant 0 : i32
    %c0_i32_1 = arith.constant 0 : i32
    return %arg0, %arg1, %c0_i32, %c0_i32_0 : i32, i32, i32, i32
  }
  func.func @transform_2(%arg0: i32, %arg1: i32) -> (i32, i32, i32) {
    %c0_i32 = arith.constant 0 : i32
    %c0_i32_0 = arith.constant 0 : i32
    %c0_i32_1 = arith.constant 0 : i32
    return %arg1, %c0_i32, %c0_i32_0 : i32, i32, i32
  }
  func.func @transform_3(%arg0: i32, %arg1: i32) -> (i32, i32, i32, i32) {
    %c0_i32 = arith.constant 0 : i32
    %c0_i32_0 = arith.constant 0 : i32
    %c0_i32_1 = arith.constant 0 : i32
    return %arg0, %arg1, %c0_i32, %c0_i32_0 : i32, i32, i32, i32
  }
  func.func @transform_4(%arg0: i32, %arg1: i32) -> (i32, i32, i32, i32) {
    %c0_i32 = arith.constant 0 : i32
    %c0_i32_0 = arith.constant 0 : i32
    %c0_i32_1 = arith.constant 0 : i32
    return %arg0, %arg1, %c0_i32, %c0_i32_0 : i32, i32, i32, i32
  }
  func.func @transform_5(%arg0: i32, %arg1: i32) -> (i32, i32, i32) {
    %c0_i32 = arith.constant 0 : i32
    %c0_i32_0 = arith.constant 0 : i32
    %c0_i32_1 = arith.constant 0 : i32
    return %arg1, %c0_i32, %c0_i32_0 : i32, i32, i32
  }
  func.func @transform_6(%arg0: i32, %arg1: i32) -> (i32, i32, i32) {
    %c0_i32 = arith.constant 0 : i32
    %c0_i32_0 = arith.constant 0 : i32
    %c0_i32_1 = arith.constant 0 : i32
    return %arg1, %c0_i32, %c0_i32_0 : i32, i32, i32
  }
  func.func @transform_7(%arg0: i32, %arg1: i32) -> (i32, i32, i32, i32) {
    %c0_i32 = arith.constant 0 : i32
    %c0_i32_0 = arith.constant 0 : i32
    %c0_i32_1 = arith.constant 0 : i32
    return %arg0, %arg1, %c0_i32, %c0_i32_0 : i32, i32, i32, i32
  }
}

module attributes {stable_mosaic.version = 11 : i64} {
  func.func @_out_fuse_kernel(%arg0: i32, %arg1: memref<128x64xf32, #tpu.memory_space<vmem>>, %arg2: memref<128x64xf32, #tpu.memory_space<vmem>>, %arg3: memref<128x64xf32, #tpu.memory_space<vmem>>, %arg4: memref<128x64xf32, #tpu.memory_space<vmem>>, %arg5: memref<1x64xf32, #tpu.memory_space<vmem>>, %arg6: memref<1x64xf32, #tpu.memory_space<vmem>>, %arg7: memref<64x32xf32, #tpu.memory_space<vmem>>, %arg8: memref<128x32xf32, #tpu.memory_space<vmem>>, %arg9: memref<128x32xf32, #tpu.memory_space<vmem>>, %arg10: memref<128x32xf32, #tpu.memory_space<vmem>>) attributes {dimension_semantics = [#tpu.dimension_semantics<parallel>], iteration_bounds = array<i64: 1>, scalar_prefetch = 0 : i64, scratch_operands = 0 : i64, tpu.core_type = #tpu.core_type<tc>, window_params = [{transform_indices = @transform_0, window_bounds = array<i64: 128, 64>}, {transform_indices = @transform_1, window_bounds = array<i64: 128, 64>}, {transform_indices = @transform_2, window_bounds = array<i64: 128, 64>}, {transform_indices = @transform_3, window_bounds = array<i64: 128, 64>}, {pipeline_mode = #tpu.pipeline_mode<synchronous>, transform_indices = @transform_4, window_bounds = array<i64: 1, 64>}, {pipeline_mode = #tpu.pipeline_mode<synchronous>, transform_indices = @transform_5, window_bounds = array<i64: 1, 64>}, {pipeline_mode = #tpu.pipeline_mode<synchronous>, transform_indices = @transform_6, window_bounds = array<i64: 64, 32>}, {transform_indices = @transform_7, window_bounds = array<i64: 128, 32>}, {transform_indices = @transform_8, window_bounds = array<i64: 128, 32>}, {transform_indices = @transform_9, window_bounds = array<i64: 128, 32>}]} {
    %c0 = arith.constant 0 : index
    %c0_0 = arith.constant 0 : index
    %0 = vector.load %arg5[%c0, %c0_0] : memref<1x64xf32, #tpu.memory_space<vmem>>, vector<1x64xf32>
    %c0_1 = arith.constant 0 : index
    %c0_2 = arith.constant 0 : index
    %1 = vector.load %arg6[%c0_1, %c0_2] : memref<1x64xf32, #tpu.memory_space<vmem>>, vector<1x64xf32>
    %c0_3 = arith.constant 0 : index
    %c0_4 = arith.constant 0 : index
    %2 = vector.load %arg4[%c0_3, %c0_4] : memref<128x64xf32, #tpu.memory_space<vmem>>, vector<128x64xf32>
    %c0_5 = arith.constant 0 : index
    %c0_6 = arith.constant 0 : index
    %3 = vector.load %arg1[%c0_5, %c0_6] : memref<128x64xf32, #tpu.memory_space<vmem>>, vector<128x64xf32>
    %cst = arith.constant dense<0.000000e+00> : vector<128xf32>
    %4 = vector.multi_reduction <add>, %3, %cst [1] : vector<128x64xf32> to vector<128xf32>
    %5 = vector.shape_cast %4 : vector<128xf32> to vector<128x1xf32>
    %cst_7 = arith.constant 6.400000e+01 : f32
    %6 = vector.broadcast %cst_7 : f32 to vector<128x1xf32>
    %7 = arith.divf %5, %6 : vector<128x1xf32>
    %8 = vector.broadcast %7 : vector<128x1xf32> to vector<128x64xf32>
    %9 = arith.subf %3, %8 : vector<128x64xf32>
    %10 = arith.mulf %9, %9 : vector<128x64xf32>
    %cst_8 = arith.constant dense<0.000000e+00> : vector<128xf32>
    %11 = vector.multi_reduction <add>, %10, %cst_8 [1] : vector<128x64xf32> to vector<128xf32>
    %12 = vector.shape_cast %11 : vector<128xf32> to vector<128x1xf32>
    %cst_9 = arith.constant 6.400000e+01 : f32
    %13 = vector.broadcast %cst_9 : f32 to vector<128x1xf32>
    %14 = arith.divf %12, %13 : vector<128x1xf32>
    %cst_10 = arith.constant 9.99999974E-6 : f32
    %15 = vector.broadcast %cst_10 : f32 to vector<128x1xf32>
    %16 = arith.addf %14, %15 : vector<128x1xf32>
    %17 = math.rsqrt %16 : vector<128x1xf32>
    %18 = vector.broadcast %17 : vector<128x1xf32> to vector<128x64xf32>
    %19 = arith.mulf %9, %18 : vector<128x64xf32>
    %20 = vector.broadcast %0 : vector<1x64xf32> to vector<128x64xf32>
    %21 = arith.mulf %19, %20 : vector<128x64xf32>
    %22 = vector.broadcast %1 : vector<1x64xf32> to vector<128x64xf32>
    %23 = arith.addf %21, %22 : vector<128x64xf32>
    %24 = arith.mulf %23, %2 : vector<128x64xf32>
    %c0_11 = arith.constant 0 : index
    %c0_12 = arith.constant 0 : index
    %25 = vector.load %arg2[%c0_11, %c0_12] : memref<128x64xf32, #tpu.memory_space<vmem>>, vector<128x64xf32>
    %cst_13 = arith.constant dense<0.000000e+00> : vector<128xf32>
    %26 = vector.multi_reduction <add>, %25, %cst_13 [1] : vector<128x64xf32> to vector<128xf32>
    %27 = vector.shape_cast %26 : vector<128xf32> to vector<128x1xf32>
    %cst_14 = arith.constant 6.400000e+01 : f32
    %28 = vector.broadcast %cst_14 : f32 to vector<128x1xf32>
    %29 = arith.divf %27, %28 : vector<128x1xf32>
    %30 = vector.broadcast %29 : vector<128x1xf32> to vector<128x64xf32>
    %31 = arith.subf %25, %30 : vector<128x64xf32>
    %32 = arith.mulf %31, %31 : vector<128x64xf32>
    %cst_15 = arith.constant dense<0.000000e+00> : vector<128xf32>
    %33 = vector.multi_reduction <add>, %32, %cst_15 [1] : vector<128x64xf32> to vector<128xf32>
    %34 = vector.shape_cast %33 : vector<128xf32> to vector<128x1xf32>
    %cst_16 = arith.constant 6.400000e+01 : f32
    %35 = vector.broadcast %cst_16 : f32 to vector<128x1xf32>
    %36 = arith.divf %34, %35 : vector<128x1xf32>
    %cst_17 = arith.constant 9.99999974E-6 : f32
    %37 = vector.broadcast %cst_17 : f32 to vector<128x1xf32>
    %38 = arith.addf %36, %37 : vector<128x1xf32>
    %39 = math.rsqrt %38 : vector<128x1xf32>
    %40 = vector.broadcast %39 : vector<128x1xf32> to vector<128x64xf32>
    %41 = arith.mulf %31, %40 : vector<128x64xf32>
    %42 = vector.broadcast %0 : vector<1x64xf32> to vector<128x64xf32>
    %43 = arith.mulf %41, %42 : vector<128x64xf32>
    %44 = vector.broadcast %1 : vector<1x64xf32> to vector<128x64xf32>
    %45 = arith.addf %43, %44 : vector<128x64xf32>
    %46 = arith.mulf %45, %2 : vector<128x64xf32>
    %47 = arith.addf %24, %46 : vector<128x64xf32>
    %c0_18 = arith.constant 0 : index
    %c0_19 = arith.constant 0 : index
    %48 = vector.load %arg3[%c0_18, %c0_19] : memref<128x64xf32, #tpu.memory_space<vmem>>, vector<128x64xf32>
    %cst_20 = arith.constant dense<0.000000e+00> : vector<128xf32>
    %49 = vector.multi_reduction <add>, %48, %cst_20 [1] : vector<128x64xf32> to vector<128xf32>
    %50 = vector.shape_cast %49 : vector<128xf32> to vector<128x1xf32>
    %cst_21 = arith.constant 6.400000e+01 : f32
    %51 = vector.broadcast %cst_21 : f32 to vector<128x1xf32>
    %52 = arith.divf %50, %51 : vector<128x1xf32>
    %53 = vector.broadcast %52 : vector<128x1xf32> to vector<128x64xf32>
    %54 = arith.subf %48, %53 : vector<128x64xf32>
    %55 = arith.mulf %54, %54 : vector<128x64xf32>
    %cst_22 = arith.constant dense<0.000000e+00> : vector<128xf32>
    %56 = vector.multi_reduction <add>, %55, %cst_22 [1] : vector<128x64xf32> to vector<128xf32>
    %57 = vector.shape_cast %56 : vector<128xf32> to vector<128x1xf32>
    %cst_23 = arith.constant 6.400000e+01 : f32
    %58 = vector.broadcast %cst_23 : f32 to vector<128x1xf32>
    %59 = arith.divf %57, %58 : vector<128x1xf32>
    %cst_24 = arith.constant 9.99999974E-6 : f32
    %60 = vector.broadcast %cst_24 : f32 to vector<128x1xf32>
    %61 = arith.addf %59, %60 : vector<128x1xf32>
    %62 = math.rsqrt %61 : vector<128x1xf32>
    %63 = vector.broadcast %62 : vector<128x1xf32> to vector<128x64xf32>
    %64 = arith.mulf %54, %63 : vector<128x64xf32>
    %65 = vector.broadcast %0 : vector<1x64xf32> to vector<128x64xf32>
    %66 = arith.mulf %64, %65 : vector<128x64xf32>
    %67 = vector.broadcast %1 : vector<1x64xf32> to vector<128x64xf32>
    %68 = arith.addf %66, %67 : vector<128x64xf32>
    %69 = arith.mulf %68, %2 : vector<128x64xf32>
    %70 = arith.addf %47, %69 : vector<128x64xf32>
    %c0_25 = arith.constant 0 : index
    %c0_26 = arith.constant 0 : index
    %71 = vector.load %arg7[%c0_25, %c0_26] : memref<64x32xf32, #tpu.memory_space<vmem>>, vector<64x32xf32>
    %cst_27 = arith.constant dense<0.000000e+00> : vector<128x32xf32>
    %72 = tpu.matmul %70, %71, %cst_27 {dimension_numbers = #tpu.dot_dimension_numbers<[1], [0], [0], [1], [0, 0, 1, 1], [], []>, precision = #tpu.contract_precision<fp32>} : vector<128x64xf32>, vector<64x32xf32>, vector<128x32xf32> -> vector<128x32xf32>
    %c0_28 = arith.constant 0 : index
    %c0_29 = arith.constant 0 : index
    %73 = vector.load %arg8[%c0_28, %c0_29] : memref<128x32xf32, #tpu.memory_space<vmem>>, vector<128x32xf32>
    %c0_30 = arith.constant 0 : index
    %c0_31 = arith.constant 0 : index
    %74 = vector.load %arg9[%c0_30, %c0_31] : memref<128x32xf32, #tpu.memory_space<vmem>>, vector<128x32xf32>
    %75 = arith.addf %73, %74 : vector<128x32xf32>
    %76 = arith.addf %75, %72 : vector<128x32xf32>
    %c0_32 = arith.constant 0 : index
    %c0_33 = arith.constant 0 : index
    %77 = vector.load %arg10[%c0_32, %c0_33] : memref<128x32xf32, #tpu.memory_space<vmem>>, vector<128x32xf32>
    tpu.vector_store %arg10[%c0_32, %c0_33], %76 {strides = array<i32>} : memref<128x32xf32, #tpu.memory_space<vmem>>, vector<128x32xf32>,
    return
  }
  func.func @transform_0(%arg0: i32) -> (i32, i32) {
    %c0_i32 = arith.constant 0 : i32
    %c0_i32_0 = arith.constant 0 : i32
    return %arg0, %c0_i32 : i32, i32
  }
  func.func @transform_1(%arg0: i32) -> (i32, i32) {
    %c0_i32 = arith.constant 0 : i32
    %c0_i32_0 = arith.constant 0 : i32
    return %arg0, %c0_i32 : i32, i32
  }
  func.func @transform_2(%arg0: i32) -> (i32, i32) {
    %c0_i32 = arith.constant 0 : i32
    %c0_i32_0 = arith.constant 0 : i32
    return %arg0, %c0_i32 : i32, i32
  }
  func.func @transform_3(%arg0: i32) -> (i32, i32) {
    %c0_i32 = arith.constant 0 : i32
    %c0_i32_0 = arith.constant 0 : i32
    return %arg0, %c0_i32 : i32, i32
  }
  func.func @transform_4(%arg0: i32) -> (i32, i32) {
    %c0_i32 = arith.constant 0 : i32
    %c0_i32_0 = arith.constant 0 : i32
    %c0_i32_1 = arith.constant 0 : i32
    return %c0_i32, %c0_i32_0 : i32, i32
  }
  func.func @transform_5(%arg0: i32) -> (i32, i32) {
    %c0_i32 = arith.constant 0 : i32
    %c0_i32_0 = arith.constant 0 : i32
    %c0_i32_1 = arith.constant 0 : i32
    return %c0_i32, %c0_i32_0 : i32, i32
  }
  func.func @transform_6(%arg0: i32) -> (i32, i32) {
    %c0_i32 = arith.constant 0 : i32
    %c0_i32_0 = arith.constant 0 : i32
    %c0_i32_1 = arith.constant 0 : i32
    return %c0_i32, %c0_i32_0 : i32, i32
  }
  func.func @transform_7(%arg0: i32) -> (i32, i32) {
    %c0_i32 = arith.constant 0 : i32
    %c0_i32_0 = arith.constant 0 : i32
    return %arg0, %c0_i32 : i32, i32
  }
  func.func @transform_8(%arg0: i32) -> (i32, i32) {
    %c0_i32 = arith.constant 0 : i32
    %c0_i32_0 = arith.constant 0 : i32
    return %arg0, %c0_i32 : i32, i32
  }
  func.func @transform_9(%arg0: i32) -> (i32, i32) {
    %c0_i32 = arith.constant 0 : i32
    %c0_i32_0 = arith.constant 0 : i32
    return %arg0, %c0_i32 : i32, i32
  }
}

</mosaic_0001>

<llo_original>
// kernel: cssf_vss_layer_forward.3
$region0: #{cssf_vss_layer_forward.3}
  #allocation0 [shape = 'u32[]', space=smem, size = 0x4, offset = 0x4, fixed_abs, tag = 'smem constant byte address 0x4 - core index']
  #allocation1 [shape = 'u32[72,128]{1,0:T(1,128)}', space=vmem, size = 0x9000, scoped, tag = 'internal scratch']
  %s0 = inlined_call_operand.hbm [shape: f32[128,32], index: 0, kind: input, shape index: {}]
  %s1 = inlined_call_operand.hbm [shape: f32[128,32], index: 1, kind: input, shape index: {}]
  %s2 = inlined_call_operand.hbm [shape: f32[1,32], index: 2, kind: input, shape index: {}]
  %s3 = inlined_call_operand.hbm [shape: f32[1,32], index: 3, kind: input, shape index: {}]
  %s4 = inlined_call_operand.hbm [shape: f32[32,64], index: 4, kind: input, shape index: {}]
  %s5 = inlined_call_operand.vmem [shape: f32[128,64], index: 5, kind: output, shape index: {0}]
  %s6 = inlined_call_operand.vmem [shape: f32[128,64], index: 6, kind: output, shape index: {1}]
  %s7 = inlined_call_operand.vmem [shape: f32[128,64], index: 7, kind: output, shape index: {2}]
  %s8 = inlined_call_operand.vmem [shape: f32[128,64], index: 8, kind: output, shape index: {3}]
  %9 = xla_tuple %s5, %s6, %s7, %s8
  %s10 = sld [smem:[#allocation0]]
  $region74: #{cssf_vss_layer_forward.3} parent=0
    _
  %s12 = ssub.s32 1, %s10
  %s13 = scalar_select 0, %s12, %s10
  $region1: #{cssf_vss_layer_forward.3} parent=0
    #allocation2 [shape = 'u8[65536]{0}', space=vmem, size = 0x10000, scoped, tag = 'input window, operand 0, single buffered']
    #allocation3 [shape = 's32[1]{0}', space=sflag, size = 0x4, scoped, tag = 'scoped memory for cssf_vss_layer_forward.3']
    #allocation4 [shape = 'u8[65536]{0}', space=vmem, size = 0x10000, scoped, tag = 'input window, operand 1, single buffered']
    #allocation5 [shape = 's32[1]{0}', space=sflag, size = 0x4, scoped, tag = 'scoped memory for cssf_vss_layer_forward.3']
    #allocation6 [shape = 'u8[512]{0}', space=vmem, size = 0x400, scoped, tag = 'input window, operand 2, single buffered']
    #allocation7 [shape = 'u8[512]{0}', space=vmem, size = 0x400, scoped, tag = 'input window, operand 3, single buffered']
    #allocation8 [shape = 's32[1]{0}', space=sflag, size = 0x4, scoped, tag = 'scoped memory for cssf_vss_layer_forward.3']
    #allocation9 [shape = 'u8[16384]{0}', space=vmem, size = 0x4000, scoped, tag = 'input window, operand 4, single buffered']
    %14 = vsyncpa [#allocation3], 0
    %15 = vsyncpa [#allocation5], 0
    %16 = vsyncpa [#allocation8], 0
    // Predicated region
    $region2: #{cssf_vss_layer_forward.3} parent=1 // pred_check
      _
    $region3: #{cssf_vss_layer_forward.3} parent=1 // pred_check_branch
      %18 = sbr.rel (0) target = $region5
    $region4: #{cssf_vss_layer_forward.3} parent=1 // pred_region
      %20 = vsyncadd [#allocation3], 0
      %s21 = sshll.u32 %s0, 4
      %s22 = int_to_ptr.hbm [resolvable:$true] %s21
      %s23 = sshll.u32 [#allocation2], 4
      %s24 = int_to_ptr.vmem [resolvable:$true] %s23
      %29 = dma.hbm_to_vmem [thread:$0]  %s22, 2048, %s24, [#allocation3], 128, 128, 8
    $region5: #{cssf_vss_layer_forward.3} parent=1 // pred_fallthru
      _
    // Predicated region
    $region6: #{cssf_vss_layer_forward.3} parent=1 // pred_check
      _
    $region7: #{cssf_vss_layer_forward.3} parent=1 // pred_check_branch
      %31 = sbr.rel (0) target = $region9
    $region8: #{cssf_vss_layer_forward.3} parent=1 // pred_region
      %33 = vsyncadd [#allocation5], 0
      %s34 = sshll.u32 %s1, 4
      %s35 = int_to_ptr.hbm [resolvable:$true] %s34
      %s36 = sshll.u32 [#allocation4], 4
      %s37 = int_to_ptr.vmem [resolvable:$true] %s36
      %42 = dma.hbm_to_vmem [thread:$0]  %s35, 2048, %s37, [#allocation5], 128, 128, 8
    $region9: #{cssf_vss_layer_forward.3} parent=1 // pred_fallthru
      _
    // Predicated region
    $region10: #{cssf_vss_layer_forward.3} parent=1 // pred_check
      _
    $region11: #{cssf_vss_layer_forward.3} parent=1 // pred_check_branch
      %44 = sbr.rel (0) target = $region13
    $region12: #{cssf_vss_layer_forward.3} parent=1 // pred_region
      %46 = vsyncadd [#allocation5], 0
      %s48 = sshll.u32 %s2, 4
      %s49 = int_to_ptr.hbm [resolvable:$true] %s48
      %s50 = sshll.u32 [#allocation6], 4
      %s51 = int_to_ptr.vmem [resolvable:$true] %s50
      %53 = dma.hbm_to_vmem [thread:$0]  %s49, 16, %s51, [#allocation5]
    $region13: #{cssf_vss_layer_forward.3} parent=1 // pred_fallthru
      _
    // Predicated region
    $region14: #{cssf_vss_layer_forward.3} parent=1 // pred_check
      _
    $region15: #{cssf_vss_layer_forward.3} parent=1 // pred_check_branch
      %55 = sbr.rel (0) target = $region17
    $region16: #{cssf_vss_layer_forward.3} parent=1 // pred_region
      %57 = vsyncadd [#allocation8], 0
      %s59 = sshll.u32 %s3, 4
      %s60 = int_to_ptr.hbm [resolvable:$true] %s59
      %s61 = sshll.u32 [#allocation7], 4
      %s62 = int_to_ptr.vmem [resolvable:$true] %s61
      %64 = dma.hbm_to_vmem [thread:$0]  %s60, 16, %s62, [#allocation8]
    $region17: #{cssf_vss_layer_forward.3} parent=1 // pred_fallthru
      _
    // Predicated region
    $region18: #{cssf_vss_layer_forward.3} parent=1 // pred_check
      _
    $region19: #{cssf_vss_layer_forward.3} parent=1 // pred_check_branch
      %66 = sbr.rel (0) target = $region21
    $region20: #{cssf_vss_layer_forward.3} parent=1 // pred_region
      %68 = vsyncadd [#allocation8], 0
      %s69 = sshll.u32 %s4, 4
      %s70 = int_to_ptr.hbm [resolvable:$true] %s69
      %s71 = sshll.u32 [#allocation9], 4
      %s72 = int_to_ptr.vmem [resolvable:$true] %s71
      %77 = dma.hbm_to_vmem [thread:$0]  %s70, 512, %s72, [#allocation8], 128, 128, 8
    $region21: #{cssf_vss_layer_forward.3} parent=1 // pred_fallthru
      _
    // Predicated region
    $region22: #{cssf_vss_layer_forward.3} parent=1 // pred_check
      _
    $region23: #{cssf_vss_layer_forward.3} parent=1 // pred_check_branch
      %79 = sbr.rel (0) target = $region25
    $region24: #{cssf_vss_layer_forward.3} parent=1 // pred_region
      %81 = dma.done [#allocation3], 2048
    $region25: #{cssf_vss_layer_forward.3} parent=1 // pred_fallthru
      _
    // Predicated region
    $region26: #{cssf_vss_layer_forward.3} parent=1 // pred_check
      _
    $region27: #{cssf_vss_layer_forward.3} parent=1 // pred_check_branch
      %83 = sbr.rel (0) target = $region29
    $region28: #{cssf_vss_layer_forward.3} parent=1 // pred_region
      %85 = dma.done [#allocation5], 2048
    $region29: #{cssf_vss_layer_forward.3} parent=1 // pred_fallthru
      _
    // Predicated region
    $region30: #{cssf_vss_layer_forward.3} parent=1 // pred_check
      _
    $region31: #{cssf_vss_layer_forward.3} parent=1 // pred_check_branch
      %87 = sbr.rel (0) target = $region33
    $region32: #{cssf_vss_layer_forward.3} parent=1 // pred_region
      %89 = dma.done [#allocation5], 16
    $region33: #{cssf_vss_layer_forward.3} parent=1 // pred_fallthru
      _
    // Predicated region
    $region34: #{cssf_vss_layer_forward.3} parent=1 // pred_check
      _
    $region35: #{cssf_vss_layer_forward.3} parent=1 // pred_check_branch
      %91 = sbr.rel (0) target = $region37
    $region36: #{cssf_vss_layer_forward.3} parent=1 // pred_region
      %93 = dma.done [#allocation8], 16
    $region37: #{cssf_vss_layer_forward.3} parent=1 // pred_fallthru
      _
    // Predicated region
    $region38: #{cssf_vss_layer_forward.3} parent=1 // pred_check
      _
    $region39: #{cssf_vss_layer_forward.3} parent=1 // pred_check_branch
      %95 = sbr.rel (0) target = $region41
    $region40: #{cssf_vss_layer_forward.3} parent=1 // pred_region
      %97 = dma.done [#allocation8], 512
    $region41: #{cssf_vss_layer_forward.3} parent=1 // pred_fallthru
      _
    %v98 = vld [vmem:[#allocation6] sm:$0x1]
    %v99 = vld [vmem:[#allocation7] sm:$0x1]
    %v100 = vld [vmem:[#allocation9] sm:$0xff]
    %v101 = vld [vmem:[#allocation9 + $0x8] sm:$0xff]
    %v102 = vld [vmem:[#allocation9 + $0x10] sm:$0xff]
    %v103 = vld [vmem:[#allocation9 + $0x18] sm:$0xff]
    %v104 = vld [vmem:[#allocation2] sm:$0xff]
    %v105 = vld [vmem:[#allocation2 + $0x8] sm:$0xff]
    %v106 = vld [vmem:[#allocation2 + $0x10] sm:$0xff]
    %v107 = vld [vmem:[#allocation2 + $0x18] sm:$0xff]
    %v108 = vld [vmem:[#allocation2 + $0x20] sm:$0xff]
    %v109 = vld [vmem:[#allocation2 + $0x28] sm:$0xff]
    %v110 = vld [vmem:[#allocation2 + $0x30] sm:$0xff]
    %v111 = vld [vmem:[#allocation2 + $0x38] sm:$0xff]
    %v112 = vld [vmem:[#allocation2 + $0x40] sm:$0xff]
    %v113 = vld [vmem:[#allocation2 + $0x48] sm:$0xff]
    %v114 = vld [vmem:[#allocation2 + $0x50] sm:$0xff]
    %v115 = vld [vmem:[#allocation2 + $0x58] sm:$0xff]
    %v116 = vld [vmem:[#allocation2 + $0x60] sm:$0xff]
    %v117 = vld [vmem:[#allocation2 + $0x68] sm:$0xff]
    %v118 = vld [vmem:[#allocation2 + $0x70] sm:$0xff]
    %v119 = vld [vmem:[#allocation2 + $0x78] sm:$0xff]
    %vm120 = vcmask 261120
    %v121 = vsel %vm120, %v104, 0.0
    %122 = vadd.xlane.f32.xlu0 %v121
    %v123 = vpop.xlane.xlu0 %122
    %v124 = vsel %vm120, %v105, 0.0
    %125 = vadd.xlane.f32.xlu0 %v124
    %v126 = vpop.xlane.xlu0 %125
    %v127 = vsel %vm120, %v106, 0.0
    %128 = vadd.xlane.f32.xlu0 %v127
    %v129 = vpop.xlane.xlu0 %128
    %v130 = vsel %vm120, %v107, 0.0
    %131 = vadd.xlane.f32.xlu0 %v130
    %v132 = vpop.xlane.xlu0 %131
    %v133 = vsel %vm120, %v108, 0.0
    %134 = vadd.xlane.f32.xlu0 %v133
    %v135 = vpop.xlane.xlu0 %134
    %v136 = vsel %vm120, %v109, 0.0
    %137 = vadd.xlane.f32.xlu0 %v136
    %v138 = vpop.xlane.xlu0 %137
    %v139 = vsel %vm120, %v110, 0.0
    %140 = vadd.xlane.f32.xlu0 %v139
    %v141 = vpop.xlane.xlu0 %140
    %v142 = vsel %vm120, %v111, 0.0
    %143 = vadd.xlane.f32.xlu0 %v142
    %v144 = vpop.xlane.xlu0 %143
    %v145 = vsel %vm120, %v112, 0.0
    %146 = vadd.xlane.f32.xlu0 %v145
    %v147 = vpop.xlane.xlu0 %146
    %v148 = vsel %vm120, %v113, 0.0
    %149 = vadd.xlane.f32.xlu0 %v148
    %v150 = vpop.xlane.xlu0 %149
    %v151 = vsel %vm120, %v114, 0.0
    %152 = vadd.xlane.f32.xlu0 %v151
    %v153 = vpop.xlane.xlu0 %152
    %v154 = vsel %vm120, %v115, 0.0
    %155 = vadd.xlane.f32.xlu0 %v154
    %v156 = vpop.xlane.xlu0 %155
    %v157 = vsel %vm120, %v116, 0.0
    %158 = vadd.xlane.f32.xlu0 %v157
    %v159 = vpop.xlane.xlu0 %158
    %v160 = vsel %vm120, %v117, 0.0
    %161 = vadd.xlane.f32.xlu0 %v160
    %v162 = vpop.xlane.xlu0 %161
    %v163 = vsel %vm120, %v118, 0.0
    %164 = vadd.xlane.f32.xlu0 %v163
    %v165 = vpop.xlane.xlu0 %164
    %v166 = vsel %vm120, %v119, 0.0
    %167 = vadd.xlane.f32.xlu0 %v166
    %v168 = vpop.xlane.xlu0 %167
    %v169 = vrcp.pop 32.0
    %v170 = vmul.f32 32.0, %v169
    %v171 = vsub.f32 1.0, %v170
    %v172 = vmul.f32 %v169, %v171
    %v173 = vadd.f32 %v169, %v172
    %vm174 = vweird.f32 %v169
    %v175 = vsel %vm174, %v169, %v173
    %v176 = vmul.f32 %v123, %v175
    %v177 = vmul.f32 %v126, %v175
    %v178 = vmul.f32 %v129, %v175
    %v179 = vmul.f32 %v132, %v175
    %v180 = vmul.f32 %v135, %v175
    %v181 = vmul.f32 %v138, %v175
    %v182 = vmul.f32 %v141, %v175
    %v183 = vmul.f32 %v144, %v175
    %v184 = vmul.f32 %v147, %v175
    %v185 = vmul.f32 %v150, %v175
    %v186 = vmul.f32 %v153, %v175
    %v187 = vmul.f32 %v156, %v175
    %v188 = vmul.f32 %v159, %v175
    %v189 = vmul.f32 %v162, %v175
    %v190 = vmul.f32 %v165, %v175
    %v191 = vmul.f32 %v168, %v175
    %v192 = vsub.f32 %v104, %v176
    %v193 = vsub.f32 %v105, %v177
    %v194 = vsub.f32 %v106, %v178
    %v195 = vsub.f32 %v107, %v179
    %v196 = vsub.f32 %v108, %v180
    %v197 = vsub.f32 %v109, %v181
    %v198 = vsub.f32 %v110, %v182
    %v199 = vsub.f32 %v111, %v183
    %v200 = vsub.f32 %v112, %v184
    %v201 = vsub.f32 %v113, %v185
    %v202 = vsub.f32 %v114, %v186
    %v203 = vsub.f32 %v115, %v187
    %v204 = vsub.f32 %v116, %v188
    %v205 = vsub.f32 %v117, %v189
    %v206 = vsub.f32 %v118, %v190
    %v207 = vsub.f32 %v119, %v191
    %v208 = vmul.f32 %v192, %v192
    %v209 = vmul.f32 %v193, %v193
    %v210 = vmul.f32 %v194, %v194
    %v211 = vmul.f32 %v195, %v195
    %v212 = vmul.f32 %v196, %v196
    %v213 = vmul.f32 %v197, %v197
    %v214 = vmul.f32 %v198, %v198
    %v215 = vmul.f32 %v199, %v199
    %v216 = vmul.f32 %v200, %v200
    %v217 = vmul.f32 %v201, %v201
    %v218 = vmul.f32 %v202, %v202
    %v219 = vmul.f32 %v203, %v203
    %v220 = vmul.f32 %v204, %v204
    %v221 = vmul.f32 %v205, %v205
    %v222 = vmul.f32 %v206, %v206
    %v223 = vmul.f32 %v207, %v207
    %v224 = vsel %vm120, %v208, 0.0
    %225 = vadd.xlane.f32.xlu0 %v224
    %v226 = vpop.xlane.xlu0 %225
    %v227 = vsel %vm120, %v209, 0.0
    %228 = vadd.xlane.f32.xlu0 %v227
    %v229 = vpop.xlane.xlu0 %228
    %v230 = vsel %vm120, %v210, 0.0
    %231 = vadd.xlane.f32.xlu0 %v230
    %v232 = vpop.xlane.xlu0 %231
    %v233 = vsel %vm120, %v211, 0.0
    %234 = vadd.xlane.f32.xlu0 %v233
    %v235 = vpop.xlane.xlu0 %234
    %v236 = vsel %vm120, %v212, 0.0
    %237 = vadd.xlane.f32.xlu0 %v236
    %v238 = vpop.xlane.xlu0 %237
    %v239 = vsel %vm120, %v213, 0.0
    %240 = vadd.xlane.f32.xlu0 %v239
    %v241 = vpop.xlane.xlu0 %240
    %v242 = vsel %vm120, %v214, 0.0
    %243 = vadd.xlane.f32.xlu0 %v242
    %v244 = vpop.xlane.xlu0 %243
    %v245 = vsel %vm120, %v215, 0.0
    %246 = vadd.xlane.f32.xlu0 %v245
    %v247 = vpop.xlane.xlu0 %246
    %v248 = vsel %vm120, %v216, 0.0
    %249 = vadd.xlane.f32.xlu0 %v248
    %v250 = vpop.xlane.xlu0 %249
    %v251 = vsel %vm120, %v217, 0.0
    %252 = vadd.xlane.f32.xlu0 %v251
    %v253 = vpop.xlane.xlu0 %252
    %v254 = vsel %vm120, %v218, 0.0
    %255 = vadd.xlane.f32.xlu0 %v254
    %v256 = vpop.xlane.xlu0 %255
    %v257 = vsel %vm120, %v219, 0.0
    %258 = vadd.xlane.f32.xlu0 %v257
    %v259 = vpop.xlane.xlu0 %258
    %v260 = vsel %vm120, %v220, 0.0
    %261 = vadd.xlane.f32.xlu0 %v260
    %v262 = vpop.xlane.xlu0 %261
    %v263 = vsel %vm120, %v221, 0.0
    %264 = vadd.xlane.f32.xlu0 %v263
    %v265 = vpop.xlane.xlu0 %264
    %v266 = vsel %vm120, %v222, 0.0
    %267 = vadd.xlane.f32.xlu0 %v266
    %v268 = vpop.xlane.xlu0 %267
    %v269 = vsel %vm120, %v223, 0.0
    %270 = vadd.xlane.f32.xlu0 %v269
    %v271 = vpop.xlane.xlu0 %270
    %v272 = vmul.f32 %v226, %v175
    %v273 = vmul.f32 %v229, %v175
    %v274 = vmul.f32 %v232, %v175
    %v275 = vmul.f32 %v235, %v175
    %v276 = vmul.f32 %v238, %v175
    %v277 = vmul.f32 %v241, %v175
    %v278 = vmul.f32 %v244, %v175
    %v279 = vmul.f32 %v247, %v175
    %v280 = vmul.f32 %v250, %v175
    %v281 = vmul.f32 %v253, %v175
    %v282 = vmul.f32 %v256, %v175
    %v283 = vmul.f32 %v259, %v175
    %v284 = vmul.f32 %v262, %v175
    %v285 = vmul.f32 %v265, %v175
    %v286 = vmul.f32 %v268, %v175
    %v287 = vmul.f32 %v271, %v175
    %v288 = vadd.f32 %v272, 1e-05
    %v289 = vadd.f32 %v273, 1e-05
    %v290 = vadd.f32 %v274, 1e-05
    %v291 = vadd.f32 %v275, 1e-05
    %v292 = vadd.f32 %v276, 1e-05
    %v293 = vadd.f32 %v277, 1e-05
    %v294 = vadd.f32 %v278, 1e-05
    %v295 = vadd.f32 %v279, 1e-05
    %v296 = vadd.f32 %v280, 1e-05
    %v297 = vadd.f32 %v281, 1e-05
    %v298 = vadd.f32 %v282, 1e-05
    %v299 = vadd.f32 %v283, 1e-05
    %v300 = vadd.f32 %v284, 1e-05
    %v301 = vadd.f32 %v285, 1e-05
    %v302 = vadd.f32 %v286, 1e-05
    %v303 = vadd.f32 %v287, 1e-05
    %v304 = vrsqrt.pop %v288
    %v305 = vmul.f32 %v304, %v288
    %v306 = vmul.f32 %v305, %v304
    %v307 = vmul.f32 0.5, %v306
    %v308 = vsub.f32 1.5, %v307
    %v309 = vmul.f32 %v304, %v308
    %vm310 = vweird.f32 %v288
    %vm311 = vweird.f32 %v304
    %vm312 = vmor %vm310, %vm311
    %v313 = vsel %vm312, %v304, %v309
    %v314 = vrsqrt.pop %v289
    %v315 = vmul.f32 %v314, %v289
    %v316 = vmul.f32 %v315, %v314
    %v317 = vmul.f32 0.5, %v316
    %v318 = vsub.f32 1.5, %v317
    %v319 = vmul.f32 %v314, %v318
    %vm320 = vweird.f32 %v289
    %vm321 = vweird.f32 %v314
    %vm322 = vmor %vm320, %vm321
    %v323 = vsel %vm322, %v314, %v319
    %v324 = vrsqrt.pop %v290
    %v325 = vmul.f32 %v324, %v290
    %v326 = vmul.f32 %v325, %v324
    %v327 = vmul.f32 0.5, %v326
    %v328 = vsub.f32 1.5, %v327
    %v329 = vmul.f32 %v324, %v328
    %vm330 = vweird.f32 %v290
    %vm331 = vweird.f32 %v324
    %vm332 = vmor %vm330, %vm331
    %v333 = vsel %vm332, %v324, %v329
    %v334 = vrsqrt.pop %v291
    %v335 = vmul.f32 %v334, %v291
    %v336 = vmul.f32 %v335, %v334
    %v337 = vmul.f32 0.5, %v336
    %v338 = vsub.f32 1.5, %v337
    %v339 = vmul.f32 %v334, %v338
    %vm340 = vweird.f32 %v291
    %vm341 = vweird.f32 %v334
    %vm342 = vmor %vm340, %vm341
    %v343 = vsel %vm342, %v334, %v339
    %v344 = vrsqrt.pop %v292
    %v345 = vmul.f32 %v344, %v292
    %v346 = vmul.f32 %v345, %v344
    %v347 = vmul.f32 0.5, %v346
    %v348 = vsub.f32 1.5, %v347
    %v349 = vmul.f32 %v344, %v348
    %vm350 = vweird.f32 %v292
    %vm351 = vweird.f32 %v344
    %vm352 = vmor %vm350, %vm351
    %v353 = vsel %vm352, %v344, %v349
    %v354 = vrsqrt.pop %v293
    %v355 = vmul.f32 %v354, %v293
    %v356 = vmul.f32 %v355, %v354
    %v357 = vmul.f32 0.5, %v356
    %v358 = vsub.f32 1.5, %v357
    %v359 = vmul.f32 %v354, %v358
    %vm360 = vweird.f32 %v293
    %vm361 = vweird.f32 %v354
    %vm362 = vmor %vm360, %vm361
    %v363 = vsel %vm362, %v354, %v359
    %v364 = vrsqrt.pop %v294
    %v365 = vmul.f32 %v364, %v294
    %v366 = vmul.f32 %v365, %v364
    %v367 = vmul.f32 0.5, %v366
    %v368 = vsub.f32 1.5, %v367
    %v369 = vmul.f32 %v364, %v368
    %vm370 = vweird.f32 %v294
    %vm371 = vweird.f32 %v364
    %vm372 = vmor %vm370, %vm371
    %v373 = vsel %vm372, %v364, %v369
    %v374 = vrsqrt.pop %v295
    %v375 = vmul.f32 %v374, %v295
    %v376 = vmul.f32 %v375, %v374
    %v377 = vmul.f32 0.5, %v376
    %v378 = vsub.f32 1.5, %v377
    %v379 = vmul.f32 %v374, %v378
    %vm380 = vweird.f32 %v295
    %vm381 = vweird.f32 %v374
    %vm382 = vmor %vm380, %vm381
    %v383 = vsel %vm382, %v374, %v379
    %v384 = vrsqrt.pop %v296
    %v385 = vmul.f32 %v384, %v296
    %v386 = vmul.f32 %v385, %v384
    %v387 = vmul.f32 0.5, %v386
    %v388 = vsub.f32 1.5, %v387
    %v389 = vmul.f32 %v384, %v388
    %vm390 = vweird.f32 %v296
    %vm391 = vweird.f32 %v384
    %vm392 = vmor %vm390, %vm391
    %v393 = vsel %vm392, %v384, %v389
    %v394 = vrsqrt.pop %v297
    %v395 = vmul.f32 %v394, %v297
    %v396 = vmul.f32 %v395, %v394
    %v397 = vmul.f32 0.5, %v396
    %v398 = vsub.f32 1.5, %v397
    %v399 = vmul.f32 %v394, %v398
    %vm400 = vweird.f32 %v297
    %vm401 = vweird.f32 %v394
    %vm402 = vmor %vm400, %vm401
    %v403 = vsel %vm402, %v394, %v399
    %v404 = vrsqrt.pop %v298
    %v405 = vmul.f32 %v404, %v298
    %v406 = vmul.f32 %v405, %v404
    %v407 = vmul.f32 0.5, %v406
    %v408 = vsub.f32 1.5, %v407
    %v409 = vmul.f32 %v404, %v408
    %vm410 = vweird.f32 %v298
    %vm411 = vweird.f32 %v404
    %vm412 = vmor %vm410, %vm411
    %v413 = vsel %vm412, %v404, %v409
    %v414 = vrsqrt.pop %v299
    %v415 = vmul.f32 %v414, %v299
    %v416 = vmul.f32 %v415, %v414
    %v417 = vmul.f32 0.5, %v416
    %v418 = vsub.f32 1.5, %v417
    %v419 = vmul.f32 %v414, %v418
    %vm420 = vweird.f32 %v299
    %vm421 = vweird.f32 %v414
    %vm422 = vmor %vm420, %vm421
    %v423 = vsel %vm422, %v414, %v419
    %v424 = vrsqrt.pop %v300
    %v425 = vmul.f32 %v424, %v300
    %v426 = vmul.f32 %v425, %v424
    %v427 = vmul.f32 0.5, %v426
    %v428 = vsub.f32 1.5, %v427
    %v429 = vmul.f32 %v424, %v428
    %vm430 = vweird.f32 %v300
    %vm431 = vweird.f32 %v424
    %vm432 = vmor %vm430, %vm431
    %v433 = vsel %vm432, %v424, %v429
    %v434 = vrsqrt.pop %v301
    %v435 = vmul.f32 %v434, %v301
    %v436 = vmul.f32 %v435, %v434
    %v437 = vmul.f32 0.5, %v436
    %v438 = vsub.f32 1.5, %v437
    %v439 = vmul.f32 %v434, %v438
    %vm440 = vweird.f32 %v301
    %vm441 = vweird.f32 %v434
    %vm442 = vmor %vm440, %vm441
    %v443 = vsel %vm442, %v434, %v439
    %v444 = vrsqrt.pop %v302
    %v445 = vmul.f32 %v444, %v302
    %v446 = vmul.f32 %v445, %v444
    %v447 = vmul.f32 0.5, %v446
    %v448 = vsub.f32 1.5, %v447
    %v449 = vmul.f32 %v444, %v448
    %vm450 = vweird.f32 %v302
    %vm451 = vweird.f32 %v444
    %vm452 = vmor %vm450, %vm451
    %v453 = vsel %vm452, %v444, %v449
    %v454 = vrsqrt.pop %v303
    %v455 = vmul.f32 %v454, %v303
    %v456 = vmul.f32 %v455, %v454
    %v457 = vmul.f32 0.5, %v456
    %v458 = vsub.f32 1.5, %v457
    %v459 = vmul.f32 %v454, %v458
    %vm460 = vweird.f32 %v303
    %vm461 = vweird.f32 %v454
    %vm462 = vmor %vm460, %vm461
    %v463 = vsel %vm462, %v454, %v459
    %v464 = vmul.f32 %v192, %v313
    %v465 = vmul.f32 %v193, %v323
    %v466 = vmul.f32 %v194, %v333
    %v467 = vmul.f32 %v195, %v343
    %v468 = vmul.f32 %v196, %v353
    %v469 = vmul.f32 %v197, %v363
    %v470 = vmul.f32 %v198, %v373
    %v471 = vmul.f32 %v199, %v383
    %v472 = vmul.f32 %v200, %v393
    %v473 = vmul.f32 %v201, %v403
    %v474 = vmul.f32 %v202, %v413
    %v475 = vmul.f32 %v203, %v423
    %v476 = vmul.f32 %v204, %v433
    %v477 = vmul.f32 %v205, %v443
    %v478 = vmul.f32 %v206, %v453
    %v479 = vmul.f32 %v207, %v463
    %v481 = vperm.slane %v98, 0
    %v483 = vmul.f32 %v464, %v481
    %v484 = vmul.f32 %v465, %v481
    %v485 = vmul.f32 %v466, %v481
    %v486 = vmul.f32 %v467, %v481
    %v487 = vmul.f32 %v468, %v481
    %v488 = vmul.f32 %v469, %v481
    %v489 = vmul.f32 %v470, %v481
    %v490 = vmul.f32 %v471, %v481
    %v491 = vmul.f32 %v472, %v481
    %v492 = vmul.f32 %v473, %v481
    %v493 = vmul.f32 %v474, %v481
    %v494 = vmul.f32 %v475, %v481
    %v495 = vmul.f32 %v476, %v481
    %v496 = vmul.f32 %v477, %v481
    %v497 = vmul.f32 %v478, %v481
    %v498 = vmul.f32 %v479, %v481
    %v500 = vperm.slane %v99, 0
    %v502 = vadd.f32 %v483, %v500
    %v503 = vadd.f32 %v484, %v500
    %v504 = vadd.f32 %v485, %v500
    %v505 = vadd.f32 %v486, %v500
    %v506 = vadd.f32 %v487, %v500
    %v507 = vadd.f32 %v488, %v500
    %v508 = vadd.f32 %v489, %v500
    %v509 = vadd.f32 %v490, %v500
    %v510 = vadd.f32 %v491, %v500
    %v511 = vadd.f32 %v492, %v500
    %v512 = vadd.f32 %v493, %v500
    %v513 = vadd.f32 %v494, %v500
    %v514 = vadd.f32 %v495, %v500
    %v515 = vadd.f32 %v496, %v500
    %v516 = vadd.f32 %v497, %v500
    %v517 = vadd.f32 %v498, %v500
    %v518 = vld [vmem:[#allocation4] sm:$0xff]
    %v519 = vld [vmem:[#allocation4 + $0x8] sm:$0xff]
    %v520 = vld [vmem:[#allocation4 + $0x10] sm:$0xff]
    %v521 = vld [vmem:[#allocation4 + $0x18] sm:$0xff]
    %v522 = vld [vmem:[#allocation4 + $0x20] sm:$0xff]
    %v523 = vld [vmem:[#allocation4 + $0x28] sm:$0xff]
    %v524 = vld [vmem:[#allocation4 + $0x30] sm:$0xff]
    %v525 = vld [vmem:[#allocation4 + $0x38] sm:$0xff]
    %v526 = vld [vmem:[#allocation4 + $0x40] sm:$0xff]
    %v527 = vld [vmem:[#allocation4 + $0x48] sm:$0xff]
    %v528 = vld [vmem:[#allocation4 + $0x50] sm:$0xff]
    %v529 = vld [vmem:[#allocation4 + $0x58] sm:$0xff]
    %v530 = vld [vmem:[#allocation4 + $0x60] sm:$0xff]
    %v531 = vld [vmem:[#allocation4 + $0x68] sm:$0xff]
    %v532 = vld [vmem:[#allocation4 + $0x70] sm:$0xff]
    %v533 = vld [vmem:[#allocation4 + $0x78] sm:$0xff]
    %v534 = vsel %vm120, %v518, 0.0
    %535 = vadd.xlane.f32.xlu0 %v534
    %v536 = vpop.xlane.xlu0 %535
    %v537 = vsel %vm120, %v519, 0.0
    %538 = vadd.xlane.f32.xlu0 %v537
    %v539 = vpop.xlane.xlu0 %538
    %v540 = vsel %vm120, %v520, 0.0
    %541 = vadd.xlane.f32.xlu0 %v540
    %v542 = vpop.xlane.xlu0 %541
    %v543 = vsel %vm120, %v521, 0.0
    %544 = vadd.xlane.f32.xlu0 %v543
    %v545 = vpop.xlane.xlu0 %544
    %v546 = vsel %vm120, %v522, 0.0
    %547 = vadd.xlane.f32.xlu0 %v546
    %v548 = vpop.xlane.xlu0 %547
    %v549 = vsel %vm120, %v523, 0.0
    %550 = vadd.xlane.f32.xlu0 %v549
    %v551 = vpop.xlane.xlu0 %550
    %v552 = vsel %vm120, %v524, 0.0
    %553 = vadd.xlane.f32.xlu0 %v552
    %v554 = vpop.xlane.xlu0 %553
    %v555 = vsel %vm120, %v525, 0.0
    %556 = vadd.xlane.f32.xlu0 %v555
    %v557 = vpop.xlane.xlu0 %556
    %v558 = vsel %vm120, %v526, 0.0
    %559 = vadd.xlane.f32.xlu0 %v558
    %v560 = vpop.xlane.xlu0 %559
    %v561 = vsel %vm120, %v527, 0.0
    %562 = vadd.xlane.f32.xlu0 %v561
    %v563 = vpop.xlane.xlu0 %562
    %v564 = vsel %vm120, %v528, 0.0
    %565 = vadd.xlane.f32.xlu0 %v564
    %v566 = vpop.xlane.xlu0 %565
    %v567 = vsel %vm120, %v529, 0.0
    %568 = vadd.xlane.f32.xlu0 %v567
    %v569 = vpop.xlane.xlu0 %568
    %v570 = vsel %vm120, %v530, 0.0
    %571 = vadd.xlane.f32.xlu0 %v570
    %v572 = vpop.xlane.xlu0 %571
    %v573 = vsel %vm120, %v531, 0.0
    %574 = vadd.xlane.f32.xlu0 %v573
    %v575 = vpop.xlane.xlu0 %574
    %v576 = vsel %vm120, %v532, 0.0
    %577 = vadd.xlane.f32.xlu0 %v576
    %v578 = vpop.xlane.xlu0 %577
    %v579 = vsel %vm120, %v533, 0.0
    %580 = vadd.xlane.f32.xlu0 %v579
    %v581 = vpop.xlane.xlu0 %580
    %v582 = vmul.f32 %v536, %v175
    %v583 = vmul.f32 %v539, %v175
    %v584 = vmul.f32 %v542, %v175
    %v585 = vmul.f32 %v545, %v175
    %v586 = vmul.f32 %v548, %v175
    %v587 = vmul.f32 %v551, %v175
    %v588 = vmul.f32 %v554, %v175
    %v589 = vmul.f32 %v557, %v175
    %v590 = vmul.f32 %v560, %v175
    %v591 = vmul.f32 %v563, %v175
    %v592 = vmul.f32 %v566, %v175
    %v593 = vmul.f32 %v569, %v175
    %v594 = vmul.f32 %v572, %v175
    %v595 = vmul.f32 %v575, %v175
    %v596 = vmul.f32 %v578, %v175
    %v597 = vmul.f32 %v581, %v175
    %v598 = vsub.f32 %v518, %v582
    %v599 = vsub.f32 %v519, %v583
    %v600 = vsub.f32 %v520, %v584
    %v601 = vsub.f32 %v521, %v585
    %v602 = vsub.f32 %v522, %v586
    %v603 = vsub.f32 %v523, %v587
    %v604 = vsub.f32 %v524, %v588
    %v605 = vsub.f32 %v525, %v589
    %v606 = vsub.f32 %v526, %v590
    %v607 = vsub.f32 %v527, %v591
    %v608 = vsub.f32 %v528, %v592
    %v609 = vsub.f32 %v529, %v593
    %v610 = vsub.f32 %v530, %v594
    %v611 = vsub.f32 %v531, %v595
    %v612 = vsub.f32 %v532, %v596
    %v613 = vsub.f32 %v533, %v597
    %v614 = vmul.f32 %v598, %v598
    %v615 = vmul.f32 %v599, %v599
    %v616 = vmul.f32 %v600, %v600
    %v617 = vmul.f32 %v601, %v601
    %v618 = vmul.f32 %v602, %v602
    %v619 = vmul.f32 %v603, %v603
    %v620 = vmul.f32 %v604, %v604
    %v621 = vmul.f32 %v605, %v605
    %v622 = vmul.f32 %v606, %v606
    %v623 = vmul.f32 %v607, %v607
    %v624 = vmul.f32 %v608, %v608
    %v625 = vmul.f32 %v609, %v609
    %v626 = vmul.f32 %v610, %v610
    %v627 = vmul.f32 %v611, %v611
    %v628 = vmul.f32 %v612, %v612
    %v629 = vmul.f32 %v613, %v613
    %v630 = vsel %vm120, %v614, 0.0
    %631 = vadd.xlane.f32.xlu0 %v630
    %v632 = vpop.xlane.xlu0 %631
    %v633 = vsel %vm120, %v615, 0.0
    %634 = vadd.xlane.f32.xlu0 %v633
    %v635 = vpop.xlane.xlu0 %634
    %v636 = vsel %vm120, %v616, 0.0
    %637 = vadd.xlane.f32.xlu0 %v636
    %v638 = vpop.xlane.xlu0 %637
    %v639 = vsel %vm120, %v617, 0.0
    %640 = vadd.xlane.f32.xlu0 %v639
    %v641 = vpop.xlane.xlu0 %640
    %v642 = vsel %vm120, %v618, 0.0
    %643 = vadd.xlane.f32.xlu0 %v642
    %v644 = vpop.xlane.xlu0 %643
    %v645 = vsel %vm120, %v619, 0.0
    %646 = vadd.xlane.f32.xlu0 %v645
    %v647 = vpop.xlane.xlu0 %646
    %v648 = vsel %vm120, %v620, 0.0
    %649 = vadd.xlane.f32.xlu0 %v648
    %v650 = vpop.xlane.xlu0 %649
    %v651 = vsel %vm120, %v621, 0.0
    %652 = vadd.xlane.f32.xlu0 %v651
    %v653 = vpop.xlane.xlu0 %652
    %v654 = vsel %vm120, %v622, 0.0
    %655 = vadd.xlane.f32.xlu0 %v654
    %v656 = vpop.xlane.xlu0 %655
    %v657 = vsel %vm120, %v623, 0.0
    %658 = vadd.xlane.f32.xlu0 %v657
    %v659 = vpop.xlane.xlu0 %658
    %v660 = vsel %vm120, %v624, 0.0
    %661 = vadd.xlane.f32.xlu0 %v660
    %v662 = vpop.xlane.xlu0 %661
    %v663 = vsel %vm120, %v625, 0.0
    %664 = vadd.xlane.f32.xlu0 %v663
    %v665 = vpop.xlane.xlu0 %664
    %v666 = vsel %vm120, %v626, 0.0
    %667 = vadd.xlane.f32.xlu0 %v666
    %v668 = vpop.xlane.xlu0 %667
    %v669 = vsel %vm120, %v627, 0.0
    %670 = vadd.xlane.f32.xlu0 %v669
    %v671 = vpop.xlane.xlu0 %670
    %v672 = vsel %vm120, %v628, 0.0
    %673 = vadd.xlane.f32.xlu0 %v672
    %v674 = vpop.xlane.xlu0 %673
    %v675 = vsel %vm120, %v629, 0.0
    %676 = vadd.xlane.f32.xlu0 %v675
    %v677 = vpop.xlane.xlu0 %676
    %v678 = vmul.f32 %v632, %v175
    %v679 = vmul.f32 %v635, %v175
    %v680 = vmul.f32 %v638, %v175
    %v681 = vmul.f32 %v641, %v175
    %v682 = vmul.f32 %v644, %v175
    %v683 = vmul.f32 %v647, %v175
    %v684 = vmul.f32 %v650, %v175
    %v685 = vmul.f32 %v653, %v175
    %v686 = vmul.f32 %v656, %v175
    %v687 = vmul.f32 %v659, %v175
    %v688 = vmul.f32 %v662, %v175
    %v689 = vmul.f32 %v665, %v175
    %v690 = vmul.f32 %v668, %v175
    %v691 = vmul.f32 %v671, %v175
    %v692 = vmul.f32 %v674, %v175
    %v693 = vmul.f32 %v677, %v175
    %v694 = vadd.f32 %v678, 1e-05
    %v695 = vadd.f32 %v679, 1e-05
    %v696 = vadd.f32 %v680, 1e-05
    %v697 = vadd.f32 %v681, 1e-05
    %v698 = vadd.f32 %v682, 1e-05
    %v699 = vadd.f32 %v683, 1e-05
    %v700 = vadd.f32 %v684, 1e-05
    %v701 = vadd.f32 %v685, 1e-05
    %v702 = vadd.f32 %v686, 1e-05
    %v703 = vadd.f32 %v687, 1e-05
    %v704 = vadd.f32 %v688, 1e-05
    %v705 = vadd.f32 %v689, 1e-05
    %v706 = vadd.f32 %v690, 1e-05
    %v707 = vadd.f32 %v691, 1e-05
    %v708 = vadd.f32 %v692, 1e-05
    %v709 = vadd.f32 %v693, 1e-05
    %v710 = vrsqrt.pop %v694
    %v711 = vmul.f32 %v710, %v694
    %v712 = vmul.f32 %v711, %v710
    %v713 = vmul.f32 0.5, %v712
    %v714 = vsub.f32 1.5, %v713
    %v715 = vmul.f32 %v710, %v714
    %vm716 = vweird.f32 %v694
    %vm717 = vweird.f32 %v710
    %vm718 = vmor %vm716, %vm717
    %v719 = vsel %vm718, %v710, %v715
    %v720 = vrsqrt.pop %v695
    %v721 = vmul.f32 %v720, %v695
    %v722 = vmul.f32 %v721, %v720
    %v723 = vmul.f32 0.5, %v722
    %v724 = vsub.f32 1.5, %v723
    %v725 = vmul.f32 %v720, %v724
    %vm726 = vweird.f32 %v695
    %vm727 = vweird.f32 %v720
    %vm728 = vmor %vm726, %vm727
    %v729 = vsel %vm728, %v720, %v725
    %v730 = vrsqrt.pop %v696
    %v731 = vmul.f32 %v730, %v696
    %v732 = vmul.f32 %v731, %v730
    %v733 = vmul.f32 0.5, %v732
    %v734 = vsub.f32 1.5, %v733
    %v735 = vmul.f32 %v730, %v734
    %vm736 = vweird.f32 %v696
    %vm737 = vweird.f32 %v730
    %vm738 = vmor %vm736, %vm737
    %v739 = vsel %vm738, %v730, %v735
    %v740 = vrsqrt.pop %v697
    %v741 = vmul.f32 %v740, %v697
    %v742 = vmul.f32 %v741, %v740
    %v743 = vmul.f32 0.5, %v742
    %v744 = vsub.f32 1.5, %v743
    %v745 = vmul.f32 %v740, %v744
    %vm746 = vweird.f32 %v697
    %vm747 = vweird.f32 %v740
    %vm748 = vmor %vm746, %vm747
    %v749 = vsel %vm748, %v740, %v745
    %v750 = vrsqrt.pop %v698
    %v751 = vmul.f32 %v750, %v698
    %v752 = vmul.f32 %v751, %v750
    %v753 = vmul.f32 0.5, %v752
    %v754 = vsub.f32 1.5, %v753
    %v755 = vmul.f32 %v750, %v754
    %vm756 = vweird.f32 %v698
    %vm757 = vweird.f32 %v750
    %vm758 = vmor %vm756, %vm757
    %v759 = vsel %vm758, %v750, %v755
    %v760 = vrsqrt.pop %v699
    %v761 = vmul.f32 %v760, %v699
    %v762 = vmul.f32 %v761, %v760
    %v763 = vmul.f32 0.5, %v762
    %v764 = vsub.f32 1.5, %v763
    %v765 = vmul.f32 %v760, %v764
    %vm766 = vweird.f32 %v699
    %vm767 = vweird.f32 %v760
    %vm768 = vmor %vm766, %vm767
    %v769 = vsel %vm768, %v760, %v765
    %v770 = vrsqrt.pop %v700
    %v771 = vmul.f32 %v770, %v700
    %v772 = vmul.f32 %v771, %v770
    %v773 = vmul.f32 0.5, %v772
    %v774 = vsub.f32 1.5, %v773
    %v775 = vmul.f32 %v770, %v774
    %vm776 = vweird.f32 %v700
    %vm777 = vweird.f32 %v770
    %vm778 = vmor %vm776, %vm777
    %v779 = vsel %vm778, %v770, %v775
    %v780 = vrsqrt.pop %v701
    %v781 = vmul.f32 %v780, %v701
    %v782 = vmul.f32 %v781, %v780
    %v783 = vmul.f32 0.5, %v782
    %v784 = vsub.f32 1.5, %v783
    %v785 = vmul.f32 %v780, %v784
    %vm786 = vweird.f32 %v701
    %vm787 = vweird.f32 %v780
    %vm788 = vmor %vm786, %vm787
    %v789 = vsel %vm788, %v780, %v785
    %v790 = vrsqrt.pop %v702
    %v791 = vmul.f32 %v790, %v702
    %v792 = vmul.f32 %v791, %v790
    %v793 = vmul.f32 0.5, %v792
    %v794 = vsub.f32 1.5, %v793
    %v795 = vmul.f32 %v790, %v794
    %vm796 = vweird.f32 %v702
    %vm797 = vweird.f32 %v790
    %vm798 = vmor %vm796, %vm797
    %v799 = vsel %vm798, %v790, %v795
    %v800 = vrsqrt.pop %v703
    %v801 = vmul.f32 %v800, %v703
    %v802 = vmul.f32 %v801, %v800
    %v803 = vmul.f32 0.5, %v802
    %v804 = vsub.f32 1.5, %v803
    %v805 = vmul.f32 %v800, %v804
    %vm806 = vweird.f32 %v703
    %vm807 = vweird.f32 %v800
    %vm808 = vmor %vm806, %vm807
    %v809 = vsel %vm808, %v800, %v805
    %v810 = vrsqrt.pop %v704
    %v811 = vmul.f32 %v810, %v704
    %v812 = vmul.f32 %v811, %v810
    %v813 = vmul.f32 0.5, %v812
    %v814 = vsub.f32 1.5, %v813
    %v815 = vmul.f32 %v810, %v814
    %vm816 = vweird.f32 %v704
    %vm817 = vweird.f32 %v810
    %vm818 = vmor %vm816, %vm817
    %v819 = vsel %vm818, %v810, %v815
    %v820 = vrsqrt.pop %v705
    %v821 = vmul.f32 %v820, %v705
    %v822 = vmul.f32 %v821, %v820
    %v823 = vmul.f32 0.5, %v822
    %v824 = vsub.f32 1.5, %v823
    %v825 = vmul.f32 %v820, %v824
    %vm826 = vweird.f32 %v705
    %vm827 = vweird.f32 %v820
    %vm828 = vmor %vm826, %vm827
    %v829 = vsel %vm828, %v820, %v825
    %v830 = vrsqrt.pop %v706
    %v831 = vmul.f32 %v830, %v706
    %v832 = vmul.f32 %v831, %v830
    %v833 = vmul.f32 0.5, %v832
    %v834 = vsub.f32 1.5, %v833
    %v835 = vmul.f32 %v830, %v834
    %vm836 = vweird.f32 %v706
    %vm837 = vweird.f32 %v830
    %vm838 = vmor %vm836, %vm837
    %v839 = vsel %vm838, %v830, %v835
    %v840 = vrsqrt.pop %v707
    %v841 = vmul.f32 %v840, %v707
    %v842 = vmul.f32 %v841, %v840
    %v843 = vmul.f32 0.5, %v842
    %v844 = vsub.f32 1.5, %v843
    %v845 = vmul.f32 %v840, %v844
    %vm846 = vweird.f32 %v707
    %vm847 = vweird.f32 %v840
    %vm848 = vmor %vm846, %vm847
    %v849 = vsel %vm848, %v840, %v845
    %v850 = vrsqrt.pop %v708
    %v851 = vmul.f32 %v850, %v708
    %v852 = vmul.f32 %v851, %v850
    %v853 = vmul.f32 0.5, %v852
    %v854 = vsub.f32 1.5, %v853
    %v855 = vmul.f32 %v850, %v854
    %vm856 = vweird.f32 %v708
    %vm857 = vweird.f32 %v850
    %vm858 = vmor %vm856, %vm857
    %v859 = vsel %vm858, %v850, %v855
    %v860 = vrsqrt.pop %v709
    %v861 = vmul.f32 %v860, %v709
    %v862 = vmul.f32 %v861, %v860
    %v863 = vmul.f32 0.5, %v862
    %v864 = vsub.f32 1.5, %v863
    %v865 = vmul.f32 %v860, %v864
    %vm866 = vweird.f32 %v709
    %vm867 = vweird.f32 %v860
    %vm868 = vmor %vm866, %vm867
    %v869 = vsel %vm868, %v860, %v865
    %v870 = vmul.f32 %v598, %v719
    %v871 = vmul.f32 %v599, %v729
    %v872 = vmul.f32 %v600, %v739
    %v873 = vmul.f32 %v601, %v749
    %v874 = vmul.f32 %v602, %v759
    %v875 = vmul.f32 %v603, %v769
    %v876 = vmul.f32 %v604, %v779
    %v877 = vmul.f32 %v605, %v789
    %v878 = vmul.f32 %v606, %v799
    %v879 = vmul.f32 %v607, %v809
    %v880 = vmul.f32 %v608, %v819
    %v881 = vmul.f32 %v609, %v829
    %v882 = vmul.f32 %v610, %v839
    %v883 = vmul.f32 %v611, %v849
    %v884 = vmul.f32 %v612, %v859
    %v885 = vmul.f32 %v613, %v869
    %v886 = vmul.f32 %v870, %v481
    %v887 = vmul.f32 %v871, %v481
    %v888 = vmul.f32 %v872, %v481
    %v889 = vmul.f32 %v873, %v481
    %v890 = vmul.f32 %v874, %v481
    %v891 = vmul.f32 %v875, %v481
    %v892 = vmul.f32 %v876, %v481
    %v893 = vmul.f32 %v877, %v481
    %v894 = vmul.f32 %v878, %v481
    %v895 = vmul.f32 %v879, %v481
    %v896 = vmul.f32 %v880, %v481
    %v897 = vmul.f32 %v881, %v481
    %v898 = vmul.f32 %v882, %v481
    %v899 = vmul.f32 %v883, %v481
    %v900 = vmul.f32 %v884, %v481
    %v901 = vmul.f32 %v885, %v481
    %v902 = vadd.f32 %v886, %v500
    %v903 = vadd.f32 %v887, %v500
    %v904 = vadd.f32 %v888, %v500
    %v905 = vadd.f32 %v889, %v500
    %v906 = vadd.f32 %v890, %v500
    %v907 = vadd.f32 %v891, %v500
    %v908 = vadd.f32 %v892, %v500
    %v909 = vadd.f32 %v893, %v500
    %v910 = vadd.f32 %v894, %v500
    %v911 = vadd.f32 %v895, %v500
    %v912 = vadd.f32 %v896, %v500
    %v913 = vadd.f32 %v897, %v500
    %v914 = vadd.f32 %v898, %v500
    %v915 = vadd.f32 %v899, %v500
    %v916 = vadd.f32 %v900, %v500
    %v917 = vadd.f32 %v901, %v500
    %v918 = vadd.f32 %v502, %v902
    %v919 = vadd.f32 %v503, %v903
    %v920 = vadd.f32 %v504, %v904
    %v921 = vadd.f32 %v505, %v905
    %v922 = vadd.f32 %v506, %v906
    %v923 = vadd.f32 %v507, %v907
    %v924 = vadd.f32 %v508, %v908
    %v925 = vadd.f32 %v509, %v909
    %v926 = vadd.f32 %v510, %v910
    %v927 = vadd.f32 %v511, %v911
    %v928 = vadd.f32 %v512, %v912
    %v929 = vadd.f32 %v513, %v913
    %v930 = vadd.f32 %v514, %v914
    %v931 = vadd.f32 %v515, %v915
    %v932 = vadd.f32 %v516, %v916
    %v933 = vadd.f32 %v517, %v917
    %v934 = vmul.f32 %v918, 0.5
    %v935 = vmul.f32 %v919, 0.5
    %v936 = vmul.f32 %v920, 0.5
    %v937 = vmul.f32 %v921, 0.5
    %v938 = vmul.f32 %v922, 0.5
    %v939 = vmul.f32 %v923, 0.5
    %v940 = vmul.f32 %v924, 0.5
    %v941 = vmul.f32 %v925, 0.5
    %v942 = vmul.f32 %v926, 0.5
    %v943 = vmul.f32 %v927, 0.5
    %v944 = vmul.f32 %v928, 0.5
    %v945 = vmul.f32 %v929, 0.5
    %v946 = vmul.f32 %v930, 0.5
    %v947 = vmul.f32 %v931, 0.5
    %v948 = vmul.f32 %v932, 0.5
    %v949 = vmul.f32 %v933, 0.5
    %v951 = vsel %vm120, %v502, 0
    %v954 = vsel %vm120, %v503, 0
    %v957 = vsel %vm120, %v504, 0
    %v960 = vsel %vm120, %v505, 0
    %v963 = vsel %vm120, %v506, 0
    %v966 = vsel %vm120, %v507, 0
    %v969 = vsel %vm120, %v508, 0
    %v972 = vsel %vm120, %v509, 0
    %v975 = vsel %vm120, %v510, 0
    %v978 = vsel %vm120, %v511, 0
    %v981 = vsel %vm120, %v512, 0
    %v984 = vsel %vm120, %v513, 0
    %v987 = vsel %vm120, %v514, 0
    %v990 = vsel %vm120, %v515, 0
    %v993 = vsel %vm120, %v516, 0
    %v996 = vsel %vm120, %v517, 0
    %998 = vmatpush.msra.mxu0 0.0
    %999 = vmatpush.msra.mxu0 0.0
    %1000 = vmatpush.msra.mxu0 0.0
    %1001 = vmatpush.msra.mxu0 0.0
    %1002 = vmatpush.msra.mxu0 0.0
    %1003 = vmatpush.msra.mxu0 0.0
    %1004 = vmatpush.msra.mxu0 0.0
    %1005 = vmatpush.msra.mxu0 0.0
    %1006 = vmatpush.msra.mxu0 0.0
    %1007 = vmatpush.msra.mxu0 0.0
    %1008 = vmatpush.msra.mxu0 0.0
    %1009 = vmatpush.msra.mxu0 0.0
    %v1010 = vand.u32 %v103, 4294901760
    %1011 = vmatpush.msra.mxu0 %v1010
    %v1012 = vand.u32 %v102, 4294901760
    %1013 = vmatpush.msra.mxu0 %v1012
    %v1014 = vand.u32 %v101, 4294901760
    %1015 = vmatpush.msra.mxu0 %v1014
    %v1016 = vand.u32 %v100, 4294901760
    %1017 = vmatpush.msra.mxu0 %v1016
    %v1018 = vand.u32 %v951, 4294901760
    %v1019 = vsub.f32 %v951, %v1018
    %v1020 = vand.u32 %v1019, 4294901760
    %v1021 = vsub.f32 %v1019, %v1020
    %v1022 = vand.u32 %v1021, 4294901760
    %1023 = vmatmul.f32.gmra.mxu0 %v1022
    %v1024 = vpop.f32.mrf.mxu0
    %v1025 = vadd.f32 0.0, %v1024
    %v1026 = vand.u32 %v954, 4294901760
    %v1027 = vsub.f32 %v954, %v1026
    %v1028 = vand.u32 %v1027, 4294901760
    %v1029 = vsub.f32 %v1027, %v1028
    %v1030 = vand.u32 %v1029, 4294901760
    %1031 = vmatmul.f32.gmra.mxu0 %v1030
    %v1032 = vpop.f32.mrf.mxu0
    %v1033 = vadd.f32 0.0, %v1032
    %v1034 = vand.u32 %v957, 4294901760
    %v1035 = vsub.f32 %v957, %v1034
    %v1036 = vand.u32 %v1035, 4294901760
    %v1037 = vsub.f32 %v1035, %v1036
    %v1038 = vand.u32 %v1037, 4294901760
    %1039 = vmatmul.f32.gmra.mxu0 %v1038
    %v1040 = vpop.f32.mrf.mxu0
    %v1041 = vadd.f32 0.0, %v1040
    %v1042 = vand.u32 %v960, 4294901760
    %v1043 = vsub.f32 %v960, %v1042
    %v1044 = vand.u32 %v1043, 4294901760
    %v1045 = vsub.f32 %v1043, %v1044
    %v1046 = vand.u32 %v1045, 4294901760
    %1047 = vmatmul.f32.gmra.mxu0 %v1046
    %v1048 = vpop.f32.mrf.mxu0
    %v1049 = vadd.f32 0.0, %v1048
    %v1050 = vand.u32 %v963, 4294901760
    %v1051 = vsub.f32 %v963, %v1050
    %v1052 = vand.u32 %v1051, 4294901760
    %v1053 = vsub.f32 %v1051, %v1052
    %v1054 = vand.u32 %v1053, 4294901760
    %1055 = vmatmul.f32.gmra.mxu0 %v1054
    %v1056 = vpop.f32.mrf.mxu0
    %v1057 = vadd.f32 0.0, %v1056
    %v1058 = vand.u32 %v966, 4294901760
    %v1059 = vsub.f32 %v966, %v1058
    %v1060 = vand.u32 %v1059, 4294901760
    %v1061 = vsub.f32 %v1059, %v1060
    %v1062 = vand.u32 %v1061, 4294901760
    %1063 = vmatmul.f32.gmra.mxu0 %v1062
    %v1064 = vpop.f32.mrf.mxu0
    %v1065 = vadd.f32 0.0, %v1064
    %v1066 = vand.u32 %v969, 4294901760
    %v1067 = vsub.f32 %v969, %v1066
    %v1068 = vand.u32 %v1067, 4294901760
    %v1069 = vsub.f32 %v1067, %v1068
    %v1070 = vand.u32 %v1069, 4294901760
    %1071 = vmatmul.f32.gmra.mxu0 %v1070
    %v1072 = vpop.f32.mrf.mxu0
    %v1073 = vadd.f32 0.0, %v1072
    %v1074 = vand.u32 %v972, 4294901760
    %v1075 = vsub.f32 %v972, %v1074
    %v1076 = vand.u32 %v1075, 4294901760
    %v1077 = vsub.f32 %v1075, %v1076
    %v1078 = vand.u32 %v1077, 4294901760
    %1079 = vmatmul.f32.gmra.mxu0 %v1078
    %v1080 = vpop.f32.mrf.mxu0
    %v1081 = vadd.f32 0.0, %v1080
    %v1082 = vand.u32 %v975, 4294901760
    %v1083 = vsub.f32 %v975, %v1082
    %v1084 = vand.u32 %v1083, 4294901760
    %v1085 = vsub.f32 %v1083, %v1084
    %v1086 = vand.u32 %v1085, 4294901760
    %1087 = vmatmul.f32.gmra.mxu0 %v1086
    %v1088 = vpop.f32.mrf.mxu0
    %v1089 = vadd.f32 0.0, %v1088
    %v1090 = vand.u32 %v978, 4294901760
    %v1091 = vsub.f32 %v978, %v1090
    %v1092 = vand.u32 %v1091, 4294901760
    %v1093 = vsub.f32 %v1091, %v1092
    %v1094 = vand.u32 %v1093, 4294901760
    %1095 = vmatmul.f32.gmra.mxu0 %v1094
    %v1096 = vpop.f32.mrf.mxu0
    %v1097 = vadd.f32 0.0, %v1096
    %v1098 = vand.u32 %v981, 4294901760
    %v1099 = vsub.f32 %v981, %v1098
    %v1100 = vand.u32 %v1099, 4294901760
    %v1101 = vsub.f32 %v1099, %v1100
    %v1102 = vand.u32 %v1101, 4294901760
    %1103 = vmatmul.f32.gmra.mxu0 %v1102
    %v1104 = vpop.f32.mrf.mxu0
    %v1105 = vadd.f32 0.0, %v1104
    %v1106 = vand.u32 %v984, 4294901760
    %v1107 = vsub.f32 %v984, %v1106
    %v1108 = vand.u32 %v1107, 4294901760
    %v1109 = vsub.f32 %v1107, %v1108
    %v1110 = vand.u32 %v1109, 4294901760
    %1111 = vmatmul.f32.gmra.mxu0 %v1110
    %v1112 = vpop.f32.mrf.mxu0
    %v1113 = vadd.f32 0.0, %v1112
    %v1114 = vand.u32 %v987, 4294901760
    %v1115 = vsub.f32 %v987, %v1114
    %v1116 = vand.u32 %v1115, 4294901760
    %v1117 = vsub.f32 %v1115, %v1116
    %v1118 = vand.u32 %v1117, 4294901760
    %1119 = vmatmul.f32.gmra.mxu0 %v1118
    %v1120 = vpop.f32.mrf.mxu0
    %v1121 = vadd.f32 0.0, %v1120
    %v1122 = vand.u32 %v990, 4294901760
    %v1123 = vsub.f32 %v990, %v1122
    %v1124 = vand.u32 %v1123, 4294901760
    %v1125 = vsub.f32 %v1123, %v1124
    %v1126 = vand.u32 %v1125, 4294901760
    %1127 = vmatmul.f32.gmra.mxu0 %v1126
    %v1128 = vpop.f32.mrf.mxu0
    %v1129 = vadd.f32 0.0, %v1128
    %v1130 = vand.u32 %v993, 4294901760
    %v1131 = vsub.f32 %v993, %v1130
    %v1132 = vand.u32 %v1131, 4294901760
    %v1133 = vsub.f32 %v1131, %v1132
    %v1134 = vand.u32 %v1133, 4294901760
    %1135 = vmatmul.f32.gmra.mxu0 %v1134
    %v1136 = vpop.f32.mrf.mxu0
    %v1137 = vadd.f32 0.0, %v1136
    %v1138 = vand.u32 %v996, 4294901760
    %v1139 = vsub.f32 %v996, %v1138
    %v1140 = vand.u32 %v1139, 4294901760
    %v1141 = vsub.f32 %v1139, %v1140
    %v1142 = vand.u32 %v1141, 4294901760
    %1143 = vmatmul.f32.gmra.mxu0 %v1142
    %v1144 = vpop.f32.mrf.mxu0
    %v1145 = vadd.f32 0.0, %v1144
    %1146 = vdwg.mxu0
    %1147 = vmatpush.msra.mxu0 0.0
    %1148 = vmatpush.msra.mxu0 0.0
    %1149 = vmatpush.msra.mxu0 0.0
    %1150 = vmatpush.msra.mxu0 0.0
    %1151 = vmatpush.msra.mxu0 0.0
    %1152 = vmatpush.msra.mxu0 0.0
    %1153 = vmatpush.msra.mxu0 0.0
    %1154 = vmatpush.msra.mxu0 0.0
    %1155 = vmatpush.msra.mxu0 0.0
    %1156 = vmatpush.msra.mxu0 0.0
    %1157 = vmatpush.msra.mxu0 0.0
    %1158 = vmatpush.msra.mxu0 0.0
    %v1159 = vand.u32 %v103, 4294901760
    %v1160 = vsub.f32 %v103, %v1159
    %v1161 = vand.u32 %v1160, 4294901760
    %v1162 = vsub.f32 %v1160, %v1161
    %v1163 = vand.u32 %v1162, 4294901760
    %1164 = vmatpush.msra.mxu0 %v1163
    %v1165 = vand.u32 %v102, 4294901760
    %v1166 = vsub.f32 %v102, %v1165
    %v1167 = vand.u32 %v1166, 4294901760
    %v1168 = vsub.f32 %v1166, %v1167
    %v1169 = vand.u32 %v1168, 4294901760
    %1170 = vmatpush.msra.mxu0 %v1169
    %v1171 = vand.u32 %v101, 4294901760
    %v1172 = vsub.f32 %v101, %v1171
    %v1173 = vand.u32 %v1172, 4294901760
    %v1174 = vsub.f32 %v1172, %v1173
    %v1175 = vand.u32 %v1174, 4294901760
    %1176 = vmatpush.msra.mxu0 %v1175
    %v1177 = vand.u32 %v100, 4294901760
    %v1178 = vsub.f32 %v100, %v1177
    %v1179 = vand.u32 %v1178, 4294901760
    %v1180 = vsub.f32 %v1178, %v1179
    %v1181 = vand.u32 %v1180, 4294901760
    %1182 = vmatpush.msra.mxu0 %v1181
    %v1183 = vand.u32 %v951, 4294901760
    %1184 = vmatmul.f32.gmra.mxu0 %v1183
    %v1185 = vpop.f32.mrf.mxu0
    %v1186 = vadd.f32 %v1025, %v1185
    %v1187 = vand.u32 %v954, 4294901760
    %1188 = vmatmul.f32.gmra.mxu0 %v1187
    %v1189 = vpop.f32.mrf.mxu0
    %v1190 = vadd.f32 %v1033, %v1189
    %v1191 = vand.u32 %v957, 4294901760
    %1192 = vmatmul.f32.gmra.mxu0 %v1191
    %v1193 = vpop.f32.mrf.mxu0
    %v1194 = vadd.f32 %v1041, %v1193
    %v1195 = vand.u32 %v960, 4294901760
    %1196 = vmatmul.f32.gmra.mxu0 %v1195
    %v1197 = vpop.f32.mrf.mxu0
    %v1198 = vadd.f32 %v1049, %v1197
    %v1199 = vand.u32 %v963, 4294901760
    %1200 = vmatmul.f32.gmra.mxu0 %v1199
    %v1201 = vpop.f32.mrf.mxu0
    %v1202 = vadd.f32 %v1057, %v1201
    %v1203 = vand.u32 %v966, 4294901760
    %1204 = vmatmul.f32.gmra.mxu0 %v1203
    %v1205 = vpop.f32.mrf.mxu0
    %v1206 = vadd.f32 %v1065, %v1205
    %v1207 = vand.u32 %v969, 4294901760
    %1208 = vmatmul.f32.gmra.mxu0 %v1207
    %v1209 = vpop.f32.mrf.mxu0
    %v1210 = vadd.f32 %v1073, %v1209
    %v1211 = vand.u32 %v972, 4294901760
    %1212 = vmatmul.f32.gmra.mxu0 %v1211
    %v1213 = vpop.f32.mrf.mxu0
    %v1214 = vadd.f32 %v1081, %v1213
    %v1215 = vand.u32 %v975, 4294901760
    %1216 = vmatmul.f32.gmra.mxu0 %v1215
    %v1217 = vpop.f32.mrf.mxu0
    %v1218 = vadd.f32 %v1089, %v1217
    %v1219 = vand.u32 %v978, 4294901760
    %1220 = vmatmul.f32.gmra.mxu0 %v1219
    %v1221 = vpop.f32.mrf.mxu0
    %v1222 = vadd.f32 %v1097, %v1221
    %v1223 = vand.u32 %v981, 4294901760
    %1224 = vmatmul.f32.gmra.mxu0 %v1223
    %v1225 = vpop.f32.mrf.mxu0
    %v1226 = vadd.f32 %v1105, %v1225
    %v1227 = vand.u32 %v984, 4294901760
    %1228 = vmatmul.f32.gmra.mxu0 %v1227
    %v1229 = vpop.f32.mrf.mxu0
    %v1230 = vadd.f32 %v1113, %v1229
    %v1231 = vand.u32 %v987, 4294901760
    %1232 = vmatmul.f32.gmra.mxu0 %v1231
    %v1233 = vpop.f32.mrf.mxu0
    %v1234 = vadd.f32 %v1121, %v1233
    %v1235 = vand.u32 %v990, 4294901760
    %1236 = vmatmul.f32.gmra.mxu0 %v1235
    %v1237 = vpop.f32.mrf.mxu0
    %v1238 = vadd.f32 %v1129, %v1237
    %v1239 = vand.u32 %v993, 4294901760
    %1240 = vmatmul.f32.gmra.mxu0 %v1239
    %v1241 = vpop.f32.mrf.mxu0
    %v1242 = vadd.f32 %v1137, %v1241
    %v1243 = vand.u32 %v996, 4294901760
    %1244 = vmatmul.f32.gmra.mxu0 %v1243
    %v1245 = vpop.f32.mrf.mxu0
    %v1246 = vadd.f32 %v1145, %v1245
    %1247 = vdwg.mxu0
    %1248 = vmatpush.msra.mxu0 0.0
    %1249 = vmatpush.msra.mxu0 0.0
    %1250 = vmatpush.msra.mxu0 0.0
    %1251 = vmatpush.msra.mxu0 0.0
    %1252 = vmatpush.msra.mxu0 0.0
    %1253 = vmatpush.msra.mxu0 0.0
    %1254 = vmatpush.msra.mxu0 0.0
    %1255 = vmatpush.msra.mxu0 0.0
    %1256 = vmatpush.msra.mxu0 0.0
    %1257 = vmatpush.msra.mxu0 0.0
    %1258 = vmatpush.msra.mxu0 0.0
    %1259 = vmatpush.msra.mxu0 0.0
    %v1260 = vand.u32 %v103, 4294901760
    %v1261 = vsub.f32 %v103, %v1260
    %1262 = vmatpush.msra.mxu0 %v1261
    %v1263 = vand.u32 %v102, 4294901760
    %v1264 = vsub.f32 %v102, %v1263
    %1265 = vmatpush.msra.mxu0 %v1264
    %v1266 = vand.u32 %v101, 4294901760
    %v1267 = vsub.f32 %v101, %v1266
    %1268 = vmatpush.msra.mxu0 %v1267
    %v1269 = vand.u32 %v100, 4294901760
    %v1270 = vsub.f32 %v100, %v1269
    %1271 = vmatpush.msra.mxu0 %v1270
    %v1272 = vand.u32 %v951, 4294901760
    %v1273 = vsub.f32 %v951, %v1272
    %1274 = vmatmul.f32.gmra.mxu0 %v1273
    %v1275 = vpop.f32.mrf.mxu0
    %v1276 = vadd.f32 %v1186, %v1275
    %v1277 = vand.u32 %v954, 4294901760
    %v1278 = vsub.f32 %v954, %v1277
    %1279 = vmatmul.f32.gmra.mxu0 %v1278
    %v1280 = vpop.f32.mrf.mxu0
    %v1281 = vadd.f32 %v1190, %v1280
    %v1282 = vand.u32 %v957, 4294901760
    %v1283 = vsub.f32 %v957, %v1282
    %1284 = vmatmul.f32.gmra.mxu0 %v1283
    %v1285 = vpop.f32.mrf.mxu0
    %v1286 = vadd.f32 %v1194, %v1285
    %v1287 = vand.u32 %v960, 4294901760
    %v1288 = vsub.f32 %v960, %v1287
    %1289 = vmatmul.f32.gmra.mxu0 %v1288
    %v1290 = vpop.f32.mrf.mxu0
    %v1291 = vadd.f32 %v1198, %v1290
    %v1292 = vand.u32 %v963, 4294901760
    %v1293 = vsub.f32 %v963, %v1292
    %1294 = vmatmul.f32.gmra.mxu0 %v1293
    %v1295 = vpop.f32.mrf.mxu0
    %v1296 = vadd.f32 %v1202, %v1295
    %v1297 = vand.u32 %v966, 4294901760
    %v1298 = vsub.f32 %v966, %v1297
    %1299 = vmatmul.f32.gmra.mxu0 %v1298
    %v1300 = vpop.f32.mrf.mxu0
    %v1301 = vadd.f32 %v1206, %v1300
    %v1302 = vand.u32 %v969, 4294901760
    %v1303 = vsub.f32 %v969, %v1302
    %1304 = vmatmul.f32.gmra.mxu0 %v1303
    %v1305 = vpop.f32.mrf.mxu0
    %v1306 = vadd.f32 %v1210, %v1305
    %v1307 = vand.u32 %v972, 4294901760
    %v1308 = vsub.f32 %v972, %v1307
    %1309 = vmatmul.f32.gmra.mxu0 %v1308
    %v1310 = vpop.f32.mrf.mxu0
    %v1311 = vadd.f32 %v1214, %v1310
    %v1312 = vand.u32 %v975, 4294901760
    %v1313 = vsub.f32 %v975, %v1312
    %1314 = vmatmul.f32.gmra.mxu0 %v1313
    %v1315 = vpop.f32.mrf.mxu0
    %v1316 = vadd.f32 %v1218, %v1315
    %v1317 = vand.u32 %v978, 4294901760
    %v1318 = vsub.f32 %v978, %v1317
    %1319 = vmatmul.f32.gmra.mxu0 %v1318
    %v1320 = vpop.f32.mrf.mxu0
    %v1321 = vadd.f32 %v1222, %v1320
    %v1322 = vand.u32 %v981, 4294901760
    %v1323 = vsub.f32 %v981, %v1322
    %1324 = vmatmul.f32.gmra.mxu0 %v1323
    %v1325 = vpop.f32.mrf.mxu0
    %v1326 = vadd.f32 %v1226, %v1325
    %v1327 = vand.u32 %v984, 4294901760
    %v1328 = vsub.f32 %v984, %v1327
    %1329 = vmatmul.f32.gmra.mxu0 %v1328
    %v1330 = vpop.f32.mrf.mxu0
    %v1331 = vadd.f32 %v1230, %v1330
    %v1332 = vand.u32 %v987, 4294901760
    %v1333 = vsub.f32 %v987, %v1332
    %1334 = vmatmul.f32.gmra.mxu0 %v1333
    %v1335 = vpop.f32.mrf.mxu0
    %v1336 = vadd.f32 %v1234, %v1335
    %v1337 = vand.u32 %v990, 4294901760
    %v1338 = vsub.f32 %v990, %v1337
    %1339 = vmatmul.f32.gmra.mxu0 %v1338
    %v1340 = vpop.f32.mrf.mxu0
    %v1341 = vadd.f32 %v1238, %v1340
    %v1342 = vand.u32 %v993, 4294901760
    %v1343 = vsub.f32 %v993, %v1342
    %1344 = vmatmul.f32.gmra.mxu0 %v1343
    %v1345 = vpop.f32.mrf.mxu0
    %v1346 = vadd.f32 %v1242, %v1345
    %v1347 = vand.u32 %v996, 4294901760
    %v1348 = vsub.f32 %v996, %v1347
    %1349 = vmatmul.f32.gmra.mxu0 %v1348
    %v1350 = vpop.f32.mrf.mxu0
    %v1351 = vadd.f32 %v1246, %v1350
    %1352 = vdwg.mxu0
    %1353 = vmatpush.msra.mxu0 0.0
    %1354 = vmatpush.msra.mxu0 0.0
    %1355 = vmatpush.msra.mxu0 0.0
    %1356 = vmatpush.msra.mxu0 0.0
    %1357 = vmatpush.msra.mxu0 0.0
    %1358 = vmatpush.msra.mxu0 0.0
    %1359 = vmatpush.msra.mxu0 0.0
    %1360 = vmatpush.msra.mxu0 0.0
    %1361 = vmatpush.msra.mxu0 0.0
    %1362 = vmatpush.msra.mxu0 0.0
    %1363 = vmatpush.msra.mxu0 0.0
    %1364 = vmatpush.msra.mxu0 0.0
    %v1365 = vand.u32 %v103, 4294901760
    %1366 = vmatpush.msra.mxu0 %v1365
    %v1367 = vand.u32 %v102, 4294901760
    %1368 = vmatpush.msra.mxu0 %v1367
    %v1369 = vand.u32 %v101, 4294901760
    %1370 = vmatpush.msra.mxu0 %v1369
    %v1371 = vand.u32 %v100, 4294901760
    %1372 = vmatpush.msra.mxu0 %v1371
    %v1373 = vand.u32 %v951, 4294901760
    %v1374 = vsub.f32 %v951, %v1373
    %v1375 = vand.u32 %v1374, 4294901760
    %1376 = vmatmul.f32.gmra.mxu0 %v1375
    %v1377 = vpop.f32.mrf.mxu0
    %v1378 = vadd.f32 %v1276, %v1377
    %v1379 = vand.u32 %v954, 4294901760
    %v1380 = vsub.f32 %v954, %v1379
    %v1381 = vand.u32 %v1380, 4294901760
    %1382 = vmatmul.f32.gmra.mxu0 %v1381
    %v1383 = vpop.f32.mrf.mxu0
    %v1384 = vadd.f32 %v1281, %v1383
    %v1385 = vand.u32 %v957, 4294901760
    %v1386 = vsub.f32 %v957, %v1385
    %v1387 = vand.u32 %v1386, 4294901760
    %1388 = vmatmul.f32.gmra.mxu0 %v1387
    %v1389 = vpop.f32.mrf.mxu0
    %v1390 = vadd.f32 %v1286, %v1389
    %v1391 = vand.u32 %v960, 4294901760
    %v1392 = vsub.f32 %v960, %v1391
    %v1393 = vand.u32 %v1392, 4294901760
    %1394 = vmatmul.f32.gmra.mxu0 %v1393
    %v1395 = vpop.f32.mrf.mxu0
    %v1396 = vadd.f32 %v1291, %v1395
    %v1397 = vand.u32 %v963, 4294901760
    %v1398 = vsub.f32 %v963, %v1397
    %v1399 = vand.u32 %v1398, 4294901760
    %1400 = vmatmul.f32.gmra.mxu0 %v1399
    %v1401 = vpop.f32.mrf.mxu0
    %v1402 = vadd.f32 %v1296, %v1401
    %v1403 = vand.u32 %v966, 4294901760
    %v1404 = vsub.f32 %v966, %v1403
    %v1405 = vand.u32 %v1404, 4294901760
    %1406 = vmatmul.f32.gmra.mxu0 %v1405
    %v1407 = vpop.f32.mrf.mxu0
    %v1408 = vadd.f32 %v1301, %v1407
    %v1409 = vand.u32 %v969, 4294901760
    %v1410 = vsub.f32 %v969, %v1409
    %v1411 = vand.u32 %v1410, 4294901760
    %1412 = vmatmul.f32.gmra.mxu0 %v1411
    %v1413 = vpop.f32.mrf.mxu0
    %v1414 = vadd.f32 %v1306, %v1413
    %v1415 = vand.u32 %v972, 4294901760
    %v1416 = vsub.f32 %v972, %v1415
    %v1417 = vand.u32 %v1416, 4294901760
    %1418 = vmatmul.f32.gmra.mxu0 %v1417
    %v1419 = vpop.f32.mrf.mxu0
    %v1420 = vadd.f32 %v1311, %v1419
    %v1421 = vand.u32 %v975, 4294901760
    %v1422 = vsub.f32 %v975, %v1421
    %v1423 = vand.u32 %v1422, 4294901760
    %1424 = vmatmul.f32.gmra.mxu0 %v1423
    %v1425 = vpop.f32.mrf.mxu0
    %v1426 = vadd.f32 %v1316, %v1425
    %v1427 = vand.u32 %v978, 4294901760
    %v1428 = vsub.f32 %v978, %v1427
    %v1429 = vand.u32 %v1428, 4294901760
    %1430 = vmatmul.f32.gmra.mxu0 %v1429
    %v1431 = vpop.f32.mrf.mxu0
    %v1432 = vadd.f32 %v1321, %v1431
    %v1433 = vand.u32 %v981, 4294901760
    %v1434 = vsub.f32 %v981, %v1433
    %v1435 = vand.u32 %v1434, 4294901760
    %1436 = vmatmul.f32.gmra.mxu0 %v1435
    %v1437 = vpop.f32.mrf.mxu0
    %v1438 = vadd.f32 %v1326, %v1437
    %v1439 = vand.u32 %v984, 4294901760
    %v1440 = vsub.f32 %v984, %v1439
    %v1441 = vand.u32 %v1440, 4294901760
    %1442 = vmatmul.f32.gmra.mxu0 %v1441
    %v1443 = vpop.f32.mrf.mxu0
    %v1444 = vadd.f32 %v1331, %v1443
    %v1445 = vand.u32 %v987, 4294901760
    %v1446 = vsub.f32 %v987, %v1445
    %v1447 = vand.u32 %v1446, 4294901760
    %1448 = vmatmul.f32.gmra.mxu0 %v1447
    %v1449 = vpop.f32.mrf.mxu0
    %v1450 = vadd.f32 %v1336, %v1449
    %v1451 = vand.u32 %v990, 4294901760
    %v1452 = vsub.f32 %v990, %v1451
    %v1453 = vand.u32 %v1452, 4294901760
    %1454 = vmatmul.f32.gmra.mxu0 %v1453
    %v1455 = vpop.f32.mrf.mxu0
    %v1456 = vadd.f32 %v1341, %v1455
    %v1457 = vand.u32 %v993, 4294901760
    %v1458 = vsub.f32 %v993, %v1457
    %v1459 = vand.u32 %v1458, 4294901760
    %1460 = vmatmul.f32.gmra.mxu0 %v1459
    %v1461 = vpop.f32.mrf.mxu0
    %v1462 = vadd.f32 %v1346, %v1461
    %v1463 = vand.u32 %v996, 4294901760
    %v1464 = vsub.f32 %v996, %v1463
    %v1465 = vand.u32 %v1464, 4294901760
    %1466 = vmatmul.f32.gmra.mxu0 %v1465
    %v1467 = vpop.f32.mrf.mxu0
    %v1468 = vadd.f32 %v1351, %v1467
    %1469 = vdwg.mxu0
    %1470 = vmatpush.msra.mxu0 0.0
    %1471 = vmatpush.msra.mxu0 0.0
    %1472 = vmatpush.msra.mxu0 0.0
    %1473 = vmatpush.msra.mxu0 0.0
    %1474 = vmatpush.msra.mxu0 0.0
    %1475 = vmatpush.msra.mxu0 0.0
    %1476 = vmatpush.msra.mxu0 0.0
    %1477 = vmatpush.msra.mxu0 0.0
    %1478 = vmatpush.msra.mxu0 0.0
    %1479 = vmatpush.msra.mxu0 0.0
    %1480 = vmatpush.msra.mxu0 0.0
    %1481 = vmatpush.msra.mxu0 0.0
    %v1482 = vand.u32 %v103, 4294901760
    %v1483 = vsub.f32 %v103, %v1482
    %v1484 = vand.u32 %v1483, 4294901760
    %1485 = vmatpush.msra.mxu0 %v1484
    %v1486 = vand.u32 %v102, 4294901760
    %v1487 = vsub.f32 %v102, %v1486
    %v1488 = vand.u32 %v1487, 4294901760
    %1489 = vmatpush.msra.mxu0 %v1488
    %v1490 = vand.u32 %v101, 4294901760
    %v1491 = vsub.f32 %v101, %v1490
    %v1492 = vand.u32 %v1491, 4294901760
    %1493 = vmatpush.msra.mxu0 %v1492
    %v1494 = vand.u32 %v100, 4294901760
    %v1495 = vsub.f32 %v100, %v1494
    %v1496 = vand.u32 %v1495, 4294901760
    %1497 = vmatpush.msra.mxu0 %v1496
    %v1498 = vand.u32 %v951, 4294901760
    %1499 = vmatmul.f32.gmra.mxu0 %v1498
    %v1500 = vpop.f32.mrf.mxu0
    %v1501 = vadd.f32 %v1378, %v1500
    %v1502 = vand.u32 %v954, 4294901760
    %1503 = vmatmul.f32.gmra.mxu0 %v1502
    %v1504 = vpop.f32.mrf.mxu0
    %v1505 = vadd.f32 %v1384, %v1504
    %v1506 = vand.u32 %v957, 4294901760
    %1507 = vmatmul.f32.gmra.mxu0 %v1506
    %v1508 = vpop.f32.mrf.mxu0
    %v1509 = vadd.f32 %v1390, %v1508
    %v1510 = vand.u32 %v960, 4294901760
    %1511 = vmatmul.f32.gmra.mxu0 %v1510
    %v1512 = vpop.f32.mrf.mxu0
    %v1513 = vadd.f32 %v1396, %v1512
    %v1514 = vand.u32 %v963, 4294901760
    %1515 = vmatmul.f32.gmra.mxu0 %v1514
    %v1516 = vpop.f32.mrf.mxu0
    %v1517 = vadd.f32 %v1402, %v1516
    %v1518 = vand.u32 %v966, 4294901760
    %1519 = vmatmul.f32.gmra.mxu0 %v1518
    %v1520 = vpop.f32.mrf.mxu0
    %v1521 = vadd.f32 %v1408, %v1520
    %v1522 = vand.u32 %v969, 4294901760
    %1523 = vmatmul.f32.gmra.mxu0 %v1522
    %v1524 = vpop.f32.mrf.mxu0
    %v1525 = vadd.f32 %v1414, %v1524
    %v1526 = vand.u32 %v972, 4294901760
    %1527 = vmatmul.f32.gmra.mxu0 %v1526
    %v1528 = vpop.f32.mrf.mxu0
    %v1529 = vadd.f32 %v1420, %v1528
    %v1530 = vand.u32 %v975, 4294901760
    %1531 = vmatmul.f32.gmra.mxu0 %v1530
    %v1532 = vpop.f32.mrf.mxu0
    %v1533 = vadd.f32 %v1426, %v1532
    %v1534 = vand.u32 %v978, 4294901760
    %1535 = vmatmul.f32.gmra.mxu0 %v1534
    %v1536 = vpop.f32.mrf.mxu0
    %v1537 = vadd.f32 %v1432, %v1536
    %v1538 = vand.u32 %v981, 4294901760
    %1539 = vmatmul.f32.gmra.mxu0 %v1538
    %v1540 = vpop.f32.mrf.mxu0
    %v1541 = vadd.f32 %v1438, %v1540
    %v1542 = vand.u32 %v984, 4294901760
    %1543 = vmatmul.f32.gmra.mxu0 %v1542
    %v1544 = vpop.f32.mrf.mxu0
    %v1545 = vadd.f32 %v1444, %v1544
    %v1546 = vand.u32 %v987, 4294901760
    %1547 = vmatmul.f32.gmra.mxu0 %v1546
    %v1548 = vpop.f32.mrf.mxu0
    %v1549 = vadd.f32 %v1450, %v1548
    %v1550 = vand.u32 %v990, 4294901760
    %1551 = vmatmul.f32.gmra.mxu0 %v1550
    %v1552 = vpop.f32.mrf.mxu0
    %v1553 = vadd.f32 %v1456, %v1552
    %v1554 = vand.u32 %v993, 4294901760
    %1555 = vmatmul.f32.gmra.mxu0 %v1554
    %v1556 = vpop.f32.mrf.mxu0
    %v1557 = vadd.f32 %v1462, %v1556
    %v1558 = vand.u32 %v996, 4294901760
    %1559 = vmatmul.f32.gmra.mxu0 %v1558
    %v1560 = vpop.f32.mrf.mxu0
    %v1561 = vadd.f32 %v1468, %v1560
    %1562 = vdwg.mxu0
    %1563 = vmatpush.msra.mxu0 0.0
    %1564 = vmatpush.msra.mxu0 0.0
    %1565 = vmatpush.msra.mxu0 0.0
    %1566 = vmatpush.msra.mxu0 0.0
    %1567 = vmatpush.msra.mxu0 0.0
    %1568 = vmatpush.msra.mxu0 0.0
    %1569 = vmatpush.msra.mxu0 0.0
    %1570 = vmatpush.msra.mxu0 0.0
    %1571 = vmatpush.msra.mxu0 0.0
    %1572 = vmatpush.msra.mxu0 0.0
    %1573 = vmatpush.msra.mxu0 0.0
    %1574 = vmatpush.msra.mxu0 0.0
    %v1575 = vand.u32 %v103, 4294901760
    %1576 = vmatpush.msra.mxu0 %v1575
    %v1577 = vand.u32 %v102, 4294901760
    %1578 = vmatpush.msra.mxu0 %v1577
    %v1579 = vand.u32 %v101, 4294901760
    %1580 = vmatpush.msra.mxu0 %v1579
    %v1581 = vand.u32 %v100, 4294901760
    %1582 = vmatpush.msra.mxu0 %v1581
    %v1583 = vand.u32 %v951, 4294901760
    %1584 = vmatmul.f32.gmra.mxu0 %v1583
    %v1585 = vpop.f32.mrf.mxu0
    %v1586 = vadd.f32 %v1501, %v1585
    %v1587 = vand.u32 %v954, 4294901760
    %1588 = vmatmul.f32.gmra.mxu0 %v1587
    %v1589 = vpop.f32.mrf.mxu0
    %v1590 = vadd.f32 %v1505, %v1589
    %v1591 = vand.u32 %v957, 4294901760
    %1592 = vmatmul.f32.gmra.mxu0 %v1591
    %v1593 = vpop.f32.mrf.mxu0
    %v1594 = vadd.f32 %v1509, %v1593
    %v1595 = vand.u32 %v960, 4294901760
    %1596 = vmatmul.f32.gmra.mxu0 %v1595
    %v1597 = vpop.f32.mrf.mxu0
    %v1598 = vadd.f32 %v1513, %v1597
    %v1599 = vand.u32 %v963, 4294901760
    %1600 = vmatmul.f32.gmra.mxu0 %v1599
    %v1601 = vpop.f32.mrf.mxu0
    %v1602 = vadd.f32 %v1517, %v1601
    %v1603 = vand.u32 %v966, 4294901760
    %1604 = vmatmul.f32.gmra.mxu0 %v1603
    %v1605 = vpop.f32.mrf.mxu0
    %v1606 = vadd.f32 %v1521, %v1605
    %v1607 = vand.u32 %v969, 4294901760
    %1608 = vmatmul.f32.gmra.mxu0 %v1607
    %v1609 = vpop.f32.mrf.mxu0
    %v1610 = vadd.f32 %v1525, %v1609
    %v1611 = vand.u32 %v972, 4294901760
    %1612 = vmatmul.f32.gmra.mxu0 %v1611
    %v1613 = vpop.f32.mrf.mxu0
    %v1614 = vadd.f32 %v1529, %v1613
    %v1615 = vand.u32 %v975, 4294901760
    %1616 = vmatmul.f32.gmra.mxu0 %v1615
    %v1617 = vpop.f32.mrf.mxu0
    %v1618 = vadd.f32 %v1533, %v1617
    %v1619 = vand.u32 %v978, 4294901760
    %1620 = vmatmul.f32.gmra.mxu0 %v1619
    %v1621 = vpop.f32.mrf.mxu0
    %v1622 = vadd.f32 %v1537, %v1621
    %v1623 = vand.u32 %v981, 4294901760
    %1624 = vmatmul.f32.gmra.mxu0 %v1623
    %v1625 = vpop.f32.mrf.mxu0
    %v1626 = vadd.f32 %v1541, %v1625
    %v1627 = vand.u32 %v984, 4294901760
    %1628 = vmatmul.f32.gmra.mxu0 %v1627
    %v1629 = vpop.f32.mrf.mxu0
    %v1630 = vadd.f32 %v1545, %v1629
    %v1631 = vand.u32 %v987, 4294901760
    %1632 = vmatmul.f32.gmra.mxu0 %v1631
    %v1633 = vpop.f32.mrf.mxu0
    %v1634 = vadd.f32 %v1549, %v1633
    %v1635 = vand.u32 %v990, 4294901760
    %1636 = vmatmul.f32.gmra.mxu0 %v1635
    %v1637 = vpop.f32.mrf.mxu0
    %v1638 = vadd.f32 %v1553, %v1637
    %v1639 = vand.u32 %v993, 4294901760
    %1640 = vmatmul.f32.gmra.mxu0 %v1639
    %v1641 = vpop.f32.mrf.mxu0
    %v1642 = vadd.f32 %v1557, %v1641
    %v1643 = vand.u32 %v996, 4294901760
    %1644 = vmatmul.f32.gmra.mxu0 %v1643
    %v1645 = vpop.f32.mrf.mxu0
    %v1646 = vadd.f32 %v1561, %v1645
    %1647 = vdwg.mxu0
    %v1649 = vsel %vm120, %v902, 0
    %v1652 = vsel %vm120, %v903, 0
    %v1655 = vsel %vm120, %v904, 0
    %v1658 = vsel %vm120, %v905, 0
    %v1661 = vsel %vm120, %v906, 0
    %v1664 = vsel %vm120, %v907, 0
    %v1667 = vsel %vm120, %v908, 0
    %v1670 = vsel %vm120, %v909, 0
    %v1673 = vsel %vm120, %v910, 0
    %v1676 = vsel %vm120, %v911, 0
    %v1679 = vsel %vm120, %v912, 0
    %v1682 = vsel %vm120, %v913, 0
    %v1685 = vsel %vm120, %v914, 0
    %v1688 = vsel %vm120, %v915, 0
    %v1691 = vsel %vm120, %v916, 0
    %v1694 = vsel %vm120, %v917, 0
    %1696 = vmatpush.msra.mxu0 0.0
    %1697 = vmatpush.msra.mxu0 0.0
    %1698 = vmatpush.msra.mxu0 0.0
    %1699 = vmatpush.msra.mxu0 0.0
    %1700 = vmatpush.msra.mxu0 0.0
    %1701 = vmatpush.msra.mxu0 0.0
    %1702 = vmatpush.msra.mxu0 0.0
    %1703 = vmatpush.msra.mxu0 0.0
    %1704 = vmatpush.msra.mxu0 0.0
    %1705 = vmatpush.msra.mxu0 0.0
    %1706 = vmatpush.msra.mxu0 0.0
    %1707 = vmatpush.msra.mxu0 0.0
    %v1708 = vand.u32 %v103, 4294901760
    %1709 = vmatpush.msra.mxu0 %v1708
    %v1710 = vand.u32 %v102, 4294901760
    %1711 = vmatpush.msra.mxu0 %v1710
    %v1712 = vand.u32 %v101, 4294901760
    %1713 = vmatpush.msra.mxu0 %v1712
    %v1714 = vand.u32 %v100, 4294901760
    %1715 = vmatpush.msra.mxu0 %v1714
    %v1716 = vand.u32 %v1649, 4294901760
    %v1717 = vsub.f32 %v1649, %v1716
    %v1718 = vand.u32 %v1717, 4294901760
    %v1719 = vsub.f32 %v1717, %v1718
    %v1720 = vand.u32 %v1719, 4294901760
    %1721 = vmatmul.f32.gmra.mxu0 %v1720
    %v1722 = vpop.f32.mrf.mxu0
    %v1723 = vadd.f32 0.0, %v1722
    %v1724 = vand.u32 %v1652, 4294901760
    %v1725 = vsub.f32 %v1652, %v1724
    %v1726 = vand.u32 %v1725, 4294901760
    %v1727 = vsub.f32 %v1725, %v1726
    %v1728 = vand.u32 %v1727, 4294901760
    %1729 = vmatmul.f32.gmra.mxu0 %v1728
    %v1730 = vpop.f32.mrf.mxu0
    %v1731 = vadd.f32 0.0, %v1730
    %v1732 = vand.u32 %v1655, 4294901760
    %v1733 = vsub.f32 %v1655, %v1732
    %v1734 = vand.u32 %v1733, 4294901760
    %v1735 = vsub.f32 %v1733, %v1734
    %v1736 = vand.u32 %v1735, 4294901760
    %1737 = vmatmul.f32.gmra.mxu0 %v1736
    %v1738 = vpop.f32.mrf.mxu0
    %v1739 = vadd.f32 0.0, %v1738
    %v1740 = vand.u32 %v1658, 4294901760
    %v1741 = vsub.f32 %v1658, %v1740
    %v1742 = vand.u32 %v1741, 4294901760
    %v1743 = vsub.f32 %v1741, %v1742
    %v1744 = vand.u32 %v1743, 4294901760
    %1745 = vmatmul.f32.gmra.mxu0 %v1744
    %v1746 = vpop.f32.mrf.mxu0
    %v1747 = vadd.f32 0.0, %v1746
    %v1748 = vand.u32 %v1661, 4294901760
    %v1749 = vsub.f32 %v1661, %v1748
    %v1750 = vand.u32 %v1749, 4294901760
    %v1751 = vsub.f32 %v1749, %v1750
    %v1752 = vand.u32 %v1751, 4294901760
    %1753 = vmatmul.f32.gmra.mxu0 %v1752
    %v1754 = vpop.f32.mrf.mxu0
    %v1755 = vadd.f32 0.0, %v1754
    %v1756 = vand.u32 %v1664, 4294901760
    %v1757 = vsub.f32 %v1664, %v1756
    %v1758 = vand.u32 %v1757, 4294901760
    %v1759 = vsub.f32 %v1757, %v1758
    %v1760 = vand.u32 %v1759, 4294901760
    %1761 = vmatmul.f32.gmra.mxu0 %v1760
    %v1762 = vpop.f32.mrf.mxu0
    %v1763 = vadd.f32 0.0, %v1762
    %v1764 = vand.u32 %v1667, 4294901760
    %v1765 = vsub.f32 %v1667, %v1764
    %v1766 = vand.u32 %v1765, 4294901760
    %v1767 = vsub.f32 %v1765, %v1766
    %v1768 = vand.u32 %v1767, 4294901760
    %1769 = vmatmul.f32.gmra.mxu0 %v1768
    %v1770 = vpop.f32.mrf.mxu0
    %v1771 = vadd.f32 0.0, %v1770
    %v1772 = vand.u32 %v1670, 4294901760
    %v1773 = vsub.f32 %v1670, %v1772
    %v1774 = vand.u32 %v1773, 4294901760
    %v1775 = vsub.f32 %v1773, %v1774
    %v1776 = vand.u32 %v1775, 4294901760
    %1777 = vmatmul.f32.gmra.mxu0 %v1776
    %v1778 = vpop.f32.mrf.mxu0
    %v1779 = vadd.f32 0.0, %v1778
    %v1780 = vand.u32 %v1673, 4294901760
    %v1781 = vsub.f32 %v1673, %v1780
    %v1782 = vand.u32 %v1781, 4294901760
    %v1783 = vsub.f32 %v1781, %v1782
    %v1784 = vand.u32 %v1783, 4294901760
    %1785 = vmatmul.f32.gmra.mxu0 %v1784
    %v1786 = vpop.f32.mrf.mxu0
    %v1787 = vadd.f32 0.0, %v1786
    %v1788 = vand.u32 %v1676, 4294901760
    %v1789 = vsub.f32 %v1676, %v1788
    %v1790 = vand.u32 %v1789, 4294901760
    %v1791 = vsub.f32 %v1789, %v1790
    %v1792 = vand.u32 %v1791, 4294901760
    %1793 = vmatmul.f32.gmra.mxu0 %v1792
    %v1794 = vpop.f32.mrf.mxu0
    %v1795 = vadd.f32 0.0, %v1794
    %v1796 = vand.u32 %v1679, 4294901760
    %v1797 = vsub.f32 %v1679, %v1796
    %v1798 = vand.u32 %v1797, 4294901760
    %v1799 = vsub.f32 %v1797, %v1798
    %v1800 = vand.u32 %v1799, 4294901760
    %1801 = vmatmul.f32.gmra.mxu0 %v1800
    %v1802 = vpop.f32.mrf.mxu0
    %v1803 = vadd.f32 0.0, %v1802
    %v1804 = vand.u32 %v1682, 4294901760
    %v1805 = vsub.f32 %v1682, %v1804
    %v1806 = vand.u32 %v1805, 4294901760
    %v1807 = vsub.f32 %v1805, %v1806
    %v1808 = vand.u32 %v1807, 4294901760
    %1809 = vmatmul.f32.gmra.mxu0 %v1808
    %v1810 = vpop.f32.mrf.mxu0
    %v1811 = vadd.f32 0.0, %v1810
    %v1812 = vand.u32 %v1685, 4294901760
    %v1813 = vsub.f32 %v1685, %v1812
    %v1814 = vand.u32 %v1813, 4294901760
    %v1815 = vsub.f32 %v1813, %v1814
    %v1816 = vand.u32 %v1815, 4294901760
    %1817 = vmatmul.f32.gmra.mxu0 %v1816
    %v1818 = vpop.f32.mrf.mxu0
    %v1819 = vadd.f32 0.0, %v1818
    %v1820 = vand.u32 %v1688, 4294901760
    %v1821 = vsub.f32 %v1688, %v1820
    %v1822 = vand.u32 %v1821, 4294901760
    %v1823 = vsub.f32 %v1821, %v1822
    %v1824 = vand.u32 %v1823, 4294901760
    %1825 = vmatmul.f32.gmra.mxu0 %v1824
    %v1826 = vpop.f32.mrf.mxu0
    %v1827 = vadd.f32 0.0, %v1826
    %v1828 = vand.u32 %v1691, 4294901760
    %v1829 = vsub.f32 %v1691, %v1828
    %v1830 = vand.u32 %v1829, 4294901760
    %v1831 = vsub.f32 %v1829, %v1830
    %v1832 = vand.u32 %v1831, 4294901760
    %1833 = vmatmul.f32.gmra.mxu0 %v1832
    %v1834 = vpop.f32.mrf.mxu0
    %v1835 = vadd.f32 0.0, %v1834
    %v1836 = vand.u32 %v1694, 4294901760
    %v1837 = vsub.f32 %v1694, %v1836
    %v1838 = vand.u32 %v1837, 4294901760
    %v1839 = vsub.f32 %v1837, %v1838
    %v1840 = vand.u32 %v1839, 4294901760
    %1841 = vmatmul.f32.gmra.mxu0 %v1840
    %v1842 = vpop.f32.mrf.mxu0
    %v1843 = vadd.f32 0.0, %v1842
    %1844 = vdwg.mxu0
    %1845 = vmatpush.msra.mxu0 0.0
    %1846 = vmatpush.msra.mxu0 0.0
    %1847 = vmatpush.msra.mxu0 0.0
    %1848 = vmatpush.msra.mxu0 0.0
    %1849 = vmatpush.msra.mxu0 0.0
    %1850 = vmatpush.msra.mxu0 0.0
    %1851 = vmatpush.msra.mxu0 0.0
    %1852 = vmatpush.msra.mxu0 0.0
    %1853 = vmatpush.msra.mxu0 0.0
    %1854 = vmatpush.msra.mxu0 0.0
    %1855 = vmatpush.msra.mxu0 0.0
    %1856 = vmatpush.msra.mxu0 0.0
    %v1857 = vand.u32 %v103, 4294901760
    %v1858 = vsub.f32 %v103, %v1857
    %v1859 = vand.u32 %v1858, 4294901760
    %v1860 = vsub.f32 %v1858, %v1859
    %v1861 = vand.u32 %v1860, 4294901760
    %1862 = vmatpush.msra.mxu0 %v1861
    %v1863 = vand.u32 %v102, 4294901760
    %v1864 = vsub.f32 %v102, %v1863
    %v1865 = vand.u32 %v1864, 4294901760
    %v1866 = vsub.f32 %v1864, %v1865
    %v1867 = vand.u32 %v1866, 4294901760
    %1868 = vmatpush.msra.mxu0 %v1867
    %v1869 = vand.u32 %v101, 4294901760
    %v1870 = vsub.f32 %v101, %v1869
    %v1871 = vand.u32 %v1870, 4294901760
    %v1872 = vsub.f32 %v1870, %v1871
    %v1873 = vand.u32 %v1872, 4294901760
    %1874 = vmatpush.msra.mxu0 %v1873
    %v1875 = vand.u32 %v100, 4294901760
    %v1876 = vsub.f32 %v100, %v1875
    %v1877 = vand.u32 %v1876, 4294901760
    %v1878 = vsub.f32 %v1876, %v1877
    %v1879 = vand.u32 %v1878, 4294901760
    %1880 = vmatpush.msra.mxu0 %v1879
    %v1881 = vand.u32 %v1649, 4294901760
    %1882 = vmatmul.f32.gmra.mxu0 %v1881
    %v1883 = vpop.f32.mrf.mxu0
    %v1884 = vadd.f32 %v1723, %v1883
    %v1885 = vand.u32 %v1652, 4294901760
    %1886 = vmatmul.f32.gmra.mxu0 %v1885
    %v1887 = vpop.f32.mrf.mxu0
    %v1888 = vadd.f32 %v1731, %v1887
    %v1889 = vand.u32 %v1655, 4294901760
    %1890 = vmatmul.f32.gmra.mxu0 %v1889
    %v1891 = vpop.f32.mrf.mxu0
    %v1892 = vadd.f32 %v1739, %v1891
    %v1893 = vand.u32 %v1658, 4294901760
    %1894 = vmatmul.f32.gmra.mxu0 %v1893
    %v1895 = vpop.f32.mrf.mxu0
    %v1896 = vadd.f32 %v1747, %v1895
    %v1897 = vand.u32 %v1661, 4294901760
    %1898 = vmatmul.f32.gmra.mxu0 %v1897
    %v1899 = vpop.f32.mrf.mxu0
    %v1900 = vadd.f32 %v1755, %v1899
    %v1901 = vand.u32 %v1664, 4294901760
    %1902 = vmatmul.f32.gmra.mxu0 %v1901
    %v1903 = vpop.f32.mrf.mxu0
    %v1904 = vadd.f32 %v1763, %v1903
    %v1905 = vand.u32 %v1667, 4294901760
    %1906 = vmatmul.f32.gmra.mxu0 %v1905
    %v1907 = vpop.f32.mrf.mxu0
    %v1908 = vadd.f32 %v1771, %v1907
    %v1909 = vand.u32 %v1670, 4294901760
    %1910 = vmatmul.f32.gmra.mxu0 %v1909
    %v1911 = vpop.f32.mrf.mxu0
    %v1912 = vadd.f32 %v1779, %v1911
    %v1913 = vand.u32 %v1673, 4294901760
    %1914 = vmatmul.f32.gmra.mxu0 %v1913
    %v1915 = vpop.f32.mrf.mxu0
    %v1916 = vadd.f32 %v1787, %v1915
    %v1917 = vand.u32 %v1676, 4294901760
    %1918 = vmatmul.f32.gmra.mxu0 %v1917
    %v1919 = vpop.f32.mrf.mxu0
    %v1920 = vadd.f32 %v1795, %v1919
    %v1921 = vand.u32 %v1679, 4294901760
    %1922 = vmatmul.f32.gmra.mxu0 %v1921
    %v1923 = vpop.f32.mrf.mxu0
    %v1924 = vadd.f32 %v1803, %v1923
    %v1925 = vand.u32 %v1682, 4294901760
    %1926 = vmatmul.f32.gmra.mxu0 %v1925
    %v1927 = vpop.f32.mrf.mxu0
    %v1928 = vadd.f32 %v1811, %v1927
    %v1929 = vand.u32 %v1685, 4294901760
    %1930 = vmatmul.f32.gmra.mxu0 %v1929
    %v1931 = vpop.f32.mrf.mxu0
    %v1932 = vadd.f32 %v1819, %v1931
    %v1933 = vand.u32 %v1688, 4294901760
    %1934 = vmatmul.f32.gmra.mxu0 %v1933
    %v1935 = vpop.f32.mrf.mxu0
    %v1936 = vadd.f32 %v1827, %v1935
    %v1937 = vand.u32 %v1691, 4294901760
    %1938 = vmatmul.f32.gmra.mxu0 %v1937
    %v1939 = vpop.f32.mrf.mxu0
    %v1940 = vadd.f32 %v1835, %v1939
    %v1941 = vand.u32 %v1694, 4294901760
    %1942 = vmatmul.f32.gmra.mxu0 %v1941
    %v1943 = vpop.f32.mrf.mxu0
    %v1944 = vadd.f32 %v1843, %v1943
    %1945 = vdwg.mxu0
    %1946 = vmatpush.msra.mxu0 0.0
    %1947 = vmatpush.msra.mxu0 0.0
    %1948 = vmatpush.msra.mxu0 0.0
    %1949 = vmatpush.msra.mxu0 0.0
    %1950 = vmatpush.msra.mxu0 0.0
    %1951 = vmatpush.msra.mxu0 0.0
    %1952 = vmatpush.msra.mxu0 0.0
    %1953 = vmatpush.msra.mxu0 0.0
    %1954 = vmatpush.msra.mxu0 0.0
    %1955 = vmatpush.msra.mxu0 0.0
    %1956 = vmatpush.msra.mxu0 0.0
    %1957 = vmatpush.msra.mxu0 0.0
    %v1958 = vand.u32 %v103, 4294901760
    %v1959 = vsub.f32 %v103, %v1958
    %1960 = vmatpush.msra.mxu0 %v1959
    %v1961 = vand.u32 %v102, 4294901760
    %v1962 = vsub.f32 %v102, %v1961
    %1963 = vmatpush.msra.mxu0 %v1962
    %v1964 = vand.u32 %v101, 4294901760
    %v1965 = vsub.f32 %v101, %v1964
    %1966 = vmatpush.msra.mxu0 %v1965
    %v1967 = vand.u32 %v100, 4294901760
    %v1968 = vsub.f32 %v100, %v1967
    %1969 = vmatpush.msra.mxu0 %v1968
    %v1970 = vand.u32 %v1649, 4294901760
    %v1971 = vsub.f32 %v1649, %v1970
    %1972 = vmatmul.f32.gmra.mxu0 %v1971
    %v1973 = vpop.f32.mrf.mxu0
    %v1974 = vadd.f32 %v1884, %v1973
    %v1975 = vand.u32 %v1652, 4294901760
    %v1976 = vsub.f32 %v1652, %v1975
    %1977 = vmatmul.f32.gmra.mxu0 %v1976
    %v1978 = vpop.f32.mrf.mxu0
    %v1979 = vadd.f32 %v1888, %v1978
    %v1980 = vand.u32 %v1655, 4294901760
    %v1981 = vsub.f32 %v1655, %v1980
    %1982 = vmatmul.f32.gmra.mxu0 %v1981
    %v1983 = vpop.f32.mrf.mxu0
    %v1984 = vadd.f32 %v1892, %v1983
    %v1985 = vand.u32 %v1658, 4294901760
    %v1986 = vsub.f32 %v1658, %v1985
    %1987 = vmatmul.f32.gmra.mxu0 %v1986
    %v1988 = vpop.f32.mrf.mxu0
    %v1989 = vadd.f32 %v1896, %v1988
    %v1990 = vand.u32 %v1661, 4294901760
    %v1991 = vsub.f32 %v1661, %v1990
    %1992 = vmatmul.f32.gmra.mxu0 %v1991
    %v1993 = vpop.f32.mrf.mxu0
    %v1994 = vadd.f32 %v1900, %v1993
    %v1995 = vand.u32 %v1664, 4294901760
    %v1996 = vsub.f32 %v1664, %v1995
    %1997 = vmatmul.f32.gmra.mxu0 %v1996
    %v1998 = vpop.f32.mrf.mxu0
    %v1999 = vadd.f32 %v1904, %v1998
    %v2000 = vand.u32 %v1667, 4294901760
    %v2001 = vsub.f32 %v1667, %v2000
    %2002 = vmatmul.f32.gmra.mxu0 %v2001
    %v2003 = vpop.f32.mrf.mxu0
    %v2004 = vadd.f32 %v1908, %v2003
    %v2005 = vand.u32 %v1670, 4294901760
    %v2006 = vsub.f32 %v1670, %v2005
    %2007 = vmatmul.f32.gmra.mxu0 %v2006
    %v2008 = vpop.f32.mrf.mxu0
    %v2009 = vadd.f32 %v1912, %v2008
    %v2010 = vand.u32 %v1673, 4294901760
    %v2011 = vsub.f32 %v1673, %v2010
    %2012 = vmatmul.f32.gmra.mxu0 %v2011
    %v2013 = vpop.f32.mrf.mxu0
    %v2014 = vadd.f32 %v1916, %v2013
    %v2015 = vand.u32 %v1676, 4294901760
    %v2016 = vsub.f32 %v1676, %v2015
    %2017 = vmatmul.f32.gmra.mxu0 %v2016
    %v2018 = vpop.f32.mrf.mxu0
    %v2019 = vadd.f32 %v1920, %v2018
    %v2020 = vand.u32 %v1679, 4294901760
    %v2021 = vsub.f32 %v1679, %v2020
    %2022 = vmatmul.f32.gmra.mxu0 %v2021
    %v2023 = vpop.f32.mrf.mxu0
    %v2024 = vadd.f32 %v1924, %v2023
    %v2025 = vand.u32 %v1682, 4294901760
    %v2026 = vsub.f32 %v1682, %v2025
    %2027 = vmatmul.f32.gmra.mxu0 %v2026
    %v2028 = vpop.f32.mrf.mxu0
    %v2029 = vadd.f32 %v1928, %v2028
    %v2030 = vand.u32 %v1685, 4294901760
    %v2031 = vsub.f32 %v1685, %v2030
    %2032 = vmatmul.f32.gmra.mxu0 %v2031
    %v2033 = vpop.f32.mrf.mxu0
    %v2034 = vadd.f32 %v1932, %v2033
    %v2035 = vand.u32 %v1688, 4294901760
    %v2036 = vsub.f32 %v1688, %v2035
    %2037 = vmatmul.f32.gmra.mxu0 %v2036
    %v2038 = vpop.f32.mrf.mxu0
    %v2039 = vadd.f32 %v1936, %v2038
    %v2040 = vand.u32 %v1691, 4294901760
    %v2041 = vsub.f32 %v1691, %v2040
    %2042 = vmatmul.f32.gmra.mxu0 %v2041
    %v2043 = vpop.f32.mrf.mxu0
    %v2044 = vadd.f32 %v1940, %v2043
    %v2045 = vand.u32 %v1694, 4294901760
    %v2046 = vsub.f32 %v1694, %v2045
    %2047 = vmatmul.f32.gmra.mxu0 %v2046
    %v2048 = vpop.f32.mrf.mxu0
    %v2049 = vadd.f32 %v1944, %v2048
    %2050 = vdwg.mxu0
    %2051 = vmatpush.msra.mxu0 0.0
    %2052 = vmatpush.msra.mxu0 0.0
    %2053 = vmatpush.msra.mxu0 0.0
    %2054 = vmatpush.msra.mxu0 0.0
    %2055 = vmatpush.msra.mxu0 0.0
    %2056 = vmatpush.msra.mxu0 0.0
    %2057 = vmatpush.msra.mxu0 0.0
    %2058 = vmatpush.msra.mxu0 0.0
    %2059 = vmatpush.msra.mxu0 0.0
    %2060 = vmatpush.msra.mxu0 0.0
    %2061 = vmatpush.msra.mxu0 0.0
    %2062 = vmatpush.msra.mxu0 0.0
    %v2063 = vand.u32 %v103, 4294901760
    %2064 = vmatpush.msra.mxu0 %v2063
    %v2065 = vand.u32 %v102, 4294901760
    %2066 = vmatpush.msra.mxu0 %v2065
    %v2067 = vand.u32 %v101, 4294901760
    %2068 = vmatpush.msra.mxu0 %v2067
    %v2069 = vand.u32 %v100, 4294901760
    %2070 = vmatpush.msra.mxu0 %v2069
    %v2071 = vand.u32 %v1649, 4294901760
    %v2072 = vsub.f32 %v1649, %v2071
    %v2073 = vand.u32 %v2072, 4294901760
    %2074 = vmatmul.f32.gmra.mxu0 %v2073
    %v2075 = vpop.f32.mrf.mxu0
    %v2076 = vadd.f32 %v1974, %v2075
    %v2077 = vand.u32 %v1652, 4294901760
    %v2078 = vsub.f32 %v1652, %v2077
    %v2079 = vand.u32 %v2078, 4294901760
    %2080 = vmatmul.f32.gmra.mxu0 %v2079
    %v2081 = vpop.f32.mrf.mxu0
    %v2082 = vadd.f32 %v1979, %v2081
    %v2083 = vand.u32 %v1655, 4294901760
    %v2084 = vsub.f32 %v1655, %v2083
    %v2085 = vand.u32 %v2084, 4294901760
    %2086 = vmatmul.f32.gmra.mxu0 %v2085
    %v2087 = vpop.f32.mrf.mxu0
    %v2088 = vadd.f32 %v1984, %v2087
    %v2089 = vand.u32 %v1658, 4294901760
    %v2090 = vsub.f32 %v1658, %v2089
    %v2091 = vand.u32 %v2090, 4294901760
    %2092 = vmatmul.f32.gmra.mxu0 %v2091
    %v2093 = vpop.f32.mrf.mxu0
    %v2094 = vadd.f32 %v1989, %v2093
    %v2095 = vand.u32 %v1661, 4294901760
    %v2096 = vsub.f32 %v1661, %v2095
    %v2097 = vand.u32 %v2096, 4294901760
    %2098 = vmatmul.f32.gmra.mxu0 %v2097
    %v2099 = vpop.f32.mrf.mxu0
    %v2100 = vadd.f32 %v1994, %v2099
    %v2101 = vand.u32 %v1664, 4294901760
    %v2102 = vsub.f32 %v1664, %v2101
    %v2103 = vand.u32 %v2102, 4294901760
    %2104 = vmatmul.f32.gmra.mxu0 %v2103
    %v2105 = vpop.f32.mrf.mxu0
    %v2106 = vadd.f32 %v1999, %v2105
    %v2107 = vand.u32 %v1667, 4294901760
    %v2108 = vsub.f32 %v1667, %v2107
    %v2109 = vand.u32 %v2108, 4294901760
    %2110 = vmatmul.f32.gmra.mxu0 %v2109
    %v2111 = vpop.f32.mrf.mxu0
    %v2112 = vadd.f32 %v2004, %v2111
    %v2113 = vand.u32 %v1670, 4294901760
    %v2114 = vsub.f32 %v1670, %v2113
    %v2115 = vand.u32 %v2114, 4294901760
    %2116 = vmatmul.f32.gmra.mxu0 %v2115
    %v2117 = vpop.f32.mrf.mxu0
    %v2118 = vadd.f32 %v2009, %v2117
    %v2119 = vand.u32 %v1673, 4294901760
    %v2120 = vsub.f32 %v1673, %v2119
    %v2121 = vand.u32 %v2120, 4294901760
    %2122 = vmatmul.f32.gmra.mxu0 %v2121
    %v2123 = vpop.f32.mrf.mxu0
    %v2124 = vadd.f32 %v2014, %v2123
    %v2125 = vand.u32 %v1676, 4294901760
    %v2126 = vsub.f32 %v1676, %v2125
    %v2127 = vand.u32 %v2126, 4294901760
    %2128 = vmatmul.f32.gmra.mxu0 %v2127
    %v2129 = vpop.f32.mrf.mxu0
    %v2130 = vadd.f32 %v2019, %v2129
    %v2131 = vand.u32 %v1679, 4294901760
    %v2132 = vsub.f32 %v1679, %v2131
    %v2133 = vand.u32 %v2132, 4294901760
    %2134 = vmatmul.f32.gmra.mxu0 %v2133
    %v2135 = vpop.f32.mrf.mxu0
    %v2136 = vadd.f32 %v2024, %v2135
    %v2137 = vand.u32 %v1682, 4294901760
    %v2138 = vsub.f32 %v1682, %v2137
    %v2139 = vand.u32 %v2138, 4294901760
    %2140 = vmatmul.f32.gmra.mxu0 %v2139
    %v2141 = vpop.f32.mrf.mxu0
    %v2142 = vadd.f32 %v2029, %v2141
    %v2143 = vand.u32 %v1685, 4294901760
    %v2144 = vsub.f32 %v1685, %v2143
    %v2145 = vand.u32 %v2144, 4294901760
    %2146 = vmatmul.f32.gmra.mxu0 %v2145
    %v2147 = vpop.f32.mrf.mxu0
    %v2148 = vadd.f32 %v2034, %v2147
    %v2149 = vand.u32 %v1688, 4294901760
    %v2150 = vsub.f32 %v1688, %v2149
    %v2151 = vand.u32 %v2150, 4294901760
    %2152 = vmatmul.f32.gmra.mxu0 %v2151
    %v2153 = vpop.f32.mrf.mxu0
    %v2154 = vadd.f32 %v2039, %v2153
    %v2155 = vand.u32 %v1691, 4294901760
    %v2156 = vsub.f32 %v1691, %v2155
    %v2157 = vand.u32 %v2156, 4294901760
    %2158 = vmatmul.f32.gmra.mxu0 %v2157
    %v2159 = vpop.f32.mrf.mxu0
    %v2160 = vadd.f32 %v2044, %v2159
    %v2161 = vand.u32 %v1694, 4294901760
    %v2162 = vsub.f32 %v1694, %v2161
    %v2163 = vand.u32 %v2162, 4294901760
    %2164 = vmatmul.f32.gmra.mxu0 %v2163
    %v2165 = vpop.f32.mrf.mxu0
    %v2166 = vadd.f32 %v2049, %v2165
    %2167 = vdwg.mxu0
    %2168 = vmatpush.msra.mxu0 0.0
    %2169 = vmatpush.msra.mxu0 0.0
    %2170 = vmatpush.msra.mxu0 0.0
    %2171 = vmatpush.msra.mxu0 0.0
    %2172 = vmatpush.msra.mxu0 0.0
    %2173 = vmatpush.msra.mxu0 0.0
    %2174 = vmatpush.msra.mxu0 0.0
    %2175 = vmatpush.msra.mxu0 0.0
    %2176 = vmatpush.msra.mxu0 0.0
    %2177 = vmatpush.msra.mxu0 0.0
    %2178 = vmatpush.msra.mxu0 0.0
    %2179 = vmatpush.msra.mxu0 0.0
    %v2180 = vand.u32 %v103, 4294901760
    %v2181 = vsub.f32 %v103, %v2180
    %v2182 = vand.u32 %v2181, 4294901760
    %2183 = vmatpush.msra.mxu0 %v2182
    %v2184 = vand.u32 %v102, 4294901760
    %v2185 = vsub.f32 %v102, %v2184
    %v2186 = vand.u32 %v2185, 4294901760
    %2187 = vmatpush.msra.mxu0 %v2186
    %v2188 = vand.u32 %v101, 4294901760
    %v2189 = vsub.f32 %v101, %v2188
    %v2190 = vand.u32 %v2189, 4294901760
    %2191 = vmatpush.msra.mxu0 %v2190
    %v2192 = vand.u32 %v100, 4294901760
    %v2193 = vsub.f32 %v100, %v2192
    %v2194 = vand.u32 %v2193, 4294901760
    %2195 = vmatpush.msra.mxu0 %v2194
    %v2196 = vand.u32 %v1649, 4294901760
    %2197 = vmatmul.f32.gmra.mxu0 %v2196
    %v2198 = vpop.f32.mrf.mxu0
    %v2199 = vadd.f32 %v2076, %v2198
    %v2200 = vand.u32 %v1652, 4294901760
    %2201 = vmatmul.f32.gmra.mxu0 %v2200
    %v2202 = vpop.f32.mrf.mxu0
    %v2203 = vadd.f32 %v2082, %v2202
    %v2204 = vand.u32 %v1655, 4294901760
    %2205 = vmatmul.f32.gmra.mxu0 %v2204
    %v2206 = vpop.f32.mrf.mxu0
    %v2207 = vadd.f32 %v2088, %v2206
    %v2208 = vand.u32 %v1658, 4294901760
    %2209 = vmatmul.f32.gmra.mxu0 %v2208
    %v2210 = vpop.f32.mrf.mxu0
    %v2211 = vadd.f32 %v2094, %v2210
    %v2212 = vand.u32 %v1661, 4294901760
    %2213 = vmatmul.f32.gmra.mxu0 %v2212
    %v2214 = vpop.f32.mrf.mxu0
    %v2215 = vadd.f32 %v2100, %v2214
    %v2216 = vand.u32 %v1664, 4294901760
    %2217 = vmatmul.f32.gmra.mxu0 %v2216
    %v2218 = vpop.f32.mrf.mxu0
    %v2219 = vadd.f32 %v2106, %v2218
    %v2220 = vand.u32 %v1667, 4294901760
    %2221 = vmatmul.f32.gmra.mxu0 %v2220
    %v2222 = vpop.f32.mrf.mxu0
    %v2223 = vadd.f32 %v2112, %v2222
    %v2224 = vand.u32 %v1670, 4294901760
    %2225 = vmatmul.f32.gmra.mxu0 %v2224
    %v2226 = vpop.f32.mrf.mxu0
    %v2227 = vadd.f32 %v2118, %v2226
    %v2228 = vand.u32 %v1673, 4294901760
    %2229 = vmatmul.f32.gmra.mxu0 %v2228
    %v2230 = vpop.f32.mrf.mxu0
    %v2231 = vadd.f32 %v2124, %v2230
    %v2232 = vand.u32 %v1676, 4294901760
    %2233 = vmatmul.f32.gmra.mxu0 %v2232
    %v2234 = vpop.f32.mrf.mxu0
    %v2235 = vadd.f32 %v2130, %v2234
    %v2236 = vand.u32 %v1679, 4294901760
    %2237 = vmatmul.f32.gmra.mxu0 %v2236
    %v2238 = vpop.f32.mrf.mxu0
    %v2239 = vadd.f32 %v2136, %v2238
    %v2240 = vand.u32 %v1682, 4294901760
    %2241 = vmatmul.f32.gmra.mxu0 %v2240
    %v2242 = vpop.f32.mrf.mxu0
    %v2243 = vadd.f32 %v2142, %v2242
    %v2244 = vand.u32 %v1685, 4294901760
    %2245 = vmatmul.f32.gmra.mxu0 %v2244
    %v2246 = vpop.f32.mrf.mxu0
    %v2247 = vadd.f32 %v2148, %v2246
    %v2248 = vand.u32 %v1688, 4294901760
    %2249 = vmatmul.f32.gmra.mxu0 %v2248
    %v2250 = vpop.f32.mrf.mxu0
    %v2251 = vadd.f32 %v2154, %v2250
    %v2252 = vand.u32 %v1691, 4294901760
    %2253 = vmatmul.f32.gmra.mxu0 %v2252
    %v2254 = vpop.f32.mrf.mxu0
    %v2255 = vadd.f32 %v2160, %v2254
    %v2256 = vand.u32 %v1694, 4294901760
    %2257 = vmatmul.f32.gmra.mxu0 %v2256
    %v2258 = vpop.f32.mrf.mxu0
    %v2259 = vadd.f32 %v2166, %v2258
    %2260 = vdwg.mxu0
    %2261 = vmatpush.msra.mxu0 0.0
    %2262 = vmatpush.msra.mxu0 0.0
    %2263 = vmatpush.msra.mxu0 0.0
    %2264 = vmatpush.msra.mxu0 0.0
    %2265 = vmatpush.msra.mxu0 0.0
    %2266 = vmatpush.msra.mxu0 0.0
    %2267 = vmatpush.msra.mxu0 0.0
    %2268 = vmatpush.msra.mxu0 0.0
    %2269 = vmatpush.msra.mxu0 0.0
    %2270 = vmatpush.msra.mxu0 0.0
    %2271 = vmatpush.msra.mxu0 0.0
    %2272 = vmatpush.msra.mxu0 0.0
    %v2273 = vand.u32 %v103, 4294901760
    %2274 = vmatpush.msra.mxu0 %v2273
    %v2275 = vand.u32 %v102, 4294901760
    %2276 = vmatpush.msra.mxu0 %v2275
    %v2277 = vand.u32 %v101, 4294901760
    %2278 = vmatpush.msra.mxu0 %v2277
    %v2279 = vand.u32 %v100, 4294901760
    %2280 = vmatpush.msra.mxu0 %v2279
    %v2281 = vand.u32 %v1649, 4294901760
    %2282 = vmatmul.f32.gmra.mxu0 %v2281
    %v2283 = vpop.f32.mrf.mxu0
    %v2284 = vadd.f32 %v2199, %v2283
    %v2285 = vand.u32 %v1652, 4294901760
    %2286 = vmatmul.f32.gmra.mxu0 %v2285
    %v2287 = vpop.f32.mrf.mxu0
    %v2288 = vadd.f32 %v2203, %v2287
    %v2289 = vand.u32 %v1655, 4294901760
    %2290 = vmatmul.f32.gmra.mxu0 %v2289
    %v2291 = vpop.f32.mrf.mxu0
    %v2292 = vadd.f32 %v2207, %v2291
    %v2293 = vand.u32 %v1658, 4294901760
    %2294 = vmatmul.f32.gmra.mxu0 %v2293
    %v2295 = vpop.f32.mrf.mxu0
    %v2296 = vadd.f32 %v2211, %v2295
    %v2297 = vand.u32 %v1661, 4294901760
    %2298 = vmatmul.f32.gmra.mxu0 %v2297
    %v2299 = vpop.f32.mrf.mxu0
    %v2300 = vadd.f32 %v2215, %v2299
    %v2301 = vand.u32 %v1664, 4294901760
    %2302 = vmatmul.f32.gmra.mxu0 %v2301
    %v2303 = vpop.f32.mrf.mxu0
    %v2304 = vadd.f32 %v2219, %v2303
    %v2305 = vand.u32 %v1667, 4294901760
    %2306 = vmatmul.f32.gmra.mxu0 %v2305
    %v2307 = vpop.f32.mrf.mxu0
    %v2308 = vadd.f32 %v2223, %v2307
    %v2309 = vand.u32 %v1670, 4294901760
    %2310 = vmatmul.f32.gmra.mxu0 %v2309
    %v2311 = vpop.f32.mrf.mxu0
    %v2312 = vadd.f32 %v2227, %v2311
    %v2313 = vand.u32 %v1673, 4294901760
    %2314 = vmatmul.f32.gmra.mxu0 %v2313
    %v2315 = vpop.f32.mrf.mxu0
    %v2316 = vadd.f32 %v2231, %v2315
    %v2317 = vand.u32 %v1676, 4294901760
    %2318 = vmatmul.f32.gmra.mxu0 %v2317
    %v2319 = vpop.f32.mrf.mxu0
    %v2320 = vadd.f32 %v2235, %v2319
    %v2321 = vand.u32 %v1679, 4294901760
    %2322 = vmatmul.f32.gmra.mxu0 %v2321
    %v2323 = vpop.f32.mrf.mxu0
    %v2324 = vadd.f32 %v2239, %v2323
    %v2325 = vand.u32 %v1682, 4294901760
    %2326 = vmatmul.f32.gmra.mxu0 %v2325
    %v2327 = vpop.f32.mrf.mxu0
    %v2328 = vadd.f32 %v2243, %v2327
    %v2329 = vand.u32 %v1685, 4294901760
    %2330 = vmatmul.f32.gmra.mxu0 %v2329
    %v2331 = vpop.f32.mrf.mxu0
    %v2332 = vadd.f32 %v2247, %v2331
    %v2333 = vand.u32 %v1688, 4294901760
    %2334 = vmatmul.f32.gmra.mxu0 %v2333
    %v2335 = vpop.f32.mrf.mxu0
    %v2336 = vadd.f32 %v2251, %v2335
    %v2337 = vand.u32 %v1691, 4294901760
    %2338 = vmatmul.f32.gmra.mxu0 %v2337
    %v2339 = vpop.f32.mrf.mxu0
    %v2340 = vadd.f32 %v2255, %v2339
    %v2341 = vand.u32 %v1694, 4294901760
    %2342 = vmatmul.f32.gmra.mxu0 %v2341
    %v2343 = vpop.f32.mrf.mxu0
    %v2344 = vadd.f32 %v2259, %v2343
    %2345 = vdwg.mxu0
    %v2347 = vsel %vm120, %v934, 0
    %v2350 = vsel %vm120, %v935, 0
    %v2353 = vsel %vm120, %v936, 0
    %v2356 = vsel %vm120, %v937, 0
    %v2359 = vsel %vm120, %v938, 0
    %v2362 = vsel %vm120, %v939, 0
    %v2365 = vsel %vm120, %v940, 0
    %v2368 = vsel %vm120, %v941, 0
    %v2371 = vsel %vm120, %v942, 0
    %v2374 = vsel %vm120, %v943, 0
    %v2377 = vsel %vm120, %v944, 0
    %v2380 = vsel %vm120, %v945, 0
    %v2383 = vsel %vm120, %v946, 0
    %v2386 = vsel %vm120, %v947, 0
    %v2389 = vsel %vm120, %v948, 0
    %v2392 = vsel %vm120, %v949, 0
    %2394 = vmatpush.msra.mxu0 0.0
    %2395 = vmatpush.msra.mxu0 0.0
    %2396 = vmatpush.msra.mxu0 0.0
    %2397 = vmatpush.msra.mxu0 0.0
    %2398 = vmatpush.msra.mxu0 0.0
    %2399 = vmatpush.msra.mxu0 0.0
    %2400 = vmatpush.msra.mxu0 0.0
    %2401 = vmatpush.msra.mxu0 0.0
    %2402 = vmatpush.msra.mxu0 0.0
    %2403 = vmatpush.msra.mxu0 0.0
    %2404 = vmatpush.msra.mxu0 0.0
    %2405 = vmatpush.msra.mxu0 0.0
    %v2406 = vand.u32 %v103, 4294901760
    %2407 = vmatpush.msra.mxu0 %v2406
    %v2408 = vand.u32 %v102, 4294901760
    %2409 = vmatpush.msra.mxu0 %v2408
    %v2410 = vand.u32 %v101, 4294901760
    %2411 = vmatpush.msra.mxu0 %v2410
    %v2412 = vand.u32 %v100, 4294901760
    %2413 = vmatpush.msra.mxu0 %v2412
    %v2414 = vand.u32 %v2347, 4294901760
    %v2415 = vsub.f32 %v2347, %v2414
    %v2416 = vand.u32 %v2415, 4294901760
    %v2417 = vsub.f32 %v2415, %v2416
    %v2418 = vand.u32 %v2417, 4294901760
    %2419 = vmatmul.f32.gmra.mxu0 %v2418
    %v2420 = vpop.f32.mrf.mxu0
    %v2421 = vadd.f32 0.0, %v2420
    %v2422 = vand.u32 %v2350, 4294901760
    %v2423 = vsub.f32 %v2350, %v2422
    %v2424 = vand.u32 %v2423, 4294901760
    %v2425 = vsub.f32 %v2423, %v2424
    %v2426 = vand.u32 %v2425, 4294901760
    %2427 = vmatmul.f32.gmra.mxu0 %v2426
    %v2428 = vpop.f32.mrf.mxu0
    %v2429 = vadd.f32 0.0, %v2428
    %v2430 = vand.u32 %v2353, 4294901760
    %v2431 = vsub.f32 %v2353, %v2430
    %v2432 = vand.u32 %v2431, 4294901760
    %v2433 = vsub.f32 %v2431, %v2432
    %v2434 = vand.u32 %v2433, 4294901760
    %2435 = vmatmul.f32.gmra.mxu0 %v2434
    %v2436 = vpop.f32.mrf.mxu0
    %v2437 = vadd.f32 0.0, %v2436
    %v2438 = vand.u32 %v2356, 4294901760
    %v2439 = vsub.f32 %v2356, %v2438
    %v2440 = vand.u32 %v2439, 4294901760
    %v2441 = vsub.f32 %v2439, %v2440
    %v2442 = vand.u32 %v2441, 4294901760
    %2443 = vmatmul.f32.gmra.mxu0 %v2442
    %v2444 = vpop.f32.mrf.mxu0
    %v2445 = vadd.f32 0.0, %v2444
    %v2446 = vand.u32 %v2359, 4294901760
    %v2447 = vsub.f32 %v2359, %v2446
    %v2448 = vand.u32 %v2447, 4294901760
    %v2449 = vsub.f32 %v2447, %v2448
    %v2450 = vand.u32 %v2449, 4294901760
    %2451 = vmatmul.f32.gmra.mxu0 %v2450
    %v2452 = vpop.f32.mrf.mxu0
    %v2453 = vadd.f32 0.0, %v2452
    %v2454 = vand.u32 %v2362, 4294901760
    %v2455 = vsub.f32 %v2362, %v2454
    %v2456 = vand.u32 %v2455, 4294901760
    %v2457 = vsub.f32 %v2455, %v2456
    %v2458 = vand.u32 %v2457, 4294901760
    %2459 = vmatmul.f32.gmra.mxu0 %v2458
    %v2460 = vpop.f32.mrf.mxu0
    %v2461 = vadd.f32 0.0, %v2460
    %v2462 = vand.u32 %v2365, 4294901760
    %v2463 = vsub.f32 %v2365, %v2462
    %v2464 = vand.u32 %v2463, 4294901760
    %v2465 = vsub.f32 %v2463, %v2464
    %v2466 = vand.u32 %v2465, 4294901760
    %2467 = vmatmul.f32.gmra.mxu0 %v2466
    %v2468 = vpop.f32.mrf.mxu0
    %v2469 = vadd.f32 0.0, %v2468
    %v2470 = vand.u32 %v2368, 4294901760
    %v2471 = vsub.f32 %v2368, %v2470
    %v2472 = vand.u32 %v2471, 4294901760
    %v2473 = vsub.f32 %v2471, %v2472
    %v2474 = vand.u32 %v2473, 4294901760
    %2475 = vmatmul.f32.gmra.mxu0 %v2474
    %v2476 = vpop.f32.mrf.mxu0
    %v2477 = vadd.f32 0.0, %v2476
    %v2478 = vand.u32 %v2371, 4294901760
    %v2479 = vsub.f32 %v2371, %v2478
    %v2480 = vand.u32 %v2479, 4294901760
    %v2481 = vsub.f32 %v2479, %v2480
    %v2482 = vand.u32 %v2481, 4294901760
    %2483 = vmatmul.f32.gmra.mxu0 %v2482
    %v2484 = vpop.f32.mrf.mxu0
    %v2485 = vadd.f32 0.0, %v2484
    %v2486 = vand.u32 %v2374, 4294901760
    %v2487 = vsub.f32 %v2374, %v2486
    %v2488 = vand.u32 %v2487, 4294901760
    %v2489 = vsub.f32 %v2487, %v2488
    %v2490 = vand.u32 %v2489, 4294901760
    %2491 = vmatmul.f32.gmra.mxu0 %v2490
    %v2492 = vpop.f32.mrf.mxu0
    %v2493 = vadd.f32 0.0, %v2492
    %v2494 = vand.u32 %v2377, 4294901760
    %v2495 = vsub.f32 %v2377, %v2494
    %v2496 = vand.u32 %v2495, 4294901760
    %v2497 = vsub.f32 %v2495, %v2496
    %v2498 = vand.u32 %v2497, 4294901760
    %2499 = vmatmul.f32.gmra.mxu0 %v2498
    %v2500 = vpop.f32.mrf.mxu0
    %v2501 = vadd.f32 0.0, %v2500
    %v2502 = vand.u32 %v2380, 4294901760
    %v2503 = vsub.f32 %v2380, %v2502
    %v2504 = vand.u32 %v2503, 4294901760
    %v2505 = vsub.f32 %v2503, %v2504
    %v2506 = vand.u32 %v2505, 4294901760
    %2507 = vmatmul.f32.gmra.mxu0 %v2506
    %v2508 = vpop.f32.mrf.mxu0
    %v2509 = vadd.f32 0.0, %v2508
    %v2510 = vand.u32 %v2383, 4294901760
    %v2511 = vsub.f32 %v2383, %v2510
    %v2512 = vand.u32 %v2511, 4294901760
    %v2513 = vsub.f32 %v2511, %v2512
    %v2514 = vand.u32 %v2513, 4294901760
    %2515 = vmatmul.f32.gmra.mxu0 %v2514
    %v2516 = vpop.f32.mrf.mxu0
    %v2517 = vadd.f32 0.0, %v2516
    %v2518 = vand.u32 %v2386, 4294901760
    %v2519 = vsub.f32 %v2386, %v2518
    %v2520 = vand.u32 %v2519, 4294901760
    %v2521 = vsub.f32 %v2519, %v2520
    %v2522 = vand.u32 %v2521, 4294901760
    %2523 = vmatmul.f32.gmra.mxu0 %v2522
    %v2524 = vpop.f32.mrf.mxu0
    %v2525 = vadd.f32 0.0, %v2524
    %v2526 = vand.u32 %v2389, 4294901760
    %v2527 = vsub.f32 %v2389, %v2526
    %v2528 = vand.u32 %v2527, 4294901760
    %v2529 = vsub.f32 %v2527, %v2528
    %v2530 = vand.u32 %v2529, 4294901760
    %2531 = vmatmul.f32.gmra.mxu0 %v2530
    %v2532 = vpop.f32.mrf.mxu0
    %v2533 = vadd.f32 0.0, %v2532
    %v2534 = vand.u32 %v2392, 4294901760
    %v2535 = vsub.f32 %v2392, %v2534
    %v2536 = vand.u32 %v2535, 4294901760
    %v2537 = vsub.f32 %v2535, %v2536
    %v2538 = vand.u32 %v2537, 4294901760
    %2539 = vmatmul.f32.gmra.mxu0 %v2538
    %v2540 = vpop.f32.mrf.mxu0
    %v2541 = vadd.f32 0.0, %v2540
    %2542 = vdwg.mxu0
    %2543 = vmatpush.msra.mxu0 0.0
    %2544 = vmatpush.msra.mxu0 0.0
    %2545 = vmatpush.msra.mxu0 0.0
    %2546 = vmatpush.msra.mxu0 0.0
    %2547 = vmatpush.msra.mxu0 0.0
    %2548 = vmatpush.msra.mxu0 0.0
    %2549 = vmatpush.msra.mxu0 0.0
    %2550 = vmatpush.msra.mxu0 0.0
    %2551 = vmatpush.msra.mxu0 0.0
    %2552 = vmatpush.msra.mxu0 0.0
    %2553 = vmatpush.msra.mxu0 0.0
    %2554 = vmatpush.msra.mxu0 0.0
    %v2555 = vand.u32 %v103, 4294901760
    %v2556 = vsub.f32 %v103, %v2555
    %v2557 = vand.u32 %v2556, 4294901760
    %v2558 = vsub.f32 %v2556, %v2557
    %v2559 = vand.u32 %v2558, 4294901760
    %2560 = vmatpush.msra.mxu0 %v2559
    %v2561 = vand.u32 %v102, 4294901760
    %v2562 = vsub.f32 %v102, %v2561
    %v2563 = vand.u32 %v2562, 4294901760
    %v2564 = vsub.f32 %v2562, %v2563
    %v2565 = vand.u32 %v2564, 4294901760
    %2566 = vmatpush.msra.mxu0 %v2565
    %v2567 = vand.u32 %v101, 4294901760
    %v2568 = vsub.f32 %v101, %v2567
    %v2569 = vand.u32 %v2568, 4294901760
    %v2570 = vsub.f32 %v2568, %v2569
    %v2571 = vand.u32 %v2570, 4294901760
    %2572 = vmatpush.msra.mxu0 %v2571
    %v2573 = vand.u32 %v100, 4294901760
    %v2574 = vsub.f32 %v100, %v2573
    %v2575 = vand.u32 %v2574, 4294901760
    %v2576 = vsub.f32 %v2574, %v2575
    %v2577 = vand.u32 %v2576, 4294901760
    %2578 = vmatpush.msra.mxu0 %v2577
    %v2579 = vand.u32 %v2347, 4294901760
    %2580 = vmatmul.f32.gmra.mxu0 %v2579
    %v2581 = vpop.f32.mrf.mxu0
    %v2582 = vadd.f32 %v2421, %v2581
    %v2583 = vand.u32 %v2350, 4294901760
    %2584 = vmatmul.f32.gmra.mxu0 %v2583
    %v2585 = vpop.f32.mrf.mxu0
    %v2586 = vadd.f32 %v2429, %v2585
    %v2587 = vand.u32 %v2353, 4294901760
    %2588 = vmatmul.f32.gmra.mxu0 %v2587
    %v2589 = vpop.f32.mrf.mxu0
    %v2590 = vadd.f32 %v2437, %v2589
    %v2591 = vand.u32 %v2356, 4294901760
    %2592 = vmatmul.f32.gmra.mxu0 %v2591
    %v2593 = vpop.f32.mrf.mxu0
    %v2594 = vadd.f32 %v2445, %v2593
    %v2595 = vand.u32 %v2359, 4294901760
    %2596 = vmatmul.f32.gmra.mxu0 %v2595
    %v2597 = vpop.f32.mrf.mxu0
    %v2598 = vadd.f32 %v2453, %v2597
    %v2599 = vand.u32 %v2362, 4294901760
    %2600 = vmatmul.f32.gmra.mxu0 %v2599
    %v2601 = vpop.f32.mrf.mxu0
    %v2602 = vadd.f32 %v2461, %v2601
    %v2603 = vand.u32 %v2365, 4294901760
    %2604 = vmatmul.f32.gmra.mxu0 %v2603
    %v2605 = vpop.f32.mrf.mxu0
    %v2606 = vadd.f32 %v2469, %v2605
    %v2607 = vand.u32 %v2368, 4294901760
    %2608 = vmatmul.f32.gmra.mxu0 %v2607
    %v2609 = vpop.f32.mrf.mxu0
    %v2610 = vadd.f32 %v2477, %v2609
    %v2611 = vand.u32 %v2371, 4294901760
    %2612 = vmatmul.f32.gmra.mxu0 %v2611
    %v2613 = vpop.f32.mrf.mxu0
    %v2614 = vadd.f32 %v2485, %v2613
    %v2615 = vand.u32 %v2374, 4294901760
    %2616 = vmatmul.f32.gmra.mxu0 %v2615
    %v2617 = vpop.f32.mrf.mxu0
    %v2618 = vadd.f32 %v2493, %v2617
    %v2619 = vand.u32 %v2377, 4294901760
    %2620 = vmatmul.f32.gmra.mxu0 %v2619
    %v2621 = vpop.f32.mrf.mxu0
    %v2622 = vadd.f32 %v2501, %v2621
    %v2623 = vand.u32 %v2380, 4294901760
    %2624 = vmatmul.f32.gmra.mxu0 %v2623
    %v2625 = vpop.f32.mrf.mxu0
    %v2626 = vadd.f32 %v2509, %v2625
    %v2627 = vand.u32 %v2383, 4294901760
    %2628 = vmatmul.f32.gmra.mxu0 %v2627
    %v2629 = vpop.f32.mrf.mxu0
    %v2630 = vadd.f32 %v2517, %v2629
    %v2631 = vand.u32 %v2386, 4294901760
    %2632 = vmatmul.f32.gmra.mxu0 %v2631
    %v2633 = vpop.f32.mrf.mxu0
    %v2634 = vadd.f32 %v2525, %v2633
    %v2635 = vand.u32 %v2389, 4294901760
    %2636 = vmatmul.f32.gmra.mxu0 %v2635
    %v2637 = vpop.f32.mrf.mxu0
    %v2638 = vadd.f32 %v2533, %v2637
    %v2639 = vand.u32 %v2392, 4294901760
    %2640 = vmatmul.f32.gmra.mxu0 %v2639
    %v2641 = vpop.f32.mrf.mxu0
    %v2642 = vadd.f32 %v2541, %v2641
    %2643 = vdwg.mxu0
    %2644 = vmatpush.msra.mxu0 0.0
    %2645 = vmatpush.msra.mxu0 0.0
    %2646 = vmatpush.msra.mxu0 0.0
    %2647 = vmatpush.msra.mxu0 0.0
    %2648 = vmatpush.msra.mxu0 0.0
    %2649 = vmatpush.msra.mxu0 0.0
    %2650 = vmatpush.msra.mxu0 0.0
    %2651 = vmatpush.msra.mxu0 0.0
    %2652 = vmatpush.msra.mxu0 0.0
    %2653 = vmatpush.msra.mxu0 0.0
    %2654 = vmatpush.msra.mxu0 0.0
    %2655 = vmatpush.msra.mxu0 0.0
    %v2656 = vand.u32 %v103, 4294901760
    %v2657 = vsub.f32 %v103, %v2656
    %2658 = vmatpush.msra.mxu0 %v2657
    %v2659 = vand.u32 %v102, 4294901760
    %v2660 = vsub.f32 %v102, %v2659
    %2661 = vmatpush.msra.mxu0 %v2660
    %v2662 = vand.u32 %v101, 4294901760
    %v2663 = vsub.f32 %v101, %v2662
    %2664 = vmatpush.msra.mxu0 %v2663
    %v2665 = vand.u32 %v100, 4294901760
    %v2666 = vsub.f32 %v100, %v2665
    %2667 = vmatpush.msra.mxu0 %v2666
    %v2668 = vand.u32 %v2347, 4294901760
    %v2669 = vsub.f32 %v2347, %v2668
    %2670 = vmatmul.f32.gmra.mxu0 %v2669
    %v2671 = vpop.f32.mrf.mxu0
    %v2672 = vadd.f32 %v2582, %v2671
    %v2673 = vand.u32 %v2350, 4294901760
    %v2674 = vsub.f32 %v2350, %v2673
    %2675 = vmatmul.f32.gmra.mxu0 %v2674
    %v2676 = vpop.f32.mrf.mxu0
    %v2677 = vadd.f32 %v2586, %v2676
    %v2678 = vand.u32 %v2353, 4294901760
    %v2679 = vsub.f32 %v2353, %v2678
    %2680 = vmatmul.f32.gmra.mxu0 %v2679
    %v2681 = vpop.f32.mrf.mxu0
    %v2682 = vadd.f32 %v2590, %v2681
    %v2683 = vand.u32 %v2356, 4294901760
    %v2684 = vsub.f32 %v2356, %v2683
    %2685 = vmatmul.f32.gmra.mxu0 %v2684
    %v2686 = vpop.f32.mrf.mxu0
    %v2687 = vadd.f32 %v2594, %v2686
    %v2688 = vand.u32 %v2359, 4294901760
    %v2689 = vsub.f32 %v2359, %v2688
    %2690 = vmatmul.f32.gmra.mxu0 %v2689
    %v2691 = vpop.f32.mrf.mxu0
    %v2692 = vadd.f32 %v2598, %v2691
    %v2693 = vand.u32 %v2362, 4294901760
    %v2694 = vsub.f32 %v2362, %v2693
    %2695 = vmatmul.f32.gmra.mxu0 %v2694
    %v2696 = vpop.f32.mrf.mxu0
    %v2697 = vadd.f32 %v2602, %v2696
    %v2698 = vand.u32 %v2365, 4294901760
    %v2699 = vsub.f32 %v2365, %v2698
    %2700 = vmatmul.f32.gmra.mxu0 %v2699
    %v2701 = vpop.f32.mrf.mxu0
    %v2702 = vadd.f32 %v2606, %v2701
    %v2703 = vand.u32 %v2368, 4294901760
    %v2704 = vsub.f32 %v2368, %v2703
    %2705 = vmatmul.f32.gmra.mxu0 %v2704
    %v2706 = vpop.f32.mrf.mxu0
    %v2707 = vadd.f32 %v2610, %v2706
    %v2708 = vand.u32 %v2371, 4294901760
    %v2709 = vsub.f32 %v2371, %v2708
    %2710 = vmatmul.f32.gmra.mxu0 %v2709
    %v2711 = vpop.f32.mrf.mxu0
    %v2712 = vadd.f32 %v2614, %v2711
    %v2713 = vand.u32 %v2374, 4294901760
    %v2714 = vsub.f32 %v2374, %v2713
    %2715 = vmatmul.f32.gmra.mxu0 %v2714
    %v2716 = vpop.f32.mrf.mxu0
    %v2717 = vadd.f32 %v2618, %v2716
    %v2718 = vand.u32 %v2377, 4294901760
    %v2719 = vsub.f32 %v2377, %v2718
    %2720 = vmatmul.f32.gmra.mxu0 %v2719
    %v2721 = vpop.f32.mrf.mxu0
    %v2722 = vadd.f32 %v2622, %v2721
    %v2723 = vand.u32 %v2380, 4294901760
    %v2724 = vsub.f32 %v2380, %v2723
    %2725 = vmatmul.f32.gmra.mxu0 %v2724
    %v2726 = vpop.f32.mrf.mxu0
    %v2727 = vadd.f32 %v2626, %v2726
    %v2728 = vand.u32 %v2383, 4294901760
    %v2729 = vsub.f32 %v2383, %v2728
    %2730 = vmatmul.f32.gmra.mxu0 %v2729
    %v2731 = vpop.f32.mrf.mxu0
    %v2732 = vadd.f32 %v2630, %v2731
    %v2733 = vand.u32 %v2386, 4294901760
    %v2734 = vsub.f32 %v2386, %v2733
    %2735 = vmatmul.f32.gmra.mxu0 %v2734
    %v2736 = vpop.f32.mrf.mxu0
    %v2737 = vadd.f32 %v2634, %v2736
    %v2738 = vand.u32 %v2389, 4294901760
    %v2739 = vsub.f32 %v2389, %v2738
    %2740 = vmatmul.f32.gmra.mxu0 %v2739
    %v2741 = vpop.f32.mrf.mxu0
    %v2742 = vadd.f32 %v2638, %v2741
    %v2743 = vand.u32 %v2392, 4294901760
    %v2744 = vsub.f32 %v2392, %v2743
    %2745 = vmatmul.f32.gmra.mxu0 %v2744
    %v2746 = vpop.f32.mrf.mxu0
    %v2747 = vadd.f32 %v2642, %v2746
    %2748 = vdwg.mxu0
    %2749 = vmatpush.msra.mxu0 0.0
    %2750 = vmatpush.msra.mxu0 0.0
    %2751 = vmatpush.msra.mxu0 0.0
    %2752 = vmatpush.msra.mxu0 0.0
    %2753 = vmatpush.msra.mxu0 0.0
    %2754 = vmatpush.msra.mxu0 0.0
    %2755 = vmatpush.msra.mxu0 0.0
    %2756 = vmatpush.msra.mxu0 0.0
    %2757 = vmatpush.msra.mxu0 0.0
    %2758 = vmatpush.msra.mxu0 0.0
    %2759 = vmatpush.msra.mxu0 0.0
    %2760 = vmatpush.msra.mxu0 0.0
    %v2761 = vand.u32 %v103, 4294901760
    %2762 = vmatpush.msra.mxu0 %v2761
    %v2763 = vand.u32 %v102, 4294901760
    %2764 = vmatpush.msra.mxu0 %v2763
    %v2765 = vand.u32 %v101, 4294901760
    %2766 = vmatpush.msra.mxu0 %v2765
    %v2767 = vand.u32 %v100, 4294901760
    %2768 = vmatpush.msra.mxu0 %v2767
    %v2769 = vand.u32 %v2347, 4294901760
    %v2770 = vsub.f32 %v2347, %v2769
    %v2771 = vand.u32 %v2770, 4294901760
    %2772 = vmatmul.f32.gmra.mxu0 %v2771
    %v2773 = vpop.f32.mrf.mxu0
    %v2774 = vadd.f32 %v2672, %v2773
    %v2775 = vand.u32 %v2350, 4294901760
    %v2776 = vsub.f32 %v2350, %v2775
    %v2777 = vand.u32 %v2776, 4294901760
    %2778 = vmatmul.f32.gmra.mxu0 %v2777
    %v2779 = vpop.f32.mrf.mxu0
    %v2780 = vadd.f32 %v2677, %v2779
    %v2781 = vand.u32 %v2353, 4294901760
    %v2782 = vsub.f32 %v2353, %v2781
    %v2783 = vand.u32 %v2782, 4294901760
    %2784 = vmatmul.f32.gmra.mxu0 %v2783
    %v2785 = vpop.f32.mrf.mxu0
    %v2786 = vadd.f32 %v2682, %v2785
    %v2787 = vand.u32 %v2356, 4294901760
    %v2788 = vsub.f32 %v2356, %v2787
    %v2789 = vand.u32 %v2788, 4294901760
    %2790 = vmatmul.f32.gmra.mxu0 %v2789
    %v2791 = vpop.f32.mrf.mxu0
    %v2792 = vadd.f32 %v2687, %v2791
    %v2793 = vand.u32 %v2359, 4294901760
    %v2794 = vsub.f32 %v2359, %v2793
    %v2795 = vand.u32 %v2794, 4294901760
    %2796 = vmatmul.f32.gmra.mxu0 %v2795
    %v2797 = vpop.f32.mrf.mxu0
    %v2798 = vadd.f32 %v2692, %v2797
    %v2799 = vand.u32 %v2362, 4294901760
    %v2800 = vsub.f32 %v2362, %v2799
    %v2801 = vand.u32 %v2800, 4294901760
    %2802 = vmatmul.f32.gmra.mxu0 %v2801
    %v2803 = vpop.f32.mrf.mxu0
    %v2804 = vadd.f32 %v2697, %v2803
    %v2805 = vand.u32 %v2365, 4294901760
    %v2806 = vsub.f32 %v2365, %v2805
    %v2807 = vand.u32 %v2806, 4294901760
    %2808 = vmatmul.f32.gmra.mxu0 %v2807
    %v2809 = vpop.f32.mrf.mxu0
    %v2810 = vadd.f32 %v2702, %v2809
    %v2811 = vand.u32 %v2368, 4294901760
    %v2812 = vsub.f32 %v2368, %v2811
    %v2813 = vand.u32 %v2812, 4294901760
    %2814 = vmatmul.f32.gmra.mxu0 %v2813
    %v2815 = vpop.f32.mrf.mxu0
    %v2816 = vadd.f32 %v2707, %v2815
    %v2817 = vand.u32 %v2371, 4294901760
    %v2818 = vsub.f32 %v2371, %v2817
    %v2819 = vand.u32 %v2818, 4294901760
    %2820 = vmatmul.f32.gmra.mxu0 %v2819
    %v2821 = vpop.f32.mrf.mxu0
    %v2822 = vadd.f32 %v2712, %v2821
    %v2823 = vand.u32 %v2374, 4294901760
    %v2824 = vsub.f32 %v2374, %v2823
    %v2825 = vand.u32 %v2824, 4294901760
    %2826 = vmatmul.f32.gmra.mxu0 %v2825
    %v2827 = vpop.f32.mrf.mxu0
    %v2828 = vadd.f32 %v2717, %v2827
    %v2829 = vand.u32 %v2377, 4294901760
    %v2830 = vsub.f32 %v2377, %v2829
    %v2831 = vand.u32 %v2830, 4294901760
    %2832 = vmatmul.f32.gmra.mxu0 %v2831
    %v2833 = vpop.f32.mrf.mxu0
    %v2834 = vadd.f32 %v2722, %v2833
    %v2835 = vand.u32 %v2380, 4294901760
    %v2836 = vsub.f32 %v2380, %v2835
    %v2837 = vand.u32 %v2836, 4294901760
    %2838 = vmatmul.f32.gmra.mxu0 %v2837
    %v2839 = vpop.f32.mrf.mxu0
    %v2840 = vadd.f32 %v2727, %v2839
    %v2841 = vand.u32 %v2383, 4294901760
    %v2842 = vsub.f32 %v2383, %v2841
    %v2843 = vand.u32 %v2842, 4294901760
    %2844 = vmatmul.f32.gmra.mxu0 %v2843
    %v2845 = vpop.f32.mrf.mxu0
    %v2846 = vadd.f32 %v2732, %v2845
    %v2847 = vand.u32 %v2386, 4294901760
    %v2848 = vsub.f32 %v2386, %v2847
    %v2849 = vand.u32 %v2848, 4294901760
    %2850 = vmatmul.f32.gmra.mxu0 %v2849
    %v2851 = vpop.f32.mrf.mxu0
    %v2852 = vadd.f32 %v2737, %v2851
    %v2853 = vand.u32 %v2389, 4294901760
    %v2854 = vsub.f32 %v2389, %v2853
    %v2855 = vand.u32 %v2854, 4294901760
    %2856 = vmatmul.f32.gmra.mxu0 %v2855
    %v2857 = vpop.f32.mrf.mxu0
    %v2858 = vadd.f32 %v2742, %v2857
    %v2859 = vand.u32 %v2392, 4294901760
    %v2860 = vsub.f32 %v2392, %v2859
    %v2861 = vand.u32 %v2860, 4294901760
    %2862 = vmatmul.f32.gmra.mxu0 %v2861
    %v2863 = vpop.f32.mrf.mxu0
    %v2864 = vadd.f32 %v2747, %v2863
    %2865 = vdwg.mxu0
    %2866 = vmatpush.msra.mxu0 0.0
    %2867 = vmatpush.msra.mxu0 0.0
    %2868 = vmatpush.msra.mxu0 0.0
    %2869 = vmatpush.msra.mxu0 0.0
    %2870 = vmatpush.msra.mxu0 0.0
    %2871 = vmatpush.msra.mxu0 0.0
    %2872 = vmatpush.msra.mxu0 0.0
    %2873 = vmatpush.msra.mxu0 0.0
    %2874 = vmatpush.msra.mxu0 0.0
    %2875 = vmatpush.msra.mxu0 0.0
    %2876 = vmatpush.msra.mxu0 0.0
    %2877 = vmatpush.msra.mxu0 0.0
    %v2878 = vand.u32 %v103, 4294901760
    %v2879 = vsub.f32 %v103, %v2878
    %v2880 = vand.u32 %v2879, 4294901760
    %2881 = vmatpush.msra.mxu0 %v2880
    %v2882 = vand.u32 %v102, 4294901760
    %v2883 = vsub.f32 %v102, %v2882
    %v2884 = vand.u32 %v2883, 4294901760
    %2885 = vmatpush.msra.mxu0 %v2884
    %v2886 = vand.u32 %v101, 4294901760
    %v2887 = vsub.f32 %v101, %v2886
    %v2888 = vand.u32 %v2887, 4294901760
    %2889 = vmatpush.msra.mxu0 %v2888
    %v2890 = vand.u32 %v100, 4294901760
    %v2891 = vsub.f32 %v100, %v2890
    %v2892 = vand.u32 %v2891, 4294901760
    %2893 = vmatpush.msra.mxu0 %v2892
    %v2894 = vand.u32 %v2347, 4294901760
    %2895 = vmatmul.f32.gmra.mxu0 %v2894
    %v2896 = vpop.f32.mrf.mxu0
    %v2897 = vadd.f32 %v2774, %v2896
    %v2898 = vand.u32 %v2350, 4294901760
    %2899 = vmatmul.f32.gmra.mxu0 %v2898
    %v2900 = vpop.f32.mrf.mxu0
    %v2901 = vadd.f32 %v2780, %v2900
    %v2902 = vand.u32 %v2353, 4294901760
    %2903 = vmatmul.f32.gmra.mxu0 %v2902
    %v2904 = vpop.f32.mrf.mxu0
    %v2905 = vadd.f32 %v2786, %v2904
    %v2906 = vand.u32 %v2356, 4294901760
    %2907 = vmatmul.f32.gmra.mxu0 %v2906
    %v2908 = vpop.f32.mrf.mxu0
    %v2909 = vadd.f32 %v2792, %v2908
    %v2910 = vand.u32 %v2359, 4294901760
    %2911 = vmatmul.f32.gmra.mxu0 %v2910
    %v2912 = vpop.f32.mrf.mxu0
    %v2913 = vadd.f32 %v2798, %v2912
    %v2914 = vand.u32 %v2362, 4294901760
    %2915 = vmatmul.f32.gmra.mxu0 %v2914
    %v2916 = vpop.f32.mrf.mxu0
    %v2917 = vadd.f32 %v2804, %v2916
    %v2918 = vand.u32 %v2365, 4294901760
    %2919 = vmatmul.f32.gmra.mxu0 %v2918
    %v2920 = vpop.f32.mrf.mxu0
    %v2921 = vadd.f32 %v2810, %v2920
    %v2922 = vand.u32 %v2368, 4294901760
    %2923 = vmatmul.f32.gmra.mxu0 %v2922
    %v2924 = vpop.f32.mrf.mxu0
    %v2925 = vadd.f32 %v2816, %v2924
    %v2926 = vand.u32 %v2371, 4294901760
    %2927 = vmatmul.f32.gmra.mxu0 %v2926
    %v2928 = vpop.f32.mrf.mxu0
    %v2929 = vadd.f32 %v2822, %v2928
    %v2930 = vand.u32 %v2374, 4294901760
    %2931 = vmatmul.f32.gmra.mxu0 %v2930
    %v2932 = vpop.f32.mrf.mxu0
    %v2933 = vadd.f32 %v2828, %v2932
    %v2934 = vand.u32 %v2377, 4294901760
    %2935 = vmatmul.f32.gmra.mxu0 %v2934
    %v2936 = vpop.f32.mrf.mxu0
    %v2937 = vadd.f32 %v2834, %v2936
    %v2938 = vand.u32 %v2380, 4294901760
    %2939 = vmatmul.f32.gmra.mxu0 %v2938
    %v2940 = vpop.f32.mrf.mxu0
    %v2941 = vadd.f32 %v2840, %v2940
    %v2942 = vand.u32 %v2383, 4294901760
    %2943 = vmatmul.f32.gmra.mxu0 %v2942
    %v2944 = vpop.f32.mrf.mxu0
    %v2945 = vadd.f32 %v2846, %v2944
    %v2946 = vand.u32 %v2386, 4294901760
    %2947 = vmatmul.f32.gmra.mxu0 %v2946
    %v2948 = vpop.f32.mrf.mxu0
    %v2949 = vadd.f32 %v2852, %v2948
    %v2950 = vand.u32 %v2389, 4294901760
    %2951 = vmatmul.f32.gmra.mxu0 %v2950
    %v2952 = vpop.f32.mrf.mxu0
    %v2953 = vadd.f32 %v2858, %v2952
    %v2954 = vand.u32 %v2392, 4294901760
    %2955 = vmatmul.f32.gmra.mxu0 %v2954
    %v2956 = vpop.f32.mrf.mxu0
    %v2957 = vadd.f32 %v2864, %v2956
    %2958 = vdwg.mxu0
    %2959 = vmatpush.msra.mxu0 0.0
    %2960 = vmatpush.msra.mxu0 0.0
    %2961 = vmatpush.msra.mxu0 0.0
    %2962 = vmatpush.msra.mxu0 0.0
    %2963 = vmatpush.msra.mxu0 0.0
    %2964 = vmatpush.msra.mxu0 0.0
    %2965 = vmatpush.msra.mxu0 0.0
    %2966 = vmatpush.msra.mxu0 0.0
    %2967 = vmatpush.msra.mxu0 0.0
    %2968 = vmatpush.msra.mxu0 0.0
    %2969 = vmatpush.msra.mxu0 0.0
    %2970 = vmatpush.msra.mxu0 0.0
    %v2971 = vand.u32 %v103, 4294901760
    %2972 = vmatpush.msra.mxu0 %v2971
    %v2973 = vand.u32 %v102, 4294901760
    %2974 = vmatpush.msra.mxu0 %v2973
    %v2975 = vand.u32 %v101, 4294901760
    %2976 = vmatpush.msra.mxu0 %v2975
    %v2977 = vand.u32 %v100, 4294901760
    %2978 = vmatpush.msra.mxu0 %v2977
    %v2979 = vand.u32 %v2347, 4294901760
    %2980 = vmatmul.f32.gmra.mxu0 %v2979
    %v2981 = vpop.f32.mrf.mxu0
    %v2982 = vadd.f32 %v2897, %v2981
    %v2983 = vand.u32 %v2350, 4294901760
    %2984 = vmatmul.f32.gmra.mxu0 %v2983
    %v2985 = vpop.f32.mrf.mxu0
    %v2986 = vadd.f32 %v2901, %v2985
    %v2987 = vand.u32 %v2353, 4294901760
    %2988 = vmatmul.f32.gmra.mxu0 %v2987
    %v2989 = vpop.f32.mrf.mxu0
    %v2990 = vadd.f32 %v2905, %v2989
    %v2991 = vand.u32 %v2356, 4294901760
    %2992 = vmatmul.f32.gmra.mxu0 %v2991
    %v2993 = vpop.f32.mrf.mxu0
    %v2994 = vadd.f32 %v2909, %v2993
    %v2995 = vand.u32 %v2359, 4294901760
    %2996 = vmatmul.f32.gmra.mxu0 %v2995
    %v2997 = vpop.f32.mrf.mxu0
    %v2998 = vadd.f32 %v2913, %v2997
    %v2999 = vand.u32 %v2362, 4294901760
    %3000 = vmatmul.f32.gmra.mxu0 %v2999
    %v3001 = vpop.f32.mrf.mxu0
    %v3002 = vadd.f32 %v2917, %v3001
    %v3003 = vand.u32 %v2365, 4294901760
    %3004 = vmatmul.f32.gmra.mxu0 %v3003
    %v3005 = vpop.f32.mrf.mxu0
    %v3006 = vadd.f32 %v2921, %v3005
    %v3007 = vand.u32 %v2368, 4294901760
    %3008 = vmatmul.f32.gmra.mxu0 %v3007
    %v3009 = vpop.f32.mrf.mxu0
    %v3010 = vadd.f32 %v2925, %v3009
    %v3011 = vand.u32 %v2371, 4294901760
    %3012 = vmatmul.f32.gmra.mxu0 %v3011
    %v3013 = vpop.f32.mrf.mxu0
    %v3014 = vadd.f32 %v2929, %v3013
    %v3015 = vand.u32 %v2374, 4294901760
    %3016 = vmatmul.f32.gmra.mxu0 %v3015
    %v3017 = vpop.f32.mrf.mxu0
    %v3018 = vadd.f32 %v2933, %v3017
    %v3019 = vand.u32 %v2377, 4294901760
    %3020 = vmatmul.f32.gmra.mxu0 %v3019
    %v3021 = vpop.f32.mrf.mxu0
    %v3022 = vadd.f32 %v2937, %v3021
    %v3023 = vand.u32 %v2380, 4294901760
    %3024 = vmatmul.f32.gmra.mxu0 %v3023
    %v3025 = vpop.f32.mrf.mxu0
    %v3026 = vadd.f32 %v2941, %v3025
    %v3027 = vand.u32 %v2383, 4294901760
    %3028 = vmatmul.f32.gmra.mxu0 %v3027
    %v3029 = vpop.f32.mrf.mxu0
    %v3030 = vadd.f32 %v2945, %v3029
    %v3031 = vand.u32 %v2386, 4294901760
    %3032 = vmatmul.f32.gmra.mxu0 %v3031
    %v3033 = vpop.f32.mrf.mxu0
    %v3034 = vadd.f32 %v2949, %v3033
    %v3035 = vand.u32 %v2389, 4294901760
    %3036 = vmatmul.f32.gmra.mxu0 %v3035
    %v3037 = vpop.f32.mrf.mxu0
    %v3038 = vadd.f32 %v2953, %v3037
    %v3039 = vand.u32 %v2392, 4294901760
    %3040 = vmatmul.f32.gmra.mxu0 %v3039
    %v3041 = vpop.f32.mrf.mxu0
    %v3042 = vadd.f32 %v2957, %v3041
    %3043 = vdwg.mxu0
    %vm3044 = vcmask 523264
    %3045 = vst.msk [vmem:[%s5] sm:$0xff] %vm3044, %v1586
    %3046 = vst.msk [vmem:[%s5 + $0x8] sm:$0xff] %vm3044, %v1590
    %3047 = vst.msk [vmem:[%s5 + $0x10] sm:$0xff] %vm3044, %v1594
    %3048 = vst.msk [vmem:[%s5 + $0x18] sm:$0xff] %vm3044, %v1598
    %3049 = vst.msk [vmem:[%s5 + $0x20] sm:$0xff] %vm3044, %v1602
    %3050 = vst.msk [vmem:[%s5 + $0x28] sm:$0xff] %vm3044, %v1606
    %3051 = vst.msk [vmem:[%s5 + $0x30] sm:$0xff] %vm3044, %v1610
    %3052 = vst.msk [vmem:[%s5 + $0x38] sm:$0xff] %vm3044, %v1614
    %3053 = vst.msk [vmem:[%s5 + $0x40] sm:$0xff] %vm3044, %v1618
    %3054 = vst.msk [vmem:[%s5 + $0x48] sm:$0xff] %vm3044, %v1622
    %3055 = vst.msk [vmem:[%s5 + $0x50] sm:$0xff] %vm3044, %v1626
    %3056 = vst.msk [vmem:[%s5 + $0x58] sm:$0xff] %vm3044, %v1630
    %3057 = vst.msk [vmem:[%s5 + $0x60] sm:$0xff] %vm3044, %v1634
    %3058 = vst.msk [vmem:[%s5 + $0x68] sm:$0xff] %vm3044, %v1638
    %3059 = vst.msk [vmem:[%s5 + $0x70] sm:$0xff] %vm3044, %v1642
    %3060 = vst.msk [vmem:[%s5 + $0x78] sm:$0xff] %vm3044, %v1646
    %3061 = vst.msk [vmem:[%s6] sm:$0xff] %vm3044, %v2284
    %3062 = vst.msk [vmem:[%s6 + $0x8] sm:$0xff] %vm3044, %v2288
    %3063 = vst.msk [vmem:[%s6 + $0x10] sm:$0xff] %vm3044, %v2292
    %3064 = vst.msk [vmem:[%s6 + $0x18] sm:$0xff] %vm3044, %v2296
    %3065 = vst.msk [vmem:[%s6 + $0x20] sm:$0xff] %vm3044, %v2300
    %3066 = vst.msk [vmem:[%s6 + $0x28] sm:$0xff] %vm3044, %v2304
    %3067 = vst.msk [vmem:[%s6 + $0x30] sm:$0xff] %vm3044, %v2308
    %3068 = vst.msk [vmem:[%s6 + $0x38] sm:$0xff] %vm3044, %v2312
    %3069 = vst.msk [vmem:[%s6 + $0x40] sm:$0xff] %vm3044, %v2316
    %3070 = vst.msk [vmem:[%s6 + $0x48] sm:$0xff] %vm3044, %v2320
    %3071 = vst.msk [vmem:[%s6 + $0x50] sm:$0xff] %vm3044, %v2324
    %3072 = vst.msk [vmem:[%s6 + $0x58] sm:$0xff] %vm3044, %v2328
    %3073 = vst.msk [vmem:[%s6 + $0x60] sm:$0xff] %vm3044, %v2332
    %3074 = vst.msk [vmem:[%s6 + $0x68] sm:$0xff] %vm3044, %v2336
    %3075 = vst.msk [vmem:[%s6 + $0x70] sm:$0xff] %vm3044, %v2340
    %3076 = vst.msk [vmem:[%s6 + $0x78] sm:$0xff] %vm3044, %v2344
    %3077 = vst.msk [vmem:[%s7] sm:$0xff] %vm3044, %v2982
    %3078 = vst.msk [vmem:[%s7 + $0x8] sm:$0xff] %vm3044, %v2986
    %3079 = vst.msk [vmem:[%s7 + $0x10] sm:$0xff] %vm3044, %v2990
    %3080 = vst.msk [vmem:[%s7 + $0x18] sm:$0xff] %vm3044, %v2994
    %3081 = vst.msk [vmem:[%s7 + $0x20] sm:$0xff] %vm3044, %v2998
    %3082 = vst.msk [vmem:[%s7 + $0x28] sm:$0xff] %vm3044, %v3002
    %3083 = vst.msk [vmem:[%s7 + $0x30] sm:$0xff] %vm3044, %v3006
    %3084 = vst.msk [vmem:[%s7 + $0x38] sm:$0xff] %vm3044, %v3010
    %3085 = vst.msk [vmem:[%s7 + $0x40] sm:$0xff] %vm3044, %v3014
    %3086 = vst.msk [vmem:[%s7 + $0x48] sm:$0xff] %vm3044, %v3018
    %3087 = vst.msk [vmem:[%s7 + $0x50] sm:$0xff] %vm3044, %v3022
    %3088 = vst.msk [vmem:[%s7 + $0x58] sm:$0xff] %vm3044, %v3026
    %3089 = vst.msk [vmem:[%s7 + $0x60] sm:$0xff] %vm3044, %v3030
    %3090 = vst.msk [vmem:[%s7 + $0x68] sm:$0xff] %vm3044, %v3034
    %3091 = vst.msk [vmem:[%s7 + $0x70] sm:$0xff] %vm3044, %v3038
    %3092 = vst.msk [vmem:[%s7 + $0x78] sm:$0xff] %vm3044, %v3042
    %v3093 = vsub.f32 0.0, %v2982
    %v3094 = vsub.f32 0.0, %v2986
    %v3095 = vsub.f32 0.0, %v2990
    %v3096 = vsub.f32 0.0, %v2994
    %v3097 = vsub.f32 0.0, %v2998
    %v3098 = vsub.f32 0.0, %v3002
    %v3099 = vsub.f32 0.0, %v3006
    %v3100 = vsub.f32 0.0, %v3010
    %v3101 = vsub.f32 0.0, %v3014
    %v3102 = vsub.f32 0.0, %v3018
    %v3103 = vsub.f32 0.0, %v3022
    %v3104 = vsub.f32 0.0, %v3026
    %v3105 = vsub.f32 0.0, %v3030
    %v3106 = vsub.f32 0.0, %v3034
    %v3107 = vsub.f32 0.0, %v3038
    %v3108 = vsub.f32 0.0, %v3042
    %v3109 = vmul.f32 %v3093, 1.442695
    %v3110 = vpow.pop %v3109
    %v3111 = vmul.f32 %v3094, 1.442695
    %v3112 = vpow.pop %v3111
    %v3113 = vmul.f32 %v3095, 1.442695
    %v3114 = vpow.pop %v3113
    %v3115 = vmul.f32 %v3096, 1.442695
    %v3116 = vpow.pop %v3115
    %v3117 = vmul.f32 %v3097, 1.442695
    %v3118 = vpow.pop %v3117
    %v3119 = vmul.f32 %v3098, 1.442695
    %v3120 = vpow.pop %v3119
    %v3121 = vmul.f32 %v3099, 1.442695
    %v3122 = vpow.pop %v3121
    %v3123 = vmul.f32 %v3100, 1.442695
    %v3124 = vpow.pop %v3123
    %v3125 = vmul.f32 %v3101, 1.442695
    %v3126 = vpow.pop %v3125
    %v3127 = vmul.f32 %v3102, 1.442695
    %v3128 = vpow.pop %v3127
    %v3129 = vmul.f32 %v3103, 1.442695
    %v3130 = vpow.pop %v3129
    %v3131 = vmul.f32 %v3104, 1.442695
    %v3132 = vpow.pop %v3131
    %v3133 = vmul.f32 %v3105, 1.442695
    %v3134 = vpow.pop %v3133
    %v3135 = vmul.f32 %v3106, 1.442695
    %v3136 = vpow.pop %v3135
    %v3137 = vmul.f32 %v3107, 1.442695
    %v3138 = vpow.pop %v3137
    %v3139 = vmul.f32 %v3108, 1.442695
    %v3140 = vpow.pop %v3139
    %v3141 = vadd.f32 %v3110, 1.0
    %v3142 = vadd.f32 %v3112, 1.0
    %v3143 = vadd.f32 %v3114, 1.0
    %v3144 = vadd.f32 %v3116, 1.0
    %v3145 = vadd.f32 %v3118, 1.0
    %v3146 = vadd.f32 %v3120, 1.0
    %v3147 = vadd.f32 %v3122, 1.0
    %v3148 = vadd.f32 %v3124, 1.0
    %v3149 = vadd.f32 %v3126, 1.0
    %v3150 = vadd.f32 %v3128, 1.0
    %v3151 = vadd.f32 %v3130, 1.0
    %v3152 = vadd.f32 %v3132, 1.0
    %v3153 = vadd.f32 %v3134, 1.0
    %v3154 = vadd.f32 %v3136, 1.0
    %v3155 = vadd.f32 %v3138, 1.0
    %v3156 = vadd.f32 %v3140, 1.0
    %v3157 = vrcp.pop %v3141
    %v3158 = vmul.f32 %v3141, %v3157
    %v3159 = vsub.f32 1.0, %v3158
    %v3160 = vmul.f32 %v3157, %v3159
    %v3161 = vadd.f32 %v3157, %v3160
    %vm3162 = vweird.f32 %v3141
    %vm3163 = vweird.f32 %v3157
    %vm3164 = vmor %vm3162, %vm3163
    %v3165 = vsel %vm3164, %v3157, %v3161
    %v3166 = vand.u32 2147483647, %v3141
    %vm3167 = vcmp.eq.f32.partialorder %v3166, 8.507059e+37
    %v3168 = vand.u32 %v3141, 2147483648
    %v3169 = vor.u32 1.1754944e-38, %v3168
    %v3170 = vsel %vm3167, %v3169, %v3165
    %v3171 = vmul.f32 1.0, %v3170
    %v3172 = vrcp.pop %v3142
    %v3173 = vmul.f32 %v3142, %v3172
    %v3174 = vsub.f32 1.0, %v3173
    %v3175 = vmul.f32 %v3172, %v3174
    %v3176 = vadd.f32 %v3172, %v3175
    %vm3177 = vweird.f32 %v3142
    %vm3178 = vweird.f32 %v3172
    %vm3179 = vmor %vm3177, %vm3178
    %v3180 = vsel %vm3179, %v3172, %v3176
    %v3181 = vand.u32 2147483647, %v3142
    %vm3182 = vcmp.eq.f32.partialorder %v3181, 8.507059e+37
    %v3183 = vand.u32 %v3142, 2147483648
    %v3184 = vor.u32 1.1754944e-38, %v3183
    %v3185 = vsel %vm3182, %v3184, %v3180
    %v3186 = vmul.f32 1.0, %v3185
    %v3187 = vrcp.pop %v3143
    %v3188 = vmul.f32 %v3143, %v3187
    %v3189 = vsub.f32 1.0, %v3188
    %v3190 = vmul.f32 %v3187, %v3189
    %v3191 = vadd.f32 %v3187, %v3190
    %vm3192 = vweird.f32 %v3143
    %vm3193 = vweird.f32 %v3187
    %vm3194 = vmor %vm3192, %vm3193
    %v3195 = vsel %vm3194, %v3187, %v3191
    %v3196 = vand.u32 2147483647, %v3143
    %vm3197 = vcmp.eq.f32.partialorder %v3196, 8.507059e+37
    %v3198 = vand.u32 %v3143, 2147483648
    %v3199 = vor.u32 1.1754944e-38, %v3198
    %v3200 = vsel %vm3197, %v3199, %v3195
    %v3201 = vmul.f32 1.0, %v3200
    %v3202 = vrcp.pop %v3144
    %v3203 = vmul.f32 %v3144, %v3202
    %v3204 = vsub.f32 1.0, %v3203
    %v3205 = vmul.f32 %v3202, %v3204
    %v3206 = vadd.f32 %v3202, %v3205
    %vm3207 = vweird.f32 %v3144
    %vm3208 = vweird.f32 %v3202
    %vm3209 = vmor %vm3207, %vm3208
    %v3210 = vsel %vm3209, %v3202, %v3206
    %v3211 = vand.u32 2147483647, %v3144
    %vm3212 = vcmp.eq.f32.partialorder %v3211, 8.507059e+37
    %v3213 = vand.u32 %v3144, 2147483648
    %v3214 = vor.u32 1.1754944e-38, %v3213
    %v3215 = vsel %vm3212, %v3214, %v3210
    %v3216 = vmul.f32 1.0, %v3215
    %v3217 = vrcp.pop %v3145
    %v3218 = vmul.f32 %v3145, %v3217
    %v3219 = vsub.f32 1.0, %v3218
    %v3220 = vmul.f32 %v3217, %v3219
    %v3221 = vadd.f32 %v3217, %v3220
    %vm3222 = vweird.f32 %v3145
    %vm3223 = vweird.f32 %v3217
    %vm3224 = vmor %vm3222, %vm3223
    %v3225 = vsel %vm3224, %v3217, %v3221
    %v3226 = vand.u32 2147483647, %v3145
    %vm3227 = vcmp.eq.f32.partialorder %v3226, 8.507059e+37
    %v3228 = vand.u32 %v3145, 2147483648
    %v3229 = vor.u32 1.1754944e-38, %v3228
    %v3230 = vsel %vm3227, %v3229, %v3225
    %v3231 = vmul.f32 1.0, %v3230
    %v3232 = vrcp.pop %v3146
    %v3233 = vmul.f32 %v3146, %v3232
    %v3234 = vsub.f32 1.0, %v3233
    %v3235 = vmul.f32 %v3232, %v3234
    %v3236 = vadd.f32 %v3232, %v3235
    %vm3237 = vweird.f32 %v3146
    %vm3238 = vweird.f32 %v3232
    %vm3239 = vmor %vm3237, %vm3238
    %v3240 = vsel %vm3239, %v3232, %v3236
    %v3241 = vand.u32 2147483647, %v3146
    %vm3242 = vcmp.eq.f32.partialorder %v3241, 8.507059e+37
    %v3243 = vand.u32 %v3146, 2147483648
    %v3244 = vor.u32 1.1754944e-38, %v3243
    %v3245 = vsel %vm3242, %v3244, %v3240
    %v3246 = vmul.f32 1.0, %v3245
    %v3247 = vrcp.pop %v3147
    %v3248 = vmul.f32 %v3147, %v3247
    %v3249 = vsub.f32 1.0, %v3248
    %v3250 = vmul.f32 %v3247, %v3249
    %v3251 = vadd.f32 %v3247, %v3250
    %vm3252 = vweird.f32 %v3147
    %vm3253 = vweird.f32 %v3247
    %vm3254 = vmor %vm3252, %vm3253
    %v3255 = vsel %vm3254, %v3247, %v3251
    %v3256 = vand.u32 2147483647, %v3147
    %vm3257 = vcmp.eq.f32.partialorder %v3256, 8.507059e+37
    %v3258 = vand.u32 %v3147, 2147483648
    %v3259 = vor.u32 1.1754944e-38, %v3258
    %v3260 = vsel %vm3257, %v3259, %v3255
    %v3261 = vmul.f32 1.0, %v3260
    %v3262 = vrcp.pop %v3148
    %v3263 = vmul.f32 %v3148, %v3262
    %v3264 = vsub.f32 1.0, %v3263
    %v3265 = vmul.f32 %v3262, %v3264
    %v3266 = vadd.f32 %v3262, %v3265
    %vm3267 = vweird.f32 %v3148
    %vm3268 = vweird.f32 %v3262
    %vm3269 = vmor %vm3267, %vm3268
    %v3270 = vsel %vm3269, %v3262, %v3266
    %v3271 = vand.u32 2147483647, %v3148
    %vm3272 = vcmp.eq.f32.partialorder %v3271, 8.507059e+37
    %v3273 = vand.u32 %v3148, 2147483648
    %v3274 = vor.u32 1.1754944e-38, %v3273
    %v3275 = vsel %vm3272, %v3274, %v3270
    %v3276 = vmul.f32 1.0, %v3275
    %v3277 = vrcp.pop %v3149
    %v3278 = vmul.f32 %v3149, %v3277
    %v3279 = vsub.f32 1.0, %v3278
    %v3280 = vmul.f32 %v3277, %v3279
    %v3281 = vadd.f32 %v3277, %v3280
    %vm3282 = vweird.f32 %v3149
    %vm3283 = vweird.f32 %v3277
    %vm3284 = vmor %vm3282, %vm3283
    %v3285 = vsel %vm3284, %v3277, %v3281
    %v3286 = vand.u32 2147483647, %v3149
    %vm3287 = vcmp.eq.f32.partialorder %v3286, 8.507059e+37
    %v3288 = vand.u32 %v3149, 2147483648
    %v3289 = vor.u32 1.1754944e-38, %v3288
    %v3290 = vsel %vm3287, %v3289, %v3285
    %v3291 = vmul.f32 1.0, %v3290
    %v3292 = vrcp.pop %v3150
    %v3293 = vmul.f32 %v3150, %v3292
    %v3294 = vsub.f32 1.0, %v3293
    %v3295 = vmul.f32 %v3292, %v3294
    %v3296 = vadd.f32 %v3292, %v3295
    %vm3297 = vweird.f32 %v3150
    %vm3298 = vweird.f32 %v3292
    %vm3299 = vmor %vm3297, %vm3298
    %v3300 = vsel %vm3299, %v3292, %v3296
    %v3301 = vand.u32 2147483647, %v3150
    %vm3302 = vcmp.eq.f32.partialorder %v3301, 8.507059e+37
    %v3303 = vand.u32 %v3150, 2147483648
    %v3304 = vor.u32 1.1754944e-38, %v3303
    %v3305 = vsel %vm3302, %v3304, %v3300
    %v3306 = vmul.f32 1.0, %v3305
    %v3307 = vrcp.pop %v3151
    %v3308 = vmul.f32 %v3151, %v3307
    %v3309 = vsub.f32 1.0, %v3308
    %v3310 = vmul.f32 %v3307, %v3309
    %v3311 = vadd.f32 %v3307, %v3310
    %vm3312 = vweird.f32 %v3151
    %vm3313 = vweird.f32 %v3307
    %vm3314 = vmor %vm3312, %vm3313
    %v3315 = vsel %vm3314, %v3307, %v3311
    %v3316 = vand.u32 2147483647, %v3151
    %vm3317 = vcmp.eq.f32.partialorder %v3316, 8.507059e+37
    %v3318 = vand.u32 %v3151, 2147483648
    %v3319 = vor.u32 1.1754944e-38, %v3318
    %v3320 = vsel %vm3317, %v3319, %v3315
    %v3321 = vmul.f32 1.0, %v3320
    %v3322 = vrcp.pop %v3152
    %v3323 = vmul.f32 %v3152, %v3322
    %v3324 = vsub.f32 1.0, %v3323
    %v3325 = vmul.f32 %v3322, %v3324
    %v3326 = vadd.f32 %v3322, %v3325
    %vm3327 = vweird.f32 %v3152
    %vm3328 = vweird.f32 %v3322
    %vm3329 = vmor %vm3327, %vm3328
    %v3330 = vsel %vm3329, %v3322, %v3326
    %v3331 = vand.u32 2147483647, %v3152
    %vm3332 = vcmp.eq.f32.partialorder %v3331, 8.507059e+37
    %v3333 = vand.u32 %v3152, 2147483648
    %v3334 = vor.u32 1.1754944e-38, %v3333
    %v3335 = vsel %vm3332, %v3334, %v3330
    %v3336 = vmul.f32 1.0, %v3335
    %v3337 = vrcp.pop %v3153
    %v3338 = vmul.f32 %v3153, %v3337
    %v3339 = vsub.f32 1.0, %v3338
    %v3340 = vmul.f32 %v3337, %v3339
    %v3341 = vadd.f32 %v3337, %v3340
    %vm3342 = vweird.f32 %v3153
    %vm3343 = vweird.f32 %v3337
    %vm3344 = vmor %vm3342, %vm3343
    %v3345 = vsel %vm3344, %v3337, %v3341
    %v3346 = vand.u32 2147483647, %v3153
    %vm3347 = vcmp.eq.f32.partialorder %v3346, 8.507059e+37
    %v3348 = vand.u32 %v3153, 2147483648
    %v3349 = vor.u32 1.1754944e-38, %v3348
    %v3350 = vsel %vm3347, %v3349, %v3345
    %v3351 = vmul.f32 1.0, %v3350
    %v3352 = vrcp.pop %v3154
    %v3353 = vmul.f32 %v3154, %v3352
    %v3354 = vsub.f32 1.0, %v3353
    %v3355 = vmul.f32 %v3352, %v3354
    %v3356 = vadd.f32 %v3352, %v3355
    %vm3357 = vweird.f32 %v3154
    %vm3358 = vweird.f32 %v3352
    %vm3359 = vmor %vm3357, %vm3358
    %v3360 = vsel %vm3359, %v3352, %v3356
    %v3361 = vand.u32 2147483647, %v3154
    %vm3362 = vcmp.eq.f32.partialorder %v3361, 8.507059e+37
    %v3363 = vand.u32 %v3154, 2147483648
    %v3364 = vor.u32 1.1754944e-38, %v3363
    %v3365 = vsel %vm3362, %v3364, %v3360
    %v3366 = vmul.f32 1.0, %v3365
    %v3367 = vrcp.pop %v3155
    %v3368 = vmul.f32 %v3155, %v3367
    %v3369 = vsub.f32 1.0, %v3368
    %v3370 = vmul.f32 %v3367, %v3369
    %v3371 = vadd.f32 %v3367, %v3370
    %vm3372 = vweird.f32 %v3155
    %vm3373 = vweird.f32 %v3367
    %vm3374 = vmor %vm3372, %vm3373
    %v3375 = vsel %vm3374, %v3367, %v3371
    %v3376 = vand.u32 2147483647, %v3155
    %vm3377 = vcmp.eq.f32.partialorder %v3376, 8.507059e+37
    %v3378 = vand.u32 %v3155, 2147483648
    %v3379 = vor.u32 1.1754944e-38, %v3378
    %v3380 = vsel %vm3377, %v3379, %v3375
    %v3381 = vmul.f32 1.0, %v3380
    %v3382 = vrcp.pop %v3156
    %v3383 = vmul.f32 %v3156, %v3382
    %v3384 = vsub.f32 1.0, %v3383
    %v3385 = vmul.f32 %v3382, %v3384
    %v3386 = vadd.f32 %v3382, %v3385
    %vm3387 = vweird.f32 %v3156
    %vm3388 = vweird.f32 %v3382
    %vm3389 = vmor %vm3387, %vm3388
    %v3390 = vsel %vm3389, %v3382, %v3386
    %v3391 = vand.u32 2147483647, %v3156
    %vm3392 = vcmp.eq.f32.partialorder %v3391, 8.507059e+37
    %v3393 = vand.u32 %v3156, 2147483648
    %v3394 = vor.u32 1.1754944e-38, %v3393
    %v3395 = vsel %vm3392, %v3394, %v3390
    %v3396 = vmul.f32 1.0, %v3395
    %v3397 = vmul.f32 %v2982, %v3171
    %v3398 = vmul.f32 %v2986, %v3186
    %v3399 = vmul.f32 %v2990, %v3201
    %v3400 = vmul.f32 %v2994, %v3216
    %v3401 = vmul.f32 %v2998, %v3231
    %v3402 = vmul.f32 %v3002, %v3246
    %v3403 = vmul.f32 %v3006, %v3261
    %v3404 = vmul.f32 %v3010, %v3276
    %v3405 = vmul.f32 %v3014, %v3291
    %v3406 = vmul.f32 %v3018, %v3306
    %v3407 = vmul.f32 %v3022, %v3321
    %v3408 = vmul.f32 %v3026, %v3336
    %v3409 = vmul.f32 %v3030, %v3351
    %v3410 = vmul.f32 %v3034, %v3366
    %v3411 = vmul.f32 %v3038, %v3381
    %v3412 = vmul.f32 %v3042, %v3396
    %3413 = vst.msk [vmem:[%s8] sm:$0xff] %vm3044, %v3397
    %3414 = vst.msk [vmem:[%s8 + $0x8] sm:$0xff] %vm3044, %v3398
    %3415 = vst.msk [vmem:[%s8 + $0x10] sm:$0xff] %vm3044, %v3399
    %3416 = vst.msk [vmem:[%s8 + $0x18] sm:$0xff] %vm3044, %v3400
    %3417 = vst.msk [vmem:[%s8 + $0x20] sm:$0xff] %vm3044, %v3401
    %3418 = vst.msk [vmem:[%s8 + $0x28] sm:$0xff] %vm3044, %v3402
    %3419 = vst.msk [vmem:[%s8 + $0x30] sm:$0xff] %vm3044, %v3403
    %3420 = vst.msk [vmem:[%s8 + $0x38] sm:$0xff] %vm3044, %v3404
    %3421 = vst.msk [vmem:[%s8 + $0x40] sm:$0xff] %vm3044, %v3405
    %3422 = vst.msk [vmem:[%s8 + $0x48] sm:$0xff] %vm3044, %v3406
    %3423 = vst.msk [vmem:[%s8 + $0x50] sm:$0xff] %vm3044, %v3407
    %3424 = vst.msk [vmem:[%s8 + $0x58] sm:$0xff] %vm3044, %v3408
    %3425 = vst.msk [vmem:[%s8 + $0x60] sm:$0xff] %vm3044, %v3409
    %3426 = vst.msk [vmem:[%s8 + $0x68] sm:$0xff] %vm3044, %v3410
    %3427 = vst.msk [vmem:[%s8 + $0x70] sm:$0xff] %vm3044, %v3411
    %3428 = vst.msk [vmem:[%s8 + $0x78] sm:$0xff] %vm3044, %v3412
    // Predicated region
    $region42: #{cssf_vss_layer_forward.3} parent=1 // pred_check
      _
    $region43: #{cssf_vss_layer_forward.3} parent=1 // pred_check_branch
      %3430 = sbr.rel (0) target = $region45
    $region44: #{cssf_vss_layer_forward.3} parent=1 // pred_region
      _
    $region45: #{cssf_vss_layer_forward.3} parent=1 // pred_fallthru
      _
    // Predicated region
    $region46: #{cssf_vss_layer_forward.3} parent=1 // pred_check
      _
    $region47: #{cssf_vss_layer_forward.3} parent=1 // pred_check_branch
      %3432 = sbr.rel (0) target = $region49
    $region48: #{cssf_vss_layer_forward.3} parent=1 // pred_region
      _
    $region49: #{cssf_vss_layer_forward.3} parent=1 // pred_fallthru
      _
    // Predicated region
    $region50: #{cssf_vss_layer_forward.3} parent=1 // pred_check
      _
    $region51: #{cssf_vss_layer_forward.3} parent=1 // pred_check_branch
      %3434 = sbr.rel (0) target = $region53
    $region52: #{cssf_vss_layer_forward.3} parent=1 // pred_region
      _
    $region53: #{cssf_vss_layer_forward.3} parent=1 // pred_fallthru
      _
    // Predicated region
    $region54: #{cssf_vss_layer_forward.3} parent=1 // pred_check
      _
    $region55: #{cssf_vss_layer_forward.3} parent=1 // pred_check_branch
      %3436 = sbr.rel (0) target = $region57
    $region56: #{cssf_vss_layer_forward.3} parent=1 // pred_region
      _
    $region57: #{cssf_vss_layer_forward.3} parent=1 // pred_fallthru
      _
    // Predicated region
    $region58: #{cssf_vss_layer_forward.3} parent=1 // pred_check
      _
    $region59: #{cssf_vss_layer_forward.3} parent=1 // pred_check_branch
      %3438 = sbr.rel (0) target = $region61
    $region60: #{cssf_vss_layer_forward.3} parent=1 // pred_region
      _
    $region61: #{cssf_vss_layer_forward.3} parent=1 // pred_fallthru
      _
    // Predicated region
    $region62: #{cssf_vss_layer_forward.3} parent=1 // pred_check
      _
    $region63: #{cssf_vss_layer_forward.3} parent=1 // pred_check_branch
      %3440 = sbr.rel (0) target = $region65
    $region64: #{cssf_vss_layer_forward.3} parent=1 // pred_region
      _
    $region65: #{cssf_vss_layer_forward.3} parent=1 // pred_fallthru
      _
    // Predicated region
    $region66: #{cssf_vss_layer_forward.3} parent=1 // pred_check
      _
    $region67: #{cssf_vss_layer_forward.3} parent=1 // pred_check_branch
      %3442 = sbr.rel (0) target = $region69
    $region68: #{cssf_vss_layer_forward.3} parent=1 // pred_region
      _
    $region69: #{cssf_vss_layer_forward.3} parent=1 // pred_fallthru
      _
    // Predicated region
    $region70: #{cssf_vss_layer_forward.3} parent=1 // pred_check
      _
    $region71: #{cssf_vss_layer_forward.3} parent=1 // pred_check_branch
      %3444 = sbr.rel (0) target = $region73
    $region72: #{cssf_vss_layer_forward.3} parent=1 // pred_region
      _
    $region73: #{cssf_vss_layer_forward.3} parent=1 // pred_fallthru
      _
    %3445 = vsyncpa [#allocation3], 1
    %3446 = vsyncpa [#allocation5], 1
    %3447 = vsyncpa [#allocation8], 1

// kernel: cssf_vss_layer_forward.4
$region0: #{cssf_vss_layer_forward.4}
  #allocation0 [shape = 'u32[]', space=smem, size = 0x4, offset = 0x4, fixed_abs, tag = 'smem constant byte address 0x4 - core index']
  #allocation1 [shape = 'u32[72,128]{1,0:T(1,128)}', space=vmem, size = 0x9000, scoped, tag = 'internal scratch']
  %s0 = inlined_call_operand.vmem [shape: f32[6,4,64,64], index: 0, kind: input, shape index: {}]
  %s1 = inlined_call_operand.vmem [shape: f32[6,4,64,64], index: 1, kind: input, shape index: {}]
  %s2 = inlined_call_operand.vmem [shape: f32[4,16,64], index: 2, kind: input, shape index: {}]
  %s3 = inlined_call_operand.vmem [shape: f32[6,4,1024,1], index: 3, kind: input, shape index: {}]
  %s4 = inlined_call_operand.vmem [shape: f32[6,4,1024,1], index: 4, kind: input, shape index: {}]
  %s5 = inlined_call_operand.vmem [shape: f32[4,1,64], index: 5, kind: input, shape index: {}]
  %s6 = inlined_call_operand.vmem [shape: f32[4,1,64], index: 6, kind: input, shape index: {}]
  %s7 = inlined_call_operand.vmem [shape: f32[6,4,64,64], index: 7, kind: output, shape index: {}]
  %s8 = sld [smem:[#allocation0]]
  $region68: #{cssf_vss_layer_forward.4} parent=0
    _
  %s10 = ssub.s32 1, %s8
  %s11 = scalar_select 0, %s10, %s8
  loop: start=0, step=1, limit=26
  $region2: #{cssf_vss_layer_forward.4} parent=0 // loop_pre_header
    _
  $region3: #{cssf_vss_layer_forward.4} parent=0 // loop_header
    %s13 = sphi 0, %s17
    %p14 = scmp.ge.s32.totalorder %s13, 26
    %s20 = sphi 0, %s32
    %s21 = sphi 0, %s28
    %s22 = sphi 0, %s20
    %s23 = sphi 0, %s21
    %s24 = sphi 0, %s22
    %s25 = sphi 0, %s23
    %s37 = sphi 0, %s39
    %s40 = sphi 0, %s37
    %s41 = sphi 0, %s40
    %s57 = sphi 0, %s41
    %s65 = sphi 0, %s67
    %s68 = sphi 0, %s65
    %s69 = sphi 0, %s68
    %s85 = sphi 0, %s69
    %s91 = sphi 0, %s93
    %s94 = sphi 0, %s91
    %s95 = sphi 0, %s94
    %s111 = sphi 0, %s95
    %s119 = sphi 0, %s121
    %s122 = sphi 0, %s119
    %s123 = sphi 0, %s122
    %s139 = sphi 0, %s123
    %s147 = sphi 0, %s149
    %s150 = sphi 0, %s147
    %s151 = sphi 0, %s150
    %s167 = sphi 0, %s151
    %s173 = sphi 0, %s175
    %s176 = sphi 0, %s173
    %s177 = sphi 0, %s176
    %s193 = sphi 0, %s177
    %s199 = sphi 0, %s201
    %s202 = sphi 0, %s199
    %s203 = sphi 0, %s202
    %s219 = sphi 0, %s203
    %s227 = sphi 0, %s229
    %s230 = sphi 0, %s227
    %s231 = sphi 0, %s230
    %s247 = sphi 0, %s231
  $region4: #{cssf_vss_layer_forward.4} parent=0 // loop_header_branch
    %16 = sbr.rel (%p14) target = $region8
  $region5: #{cssf_vss_layer_forward.4} parent=0 // loop_body
    %s18 = ssub.s32 %s13, 1
    %s19 = ssub.s32 %s13, 2
    %s26 = sadd.s32 1, %s21
    %p27 = scmp.ge.s32.totalorder %s26, 4
    %s28 = scalar_select %p27, 0, %s26
    %s29 = sadd.s32 1, %s20
    %s30 = scalar_select %p27, %s29, %s20
    %p31 = scmp.ge.s32.totalorder %s30, 6
    %s32 = scalar_select %p31, 0, %s30
    %s33 = ssub.s32 %s20, %s32
    %s34 = ssub.s32 %s21, %s28
    %s35 = sor.u32 %s33, %s34
    %p36 = scmp.eq.s32.totalorder %s35, 0
    %s38 = sadd.s32 %s37, 1
    %s39 = scalar_select %p36, %s37, %s38
    %p42 = pneg %p36
    %p43 = scmp.eq.s32.totalorder %s13, 23
    %p44 = por %p42, %p43
    %p45 = scmp.ne.s32.totalorder %s37, %s40
    %p46 = scmp.eq.s32.totalorder %s13, 0
    %p47 = por %p45, %p46
    %p48 = scmp.ne.s32.totalorder %s37, %s40
    %p49 = scmp.eq.s32.totalorder %s18, 23
    %p50 = por %p48, %p49
    %p51 = scmp.ne.s32.totalorder %s40, %s41
    %p52 = scmp.eq.s32.totalorder %s18, 0
    %p53 = por %p51, %p52
    %p54 = scmp.ne.s32.totalorder %s40, %s41
    %p55 = scmp.eq.s32.totalorder %s19, 23
    %p56 = por %p54, %p55
    %p58 = scmp.ne.s32.totalorder %s41, %s57
    %p59 = scmp.eq.s32.totalorder %s19, 0
    %p60 = por %p58, %p59
    %s61 = ssub.s32 %s20, %s32
    %s62 = ssub.s32 %s21, %s28
    %s63 = sor.u32 %s61, %s62
    %p64 = scmp.eq.s32.totalorder %s63, 0
    %s66 = sadd.s32 %s65, 1
    %s67 = scalar_select %p64, %s65, %s66
    %p70 = pneg %p64
    %p71 = scmp.eq.s32.totalorder %s13, 23
    %p72 = por %p70, %p71
    %p73 = scmp.ne.s32.totalorder %s65, %s68
    %p74 = scmp.eq.s32.totalorder %s13, 0
    %p75 = por %p73, %p74
    %p76 = scmp.ne.s32.totalorder %s65, %s68
    %p77 = scmp.eq.s32.totalorder %s18, 23
    %p78 = por %p76, %p77
    %p79 = scmp.ne.s32.totalorder %s68, %s69
    %p80 = scmp.eq.s32.totalorder %s18, 0
    %p81 = por %p79, %p80
    %p82 = scmp.ne.s32.totalorder %s68, %s69
    %p83 = scmp.eq.s32.totalorder %s19, 23
    %p84 = por %p82, %p83
    %p86 = scmp.ne.s32.totalorder %s69, %s85
    %p87 = scmp.eq.s32.totalorder %s19, 0
    %p88 = por %p86, %p87
    %s89 = ssub.s32 %s21, %s28
    %p90 = scmp.eq.s32.totalorder %s89, 0
    %s92 = sadd.s32 %s91, 1
    %s93 = scalar_select %p90, %s91, %s92
    %p96 = pneg %p90
    %p97 = scmp.eq.s32.totalorder %s13, 23
    %p98 = por %p96, %p97
    %p99 = scmp.ne.s32.totalorder %s91, %s94
    %p100 = scmp.eq.s32.totalorder %s13, 0
    %p101 = por %p99, %p100
    %p102 = scmp.ne.s32.totalorder %s91, %s94
    %p103 = scmp.eq.s32.totalorder %s18, 23
    %p104 = por %p102, %p103
    %p105 = scmp.ne.s32.totalorder %s94, %s95
    %p106 = scmp.eq.s32.totalorder %s18, 0
    %p107 = por %p105, %p106
    %p108 = scmp.ne.s32.totalorder %s94, %s95
    %p109 = scmp.eq.s32.totalorder %s19, 23
    %p110 = por %p108, %p109
    %p112 = scmp.ne.s32.totalorder %s95, %s111
    %p113 = scmp.eq.s32.totalorder %s19, 0
    %p114 = por %p112, %p113
    %s115 = ssub.s32 %s20, %s32
    %s116 = ssub.s32 %s21, %s28
    %s117 = sor.u32 %s115, %s116
    %p118 = scmp.eq.s32.totalorder %s117, 0
    %s120 = sadd.s32 %s119, 1
    %s121 = scalar_select %p118, %s119, %s120
    %p124 = pneg %p118
    %p125 = scmp.eq.s32.totalorder %s13, 23
    %p126 = por %p124, %p125
    %p127 = scmp.ne.s32.totalorder %s119, %s122
    %p128 = scmp.eq.s32.totalorder %s13, 0
    %p129 = por %p127, %p128
    %p130 = scmp.ne.s32.totalorder %s119, %s122
    %p131 = scmp.eq.s32.totalorder %s18, 23
    %p132 = por %p130, %p131
    %p133 = scmp.ne.s32.totalorder %s122, %s123
    %p134 = scmp.eq.s32.totalorder %s18, 0
    %p135 = por %p133, %p134
    %p136 = scmp.ne.s32.totalorder %s122, %s123
    %p137 = scmp.eq.s32.totalorder %s19, 23
    %p138 = por %p136, %p137
    %p140 = scmp.ne.s32.totalorder %s123, %s139
    %p141 = scmp.eq.s32.totalorder %s19, 0
    %p142 = por %p140, %p141
    %s143 = ssub.s32 %s20, %s32
    %s144 = ssub.s32 %s21, %s28
    %s145 = sor.u32 %s143, %s144
    %p146 = scmp.eq.s32.totalorder %s145, 0
    %s148 = sadd.s32 %s147, 1
    %s149 = scalar_select %p146, %s147, %s148
    %p152 = pneg %p146
    %p153 = scmp.eq.s32.totalorder %s13, 23
    %p154 = por %p152, %p153
    %p155 = scmp.ne.s32.totalorder %s147, %s150
    %p156 = scmp.eq.s32.totalorder %s13, 0
    %p157 = por %p155, %p156
    %p158 = scmp.ne.s32.totalorder %s147, %s150
    %p159 = scmp.eq.s32.totalorder %s18, 23
    %p160 = por %p158, %p159
    %p161 = scmp.ne.s32.totalorder %s150, %s151
    %p162 = scmp.eq.s32.totalorder %s18, 0
    %p163 = por %p161, %p162
    %p164 = scmp.ne.s32.totalorder %s150, %s151
    %p165 = scmp.eq.s32.totalorder %s19, 23
    %p166 = por %p164, %p165
    %p168 = scmp.ne.s32.totalorder %s151, %s167
    %p169 = scmp.eq.s32.totalorder %s19, 0
    %p170 = por %p168, %p169
    %s171 = ssub.s32 %s21, %s28
    %p172 = scmp.eq.s32.totalorder %s171, 0
    %s174 = sadd.s32 %s173, 1
    %s175 = scalar_select %p172, %s173, %s174
    %p178 = pneg %p172
    %p179 = scmp.eq.s32.totalorder %s13, 23
    %p180 = por %p178, %p179
    %p181 = scmp.ne.s32.totalorder %s173, %s176
    %p182 = scmp.eq.s32.totalorder %s13, 0
    %p183 = por %p181, %p182
    %p184 = scmp.ne.s32.totalorder %s173, %s176
    %p185 = scmp.eq.s32.totalorder %s18, 23
    %p186 = por %p184, %p185
    %p187 = scmp.ne.s32.totalorder %s176, %s177
    %p188 = scmp.eq.s32.totalorder %s18, 0
    %p189 = por %p187, %p188
    %p190 = scmp.ne.s32.totalorder %s176, %s177
    %p191 = scmp.eq.s32.totalorder %s19, 23
    %p192 = por %p190, %p191
    %p194 = scmp.ne.s32.totalorder %s177, %s193
    %p195 = scmp.eq.s32.totalorder %s19, 0
    %p196 = por %p194, %p195
    %s197 = ssub.s32 %s21, %s28
    %p198 = scmp.eq.s32.totalorder %s197, 0
    %s200 = sadd.s32 %s199, 1
    %s201 = scalar_select %p198, %s199, %s200
    %p204 = pneg %p198
    %p205 = scmp.eq.s32.totalorder %s13, 23
    %p206 = por %p204, %p205
    %p207 = scmp.ne.s32.totalorder %s199, %s202
    %p208 = scmp.eq.s32.totalorder %s13, 0
    %p209 = por %p207, %p208
    %p210 = scmp.ne.s32.totalorder %s199, %s202
    %p211 = scmp.eq.s32.totalorder %s18, 23
    %p212 = por %p210, %p211
    %p213 = scmp.ne.s32.totalorder %s202, %s203
    %p214 = scmp.eq.s32.totalorder %s18, 0
    %p215 = por %p213, %p214
    %p216 = scmp.ne.s32.totalorder %s202, %s203
    %p217 = scmp.eq.s32.totalorder %s19, 23
    %p218 = por %p216, %p217
    %p220 = scmp.ne.s32.totalorder %s203, %s219
    %p221 = scmp.eq.s32.totalorder %s19, 0
    %p222 = por %p220, %p221
    %s223 = ssub.s32 %s20, %s32
    %s224 = ssub.s32 %s21, %s28
    %s225 = sor.u32 %s223, %s224
    %p226 = scmp.eq.s32.totalorder %s225, 0
    %s228 = sadd.s32 %s227, 1
    %s229 = scalar_select %p226, %s227, %s228
    %p232 = pneg %p226
    %p233 = scmp.eq.s32.totalorder %s13, 23
    %p234 = por %p232, %p233
    %p235 = scmp.ne.s32.totalorder %s227, %s230
    %p236 = scmp.eq.s32.totalorder %s13, 0
    %p237 = por %p235, %p236
    %p238 = scmp.ne.s32.totalorder %s227, %s230
    %p239 = scmp.eq.s32.totalorder %s18, 23
    %p240 = por %p238, %p239
    %p241 = scmp.ne.s32.totalorder %s230, %s231
    %p242 = scmp.eq.s32.totalorder %s18, 0
    %p243 = por %p241, %p242
    %p244 = scmp.ne.s32.totalorder %s230, %s231
    %p245 = scmp.eq.s32.totalorder %s19, 23
    %p246 = por %p244, %p245
    %p248 = scmp.ne.s32.totalorder %s231, %s247
    %p249 = scmp.eq.s32.totalorder %s19, 0
    %p250 = por %p248, %p249
    %p251 = scmp.le.s32.totalorder 1, %s13
    %p252 = scmp.lt.s32.totalorder %s13, 25
    %p253 = pnand %p251, %p252
    %p254 = pneg %p253
    // Predicated region
    $region9: #{cssf_vss_layer_forward.4} parent=5 // pred_check
      _
    $region10: #{cssf_vss_layer_forward.4} parent=5 // pred_check_branch
      %256 = sbr.rel (%p253) target = $region12
    $region11: #{cssf_vss_layer_forward.4} parent=5 // pred_region
      %s257 = ssub.s32 %s13, 1
    $region12: #{cssf_vss_layer_forward.4} parent=5 // pred_fallthru
      _
    %p258 = scmp.lt.s32.totalorder %s13, 24
    // Predicated region
    $region13: #{cssf_vss_layer_forward.4} parent=5 // pred_check
      %p259 = pneg %p258
    $region14: #{cssf_vss_layer_forward.4} parent=5 // pred_check_branch
      %261 = sbr.rel (%p259) target = $region16
    $region15: #{cssf_vss_layer_forward.4} parent=5 // pred_region
      // Predicated region
      $region17: #{cssf_vss_layer_forward.4} parent=15 // pred_check
        %p262 = pneg %p47
      $region18: #{cssf_vss_layer_forward.4} parent=15 // pred_check_branch
        %264 = sbr.rel (%p262) target = $region20
      $region19: #{cssf_vss_layer_forward.4} parent=15 // pred_region
        %p265 = scmp.lt.s32.totalorder %s20, 5
        %s266 = scalar_select %p265, %s20, 5
        %p267 = scmp.lt.s32.totalorder %s21, 3
        %s268 = scalar_select %p267, %s21, 3
        %s269 = smul.addr %s268, 8
        %s270 = smul.addr %s266, 32
        %s271 = sadd.s32 %s269, %s270
        %s272 = smul.addr %s271, 8
        %s273 = scalar_lea.vmem %s0, %s272
      $region20: #{cssf_vss_layer_forward.4} parent=15 // pred_fallthru
        _
      // Predicated region
      $region21: #{cssf_vss_layer_forward.4} parent=15 // pred_check
        %p274 = pneg %p75
      $region22: #{cssf_vss_layer_forward.4} parent=15 // pred_check_branch
        %276 = sbr.rel (%p274) target = $region24
      $region23: #{cssf_vss_layer_forward.4} parent=15 // pred_region
        %p277 = scmp.lt.s32.totalorder %s20, 5
        %s278 = scalar_select %p277, %s20, 5
        %p279 = scmp.lt.s32.totalorder %s21, 3
        %s280 = scalar_select %p279, %s21, 3
        %s281 = smul.addr %s280, 8
        %s282 = smul.addr %s278, 32
        %s283 = sadd.s32 %s281, %s282
        %s284 = smul.addr %s283, 8
        %s285 = scalar_lea.vmem %s1, %s284
      $region24: #{cssf_vss_layer_forward.4} parent=15 // pred_fallthru
        _
      // Predicated region
      $region25: #{cssf_vss_layer_forward.4} parent=15 // pred_check
        %p286 = pneg %p101
      $region26: #{cssf_vss_layer_forward.4} parent=15 // pred_check_branch
        %288 = sbr.rel (%p286) target = $region28
      $region27: #{cssf_vss_layer_forward.4} parent=15 // pred_region
        %p289 = scmp.lt.s32.totalorder %s21, 3
        %s290 = scalar_select %p289, %s21, 3
        %s291 = smul.addr %s290, 2
        %s292 = smul.addr %s291, 8
        %s293 = scalar_lea.vmem %s2, %s292
      $region28: #{cssf_vss_layer_forward.4} parent=15 // pred_fallthru
        _
      // Predicated region
      $region29: #{cssf_vss_layer_forward.4} parent=15 // pred_check
        %p294 = pneg %p129
      $region30: #{cssf_vss_layer_forward.4} parent=15 // pred_check_branch
        %296 = sbr.rel (%p294) target = $region32
      $region31: #{cssf_vss_layer_forward.4} parent=15 // pred_region
        %p297 = scmp.lt.s32.totalorder %s20, 5
        %s298 = scalar_select %p297, %s20, 5
        %p299 = scmp.lt.s32.totalorder %s21, 3
        %s300 = scalar_select %p299, %s21, 3
        %s301 = smul.addr %s300, 128
        %s302 = smul.addr %s298, 512
        %s303 = sadd.s32 %s301, %s302
        %s304 = smul.addr %s303, 8
        %s305 = scalar_lea.vmem %s3, %s304
      $region32: #{cssf_vss_layer_forward.4} parent=15 // pred_fallthru
        _
      // Predicated region
      $region33: #{cssf_vss_layer_forward.4} parent=15 // pred_check
        %p306 = pneg %p157
      $region34: #{cssf_vss_layer_forward.4} parent=15 // pred_check_branch
        %308 = sbr.rel (%p306) target = $region36
      $region35: #{cssf_vss_layer_forward.4} parent=15 // pred_region
        %p309 = scmp.lt.s32.totalorder %s20, 5
        %s310 = scalar_select %p309, %s20, 5
        %p311 = scmp.lt.s32.totalorder %s21, 3
        %s312 = scalar_select %p311, %s21, 3
        %s313 = smul.addr %s312, 128
        %s314 = smul.addr %s310, 512
        %s315 = sadd.s32 %s313, %s314
        %s316 = smul.addr %s315, 8
        %s317 = scalar_lea.vmem %s4, %s316
      $region36: #{cssf_vss_layer_forward.4} parent=15 // pred_fallthru
        _
      // Predicated region
      $region37: #{cssf_vss_layer_forward.4} parent=15 // pred_check
        %p318 = pneg %p183
      $region38: #{cssf_vss_layer_forward.4} parent=15 // pred_check_branch
        %320 = sbr.rel (%p318) target = $region40
      $region39: #{cssf_vss_layer_forward.4} parent=15 // pred_region
        %p321 = scmp.lt.s32.totalorder %s21, 3
        %s322 = scalar_select %p321, %s21, 3
        %s323 = scalar_lea.vmem %s5, %s322
      $region40: #{cssf_vss_layer_forward.4} parent=15 // pred_fallthru
        _
      // Predicated region
      $region41: #{cssf_vss_layer_forward.4} parent=15 // pred_check
        %p324 = pneg %p209
      $region42: #{cssf_vss_layer_forward.4} parent=15 // pred_check_branch
        %326 = sbr.rel (%p324) target = $region44
      $region43: #{cssf_vss_layer_forward.4} parent=15 // pred_region
        %p327 = scmp.lt.s32.totalorder %s21, 3
        %s328 = scalar_select %p327, %s21, 3
        %s329 = scalar_lea.vmem %s6, %s328
      $region44: #{cssf_vss_layer_forward.4} parent=15 // pred_fallthru
        _
    $region16: #{cssf_vss_layer_forward.4} parent=5 // pred_fallthru
      _
    %p330 = scmp.le.s32.totalorder 1, %s13
    %p331 = scmp.lt.s32.totalorder %s13, 25
    %p332 = pnand %p330, %p331
    %p333 = pneg %p332
    // Predicated region
    $region45: #{cssf_vss_layer_forward.4} parent=5 // pred_check
      _
    $region46: #{cssf_vss_layer_forward.4} parent=5 // pred_check_branch
      %335 = sbr.rel (%p332) target = $region48
    $region47: #{cssf_vss_layer_forward.4} parent=5 // pred_region
      %s336 = ssub.s32 %s13, 1
      %p337 = scmp.lt.s32.totalorder %s22, 5
      %s338 = scalar_select %p337, %s22, 5
      %p339 = scmp.lt.s32.totalorder %s23, 3
      %s340 = scalar_select %p339, %s23, 3
      %s341 = smul.addr %s340, 8
      %s342 = smul.addr %s338, 32
      %s343 = sadd.s32 %s341, %s342
      %s344 = smul.addr %s343, 8
      %s345 = scalar_lea.vmem %s0, %s344
      %p346 = pneg %p53
      %p347 = pneg %p50
      %p348 = scmp.lt.s32.totalorder %s22, 5
      %s349 = scalar_select %p348, %s22, 5
      %p350 = scmp.lt.s32.totalorder %s23, 3
      %s351 = scalar_select %p350, %s23, 3
      %s352 = smul.addr %s351, 8
      %s353 = smul.addr %s349, 32
      %s354 = sadd.s32 %s352, %s353
      %s355 = smul.addr %s354, 8
      %s356 = scalar_lea.vmem %s1, %s355
      %p357 = pneg %p81
      %p358 = pneg %p78
      %p359 = scmp.lt.s32.totalorder %s23, 3
      %s360 = scalar_select %p359, %s23, 3
      %s361 = smul.addr %s360, 2
      %s362 = smul.addr %s361, 8
      %s363 = scalar_lea.vmem %s2, %s362
      %p364 = pneg %p107
      %p365 = pneg %p104
      %p366 = scmp.lt.s32.totalorder %s22, 5
      %s367 = scalar_select %p366, %s22, 5
      %p368 = scmp.lt.s32.totalorder %s23, 3
      %s369 = scalar_select %p368, %s23, 3
      %s370 = smul.addr %s369, 128
      %s371 = smul.addr %s367, 512
      %s372 = sadd.s32 %s370, %s371
      %s373 = smul.addr %s372, 8
      %s374 = scalar_lea.vmem %s3, %s373
      %p375 = pneg %p135
      %p376 = pneg %p132
      %p377 = scmp.lt.s32.totalorder %s22, 5
      %s378 = scalar_select %p377, %s22, 5
      %p379 = scmp.lt.s32.totalorder %s23, 3
      %s380 = scalar_select %p379, %s23, 3
      %s381 = smul.addr %s380, 128
      %s382 = smul.addr %s378, 512
      %s383 = sadd.s32 %s381, %s382
      %s384 = smul.addr %s383, 8
      %s385 = scalar_lea.vmem %s4, %s384
      %p386 = pneg %p163
      %p387 = pneg %p160
      %p388 = scmp.lt.s32.totalorder %s23, 3
      %s389 = scalar_select %p388, %s23, 3
      %s390 = scalar_lea.vmem %s5, %s389
      %p391 = pneg %p189
      %p392 = pneg %p186
      %p393 = scmp.lt.s32.totalorder %s23, 3
      %s394 = scalar_select %p393, %s23, 3
      %s395 = scalar_lea.vmem %s6, %s394
      %p396 = pneg %p215
      %p397 = pneg %p212
      %p398 = pneg %p243
      %p399 = pneg %p240
      %p400 = scmp.lt.s32.totalorder %s22, 5
      %s401 = scalar_select %p400, %s22, 5
      %p402 = scmp.lt.s32.totalorder %s23, 3
      %s403 = scalar_select %p402, %s23, 3
      %s404 = smul.addr %s403, 8
      %s405 = smul.addr %s401, 32
      %s406 = sadd.s32 %s404, %s405
      %s407 = smul.addr %s406, 8
      %s408 = scalar_lea.vmem %s7, %s407
      %p409 = scmp.lt.s32.totalorder %s22, 5
      %s410 = scalar_select %p409, %s22, 5
      %p411 = scmp.lt.s32.totalorder %s23, 3
      %s412 = scalar_select %p411, %s23, 3
      %s413 = smul.addr %s412, 8
      %s414 = smul.addr %s410, 32
      %s415 = sadd.s32 %s413, %s414
      %s416 = smul.addr %s415, 8
      %s417 = scalar_lea.vmem %s0, %s416
      %p418 = scmp.lt.s32.totalorder %s22, 5
      %s419 = scalar_select %p418, %s22, 5
      %p420 = scmp.lt.s32.totalorder %s23, 3
      %s421 = scalar_select %p420, %s23, 3
      %s422 = smul.addr %s421, 8
      %s423 = smul.addr %s419, 32
      %s424 = sadd.s32 %s422, %s423
      %s425 = smul.addr %s424, 8
      %s426 = scalar_lea.vmem %s1, %s425
      %p427 = scmp.lt.s32.totalorder %s23, 3
      %s428 = scalar_select %p427, %s23, 3
      %s429 = smul.addr %s428, 2
      %s430 = smul.addr %s429, 8
      %s431 = scalar_lea.vmem %s2, %s430
      %p432 = scmp.lt.s32.totalorder %s22, 5
      %s433 = scalar_select %p432, %s22, 5
      %p434 = scmp.lt.s32.totalorder %s23, 3
      %s435 = scalar_select %p434, %s23, 3
      %s436 = smul.addr %s435, 128
      %s437 = smul.addr %s433, 512
      %s438 = sadd.s32 %s436, %s437
      %s439 = smul.addr %s438, 8
      %s440 = scalar_lea.vmem %s3, %s439
      %p441 = scmp.lt.s32.totalorder %s22, 5
      %s442 = scalar_select %p441, %s22, 5
      %p443 = scmp.lt.s32.totalorder %s23, 3
      %s444 = scalar_select %p443, %s23, 3
      %s445 = smul.addr %s444, 128
      %s446 = smul.addr %s442, 512
      %s447 = sadd.s32 %s445, %s446
      %s448 = smul.addr %s447, 8
      %s449 = scalar_lea.vmem %s4, %s448
      %p450 = scmp.lt.s32.totalorder %s23, 3
      %s451 = scalar_select %p450, %s23, 3
      %s452 = scalar_lea.vmem %s5, %s451
      %p453 = scmp.lt.s32.totalorder %s23, 3
      %s454 = scalar_select %p453, %s23, 3
      %s455 = scalar_lea.vmem %s6, %s454
      %p456 = scmp.lt.s32.totalorder %s22, 5
      %s457 = scalar_select %p456, %s22, 5
      %p458 = scmp.lt.s32.totalorder %s23, 3
      %s459 = scalar_select %p458, %s23, 3
      %s460 = smul.addr %s459, 8
      %s461 = smul.addr %s457, 32
      %s462 = sadd.s32 %s460, %s461
      %s463 = smul.addr %s462, 8
      %s464 = scalar_lea.vmem %s7, %s463
      %v465 = vld [vmem:[%s431] sm:$0xff]
      %v466 = vld [vmem:[%s431 + $0x8] sm:$0xff]
      %v467 = vld [vmem:[%s452] sm:$0x1]
      %v468 = vld [vmem:[%s455] sm:$0x1]
      loop: start=0, step=1, limit=64
      $region49: #{cssf_vss_layer_forward.4} parent=47 // loop_pre_header
        _
      $region50: #{cssf_vss_layer_forward.4} parent=47 // loop_header
        %s470 = sphi 0, %s474
        %p471 = scmp.ge.s32.totalorder %s470, 64
        %v475 = vphi 0.0, %v519
        %v476 = vphi 0.0, %v520
      $region51: #{cssf_vss_layer_forward.4} parent=47 // loop_header_branch
        %473 = sbr.rel (%p471) target = $region55
      $region52: #{cssf_vss_layer_forward.4} parent=47 // loop_body
        %s477 = scalar_lea.vmem %s426, %s470
        %v478 = vld [vmem:[%s477] sm:$0x1]
        %v479 = vadd.f32 %v478, %v468
        %vm480 = vcmp.gt.f32.partialorder %v479, 20.0
        %v481 = vmul.f32 %v479, 1.442695
        %v482 = vpow.pop %v481
        %v483 = vadd.f32 %v482, 1.0
        %v484 = vlog2.pop %v483
        %v485 = vmul.f32 %v484, 0.6931472
        %v486 = vsel %vm480, %v479, %v485
        %s487 = scalar_lea.vmem %s417, %s470
        %v488 = vld [vmem:[%s487] sm:$0x1]
        %s489 = smul.u32 %s470, 16
        %s490 = scalar_lea.vmem %s440, %s489
        %v491 = vld [vmem:[%s490] sm:$0xff]
        %v492 = vld [vmem:[%s490 + $0x8] sm:$0xff]
        %s493 = scalar_lea.vmem %s449, %s489
        %v494 = vld [vmem:[%s493] sm:$0xff]
        %v495 = vld [vmem:[%s493 + $0x8] sm:$0xff]
        %v496 = vperm.slane %v486, 0
        %v497 = vmul.f32 %v496, %v465
        %v498 = vmul.f32 %v496, %v466
        %v499 = vmul.f32 %v497, 1.442695
        %v500 = vpow.pop %v499
        %v501 = vmul.f32 %v498, 1.442695
        %v502 = vpow.pop %v501
        %v503 = vmul.f32 %v500, %v475
        %v504 = vmul.f32 %v502, %v476
        %v505 = vmul.f32 %v486, %v488
        %507 = vset.pattern.permute.xlu0 0
        %508 = vperm.xlu0 %507, %v491
        %v509 = vpop.permute.xlu0 %508
        %512 = vset.pattern.permute.xlu0 0
        %513 = vperm.xlu0 %512, %v492
        %v514 = vpop.permute.xlu0 %513
        %v516 = vperm.slane %v505, 0
        %v517 = vmul.f32 %v509, %v516
        %v518 = vmul.f32 %v514, %v516
        %v519 = vadd.f32 %v503, %v517
        %v520 = vadd.f32 %v504, %v518
        %522 = vset.pattern.permute.xlu0 0
        %523 = vperm.xlu0 %522, %v494
        %v524 = vpop.permute.xlu0 %523
        %527 = vset.pattern.permute.xlu0 0
        %528 = vperm.xlu0 %527, %v495
        %v529 = vpop.permute.xlu0 %528
        %v531 = vmul.f32 %v524, %v519
        %v532 = vmul.f32 %v529, %v520
        %vm533 = vcmask 523264
        %v534 = vsel %vm533, %v531, 0.0
        %v535 = vsel %vm533, %v532, 0.0
        %v536 = vadd.f32 %v534, %v535
        %v537 = vrot.slane %v536, 4
        %v538 = vadd.f32 %v536, %v537
        %v539 = vrot.slane %v538, 2
        %v540 = vadd.f32 %v538, %v539
        %v541 = vrot.slane %v540, 1
        %v542 = vadd.f32 %v540, %v541
        %v543 = vmul.f32 %v467, %v488
        %v544 = vadd.f32 %v542, %v543
        %s545 = scalar_lea.vmem %s464, %s470
        %vm546 = vcmask 516096
        %547 = vst.msk [vmem:[%s545] sm:$0x1] %vm546, %v544
      $region53: #{cssf_vss_layer_forward.4} parent=47 // loop_footer
        %s474 = sadd.s32 1, %s470
      $region54: #{cssf_vss_layer_forward.4} parent=47 // loop_footer_branch
        %469 = sbr.rel target = $region50
      $region55: #{cssf_vss_layer_forward.4} parent=47 // loop_exit
        _
      %p548 = scmp.lt.s32.totalorder %s22, 5
      %s549 = scalar_select %p548, %s22, 5
      %p550 = scmp.lt.s32.totalorder %s23, 3
      %s551 = scalar_select %p550, %s23, 3
      %s552 = smul.addr %s551, 8
      %s553 = smul.addr %s549, 32
      %s554 = sadd.s32 %s552, %s553
      %s555 = smul.addr %s554, 8
      %s556 = scalar_lea.vmem %s7, %s555
      // Predicated region
      $region56: #{cssf_vss_layer_forward.4} parent=47 // pred_check
        %p557 = pneg %p240
      $region57: #{cssf_vss_layer_forward.4} parent=47 // pred_check_branch
        %559 = sbr.rel (%p557) target = $region59
      $region58: #{cssf_vss_layer_forward.4} parent=47 // pred_region
        _
      $region59: #{cssf_vss_layer_forward.4} parent=47 // pred_fallthru
        _
    $region48: #{cssf_vss_layer_forward.4} parent=5 // pred_fallthru
      _
    %p560 = scmp.le.s32.totalorder 2, %s13
    // Predicated region
    $region60: #{cssf_vss_layer_forward.4} parent=5 // pred_check
      %p561 = pneg %p560
    $region61: #{cssf_vss_layer_forward.4} parent=5 // pred_check_branch
      %563 = sbr.rel (%p561) target = $region63
    $region62: #{cssf_vss_layer_forward.4} parent=5 // pred_region
      %s564 = ssub.s32 %s13, 2
      // Predicated region
      $region64: #{cssf_vss_layer_forward.4} parent=62 // pred_check
        %p565 = pneg %p246
      $region65: #{cssf_vss_layer_forward.4} parent=62 // pred_check_branch
        %567 = sbr.rel (%p565) target = $region67
      $region66: #{cssf_vss_layer_forward.4} parent=62 // pred_region
        %p568 = scmp.lt.s32.totalorder %s24, 5
        %s569 = scalar_select %p568, %s24, 5
        %p570 = scmp.lt.s32.totalorder %s25, 3
        %s571 = scalar_select %p570, %s25, 3
        %s572 = smul.addr %s571, 8
        %s573 = smul.addr %s569, 32
        %s574 = sadd.s32 %s572, %s573
        %s575 = smul.addr %s574, 8
        %s576 = scalar_lea.vmem %s7, %s575
      $region67: #{cssf_vss_layer_forward.4} parent=62 // pred_fallthru
        _
    $region63: #{cssf_vss_layer_forward.4} parent=5 // pred_fallthru
      _
  $region6: #{cssf_vss_layer_forward.4} parent=0 // loop_footer
    %s17 = sadd.s32 1, %s13
  $region7: #{cssf_vss_layer_forward.4} parent=0 // loop_footer_branch
    %12 = sbr.rel target = $region3
  $region8: #{cssf_vss_layer_forward.4} parent=0 // loop_exit
    _

// kernel: cssf_vss_layer_forward.5
$region0: #{cssf_vss_layer_forward.5}
  #allocation0 [shape = 'u32[]', space=smem, size = 0x4, offset = 0x4, fixed_abs, tag = 'smem constant byte address 0x4 - core index']
  #allocation1 [shape = 'u32[72,128]{1,0:T(1,128)}', space=vmem, size = 0x9000, scoped, tag = 'internal scratch']
  %s0 = inlined_call_operand.vmem [shape: f32[128,64], index: 0, kind: input, shape index: {}]
  %s1 = inlined_call_operand.vmem [shape: f32[128,64], index: 1, kind: input, shape index: {}]
  %s2 = inlined_call_operand.vmem [shape: f32[128,64], index: 2, kind: input, shape index: {}]
  %s3 = inlined_call_operand.vmem [shape: f32[128,64], index: 3, kind: input, shape index: {}]
  %s4 = inlined_call_operand.vmem [shape: f32[1,64], index: 4, kind: input, shape index: {}]
  %s5 = inlined_call_operand.vmem [shape: f32[1,64], index: 5, kind: input, shape index: {}]
  %s6 = inlined_call_operand.vmem [shape: f32[64,32], index: 6, kind: input, shape index: {}]
  %s7 = inlined_call_operand.vmem [shape: f32[128,32], index: 7, kind: input, shape index: {}]
  %s8 = inlined_call_operand.vmem [shape: f32[128,32], index: 8, kind: input, shape index: {}]
  %s9 = inlined_call_operand.hbm [shape: f32[128,32], index: 9, kind: output, shape index: {}]
  %s10 = sld [smem:[#allocation0]]
  $region46: #{cssf_vss_layer_forward.5} parent=0
    _
  %s12 = ssub.s32 1, %s10
  %s13 = scalar_select 0, %s12, %s10
  $region1: #{cssf_vss_layer_forward.5} parent=0
    #allocation2 [shape = 'u8[65536]{0}', space=vmem, size = 0x10000, scoped, tag = 'output window, operand 0, single buffered']
    #allocation3 [shape = 's32[1]{0}', space=sflag, size = 0x4, scoped, tag = 'scoped memory for cssf_vss_layer_forward.5']
    %14 = vsyncpa [#allocation3], 0
    // Predicated region
    $region2: #{cssf_vss_layer_forward.5} parent=1 // pred_check
      _
    $region3: #{cssf_vss_layer_forward.5} parent=1 // pred_check_branch
      %16 = sbr.rel (0) target = $region5
    $region4: #{cssf_vss_layer_forward.5} parent=1 // pred_region
      _
    $region5: #{cssf_vss_layer_forward.5} parent=1 // pred_fallthru
      _
    // Predicated region
    $region6: #{cssf_vss_layer_forward.5} parent=1 // pred_check
      _
    $region7: #{cssf_vss_layer_forward.5} parent=1 // pred_check_branch
      %18 = sbr.rel (0) target = $region9
    $region8: #{cssf_vss_layer_forward.5} parent=1 // pred_region
      _
    $region9: #{cssf_vss_layer_forward.5} parent=1 // pred_fallthru
      _
    // Predicated region
    $region10: #{cssf_vss_layer_forward.5} parent=1 // pred_check
      _
    $region11: #{cssf_vss_layer_forward.5} parent=1 // pred_check_branch
      %20 = sbr.rel (0) target = $region13
    $region12: #{cssf_vss_layer_forward.5} parent=1 // pred_region
      _
    $region13: #{cssf_vss_layer_forward.5} parent=1 // pred_fallthru
      _
    // Predicated region
    $region14: #{cssf_vss_layer_forward.5} parent=1 // pred_check
      _
    $region15: #{cssf_vss_layer_forward.5} parent=1 // pred_check_branch
      %22 = sbr.rel (0) target = $region17
    $region16: #{cssf_vss_layer_forward.5} parent=1 // pred_region
      _
    $region17: #{cssf_vss_layer_forward.5} parent=1 // pred_fallthru
      _
    // Predicated region
    $region18: #{cssf_vss_layer_forward.5} parent=1 // pred_check
      _
    $region19: #{cssf_vss_layer_forward.5} parent=1 // pred_check_branch
      %24 = sbr.rel (0) target = $region21
    $region20: #{cssf_vss_layer_forward.5} parent=1 // pred_region
      _
    $region21: #{cssf_vss_layer_forward.5} parent=1 // pred_fallthru
      _
    // Predicated region
    $region22: #{cssf_vss_layer_forward.5} parent=1 // pred_check
      _
    $region23: #{cssf_vss_layer_forward.5} parent=1 // pred_check_branch
      %26 = sbr.rel (0) target = $region25
    $region24: #{cssf_vss_layer_forward.5} parent=1 // pred_region
      _
    $region25: #{cssf_vss_layer_forward.5} parent=1 // pred_fallthru
      _
    // Predicated region
    $region26: #{cssf_vss_layer_forward.5} parent=1 // pred_check
      _
    $region27: #{cssf_vss_layer_forward.5} parent=1 // pred_check_branch
      %28 = sbr.rel (0) target = $region29
    $region28: #{cssf_vss_layer_forward.5} parent=1 // pred_region
      _
    $region29: #{cssf_vss_layer_forward.5} parent=1 // pred_fallthru
      _
    // Predicated region
    $region30: #{cssf_vss_layer_forward.5} parent=1 // pred_check
      _
    $region31: #{cssf_vss_layer_forward.5} parent=1 // pred_check_branch
      %30 = sbr.rel (0) target = $region33
    $region32: #{cssf_vss_layer_forward.5} parent=1 // pred_region
      _
    $region33: #{cssf_vss_layer_forward.5} parent=1 // pred_fallthru
      _
    // Predicated region
    $region34: #{cssf_vss_layer_forward.5} parent=1 // pred_check
      _
    $region35: #{cssf_vss_layer_forward.5} parent=1 // pred_check_branch
      %32 = sbr.rel (0) target = $region37
    $region36: #{cssf_vss_layer_forward.5} parent=1 // pred_region
      _
    $region37: #{cssf_vss_layer_forward.5} parent=1 // pred_fallthru
      _
    %v33 = vld [vmem:[%s4] sm:$0x1]
    %v34 = vld [vmem:[%s5] sm:$0x1]
    %v35 = vld [vmem:[%s3] sm:$0xff]
    %v36 = vld [vmem:[%s3 + $0x8] sm:$0xff]
    %v37 = vld [vmem:[%s3 + $0x10] sm:$0xff]
    %v38 = vld [vmem:[%s3 + $0x18] sm:$0xff]
    %v39 = vld [vmem:[%s3 + $0x20] sm:$0xff]
    %v40 = vld [vmem:[%s3 + $0x28] sm:$0xff]
    %v41 = vld [vmem:[%s3 + $0x30] sm:$0xff]
    %v42 = vld [vmem:[%s3 + $0x38] sm:$0xff]
    %v43 = vld [vmem:[%s3 + $0x40] sm:$0xff]
    %v44 = vld [vmem:[%s3 + $0x48] sm:$0xff]
    %v45 = vld [vmem:[%s3 + $0x50] sm:$0xff]
    %v46 = vld [vmem:[%s3 + $0x58] sm:$0xff]
    %v47 = vld [vmem:[%s3 + $0x60] sm:$0xff]
    %v48 = vld [vmem:[%s3 + $0x68] sm:$0xff]
    %v49 = vld [vmem:[%s3 + $0x70] sm:$0xff]
    %v50 = vld [vmem:[%s3 + $0x78] sm:$0xff]
    %v51 = vld [vmem:[%s0] sm:$0xff]
    %v52 = vld [vmem:[%s0 + $0x8] sm:$0xff]
    %v53 = vld [vmem:[%s0 + $0x10] sm:$0xff]
    %v54 = vld [vmem:[%s0 + $0x18] sm:$0xff]
    %v55 = vld [vmem:[%s0 + $0x20] sm:$0xff]
    %v56 = vld [vmem:[%s0 + $0x28] sm:$0xff]
    %v57 = vld [vmem:[%s0 + $0x30] sm:$0xff]
    %v58 = vld [vmem:[%s0 + $0x38] sm:$0xff]
    %v59 = vld [vmem:[%s0 + $0x40] sm:$0xff]
    %v60 = vld [vmem:[%s0 + $0x48] sm:$0xff]
    %v61 = vld [vmem:[%s0 + $0x50] sm:$0xff]
    %v62 = vld [vmem:[%s0 + $0x58] sm:$0xff]
    %v63 = vld [vmem:[%s0 + $0x60] sm:$0xff]
    %v64 = vld [vmem:[%s0 + $0x68] sm:$0xff]
    %v65 = vld [vmem:[%s0 + $0x70] sm:$0xff]
    %v66 = vld [vmem:[%s0 + $0x78] sm:$0xff]
    %vm67 = vcmask 523264
    %v68 = vsel %vm67, %v51, 0.0
    %69 = vadd.xlane.f32.xlu0 %v68
    %v70 = vpop.xlane.xlu0 %69
    %v71 = vsel %vm67, %v52, 0.0
    %72 = vadd.xlane.f32.xlu0 %v71
    %v73 = vpop.xlane.xlu0 %72
    %v74 = vsel %vm67, %v53, 0.0
    %75 = vadd.xlane.f32.xlu0 %v74
    %v76 = vpop.xlane.xlu0 %75
    %v77 = vsel %vm67, %v54, 0.0
    %78 = vadd.xlane.f32.xlu0 %v77
    %v79 = vpop.xlane.xlu0 %78
    %v80 = vsel %vm67, %v55, 0.0
    %81 = vadd.xlane.f32.xlu0 %v80
    %v82 = vpop.xlane.xlu0 %81
    %v83 = vsel %vm67, %v56, 0.0
    %84 = vadd.xlane.f32.xlu0 %v83
    %v85 = vpop.xlane.xlu0 %84
    %v86 = vsel %vm67, %v57, 0.0
    %87 = vadd.xlane.f32.xlu0 %v86
    %v88 = vpop.xlane.xlu0 %87
    %v89 = vsel %vm67, %v58, 0.0
    %90 = vadd.xlane.f32.xlu0 %v89
    %v91 = vpop.xlane.xlu0 %90
    %v92 = vsel %vm67, %v59, 0.0
    %93 = vadd.xlane.f32.xlu0 %v92
    %v94 = vpop.xlane.xlu0 %93
    %v95 = vsel %vm67, %v60, 0.0
    %96 = vadd.xlane.f32.xlu0 %v95
    %v97 = vpop.xlane.xlu0 %96
    %v98 = vsel %vm67, %v61, 0.0
    %99 = vadd.xlane.f32.xlu0 %v98
    %v100 = vpop.xlane.xlu0 %99
    %v101 = vsel %vm67, %v62, 0.0
    %102 = vadd.xlane.f32.xlu0 %v101
    %v103 = vpop.xlane.xlu0 %102
    %v104 = vsel %vm67, %v63, 0.0
    %105 = vadd.xlane.f32.xlu0 %v104
    %v106 = vpop.xlane.xlu0 %105
    %v107 = vsel %vm67, %v64, 0.0
    %108 = vadd.xlane.f32.xlu0 %v107
    %v109 = vpop.xlane.xlu0 %108
    %v110 = vsel %vm67, %v65, 0.0
    %111 = vadd.xlane.f32.xlu0 %v110
    %v112 = vpop.xlane.xlu0 %111
    %v113 = vsel %vm67, %v66, 0.0
    %114 = vadd.xlane.f32.xlu0 %v113
    %v115 = vpop.xlane.xlu0 %114
    %v116 = vrcp.pop 64.0
    %v117 = vmul.f32 64.0, %v116
    %v118 = vsub.f32 1.0, %v117
    %v119 = vmul.f32 %v116, %v118
    %v120 = vadd.f32 %v116, %v119
    %vm121 = vweird.f32 %v116
    %v122 = vsel %vm121, %v116, %v120
    %v123 = vmul.f32 %v70, %v122
    %v124 = vmul.f32 %v73, %v122
    %v125 = vmul.f32 %v76, %v122
    %v126 = vmul.f32 %v79, %v122
    %v127 = vmul.f32 %v82, %v122
    %v128 = vmul.f32 %v85, %v122
    %v129 = vmul.f32 %v88, %v122
    %v130 = vmul.f32 %v91, %v122
    %v131 = vmul.f32 %v94, %v122
    %v132 = vmul.f32 %v97, %v122
    %v133 = vmul.f32 %v100, %v122
    %v134 = vmul.f32 %v103, %v122
    %v135 = vmul.f32 %v106, %v122
    %v136 = vmul.f32 %v109, %v122
    %v137 = vmul.f32 %v112, %v122
    %v138 = vmul.f32 %v115, %v122
    %v139 = vsub.f32 %v51, %v123
    %v140 = vsub.f32 %v52, %v124
    %v141 = vsub.f32 %v53, %v125
    %v142 = vsub.f32 %v54, %v126
    %v143 = vsub.f32 %v55, %v127
    %v144 = vsub.f32 %v56, %v128
    %v145 = vsub.f32 %v57, %v129
    %v146 = vsub.f32 %v58, %v130
    %v147 = vsub.f32 %v59, %v131
    %v148 = vsub.f32 %v60, %v132
    %v149 = vsub.f32 %v61, %v133
    %v150 = vsub.f32 %v62, %v134
    %v151 = vsub.f32 %v63, %v135
    %v152 = vsub.f32 %v64, %v136
    %v153 = vsub.f32 %v65, %v137
    %v154 = vsub.f32 %v66, %v138
    %v155 = vmul.f32 %v139, %v139
    %v156 = vmul.f32 %v140, %v140
    %v157 = vmul.f32 %v141, %v141
    %v158 = vmul.f32 %v142, %v142
    %v159 = vmul.f32 %v143, %v143
    %v160 = vmul.f32 %v144, %v144
    %v161 = vmul.f32 %v145, %v145
    %v162 = vmul.f32 %v146, %v146
    %v163 = vmul.f32 %v147, %v147
    %v164 = vmul.f32 %v148, %v148
    %v165 = vmul.f32 %v149, %v149
    %v166 = vmul.f32 %v150, %v150
    %v167 = vmul.f32 %v151, %v151
    %v168 = vmul.f32 %v152, %v152
    %v169 = vmul.f32 %v153, %v153
    %v170 = vmul.f32 %v154, %v154
    %v171 = vsel %vm67, %v155, 0.0
    %172 = vadd.xlane.f32.xlu0 %v171
    %v173 = vpop.xlane.xlu0 %172
    %v174 = vsel %vm67, %v156, 0.0
    %175 = vadd.xlane.f32.xlu0 %v174
    %v176 = vpop.xlane.xlu0 %175
    %v177 = vsel %vm67, %v157, 0.0
    %178 = vadd.xlane.f32.xlu0 %v177
    %v179 = vpop.xlane.xlu0 %178
    %v180 = vsel %vm67, %v158, 0.0
    %181 = vadd.xlane.f32.xlu0 %v180
    %v182 = vpop.xlane.xlu0 %181
    %v183 = vsel %vm67, %v159, 0.0
    %184 = vadd.xlane.f32.xlu0 %v183
    %v185 = vpop.xlane.xlu0 %184
    %v186 = vsel %vm67, %v160, 0.0
    %187 = vadd.xlane.f32.xlu0 %v186
    %v188 = vpop.xlane.xlu0 %187
    %v189 = vsel %vm67, %v161, 0.0
    %190 = vadd.xlane.f32.xlu0 %v189
    %v191 = vpop.xlane.xlu0 %190
    %v192 = vsel %vm67, %v162, 0.0
    %193 = vadd.xlane.f32.xlu0 %v192
    %v194 = vpop.xlane.xlu0 %193
    %v195 = vsel %vm67, %v163, 0.0
    %196 = vadd.xlane.f32.xlu0 %v195
    %v197 = vpop.xlane.xlu0 %196
    %v198 = vsel %vm67, %v164, 0.0
    %199 = vadd.xlane.f32.xlu0 %v198
    %v200 = vpop.xlane.xlu0 %199
    %v201 = vsel %vm67, %v165, 0.0
    %202 = vadd.xlane.f32.xlu0 %v201
    %v203 = vpop.xlane.xlu0 %202
    %v204 = vsel %vm67, %v166, 0.0
    %205 = vadd.xlane.f32.xlu0 %v204
    %v206 = vpop.xlane.xlu0 %205
    %v207 = vsel %vm67, %v167, 0.0
    %208 = vadd.xlane.f32.xlu0 %v207
    %v209 = vpop.xlane.xlu0 %208
    %v210 = vsel %vm67, %v168, 0.0
    %211 = vadd.xlane.f32.xlu0 %v210
    %v212 = vpop.xlane.xlu0 %211
    %v213 = vsel %vm67, %v169, 0.0
    %214 = vadd.xlane.f32.xlu0 %v213
    %v215 = vpop.xlane.xlu0 %214
    %v216 = vsel %vm67, %v170, 0.0
    %217 = vadd.xlane.f32.xlu0 %v216
    %v218 = vpop.xlane.xlu0 %217
    %v219 = vmul.f32 %v173, %v122
    %v220 = vmul.f32 %v176, %v122
    %v221 = vmul.f32 %v179, %v122
    %v222 = vmul.f32 %v182, %v122
    %v223 = vmul.f32 %v185, %v122
    %v224 = vmul.f32 %v188, %v122
    %v225 = vmul.f32 %v191, %v122
    %v226 = vmul.f32 %v194, %v122
    %v227 = vmul.f32 %v197, %v122
    %v228 = vmul.f32 %v200, %v122
    %v229 = vmul.f32 %v203, %v122
    %v230 = vmul.f32 %v206, %v122
    %v231 = vmul.f32 %v209, %v122
    %v232 = vmul.f32 %v212, %v122
    %v233 = vmul.f32 %v215, %v122
    %v234 = vmul.f32 %v218, %v122
    %v235 = vadd.f32 %v219, 1e-05
    %v236 = vadd.f32 %v220, 1e-05
    %v237 = vadd.f32 %v221, 1e-05
    %v238 = vadd.f32 %v222, 1e-05
    %v239 = vadd.f32 %v223, 1e-05
    %v240 = vadd.f32 %v224, 1e-05
    %v241 = vadd.f32 %v225, 1e-05
    %v242 = vadd.f32 %v226, 1e-05
    %v243 = vadd.f32 %v227, 1e-05
    %v244 = vadd.f32 %v228, 1e-05
    %v245 = vadd.f32 %v229, 1e-05
    %v246 = vadd.f32 %v230, 1e-05
    %v247 = vadd.f32 %v231, 1e-05
    %v248 = vadd.f32 %v232, 1e-05
    %v249 = vadd.f32 %v233, 1e-05
    %v250 = vadd.f32 %v234, 1e-05
    %v251 = vrsqrt.pop %v235
    %v252 = vmul.f32 %v251, %v235
    %v253 = vmul.f32 %v252, %v251
    %v254 = vmul.f32 0.5, %v253
    %v255 = vsub.f32 1.5, %v254
    %v256 = vmul.f32 %v251, %v255
    %vm257 = vweird.f32 %v235
    %vm258 = vweird.f32 %v251
    %vm259 = vmor %vm257, %vm258
    %v260 = vsel %vm259, %v251, %v256
    %v261 = vrsqrt.pop %v236
    %v262 = vmul.f32 %v261, %v236
    %v263 = vmul.f32 %v262, %v261
    %v264 = vmul.f32 0.5, %v263
    %v265 = vsub.f32 1.5, %v264
    %v266 = vmul.f32 %v261, %v265
    %vm267 = vweird.f32 %v236
    %vm268 = vweird.f32 %v261
    %vm269 = vmor %vm267, %vm268
    %v270 = vsel %vm269, %v261, %v266
    %v271 = vrsqrt.pop %v237
    %v272 = vmul.f32 %v271, %v237
    %v273 = vmul.f32 %v272, %v271
    %v274 = vmul.f32 0.5, %v273
    %v275 = vsub.f32 1.5, %v274
    %v276 = vmul.f32 %v271, %v275
    %vm277 = vweird.f32 %v237
    %vm278 = vweird.f32 %v271
    %vm279 = vmor %vm277, %vm278
    %v280 = vsel %vm279, %v271, %v276
    %v281 = vrsqrt.pop %v238
    %v282 = vmul.f32 %v281, %v238
    %v283 = vmul.f32 %v282, %v281
    %v284 = vmul.f32 0.5, %v283
    %v285 = vsub.f32 1.5, %v284
    %v286 = vmul.f32 %v281, %v285
    %vm287 = vweird.f32 %v238
    %vm288 = vweird.f32 %v281
    %vm289 = vmor %vm287, %vm288
    %v290 = vsel %vm289, %v281, %v286
    %v291 = vrsqrt.pop %v239
    %v292 = vmul.f32 %v291, %v239
    %v293 = vmul.f32 %v292, %v291
    %v294 = vmul.f32 0.5, %v293
    %v295 = vsub.f32 1.5, %v294
    %v296 = vmul.f32 %v291, %v295
    %vm297 = vweird.f32 %v239
    %vm298 = vweird.f32 %v291
    %vm299 = vmor %vm297, %vm298
    %v300 = vsel %vm299, %v291, %v296
    %v301 = vrsqrt.pop %v240
    %v302 = vmul.f32 %v301, %v240
    %v303 = vmul.f32 %v302, %v301
    %v304 = vmul.f32 0.5, %v303
    %v305 = vsub.f32 1.5, %v304
    %v306 = vmul.f32 %v301, %v305
    %vm307 = vweird.f32 %v240
    %vm308 = vweird.f32 %v301
    %vm309 = vmor %vm307, %vm308
    %v310 = vsel %vm309, %v301, %v306
    %v311 = vrsqrt.pop %v241
    %v312 = vmul.f32 %v311, %v241
    %v313 = vmul.f32 %v312, %v311
    %v314 = vmul.f32 0.5, %v313
    %v315 = vsub.f32 1.5, %v314
    %v316 = vmul.f32 %v311, %v315
    %vm317 = vweird.f32 %v241
    %vm318 = vweird.f32 %v311
    %vm319 = vmor %vm317, %vm318
    %v320 = vsel %vm319, %v311, %v316
    %v321 = vrsqrt.pop %v242
    %v322 = vmul.f32 %v321, %v242
    %v323 = vmul.f32 %v322, %v321
    %v324 = vmul.f32 0.5, %v323
    %v325 = vsub.f32 1.5, %v324
    %v326 = vmul.f32 %v321, %v325
    %vm327 = vweird.f32 %v242
    %vm328 = vweird.f32 %v321
    %vm329 = vmor %vm327, %vm328
    %v330 = vsel %vm329, %v321, %v326
    %v331 = vrsqrt.pop %v243
    %v332 = vmul.f32 %v331, %v243
    %v333 = vmul.f32 %v332, %v331
    %v334 = vmul.f32 0.5, %v333
    %v335 = vsub.f32 1.5, %v334
    %v336 = vmul.f32 %v331, %v335
    %vm337 = vweird.f32 %v243
    %vm338 = vweird.f32 %v331
    %vm339 = vmor %vm337, %vm338
    %v340 = vsel %vm339, %v331, %v336
    %v341 = vrsqrt.pop %v244
    %v342 = vmul.f32 %v341, %v244
    %v343 = vmul.f32 %v342, %v341
    %v344 = vmul.f32 0.5, %v343
    %v345 = vsub.f32 1.5, %v344
    %v346 = vmul.f32 %v341, %v345
    %vm347 = vweird.f32 %v244
    %vm348 = vweird.f32 %v341
    %vm349 = vmor %vm347, %vm348
    %v350 = vsel %vm349, %v341, %v346
    %v351 = vrsqrt.pop %v245
    %v352 = vmul.f32 %v351, %v245
    %v353 = vmul.f32 %v352, %v351
    %v354 = vmul.f32 0.5, %v353
    %v355 = vsub.f32 1.5, %v354
    %v356 = vmul.f32 %v351, %v355
    %vm357 = vweird.f32 %v245
    %vm358 = vweird.f32 %v351
    %vm359 = vmor %vm357, %vm358
    %v360 = vsel %vm359, %v351, %v356
    %v361 = vrsqrt.pop %v246
    %v362 = vmul.f32 %v361, %v246
    %v363 = vmul.f32 %v362, %v361
    %v364 = vmul.f32 0.5, %v363
    %v365 = vsub.f32 1.5, %v364
    %v366 = vmul.f32 %v361, %v365
    %vm367 = vweird.f32 %v246
    %vm368 = vweird.f32 %v361
    %vm369 = vmor %vm367, %vm368
    %v370 = vsel %vm369, %v361, %v366
    %v371 = vrsqrt.pop %v247
    %v372 = vmul.f32 %v371, %v247
    %v373 = vmul.f32 %v372, %v371
    %v374 = vmul.f32 0.5, %v373
    %v375 = vsub.f32 1.5, %v374
    %v376 = vmul.f32 %v371, %v375
    %vm377 = vweird.f32 %v247
    %vm378 = vweird.f32 %v371
    %vm379 = vmor %vm377, %vm378
    %v380 = vsel %vm379, %v371, %v376
    %v381 = vrsqrt.pop %v248
    %v382 = vmul.f32 %v381, %v248
    %v383 = vmul.f32 %v382, %v381
    %v384 = vmul.f32 0.5, %v383
    %v385 = vsub.f32 1.5, %v384
    %v386 = vmul.f32 %v381, %v385
    %vm387 = vweird.f32 %v248
    %vm388 = vweird.f32 %v381
    %vm389 = vmor %vm387, %vm388
    %v390 = vsel %vm389, %v381, %v386
    %v391 = vrsqrt.pop %v249
    %v392 = vmul.f32 %v391, %v249
    %v393 = vmul.f32 %v392, %v391
    %v394 = vmul.f32 0.5, %v393
    %v395 = vsub.f32 1.5, %v394
    %v396 = vmul.f32 %v391, %v395
    %vm397 = vweird.f32 %v249
    %vm398 = vweird.f32 %v391
    %vm399 = vmor %vm397, %vm398
    %v400 = vsel %vm399, %v391, %v396
    %v401 = vrsqrt.pop %v250
    %v402 = vmul.f32 %v401, %v250
    %v403 = vmul.f32 %v402, %v401
    %v404 = vmul.f32 0.5, %v403
    %v405 = vsub.f32 1.5, %v404
    %v406 = vmul.f32 %v401, %v405
    %vm407 = vweird.f32 %v250
    %vm408 = vweird.f32 %v401
    %vm409 = vmor %vm407, %vm408
    %v410 = vsel %vm409, %v401, %v406
    %v411 = vmul.f32 %v139, %v260
    %v412 = vmul.f32 %v140, %v270
    %v413 = vmul.f32 %v141, %v280
    %v414 = vmul.f32 %v142, %v290
    %v415 = vmul.f32 %v143, %v300
    %v416 = vmul.f32 %v144, %v310
    %v417 = vmul.f32 %v145, %v320
    %v418 = vmul.f32 %v146, %v330
    %v419 = vmul.f32 %v147, %v340
    %v420 = vmul.f32 %v148, %v350
    %v421 = vmul.f32 %v149, %v360
    %v422 = vmul.f32 %v150, %v370
    %v423 = vmul.f32 %v151, %v380
    %v424 = vmul.f32 %v152, %v390
    %v425 = vmul.f32 %v153, %v400
    %v426 = vmul.f32 %v154, %v410
    %v428 = vperm.slane %v33, 0
    %v430 = vmul.f32 %v411, %v428
    %v431 = vmul.f32 %v412, %v428
    %v432 = vmul.f32 %v413, %v428
    %v433 = vmul.f32 %v414, %v428
    %v434 = vmul.f32 %v415, %v428
    %v435 = vmul.f32 %v416, %v428
    %v436 = vmul.f32 %v417, %v428
    %v437 = vmul.f32 %v418, %v428
    %v438 = vmul.f32 %v419, %v428
    %v439 = vmul.f32 %v420, %v428
    %v440 = vmul.f32 %v421, %v428
    %v441 = vmul.f32 %v422, %v428
    %v442 = vmul.f32 %v423, %v428
    %v443 = vmul.f32 %v424, %v428
    %v444 = vmul.f32 %v425, %v428
    %v445 = vmul.f32 %v426, %v428
    %v447 = vperm.slane %v34, 0
    %v449 = vadd.f32 %v430, %v447
    %v450 = vadd.f32 %v431, %v447
    %v451 = vadd.f32 %v432, %v447
    %v452 = vadd.f32 %v433, %v447
    %v453 = vadd.f32 %v434, %v447
    %v454 = vadd.f32 %v435, %v447
    %v455 = vadd.f32 %v436, %v447
    %v456 = vadd.f32 %v437, %v447
    %v457 = vadd.f32 %v438, %v447
    %v458 = vadd.f32 %v439, %v447
    %v459 = vadd.f32 %v440, %v447
    %v460 = vadd.f32 %v441, %v447
    %v461 = vadd.f32 %v442, %v447
    %v462 = vadd.f32 %v443, %v447
    %v463 = vadd.f32 %v444, %v447
    %v464 = vadd.f32 %v445, %v447
    %v465 = vmul.f32 %v449, %v35
    %v466 = vmul.f32 %v450, %v36
    %v467 = vmul.f32 %v451, %v37
    %v468 = vmul.f32 %v452, %v38
    %v469 = vmul.f32 %v453, %v39
    %v470 = vmul.f32 %v454, %v40
    %v471 = vmul.f32 %v455, %v41
    %v472 = vmul.f32 %v456, %v42
    %v473 = vmul.f32 %v457, %v43
    %v474 = vmul.f32 %v458, %v44
    %v475 = vmul.f32 %v459, %v45
    %v476 = vmul.f32 %v460, %v46
    %v477 = vmul.f32 %v461, %v47
    %v478 = vmul.f32 %v462, %v48
    %v479 = vmul.f32 %v463, %v49
    %v480 = vmul.f32 %v464, %v50
    %v481 = vld [vmem:[%s1] sm:$0xff]
    %v482 = vld [vmem:[%s1 + $0x8] sm:$0xff]
    %v483 = vld [vmem:[%s1 + $0x10] sm:$0xff]
    %v484 = vld [vmem:[%s1 + $0x18] sm:$0xff]
    %v485 = vld [vmem:[%s1 + $0x20] sm:$0xff]
    %v486 = vld [vmem:[%s1 + $0x28] sm:$0xff]
    %v487 = vld [vmem:[%s1 + $0x30] sm:$0xff]
    %v488 = vld [vmem:[%s1 + $0x38] sm:$0xff]
    %v489 = vld [vmem:[%s1 + $0x40] sm:$0xff]
    %v490 = vld [vmem:[%s1 + $0x48] sm:$0xff]
    %v491 = vld [vmem:[%s1 + $0x50] sm:$0xff]
    %v492 = vld [vmem:[%s1 + $0x58] sm:$0xff]
    %v493 = vld [vmem:[%s1 + $0x60] sm:$0xff]
    %v494 = vld [vmem:[%s1 + $0x68] sm:$0xff]
    %v495 = vld [vmem:[%s1 + $0x70] sm:$0xff]
    %v496 = vld [vmem:[%s1 + $0x78] sm:$0xff]
    %v497 = vsel %vm67, %v481, 0.0
    %498 = vadd.xlane.f32.xlu0 %v497
    %v499 = vpop.xlane.xlu0 %498
    %v500 = vsel %vm67, %v482, 0.0
    %501 = vadd.xlane.f32.xlu0 %v500
    %v502 = vpop.xlane.xlu0 %501
    %v503 = vsel %vm67, %v483, 0.0
    %504 = vadd.xlane.f32.xlu0 %v503
    %v505 = vpop.xlane.xlu0 %504
    %v506 = vsel %vm67, %v484, 0.0
    %507 = vadd.xlane.f32.xlu0 %v506
    %v508 = vpop.xlane.xlu0 %507
    %v509 = vsel %vm67, %v485, 0.0
    %510 = vadd.xlane.f32.xlu0 %v509
    %v511 = vpop.xlane.xlu0 %510
    %v512 = vsel %vm67, %v486, 0.0
    %513 = vadd.xlane.f32.xlu0 %v512
    %v514 = vpop.xlane.xlu0 %513
    %v515 = vsel %vm67, %v487, 0.0
    %516 = vadd.xlane.f32.xlu0 %v515
    %v517 = vpop.xlane.xlu0 %516
    %v518 = vsel %vm67, %v488, 0.0
    %519 = vadd.xlane.f32.xlu0 %v518
    %v520 = vpop.xlane.xlu0 %519
    %v521 = vsel %vm67, %v489, 0.0
    %522 = vadd.xlane.f32.xlu0 %v521
    %v523 = vpop.xlane.xlu0 %522
    %v524 = vsel %vm67, %v490, 0.0
    %525 = vadd.xlane.f32.xlu0 %v524
    %v526 = vpop.xlane.xlu0 %525
    %v527 = vsel %vm67, %v491, 0.0
    %528 = vadd.xlane.f32.xlu0 %v527
    %v529 = vpop.xlane.xlu0 %528
    %v530 = vsel %vm67, %v492, 0.0
    %531 = vadd.xlane.f32.xlu0 %v530
    %v532 = vpop.xlane.xlu0 %531
    %v533 = vsel %vm67, %v493, 0.0
    %534 = vadd.xlane.f32.xlu0 %v533
    %v535 = vpop.xlane.xlu0 %534
    %v536 = vsel %vm67, %v494, 0.0
    %537 = vadd.xlane.f32.xlu0 %v536
    %v538 = vpop.xlane.xlu0 %537
    %v539 = vsel %vm67, %v495, 0.0
    %540 = vadd.xlane.f32.xlu0 %v539
    %v541 = vpop.xlane.xlu0 %540
    %v542 = vsel %vm67, %v496, 0.0
    %543 = vadd.xlane.f32.xlu0 %v542
    %v544 = vpop.xlane.xlu0 %543
    %v545 = vmul.f32 %v499, %v122
    %v546 = vmul.f32 %v502, %v122
    %v547 = vmul.f32 %v505, %v122
    %v548 = vmul.f32 %v508, %v122
    %v549 = vmul.f32 %v511, %v122
    %v550 = vmul.f32 %v514, %v122
    %v551 = vmul.f32 %v517, %v122
    %v552 = vmul.f32 %v520, %v122
    %v553 = vmul.f32 %v523, %v122
    %v554 = vmul.f32 %v526, %v122
    %v555 = vmul.f32 %v529, %v122
    %v556 = vmul.f32 %v532, %v122
    %v557 = vmul.f32 %v535, %v122
    %v558 = vmul.f32 %v538, %v122
    %v559 = vmul.f32 %v541, %v122
    %v560 = vmul.f32 %v544, %v122
    %v561 = vsub.f32 %v481, %v545
    %v562 = vsub.f32 %v482, %v546
    %v563 = vsub.f32 %v483, %v547
    %v564 = vsub.f32 %v484, %v548
    %v565 = vsub.f32 %v485, %v549
    %v566 = vsub.f32 %v486, %v550
    %v567 = vsub.f32 %v487, %v551
    %v568 = vsub.f32 %v488, %v552
    %v569 = vsub.f32 %v489, %v553
    %v570 = vsub.f32 %v490, %v554
    %v571 = vsub.f32 %v491, %v555
    %v572 = vsub.f32 %v492, %v556
    %v573 = vsub.f32 %v493, %v557
    %v574 = vsub.f32 %v494, %v558
    %v575 = vsub.f32 %v495, %v559
    %v576 = vsub.f32 %v496, %v560
    %v577 = vmul.f32 %v561, %v561
    %v578 = vmul.f32 %v562, %v562
    %v579 = vmul.f32 %v563, %v563
    %v580 = vmul.f32 %v564, %v564
    %v581 = vmul.f32 %v565, %v565
    %v582 = vmul.f32 %v566, %v566
    %v583 = vmul.f32 %v567, %v567
    %v584 = vmul.f32 %v568, %v568
    %v585 = vmul.f32 %v569, %v569
    %v586 = vmul.f32 %v570, %v570
    %v587 = vmul.f32 %v571, %v571
    %v588 = vmul.f32 %v572, %v572
    %v589 = vmul.f32 %v573, %v573
    %v590 = vmul.f32 %v574, %v574
    %v591 = vmul.f32 %v575, %v575
    %v592 = vmul.f32 %v576, %v576
    %v593 = vsel %vm67, %v577, 0.0
    %594 = vadd.xlane.f32.xlu0 %v593
    %v595 = vpop.xlane.xlu0 %594
    %v596 = vsel %vm67, %v578, 0.0
    %597 = vadd.xlane.f32.xlu0 %v596
    %v598 = vpop.xlane.xlu0 %597
    %v599 = vsel %vm67, %v579, 0.0
    %600 = vadd.xlane.f32.xlu0 %v599
    %v601 = vpop.xlane.xlu0 %600
    %v602 = vsel %vm67, %v580, 0.0
    %603 = vadd.xlane.f32.xlu0 %v602
    %v604 = vpop.xlane.xlu0 %603
    %v605 = vsel %vm67, %v581, 0.0
    %606 = vadd.xlane.f32.xlu0 %v605
    %v607 = vpop.xlane.xlu0 %606
    %v608 = vsel %vm67, %v582, 0.0
    %609 = vadd.xlane.f32.xlu0 %v608
    %v610 = vpop.xlane.xlu0 %609
    %v611 = vsel %vm67, %v583, 0.0
    %612 = vadd.xlane.f32.xlu0 %v611
    %v613 = vpop.xlane.xlu0 %612
    %v614 = vsel %vm67, %v584, 0.0
    %615 = vadd.xlane.f32.xlu0 %v614
    %v616 = vpop.xlane.xlu0 %615
    %v617 = vsel %vm67, %v585, 0.0
    %618 = vadd.xlane.f32.xlu0 %v617
    %v619 = vpop.xlane.xlu0 %618
    %v620 = vsel %vm67, %v586, 0.0
    %621 = vadd.xlane.f32.xlu0 %v620
    %v622 = vpop.xlane.xlu0 %621
    %v623 = vsel %vm67, %v587, 0.0
    %624 = vadd.xlane.f32.xlu0 %v623
    %v625 = vpop.xlane.xlu0 %624
    %v626 = vsel %vm67, %v588, 0.0
    %627 = vadd.xlane.f32.xlu0 %v626
    %v628 = vpop.xlane.xlu0 %627
    %v629 = vsel %vm67, %v589, 0.0
    %630 = vadd.xlane.f32.xlu0 %v629
    %v631 = vpop.xlane.xlu0 %630
    %v632 = vsel %vm67, %v590, 0.0
    %633 = vadd.xlane.f32.xlu0 %v632
    %v634 = vpop.xlane.xlu0 %633
    %v635 = vsel %vm67, %v591, 0.0
    %636 = vadd.xlane.f32.xlu0 %v635
    %v637 = vpop.xlane.xlu0 %636
    %v638 = vsel %vm67, %v592, 0.0
    %639 = vadd.xlane.f32.xlu0 %v638
    %v640 = vpop.xlane.xlu0 %639
    %v641 = vmul.f32 %v595, %v122
    %v642 = vmul.f32 %v598, %v122
    %v643 = vmul.f32 %v601, %v122
    %v644 = vmul.f32 %v604, %v122
    %v645 = vmul.f32 %v607, %v122
    %v646 = vmul.f32 %v610, %v122
    %v647 = vmul.f32 %v613, %v122
    %v648 = vmul.f32 %v616, %v122
    %v649 = vmul.f32 %v619, %v122
    %v650 = vmul.f32 %v622, %v122
    %v651 = vmul.f32 %v625, %v122
    %v652 = vmul.f32 %v628, %v122
    %v653 = vmul.f32 %v631, %v122
    %v654 = vmul.f32 %v634, %v122
    %v655 = vmul.f32 %v637, %v122
    %v656 = vmul.f32 %v640, %v122
    %v657 = vadd.f32 %v641, 1e-05
    %v658 = vadd.f32 %v642, 1e-05
    %v659 = vadd.f32 %v643, 1e-05
    %v660 = vadd.f32 %v644, 1e-05
    %v661 = vadd.f32 %v645, 1e-05
    %v662 = vadd.f32 %v646, 1e-05
    %v663 = vadd.f32 %v647, 1e-05
    %v664 = vadd.f32 %v648, 1e-05
    %v665 = vadd.f32 %v649, 1e-05
    %v666 = vadd.f32 %v650, 1e-05
    %v667 = vadd.f32 %v651, 1e-05
    %v668 = vadd.f32 %v652, 1e-05
    %v669 = vadd.f32 %v653, 1e-05
    %v670 = vadd.f32 %v654, 1e-05
    %v671 = vadd.f32 %v655, 1e-05
    %v672 = vadd.f32 %v656, 1e-05
    %v673 = vrsqrt.pop %v657
    %v674 = vmul.f32 %v673, %v657
    %v675 = vmul.f32 %v674, %v673
    %v676 = vmul.f32 0.5, %v675
    %v677 = vsub.f32 1.5, %v676
    %v678 = vmul.f32 %v673, %v677
    %vm679 = vweird.f32 %v657
    %vm680 = vweird.f32 %v673
    %vm681 = vmor %vm679, %vm680
    %v682 = vsel %vm681, %v673, %v678
    %v683 = vrsqrt.pop %v658
    %v684 = vmul.f32 %v683, %v658
    %v685 = vmul.f32 %v684, %v683
    %v686 = vmul.f32 0.5, %v685
    %v687 = vsub.f32 1.5, %v686
    %v688 = vmul.f32 %v683, %v687
    %vm689 = vweird.f32 %v658
    %vm690 = vweird.f32 %v683
    %vm691 = vmor %vm689, %vm690
    %v692 = vsel %vm691, %v683, %v688
    %v693 = vrsqrt.pop %v659
    %v694 = vmul.f32 %v693, %v659
    %v695 = vmul.f32 %v694, %v693
    %v696 = vmul.f32 0.5, %v695
    %v697 = vsub.f32 1.5, %v696
    %v698 = vmul.f32 %v693, %v697
    %vm699 = vweird.f32 %v659
    %vm700 = vweird.f32 %v693
    %vm701 = vmor %vm699, %vm700
    %v702 = vsel %vm701, %v693, %v698
    %v703 = vrsqrt.pop %v660
    %v704 = vmul.f32 %v703, %v660
    %v705 = vmul.f32 %v704, %v703
    %v706 = vmul.f32 0.5, %v705
    %v707 = vsub.f32 1.5, %v706
    %v708 = vmul.f32 %v703, %v707
    %vm709 = vweird.f32 %v660
    %vm710 = vweird.f32 %v703
    %vm711 = vmor %vm709, %vm710
    %v712 = vsel %vm711, %v703, %v708
    %v713 = vrsqrt.pop %v661
    %v714 = vmul.f32 %v713, %v661
    %v715 = vmul.f32 %v714, %v713
    %v716 = vmul.f32 0.5, %v715
    %v717 = vsub.f32 1.5, %v716
    %v718 = vmul.f32 %v713, %v717
    %vm719 = vweird.f32 %v661
    %vm720 = vweird.f32 %v713
    %vm721 = vmor %vm719, %vm720
    %v722 = vsel %vm721, %v713, %v718
    %v723 = vrsqrt.pop %v662
    %v724 = vmul.f32 %v723, %v662
    %v725 = vmul.f32 %v724, %v723
    %v726 = vmul.f32 0.5, %v725
    %v727 = vsub.f32 1.5, %v726
    %v728 = vmul.f32 %v723, %v727
    %vm729 = vweird.f32 %v662
    %vm730 = vweird.f32 %v723
    %vm731 = vmor %vm729, %vm730
    %v732 = vsel %vm731, %v723, %v728
    %v733 = vrsqrt.pop %v663
    %v734 = vmul.f32 %v733, %v663
    %v735 = vmul.f32 %v734, %v733
    %v736 = vmul.f32 0.5, %v735
    %v737 = vsub.f32 1.5, %v736
    %v738 = vmul.f32 %v733, %v737
    %vm739 = vweird.f32 %v663
    %vm740 = vweird.f32 %v733
    %vm741 = vmor %vm739, %vm740
    %v742 = vsel %vm741, %v733, %v738
    %v743 = vrsqrt.pop %v664
    %v744 = vmul.f32 %v743, %v664
    %v745 = vmul.f32 %v744, %v743
    %v746 = vmul.f32 0.5, %v745
    %v747 = vsub.f32 1.5, %v746
    %v748 = vmul.f32 %v743, %v747
    %vm749 = vweird.f32 %v664
    %vm750 = vweird.f32 %v743
    %vm751 = vmor %vm749, %vm750
    %v752 = vsel %vm751, %v743, %v748
    %v753 = vrsqrt.pop %v665
    %v754 = vmul.f32 %v753, %v665
    %v755 = vmul.f32 %v754, %v753
    %v756 = vmul.f32 0.5, %v755
    %v757 = vsub.f32 1.5, %v756
    %v758 = vmul.f32 %v753, %v757
    %vm759 = vweird.f32 %v665
    %vm760 = vweird.f32 %v753
    %vm761 = vmor %vm759, %vm760
    %v762 = vsel %vm761, %v753, %v758
    %v763 = vrsqrt.pop %v666
    %v764 = vmul.f32 %v763, %v666
    %v765 = vmul.f32 %v764, %v763
    %v766 = vmul.f32 0.5, %v765
    %v767 = vsub.f32 1.5, %v766
    %v768 = vmul.f32 %v763, %v767
    %vm769 = vweird.f32 %v666
    %vm770 = vweird.f32 %v763
    %vm771 = vmor %vm769, %vm770
    %v772 = vsel %vm771, %v763, %v768
    %v773 = vrsqrt.pop %v667
    %v774 = vmul.f32 %v773, %v667
    %v775 = vmul.f32 %v774, %v773
    %v776 = vmul.f32 0.5, %v775
    %v777 = vsub.f32 1.5, %v776
    %v778 = vmul.f32 %v773, %v777
    %vm779 = vweird.f32 %v667
    %vm780 = vweird.f32 %v773
    %vm781 = vmor %vm779, %vm780
    %v782 = vsel %vm781, %v773, %v778
    %v783 = vrsqrt.pop %v668
    %v784 = vmul.f32 %v783, %v668
    %v785 = vmul.f32 %v784, %v783
    %v786 = vmul.f32 0.5, %v785
    %v787 = vsub.f32 1.5, %v786
    %v788 = vmul.f32 %v783, %v787
    %vm789 = vweird.f32 %v668
    %vm790 = vweird.f32 %v783
    %vm791 = vmor %vm789, %vm790
    %v792 = vsel %vm791, %v783, %v788
    %v793 = vrsqrt.pop %v669
    %v794 = vmul.f32 %v793, %v669
    %v795 = vmul.f32 %v794, %v793
    %v796 = vmul.f32 0.5, %v795
    %v797 = vsub.f32 1.5, %v796
    %v798 = vmul.f32 %v793, %v797
    %vm799 = vweird.f32 %v669
    %vm800 = vweird.f32 %v793
    %vm801 = vmor %vm799, %vm800
    %v802 = vsel %vm801, %v793, %v798
    %v803 = vrsqrt.pop %v670
    %v804 = vmul.f32 %v803, %v670
    %v805 = vmul.f32 %v804, %v803
    %v806 = vmul.f32 0.5, %v805
    %v807 = vsub.f32 1.5, %v806
    %v808 = vmul.f32 %v803, %v807
    %vm809 = vweird.f32 %v670
    %vm810 = vweird.f32 %v803
    %vm811 = vmor %vm809, %vm810
    %v812 = vsel %vm811, %v803, %v808
    %v813 = vrsqrt.pop %v671
    %v814 = vmul.f32 %v813, %v671
    %v815 = vmul.f32 %v814, %v813
    %v816 = vmul.f32 0.5, %v815
    %v817 = vsub.f32 1.5, %v816
    %v818 = vmul.f32 %v813, %v817
    %vm819 = vweird.f32 %v671
    %vm820 = vweird.f32 %v813
    %vm821 = vmor %vm819, %vm820
    %v822 = vsel %vm821, %v813, %v818
    %v823 = vrsqrt.pop %v672
    %v824 = vmul.f32 %v823, %v672
    %v825 = vmul.f32 %v824, %v823
    %v826 = vmul.f32 0.5, %v825
    %v827 = vsub.f32 1.5, %v826
    %v828 = vmul.f32 %v823, %v827
    %vm829 = vweird.f32 %v672
    %vm830 = vweird.f32 %v823
    %vm831 = vmor %vm829, %vm830
    %v832 = vsel %vm831, %v823, %v828
    %v833 = vmul.f32 %v561, %v682
    %v834 = vmul.f32 %v562, %v692
    %v835 = vmul.f32 %v563, %v702
    %v836 = vmul.f32 %v564, %v712
    %v837 = vmul.f32 %v565, %v722
    %v838 = vmul.f32 %v566, %v732
    %v839 = vmul.f32 %v567, %v742
    %v840 = vmul.f32 %v568, %v752
    %v841 = vmul.f32 %v569, %v762
    %v842 = vmul.f32 %v570, %v772
    %v843 = vmul.f32 %v571, %v782
    %v844 = vmul.f32 %v572, %v792
    %v845 = vmul.f32 %v573, %v802
    %v846 = vmul.f32 %v574, %v812
    %v847 = vmul.f32 %v575, %v822
    %v848 = vmul.f32 %v576, %v832
    %v849 = vmul.f32 %v833, %v428
    %v850 = vmul.f32 %v834, %v428
    %v851 = vmul.f32 %v835, %v428
    %v852 = vmul.f32 %v836, %v428
    %v853 = vmul.f32 %v837, %v428
    %v854 = vmul.f32 %v838, %v428
    %v855 = vmul.f32 %v839, %v428
    %v856 = vmul.f32 %v840, %v428
    %v857 = vmul.f32 %v841, %v428
    %v858 = vmul.f32 %v842, %v428
    %v859 = vmul.f32 %v843, %v428
    %v860 = vmul.f32 %v844, %v428
    %v861 = vmul.f32 %v845, %v428
    %v862 = vmul.f32 %v846, %v428
    %v863 = vmul.f32 %v847, %v428
    %v864 = vmul.f32 %v848, %v428
    %v865 = vadd.f32 %v849, %v447
    %v866 = vadd.f32 %v850, %v447
    %v867 = vadd.f32 %v851, %v447
    %v868 = vadd.f32 %v852, %v447
    %v869 = vadd.f32 %v853, %v447
    %v870 = vadd.f32 %v854, %v447
    %v871 = vadd.f32 %v855, %v447
    %v872 = vadd.f32 %v856, %v447
    %v873 = vadd.f32 %v857, %v447
    %v874 = vadd.f32 %v858, %v447
    %v875 = vadd.f32 %v859, %v447
    %v876 = vadd.f32 %v860, %v447
    %v877 = vadd.f32 %v861, %v447
    %v878 = vadd.f32 %v862, %v447
    %v879 = vadd.f32 %v863, %v447
    %v880 = vadd.f32 %v864, %v447
    %v881 = vmul.f32 %v865, %v35
    %v882 = vmul.f32 %v866, %v36
    %v883 = vmul.f32 %v867, %v37
    %v884 = vmul.f32 %v868, %v38
    %v885 = vmul.f32 %v869, %v39
    %v886 = vmul.f32 %v870, %v40
    %v887 = vmul.f32 %v871, %v41
    %v888 = vmul.f32 %v872, %v42
    %v889 = vmul.f32 %v873, %v43
    %v890 = vmul.f32 %v874, %v44
    %v891 = vmul.f32 %v875, %v45
    %v892 = vmul.f32 %v876, %v46
    %v893 = vmul.f32 %v877, %v47
    %v894 = vmul.f32 %v878, %v48
    %v895 = vmul.f32 %v879, %v49
    %v896 = vmul.f32 %v880, %v50
    %v897 = vadd.f32 %v465, %v881
    %v898 = vadd.f32 %v466, %v882
    %v899 = vadd.f32 %v467, %v883
    %v900 = vadd.f32 %v468, %v884
    %v901 = vadd.f32 %v469, %v885
    %v902 = vadd.f32 %v470, %v886
    %v903 = vadd.f32 %v471, %v887
    %v904 = vadd.f32 %v472, %v888
    %v905 = vadd.f32 %v473, %v889
    %v906 = vadd.f32 %v474, %v890
    %v907 = vadd.f32 %v475, %v891
    %v908 = vadd.f32 %v476, %v892
    %v909 = vadd.f32 %v477, %v893
    %v910 = vadd.f32 %v478, %v894
    %v911 = vadd.f32 %v479, %v895
    %v912 = vadd.f32 %v480, %v896
    %v913 = vld [vmem:[%s2] sm:$0xff]
    %v914 = vld [vmem:[%s2 + $0x8] sm:$0xff]
    %v915 = vld [vmem:[%s2 + $0x10] sm:$0xff]
    %v916 = vld [vmem:[%s2 + $0x18] sm:$0xff]
    %v917 = vld [vmem:[%s2 + $0x20] sm:$0xff]
    %v918 = vld [vmem:[%s2 + $0x28] sm:$0xff]
    %v919 = vld [vmem:[%s2 + $0x30] sm:$0xff]
    %v920 = vld [vmem:[%s2 + $0x38] sm:$0xff]
    %v921 = vld [vmem:[%s2 + $0x40] sm:$0xff]
    %v922 = vld [vmem:[%s2 + $0x48] sm:$0xff]
    %v923 = vld [vmem:[%s2 + $0x50] sm:$0xff]
    %v924 = vld [vmem:[%s2 + $0x58] sm:$0xff]
    %v925 = vld [vmem:[%s2 + $0x60] sm:$0xff]
    %v926 = vld [vmem:[%s2 + $0x68] sm:$0xff]
    %v927 = vld [vmem:[%s2 + $0x70] sm:$0xff]
    %v928 = vld [vmem:[%s2 + $0x78] sm:$0xff]
    %v929 = vsel %vm67, %v913, 0.0
    %930 = vadd.xlane.f32.xlu0 %v929
    %v931 = vpop.xlane.xlu0 %930
    %v932 = vsel %vm67, %v914, 0.0
    %933 = vadd.xlane.f32.xlu0 %v932
    %v934 = vpop.xlane.xlu0 %933
    %v935 = vsel %vm67, %v915, 0.0
    %936 = vadd.xlane.f32.xlu0 %v935
    %v937 = vpop.xlane.xlu0 %936
    %v938 = vsel %vm67, %v916, 0.0
    %939 = vadd.xlane.f32.xlu0 %v938
    %v940 = vpop.xlane.xlu0 %939
    %v941 = vsel %vm67, %v917, 0.0
    %942 = vadd.xlane.f32.xlu0 %v941
    %v943 = vpop.xlane.xlu0 %942
    %v944 = vsel %vm67, %v918, 0.0
    %945 = vadd.xlane.f32.xlu0 %v944
    %v946 = vpop.xlane.xlu0 %945
    %v947 = vsel %vm67, %v919, 0.0
    %948 = vadd.xlane.f32.xlu0 %v947
    %v949 = vpop.xlane.xlu0 %948
    %v950 = vsel %vm67, %v920, 0.0
    %951 = vadd.xlane.f32.xlu0 %v950
    %v952 = vpop.xlane.xlu0 %951
    %v953 = vsel %vm67, %v921, 0.0
    %954 = vadd.xlane.f32.xlu0 %v953
    %v955 = vpop.xlane.xlu0 %954
    %v956 = vsel %vm67, %v922, 0.0
    %957 = vadd.xlane.f32.xlu0 %v956
    %v958 = vpop.xlane.xlu0 %957
    %v959 = vsel %vm67, %v923, 0.0
    %960 = vadd.xlane.f32.xlu0 %v959
    %v961 = vpop.xlane.xlu0 %960
    %v962 = vsel %vm67, %v924, 0.0
    %963 = vadd.xlane.f32.xlu0 %v962
    %v964 = vpop.xlane.xlu0 %963
    %v965 = vsel %vm67, %v925, 0.0
    %966 = vadd.xlane.f32.xlu0 %v965
    %v967 = vpop.xlane.xlu0 %966
    %v968 = vsel %vm67, %v926, 0.0
    %969 = vadd.xlane.f32.xlu0 %v968
    %v970 = vpop.xlane.xlu0 %969
    %v971 = vsel %vm67, %v927, 0.0
    %972 = vadd.xlane.f32.xlu0 %v971
    %v973 = vpop.xlane.xlu0 %972
    %v974 = vsel %vm67, %v928, 0.0
    %975 = vadd.xlane.f32.xlu0 %v974
    %v976 = vpop.xlane.xlu0 %975
    %v977 = vmul.f32 %v931, %v122
    %v978 = vmul.f32 %v934, %v122
    %v979 = vmul.f32 %v937, %v122
    %v980 = vmul.f32 %v940, %v122
    %v981 = vmul.f32 %v943, %v122
    %v982 = vmul.f32 %v946, %v122
    %v983 = vmul.f32 %v949, %v122
    %v984 = vmul.f32 %v952, %v122
    %v985 = vmul.f32 %v955, %v122
    %v986 = vmul.f32 %v958, %v122
    %v987 = vmul.f32 %v961, %v122
    %v988 = vmul.f32 %v964, %v122
    %v989 = vmul.f32 %v967, %v122
    %v990 = vmul.f32 %v970, %v122
    %v991 = vmul.f32 %v973, %v122
    %v992 = vmul.f32 %v976, %v122
    %v993 = vsub.f32 %v913, %v977
    %v994 = vsub.f32 %v914, %v978
    %v995 = vsub.f32 %v915, %v979
    %v996 = vsub.f32 %v916, %v980
    %v997 = vsub.f32 %v917, %v981
    %v998 = vsub.f32 %v918, %v982
    %v999 = vsub.f32 %v919, %v983
    %v1000 = vsub.f32 %v920, %v984
    %v1001 = vsub.f32 %v921, %v985
    %v1002 = vsub.f32 %v922, %v986
    %v1003 = vsub.f32 %v923, %v987
    %v1004 = vsub.f32 %v924, %v988
    %v1005 = vsub.f32 %v925, %v989
    %v1006 = vsub.f32 %v926, %v990
    %v1007 = vsub.f32 %v927, %v991
    %v1008 = vsub.f32 %v928, %v992
    %v1009 = vmul.f32 %v993, %v993
    %v1010 = vmul.f32 %v994, %v994
    %v1011 = vmul.f32 %v995, %v995
    %v1012 = vmul.f32 %v996, %v996
    %v1013 = vmul.f32 %v997, %v997
    %v1014 = vmul.f32 %v998, %v998
    %v1015 = vmul.f32 %v999, %v999
    %v1016 = vmul.f32 %v1000, %v1000
    %v1017 = vmul.f32 %v1001, %v1001
    %v1018 = vmul.f32 %v1002, %v1002
    %v1019 = vmul.f32 %v1003, %v1003
    %v1020 = vmul.f32 %v1004, %v1004
    %v1021 = vmul.f32 %v1005, %v1005
    %v1022 = vmul.f32 %v1006, %v1006
    %v1023 = vmul.f32 %v1007, %v1007
    %v1024 = vmul.f32 %v1008, %v1008
    %v1025 = vsel %vm67, %v1009, 0.0
    %1026 = vadd.xlane.f32.xlu0 %v1025
    %v1027 = vpop.xlane.xlu0 %1026
    %v1028 = vsel %vm67, %v1010, 0.0
    %1029 = vadd.xlane.f32.xlu0 %v1028
    %v1030 = vpop.xlane.xlu0 %1029
    %v1031 = vsel %vm67, %v1011, 0.0
    %1032 = vadd.xlane.f32.xlu0 %v1031
    %v1033 = vpop.xlane.xlu0 %1032
    %v1034 = vsel %vm67, %v1012, 0.0
    %1035 = vadd.xlane.f32.xlu0 %v1034
    %v1036 = vpop.xlane.xlu0 %1035
    %v1037 = vsel %vm67, %v1013, 0.0
    %1038 = vadd.xlane.f32.xlu0 %v1037
    %v1039 = vpop.xlane.xlu0 %1038
    %v1040 = vsel %vm67, %v1014, 0.0
    %1041 = vadd.xlane.f32.xlu0 %v1040
    %v1042 = vpop.xlane.xlu0 %1041
    %v1043 = vsel %vm67, %v1015, 0.0
    %1044 = vadd.xlane.f32.xlu0 %v1043
    %v1045 = vpop.xlane.xlu0 %1044
    %v1046 = vsel %vm67, %v1016, 0.0
    %1047 = vadd.xlane.f32.xlu0 %v1046
    %v1048 = vpop.xlane.xlu0 %1047
    %v1049 = vsel %vm67, %v1017, 0.0
    %1050 = vadd.xlane.f32.xlu0 %v1049
    %v1051 = vpop.xlane.xlu0 %1050
    %v1052 = vsel %vm67, %v1018, 0.0
    %1053 = vadd.xlane.f32.xlu0 %v1052
    %v1054 = vpop.xlane.xlu0 %1053
    %v1055 = vsel %vm67, %v1019, 0.0
    %1056 = vadd.xlane.f32.xlu0 %v1055
    %v1057 = vpop.xlane.xlu0 %1056
    %v1058 = vsel %vm67, %v1020, 0.0
    %1059 = vadd.xlane.f32.xlu0 %v1058
    %v1060 = vpop.xlane.xlu0 %1059
    %v1061 = vsel %vm67, %v1021, 0.0
    %1062 = vadd.xlane.f32.xlu0 %v1061
    %v1063 = vpop.xlane.xlu0 %1062
    %v1064 = vsel %vm67, %v1022, 0.0
    %1065 = vadd.xlane.f32.xlu0 %v1064
    %v1066 = vpop.xlane.xlu0 %1065
    %v1067 = vsel %vm67, %v1023, 0.0
    %1068 = vadd.xlane.f32.xlu0 %v1067
    %v1069 = vpop.xlane.xlu0 %1068
    %v1070 = vsel %vm67, %v1024, 0.0
    %1071 = vadd.xlane.f32.xlu0 %v1070
    %v1072 = vpop.xlane.xlu0 %1071
    %v1073 = vmul.f32 %v1027, %v122
    %v1074 = vmul.f32 %v1030, %v122
    %v1075 = vmul.f32 %v1033, %v122
    %v1076 = vmul.f32 %v1036, %v122
    %v1077 = vmul.f32 %v1039, %v122
    %v1078 = vmul.f32 %v1042, %v122
    %v1079 = vmul.f32 %v1045, %v122
    %v1080 = vmul.f32 %v1048, %v122
    %v1081 = vmul.f32 %v1051, %v122
    %v1082 = vmul.f32 %v1054, %v122
    %v1083 = vmul.f32 %v1057, %v122
    %v1084 = vmul.f32 %v1060, %v122
    %v1085 = vmul.f32 %v1063, %v122
    %v1086 = vmul.f32 %v1066, %v122
    %v1087 = vmul.f32 %v1069, %v122
    %v1088 = vmul.f32 %v1072, %v122
    %v1089 = vadd.f32 %v1073, 1e-05
    %v1090 = vadd.f32 %v1074, 1e-05
    %v1091 = vadd.f32 %v1075, 1e-05
    %v1092 = vadd.f32 %v1076, 1e-05
    %v1093 = vadd.f32 %v1077, 1e-05
    %v1094 = vadd.f32 %v1078, 1e-05
    %v1095 = vadd.f32 %v1079, 1e-05
    %v1096 = vadd.f32 %v1080, 1e-05
    %v1097 = vadd.f32 %v1081, 1e-05
    %v1098 = vadd.f32 %v1082, 1e-05
    %v1099 = vadd.f32 %v1083, 1e-05
    %v1100 = vadd.f32 %v1084, 1e-05
    %v1101 = vadd.f32 %v1085, 1e-05
    %v1102 = vadd.f32 %v1086, 1e-05
    %v1103 = vadd.f32 %v1087, 1e-05
    %v1104 = vadd.f32 %v1088, 1e-05
    %v1105 = vrsqrt.pop %v1089
    %v1106 = vmul.f32 %v1105, %v1089
    %v1107 = vmul.f32 %v1106, %v1105
    %v1108 = vmul.f32 0.5, %v1107
    %v1109 = vsub.f32 1.5, %v1108
    %v1110 = vmul.f32 %v1105, %v1109
    %vm1111 = vweird.f32 %v1089
    %vm1112 = vweird.f32 %v1105
    %vm1113 = vmor %vm1111, %vm1112
    %v1114 = vsel %vm1113, %v1105, %v1110
    %v1115 = vrsqrt.pop %v1090
    %v1116 = vmul.f32 %v1115, %v1090
    %v1117 = vmul.f32 %v1116, %v1115
    %v1118 = vmul.f32 0.5, %v1117
    %v1119 = vsub.f32 1.5, %v1118
    %v1120 = vmul.f32 %v1115, %v1119
    %vm1121 = vweird.f32 %v1090
    %vm1122 = vweird.f32 %v1115
    %vm1123 = vmor %vm1121, %vm1122
    %v1124 = vsel %vm1123, %v1115, %v1120
    %v1125 = vrsqrt.pop %v1091
    %v1126 = vmul.f32 %v1125, %v1091
    %v1127 = vmul.f32 %v1126, %v1125
    %v1128 = vmul.f32 0.5, %v1127
    %v1129 = vsub.f32 1.5, %v1128
    %v1130 = vmul.f32 %v1125, %v1129
    %vm1131 = vweird.f32 %v1091
    %vm1132 = vweird.f32 %v1125
    %vm1133 = vmor %vm1131, %vm1132
    %v1134 = vsel %vm1133, %v1125, %v1130
    %v1135 = vrsqrt.pop %v1092
    %v1136 = vmul.f32 %v1135, %v1092
    %v1137 = vmul.f32 %v1136, %v1135
    %v1138 = vmul.f32 0.5, %v1137
    %v1139 = vsub.f32 1.5, %v1138
    %v1140 = vmul.f32 %v1135, %v1139
    %vm1141 = vweird.f32 %v1092
    %vm1142 = vweird.f32 %v1135
    %vm1143 = vmor %vm1141, %vm1142
    %v1144 = vsel %vm1143, %v1135, %v1140
    %v1145 = vrsqrt.pop %v1093
    %v1146 = vmul.f32 %v1145, %v1093
    %v1147 = vmul.f32 %v1146, %v1145
    %v1148 = vmul.f32 0.5, %v1147
    %v1149 = vsub.f32 1.5, %v1148
    %v1150 = vmul.f32 %v1145, %v1149
    %vm1151 = vweird.f32 %v1093
    %vm1152 = vweird.f32 %v1145
    %vm1153 = vmor %vm1151, %vm1152
    %v1154 = vsel %vm1153, %v1145, %v1150
    %v1155 = vrsqrt.pop %v1094
    %v1156 = vmul.f32 %v1155, %v1094
    %v1157 = vmul.f32 %v1156, %v1155
    %v1158 = vmul.f32 0.5, %v1157
    %v1159 = vsub.f32 1.5, %v1158
    %v1160 = vmul.f32 %v1155, %v1159
    %vm1161 = vweird.f32 %v1094
    %vm1162 = vweird.f32 %v1155
    %vm1163 = vmor %vm1161, %vm1162
    %v1164 = vsel %vm1163, %v1155, %v1160
    %v1165 = vrsqrt.pop %v1095
    %v1166 = vmul.f32 %v1165, %v1095
    %v1167 = vmul.f32 %v1166, %v1165
    %v1168 = vmul.f32 0.5, %v1167
    %v1169 = vsub.f32 1.5, %v1168
    %v1170 = vmul.f32 %v1165, %v1169
    %vm1171 = vweird.f32 %v1095
    %vm1172 = vweird.f32 %v1165
    %vm1173 = vmor %vm1171, %vm1172
    %v1174 = vsel %vm1173, %v1165, %v1170
    %v1175 = vrsqrt.pop %v1096
    %v1176 = vmul.f32 %v1175, %v1096
    %v1177 = vmul.f32 %v1176, %v1175
    %v1178 = vmul.f32 0.5, %v1177
    %v1179 = vsub.f32 1.5, %v1178
    %v1180 = vmul.f32 %v1175, %v1179
    %vm1181 = vweird.f32 %v1096
    %vm1182 = vweird.f32 %v1175
    %vm1183 = vmor %vm1181, %vm1182
    %v1184 = vsel %vm1183, %v1175, %v1180
    %v1185 = vrsqrt.pop %v1097
    %v1186 = vmul.f32 %v1185, %v1097
    %v1187 = vmul.f32 %v1186, %v1185
    %v1188 = vmul.f32 0.5, %v1187
    %v1189 = vsub.f32 1.5, %v1188
    %v1190 = vmul.f32 %v1185, %v1189
    %vm1191 = vweird.f32 %v1097
    %vm1192 = vweird.f32 %v1185
    %vm1193 = vmor %vm1191, %vm1192
    %v1194 = vsel %vm1193, %v1185, %v1190
    %v1195 = vrsqrt.pop %v1098
    %v1196 = vmul.f32 %v1195, %v1098
    %v1197 = vmul.f32 %v1196, %v1195
    %v1198 = vmul.f32 0.5, %v1197
    %v1199 = vsub.f32 1.5, %v1198
    %v1200 = vmul.f32 %v1195, %v1199
    %vm1201 = vweird.f32 %v1098
    %vm1202 = vweird.f32 %v1195
    %vm1203 = vmor %vm1201, %vm1202
    %v1204 = vsel %vm1203, %v1195, %v1200
    %v1205 = vrsqrt.pop %v1099
    %v1206 = vmul.f32 %v1205, %v1099
    %v1207 = vmul.f32 %v1206, %v1205
    %v1208 = vmul.f32 0.5, %v1207
    %v1209 = vsub.f32 1.5, %v1208
    %v1210 = vmul.f32 %v1205, %v1209
    %vm1211 = vweird.f32 %v1099
    %vm1212 = vweird.f32 %v1205
    %vm1213 = vmor %vm1211, %vm1212
    %v1214 = vsel %vm1213, %v1205, %v1210
    %v1215 = vrsqrt.pop %v1100
    %v1216 = vmul.f32 %v1215, %v1100
    %v1217 = vmul.f32 %v1216, %v1215
    %v1218 = vmul.f32 0.5, %v1217
    %v1219 = vsub.f32 1.5, %v1218
    %v1220 = vmul.f32 %v1215, %v1219
    %vm1221 = vweird.f32 %v1100
    %vm1222 = vweird.f32 %v1215
    %vm1223 = vmor %vm1221, %vm1222
    %v1224 = vsel %vm1223, %v1215, %v1220
    %v1225 = vrsqrt.pop %v1101
    %v1226 = vmul.f32 %v1225, %v1101
    %v1227 = vmul.f32 %v1226, %v1225
    %v1228 = vmul.f32 0.5, %v1227
    %v1229 = vsub.f32 1.5, %v1228
    %v1230 = vmul.f32 %v1225, %v1229
    %vm1231 = vweird.f32 %v1101
    %vm1232 = vweird.f32 %v1225
    %vm1233 = vmor %vm1231, %vm1232
    %v1234 = vsel %vm1233, %v1225, %v1230
    %v1235 = vrsqrt.pop %v1102
    %v1236 = vmul.f32 %v1235, %v1102
    %v1237 = vmul.f32 %v1236, %v1235
    %v1238 = vmul.f32 0.5, %v1237
    %v1239 = vsub.f32 1.5, %v1238
    %v1240 = vmul.f32 %v1235, %v1239
    %vm1241 = vweird.f32 %v1102
    %vm1242 = vweird.f32 %v1235
    %vm1243 = vmor %vm1241, %vm1242
    %v1244 = vsel %vm1243, %v1235, %v1240
    %v1245 = vrsqrt.pop %v1103
    %v1246 = vmul.f32 %v1245, %v1103
    %v1247 = vmul.f32 %v1246, %v1245
    %v1248 = vmul.f32 0.5, %v1247
    %v1249 = vsub.f32 1.5, %v1248
    %v1250 = vmul.f32 %v1245, %v1249
    %vm1251 = vweird.f32 %v1103
    %vm1252 = vweird.f32 %v1245
    %vm1253 = vmor %vm1251, %vm1252
    %v1254 = vsel %vm1253, %v1245, %v1250
    %v1255 = vrsqrt.pop %v1104
    %v1256 = vmul.f32 %v1255, %v1104
    %v1257 = vmul.f32 %v1256, %v1255
    %v1258 = vmul.f32 0.5, %v1257
    %v1259 = vsub.f32 1.5, %v1258
    %v1260 = vmul.f32 %v1255, %v1259
    %vm1261 = vweird.f32 %v1104
    %vm1262 = vweird.f32 %v1255
    %vm1263 = vmor %vm1261, %vm1262
    %v1264 = vsel %vm1263, %v1255, %v1260
    %v1265 = vmul.f32 %v993, %v1114
    %v1266 = vmul.f32 %v994, %v1124
    %v1267 = vmul.f32 %v995, %v1134
    %v1268 = vmul.f32 %v996, %v1144
    %v1269 = vmul.f32 %v997, %v1154
    %v1270 = vmul.f32 %v998, %v1164
    %v1271 = vmul.f32 %v999, %v1174
    %v1272 = vmul.f32 %v1000, %v1184
    %v1273 = vmul.f32 %v1001, %v1194
    %v1274 = vmul.f32 %v1002, %v1204
    %v1275 = vmul.f32 %v1003, %v1214
    %v1276 = vmul.f32 %v1004, %v1224
    %v1277 = vmul.f32 %v1005, %v1234
    %v1278 = vmul.f32 %v1006, %v1244
    %v1279 = vmul.f32 %v1007, %v1254
    %v1280 = vmul.f32 %v1008, %v1264
    %v1281 = vmul.f32 %v1265, %v428
    %v1282 = vmul.f32 %v1266, %v428
    %v1283 = vmul.f32 %v1267, %v428
    %v1284 = vmul.f32 %v1268, %v428
    %v1285 = vmul.f32 %v1269, %v428
    %v1286 = vmul.f32 %v1270, %v428
    %v1287 = vmul.f32 %v1271, %v428
    %v1288 = vmul.f32 %v1272, %v428
    %v1289 = vmul.f32 %v1273, %v428
    %v1290 = vmul.f32 %v1274, %v428
    %v1291 = vmul.f32 %v1275, %v428
    %v1292 = vmul.f32 %v1276, %v428
    %v1293 = vmul.f32 %v1277, %v428
    %v1294 = vmul.f32 %v1278, %v428
    %v1295 = vmul.f32 %v1279, %v428
    %v1296 = vmul.f32 %v1280, %v428
    %v1297 = vadd.f32 %v1281, %v447
    %v1298 = vadd.f32 %v1282, %v447
    %v1299 = vadd.f32 %v1283, %v447
    %v1300 = vadd.f32 %v1284, %v447
    %v1301 = vadd.f32 %v1285, %v447
    %v1302 = vadd.f32 %v1286, %v447
    %v1303 = vadd.f32 %v1287, %v447
    %v1304 = vadd.f32 %v1288, %v447
    %v1305 = vadd.f32 %v1289, %v447
    %v1306 = vadd.f32 %v1290, %v447
    %v1307 = vadd.f32 %v1291, %v447
    %v1308 = vadd.f32 %v1292, %v447
    %v1309 = vadd.f32 %v1293, %v447
    %v1310 = vadd.f32 %v1294, %v447
    %v1311 = vadd.f32 %v1295, %v447
    %v1312 = vadd.f32 %v1296, %v447
    %v1313 = vmul.f32 %v1297, %v35
    %v1314 = vmul.f32 %v1298, %v36
    %v1315 = vmul.f32 %v1299, %v37
    %v1316 = vmul.f32 %v1300, %v38
    %v1317 = vmul.f32 %v1301, %v39
    %v1318 = vmul.f32 %v1302, %v40
    %v1319 = vmul.f32 %v1303, %v41
    %v1320 = vmul.f32 %v1304, %v42
    %v1321 = vmul.f32 %v1305, %v43
    %v1322 = vmul.f32 %v1306, %v44
    %v1323 = vmul.f32 %v1307, %v45
    %v1324 = vmul.f32 %v1308, %v46
    %v1325 = vmul.f32 %v1309, %v47
    %v1326 = vmul.f32 %v1310, %v48
    %v1327 = vmul.f32 %v1311, %v49
    %v1328 = vmul.f32 %v1312, %v50
    %v1329 = vadd.f32 %v897, %v1313
    %v1330 = vadd.f32 %v898, %v1314
    %v1331 = vadd.f32 %v899, %v1315
    %v1332 = vadd.f32 %v900, %v1316
    %v1333 = vadd.f32 %v901, %v1317
    %v1334 = vadd.f32 %v902, %v1318
    %v1335 = vadd.f32 %v903, %v1319
    %v1336 = vadd.f32 %v904, %v1320
    %v1337 = vadd.f32 %v905, %v1321
    %v1338 = vadd.f32 %v906, %v1322
    %v1339 = vadd.f32 %v907, %v1323
    %v1340 = vadd.f32 %v908, %v1324
    %v1341 = vadd.f32 %v909, %v1325
    %v1342 = vadd.f32 %v910, %v1326
    %v1343 = vadd.f32 %v911, %v1327
    %v1344 = vadd.f32 %v912, %v1328
    %v1345 = vld [vmem:[%s6] sm:$0xff]
    %v1346 = vld [vmem:[%s6 + $0x8] sm:$0xff]
    %v1347 = vld [vmem:[%s6 + $0x10] sm:$0xff]
    %v1348 = vld [vmem:[%s6 + $0x18] sm:$0xff]
    %v1349 = vld [vmem:[%s6 + $0x20] sm:$0xff]
    %v1350 = vld [vmem:[%s6 + $0x28] sm:$0xff]
    %v1351 = vld [vmem:[%s6 + $0x30] sm:$0xff]
    %v1352 = vld [vmem:[%s6 + $0x38] sm:$0xff]
    %v1354 = vsel %vm67, %v1329, 0
    %v1357 = vsel %vm67, %v1330, 0
    %v1360 = vsel %vm67, %v1331, 0
    %v1363 = vsel %vm67, %v1332, 0
    %v1366 = vsel %vm67, %v1333, 0
    %v1369 = vsel %vm67, %v1334, 0
    %v1372 = vsel %vm67, %v1335, 0
    %v1375 = vsel %vm67, %v1336, 0
    %v1378 = vsel %vm67, %v1337, 0
    %v1381 = vsel %vm67, %v1338, 0
    %v1384 = vsel %vm67, %v1339, 0
    %v1387 = vsel %vm67, %v1340, 0
    %v1390 = vsel %vm67, %v1341, 0
    %v1393 = vsel %vm67, %v1342, 0
    %v1396 = vsel %vm67, %v1343, 0
    %v1399 = vsel %vm67, %v1344, 0
    %1401 = vmatpush.msra.mxu0 0.0
    %1402 = vmatpush.msra.mxu0 0.0
    %1403 = vmatpush.msra.mxu0 0.0
    %1404 = vmatpush.msra.mxu0 0.0
    %1405 = vmatpush.msra.mxu0 0.0
    %1406 = vmatpush.msra.mxu0 0.0
    %1407 = vmatpush.msra.mxu0 0.0
    %1408 = vmatpush.msra.mxu0 0.0
    %v1409 = vand.u32 %v1352, 4294901760
    %1410 = vmatpush.msra.mxu0 %v1409
    %v1411 = vand.u32 %v1351, 4294901760
    %1412 = vmatpush.msra.mxu0 %v1411
    %v1413 = vand.u32 %v1350, 4294901760
    %1414 = vmatpush.msra.mxu0 %v1413
    %v1415 = vand.u32 %v1349, 4294901760
    %1416 = vmatpush.msra.mxu0 %v1415
    %v1417 = vand.u32 %v1348, 4294901760
    %1418 = vmatpush.msra.mxu0 %v1417
    %v1419 = vand.u32 %v1347, 4294901760
    %1420 = vmatpush.msra.mxu0 %v1419
    %v1421 = vand.u32 %v1346, 4294901760
    %1422 = vmatpush.msra.mxu0 %v1421
    %v1423 = vand.u32 %v1345, 4294901760
    %1424 = vmatpush.msra.mxu0 %v1423
    %v1425 = vand.u32 %v1354, 4294901760
    %v1426 = vsub.f32 %v1354, %v1425
    %v1427 = vand.u32 %v1426, 4294901760
    %v1428 = vsub.f32 %v1426, %v1427
    %v1429 = vand.u32 %v1428, 4294901760
    %1430 = vmatmul.f32.gmra.mxu0 %v1429
    %v1431 = vpop.f32.mrf.mxu0
    %v1432 = vadd.f32 0.0, %v1431
    %v1433 = vand.u32 %v1357, 4294901760
    %v1434 = vsub.f32 %v1357, %v1433
    %v1435 = vand.u32 %v1434, 4294901760
    %v1436 = vsub.f32 %v1434, %v1435
    %v1437 = vand.u32 %v1436, 4294901760
    %1438 = vmatmul.f32.gmra.mxu0 %v1437
    %v1439 = vpop.f32.mrf.mxu0
    %v1440 = vadd.f32 0.0, %v1439
    %v1441 = vand.u32 %v1360, 4294901760
    %v1442 = vsub.f32 %v1360, %v1441
    %v1443 = vand.u32 %v1442, 4294901760
    %v1444 = vsub.f32 %v1442, %v1443
    %v1445 = vand.u32 %v1444, 4294901760
    %1446 = vmatmul.f32.gmra.mxu0 %v1445
    %v1447 = vpop.f32.mrf.mxu0
    %v1448 = vadd.f32 0.0, %v1447
    %v1449 = vand.u32 %v1363, 4294901760
    %v1450 = vsub.f32 %v1363, %v1449
    %v1451 = vand.u32 %v1450, 4294901760
    %v1452 = vsub.f32 %v1450, %v1451
    %v1453 = vand.u32 %v1452, 4294901760
    %1454 = vmatmul.f32.gmra.mxu0 %v1453
    %v1455 = vpop.f32.mrf.mxu0
    %v1456 = vadd.f32 0.0, %v1455
    %v1457 = vand.u32 %v1366, 4294901760
    %v1458 = vsub.f32 %v1366, %v1457
    %v1459 = vand.u32 %v1458, 4294901760
    %v1460 = vsub.f32 %v1458, %v1459
    %v1461 = vand.u32 %v1460, 4294901760
    %1462 = vmatmul.f32.gmra.mxu0 %v1461
    %v1463 = vpop.f32.mrf.mxu0
    %v1464 = vadd.f32 0.0, %v1463
    %v1465 = vand.u32 %v1369, 4294901760
    %v1466 = vsub.f32 %v1369, %v1465
    %v1467 = vand.u32 %v1466, 4294901760
    %v1468 = vsub.f32 %v1466, %v1467
    %v1469 = vand.u32 %v1468, 4294901760
    %1470 = vmatmul.f32.gmra.mxu0 %v1469
    %v1471 = vpop.f32.mrf.mxu0
    %v1472 = vadd.f32 0.0, %v1471
    %v1473 = vand.u32 %v1372, 4294901760
    %v1474 = vsub.f32 %v1372, %v1473
    %v1475 = vand.u32 %v1474, 4294901760
    %v1476 = vsub.f32 %v1474, %v1475
    %v1477 = vand.u32 %v1476, 4294901760
    %1478 = vmatmul.f32.gmra.mxu0 %v1477
    %v1479 = vpop.f32.mrf.mxu0
    %v1480 = vadd.f32 0.0, %v1479
    %v1481 = vand.u32 %v1375, 4294901760
    %v1482 = vsub.f32 %v1375, %v1481
    %v1483 = vand.u32 %v1482, 4294901760
    %v1484 = vsub.f32 %v1482, %v1483
    %v1485 = vand.u32 %v1484, 4294901760
    %1486 = vmatmul.f32.gmra.mxu0 %v1485
    %v1487 = vpop.f32.mrf.mxu0
    %v1488 = vadd.f32 0.0, %v1487
    %v1489 = vand.u32 %v1378, 4294901760
    %v1490 = vsub.f32 %v1378, %v1489
    %v1491 = vand.u32 %v1490, 4294901760
    %v1492 = vsub.f32 %v1490, %v1491
    %v1493 = vand.u32 %v1492, 4294901760
    %1494 = vmatmul.f32.gmra.mxu0 %v1493
    %v1495 = vpop.f32.mrf.mxu0
    %v1496 = vadd.f32 0.0, %v1495
    %v1497 = vand.u32 %v1381, 4294901760
    %v1498 = vsub.f32 %v1381, %v1497
    %v1499 = vand.u32 %v1498, 4294901760
    %v1500 = vsub.f32 %v1498, %v1499
    %v1501 = vand.u32 %v1500, 4294901760
    %1502 = vmatmul.f32.gmra.mxu0 %v1501
    %v1503 = vpop.f32.mrf.mxu0
    %v1504 = vadd.f32 0.0, %v1503
    %v1505 = vand.u32 %v1384, 4294901760
    %v1506 = vsub.f32 %v1384, %v1505
    %v1507 = vand.u32 %v1506, 4294901760
    %v1508 = vsub.f32 %v1506, %v1507
    %v1509 = vand.u32 %v1508, 4294901760
    %1510 = vmatmul.f32.gmra.mxu0 %v1509
    %v1511 = vpop.f32.mrf.mxu0
    %v1512 = vadd.f32 0.0, %v1511
    %v1513 = vand.u32 %v1387, 4294901760
    %v1514 = vsub.f32 %v1387, %v1513
    %v1515 = vand.u32 %v1514, 4294901760
    %v1516 = vsub.f32 %v1514, %v1515
    %v1517 = vand.u32 %v1516, 4294901760
    %1518 = vmatmul.f32.gmra.mxu0 %v1517
    %v1519 = vpop.f32.mrf.mxu0
    %v1520 = vadd.f32 0.0, %v1519
    %v1521 = vand.u32 %v1390, 4294901760
    %v1522 = vsub.f32 %v1390, %v1521
    %v1523 = vand.u32 %v1522, 4294901760
    %v1524 = vsub.f32 %v1522, %v1523
    %v1525 = vand.u32 %v1524, 4294901760
    %1526 = vmatmul.f32.gmra.mxu0 %v1525
    %v1527 = vpop.f32.mrf.mxu0
    %v1528 = vadd.f32 0.0, %v1527
    %v1529 = vand.u32 %v1393, 4294901760
    %v1530 = vsub.f32 %v1393, %v1529
    %v1531 = vand.u32 %v1530, 4294901760
    %v1532 = vsub.f32 %v1530, %v1531
    %v1533 = vand.u32 %v1532, 4294901760
    %1534 = vmatmul.f32.gmra.mxu0 %v1533
    %v1535 = vpop.f32.mrf.mxu0
    %v1536 = vadd.f32 0.0, %v1535
    %v1537 = vand.u32 %v1396, 4294901760
    %v1538 = vsub.f32 %v1396, %v1537
    %v1539 = vand.u32 %v1538, 4294901760
    %v1540 = vsub.f32 %v1538, %v1539
    %v1541 = vand.u32 %v1540, 4294901760
    %1542 = vmatmul.f32.gmra.mxu0 %v1541
    %v1543 = vpop.f32.mrf.mxu0
    %v1544 = vadd.f32 0.0, %v1543
    %v1545 = vand.u32 %v1399, 4294901760
    %v1546 = vsub.f32 %v1399, %v1545
    %v1547 = vand.u32 %v1546, 4294901760
    %v1548 = vsub.f32 %v1546, %v1547
    %v1549 = vand.u32 %v1548, 4294901760
    %1550 = vmatmul.f32.gmra.mxu0 %v1549
    %v1551 = vpop.f32.mrf.mxu0
    %v1552 = vadd.f32 0.0, %v1551
    %1553 = vdwg.mxu0
    %1554 = vmatpush.msra.mxu0 0.0
    %1555 = vmatpush.msra.mxu0 0.0
    %1556 = vmatpush.msra.mxu0 0.0
    %1557 = vmatpush.msra.mxu0 0.0
    %1558 = vmatpush.msra.mxu0 0.0
    %1559 = vmatpush.msra.mxu0 0.0
    %1560 = vmatpush.msra.mxu0 0.0
    %1561 = vmatpush.msra.mxu0 0.0
    %v1562 = vand.u32 %v1352, 4294901760
    %v1563 = vsub.f32 %v1352, %v1562
    %v1564 = vand.u32 %v1563, 4294901760
    %v1565 = vsub.f32 %v1563, %v1564
    %v1566 = vand.u32 %v1565, 4294901760
    %1567 = vmatpush.msra.mxu0 %v1566
    %v1568 = vand.u32 %v1351, 4294901760
    %v1569 = vsub.f32 %v1351, %v1568
    %v1570 = vand.u32 %v1569, 4294901760
    %v1571 = vsub.f32 %v1569, %v1570
    %v1572 = vand.u32 %v1571, 4294901760
    %1573 = vmatpush.msra.mxu0 %v1572
    %v1574 = vand.u32 %v1350, 4294901760
    %v1575 = vsub.f32 %v1350, %v1574
    %v1576 = vand.u32 %v1575, 4294901760
    %v1577 = vsub.f32 %v1575, %v1576
    %v1578 = vand.u32 %v1577, 4294901760
    %1579 = vmatpush.msra.mxu0 %v1578
    %v1580 = vand.u32 %v1349, 4294901760
    %v1581 = vsub.f32 %v1349, %v1580
    %v1582 = vand.u32 %v1581, 4294901760
    %v1583 = vsub.f32 %v1581, %v1582
    %v1584 = vand.u32 %v1583, 4294901760
    %1585 = vmatpush.msra.mxu0 %v1584
    %v1586 = vand.u32 %v1348, 4294901760
    %v1587 = vsub.f32 %v1348, %v1586
    %v1588 = vand.u32 %v1587, 4294901760
    %v1589 = vsub.f32 %v1587, %v1588
    %v1590 = vand.u32 %v1589, 4294901760
    %1591 = vmatpush.msra.mxu0 %v1590
    %v1592 = vand.u32 %v1347, 4294901760
    %v1593 = vsub.f32 %v1347, %v1592
    %v1594 = vand.u32 %v1593, 4294901760
    %v1595 = vsub.f32 %v1593, %v1594
    %v1596 = vand.u32 %v1595, 4294901760
    %1597 = vmatpush.msra.mxu0 %v1596
    %v1598 = vand.u32 %v1346, 4294901760
    %v1599 = vsub.f32 %v1346, %v1598
    %v1600 = vand.u32 %v1599, 4294901760
    %v1601 = vsub.f32 %v1599, %v1600
    %v1602 = vand.u32 %v1601, 4294901760
    %1603 = vmatpush.msra.mxu0 %v1602
    %v1604 = vand.u32 %v1345, 4294901760
    %v1605 = vsub.f32 %v1345, %v1604
    %v1606 = vand.u32 %v1605, 4294901760
    %v1607 = vsub.f32 %v1605, %v1606
    %v1608 = vand.u32 %v1607, 4294901760
    %1609 = vmatpush.msra.mxu0 %v1608
    %v1610 = vand.u32 %v1354, 4294901760
    %1611 = vmatmul.f32.gmra.mxu0 %v1610
    %v1612 = vpop.f32.mrf.mxu0
    %v1613 = vadd.f32 %v1432, %v1612
    %v1614 = vand.u32 %v1357, 4294901760
    %1615 = vmatmul.f32.gmra.mxu0 %v1614
    %v1616 = vpop.f32.mrf.mxu0
    %v1617 = vadd.f32 %v1440, %v1616
    %v1618 = vand.u32 %v1360, 4294901760
    %1619 = vmatmul.f32.gmra.mxu0 %v1618
    %v1620 = vpop.f32.mrf.mxu0
    %v1621 = vadd.f32 %v1448, %v1620
    %v1622 = vand.u32 %v1363, 4294901760
    %1623 = vmatmul.f32.gmra.mxu0 %v1622
    %v1624 = vpop.f32.mrf.mxu0
    %v1625 = vadd.f32 %v1456, %v1624
    %v1626 = vand.u32 %v1366, 4294901760
    %1627 = vmatmul.f32.gmra.mxu0 %v1626
    %v1628 = vpop.f32.mrf.mxu0
    %v1629 = vadd.f32 %v1464, %v1628
    %v1630 = vand.u32 %v1369, 4294901760
    %1631 = vmatmul.f32.gmra.mxu0 %v1630
    %v1632 = vpop.f32.mrf.mxu0
    %v1633 = vadd.f32 %v1472, %v1632
    %v1634 = vand.u32 %v1372, 4294901760
    %1635 = vmatmul.f32.gmra.mxu0 %v1634
    %v1636 = vpop.f32.mrf.mxu0
    %v1637 = vadd.f32 %v1480, %v1636
    %v1638 = vand.u32 %v1375, 4294901760
    %1639 = vmatmul.f32.gmra.mxu0 %v1638
    %v1640 = vpop.f32.mrf.mxu0
    %v1641 = vadd.f32 %v1488, %v1640
    %v1642 = vand.u32 %v1378, 4294901760
    %1643 = vmatmul.f32.gmra.mxu0 %v1642
    %v1644 = vpop.f32.mrf.mxu0
    %v1645 = vadd.f32 %v1496, %v1644
    %v1646 = vand.u32 %v1381, 4294901760
    %1647 = vmatmul.f32.gmra.mxu0 %v1646
    %v1648 = vpop.f32.mrf.mxu0
    %v1649 = vadd.f32 %v1504, %v1648
    %v1650 = vand.u32 %v1384, 4294901760
    %1651 = vmatmul.f32.gmra.mxu0 %v1650
    %v1652 = vpop.f32.mrf.mxu0
    %v1653 = vadd.f32 %v1512, %v1652
    %v1654 = vand.u32 %v1387, 4294901760
    %1655 = vmatmul.f32.gmra.mxu0 %v1654
    %v1656 = vpop.f32.mrf.mxu0
    %v1657 = vadd.f32 %v1520, %v1656
    %v1658 = vand.u32 %v1390, 4294901760
    %1659 = vmatmul.f32.gmra.mxu0 %v1658
    %v1660 = vpop.f32.mrf.mxu0
    %v1661 = vadd.f32 %v1528, %v1660
    %v1662 = vand.u32 %v1393, 4294901760
    %1663 = vmatmul.f32.gmra.mxu0 %v1662
    %v1664 = vpop.f32.mrf.mxu0
    %v1665 = vadd.f32 %v1536, %v1664
    %v1666 = vand.u32 %v1396, 4294901760
    %1667 = vmatmul.f32.gmra.mxu0 %v1666
    %v1668 = vpop.f32.mrf.mxu0
    %v1669 = vadd.f32 %v1544, %v1668
    %v1670 = vand.u32 %v1399, 4294901760
    %1671 = vmatmul.f32.gmra.mxu0 %v1670
    %v1672 = vpop.f32.mrf.mxu0
    %v1673 = vadd.f32 %v1552, %v1672
    %1674 = vdwg.mxu0
    %1675 = vmatpush.msra.mxu0 0.0
    %1676 = vmatpush.msra.mxu0 0.0
    %1677 = vmatpush.msra.mxu0 0.0
    %1678 = vmatpush.msra.mxu0 0.0
    %1679 = vmatpush.msra.mxu0 0.0
    %1680 = vmatpush.msra.mxu0 0.0
    %1681 = vmatpush.msra.mxu0 0.0
    %1682 = vmatpush.msra.mxu0 0.0
    %v1683 = vand.u32 %v1352, 4294901760
    %v1684 = vsub.f32 %v1352, %v1683
    %1685 = vmatpush.msra.mxu0 %v1684
    %v1686 = vand.u32 %v1351, 4294901760
    %v1687 = vsub.f32 %v1351, %v1686
    %1688 = vmatpush.msra.mxu0 %v1687
    %v1689 = vand.u32 %v1350, 4294901760
    %v1690 = vsub.f32 %v1350, %v1689
    %1691 = vmatpush.msra.mxu0 %v1690
    %v1692 = vand.u32 %v1349, 4294901760
    %v1693 = vsub.f32 %v1349, %v1692
    %1694 = vmatpush.msra.mxu0 %v1693
    %v1695 = vand.u32 %v1348, 4294901760
    %v1696 = vsub.f32 %v1348, %v1695
    %1697 = vmatpush.msra.mxu0 %v1696
    %v1698 = vand.u32 %v1347, 4294901760
    %v1699 = vsub.f32 %v1347, %v1698
    %1700 = vmatpush.msra.mxu0 %v1699
    %v1701 = vand.u32 %v1346, 4294901760
    %v1702 = vsub.f32 %v1346, %v1701
    %1703 = vmatpush.msra.mxu0 %v1702
    %v1704 = vand.u32 %v1345, 4294901760
    %v1705 = vsub.f32 %v1345, %v1704
    %1706 = vmatpush.msra.mxu0 %v1705
    %v1707 = vand.u32 %v1354, 4294901760
    %v1708 = vsub.f32 %v1354, %v1707
    %1709 = vmatmul.f32.gmra.mxu0 %v1708
    %v1710 = vpop.f32.mrf.mxu0
    %v1711 = vadd.f32 %v1613, %v1710
    %v1712 = vand.u32 %v1357, 4294901760
    %v1713 = vsub.f32 %v1357, %v1712
    %1714 = vmatmul.f32.gmra.mxu0 %v1713
    %v1715 = vpop.f32.mrf.mxu0
    %v1716 = vadd.f32 %v1617, %v1715
    %v1717 = vand.u32 %v1360, 4294901760
    %v1718 = vsub.f32 %v1360, %v1717
    %1719 = vmatmul.f32.gmra.mxu0 %v1718
    %v1720 = vpop.f32.mrf.mxu0
    %v1721 = vadd.f32 %v1621, %v1720
    %v1722 = vand.u32 %v1363, 4294901760
    %v1723 = vsub.f32 %v1363, %v1722
    %1724 = vmatmul.f32.gmra.mxu0 %v1723
    %v1725 = vpop.f32.mrf.mxu0
    %v1726 = vadd.f32 %v1625, %v1725
    %v1727 = vand.u32 %v1366, 4294901760
    %v1728 = vsub.f32 %v1366, %v1727
    %1729 = vmatmul.f32.gmra.mxu0 %v1728
    %v1730 = vpop.f32.mrf.mxu0
    %v1731 = vadd.f32 %v1629, %v1730
    %v1732 = vand.u32 %v1369, 4294901760
    %v1733 = vsub.f32 %v1369, %v1732
    %1734 = vmatmul.f32.gmra.mxu0 %v1733
    %v1735 = vpop.f32.mrf.mxu0
    %v1736 = vadd.f32 %v1633, %v1735
    %v1737 = vand.u32 %v1372, 4294901760
    %v1738 = vsub.f32 %v1372, %v1737
    %1739 = vmatmul.f32.gmra.mxu0 %v1738
    %v1740 = vpop.f32.mrf.mxu0
    %v1741 = vadd.f32 %v1637, %v1740
    %v1742 = vand.u32 %v1375, 4294901760
    %v1743 = vsub.f32 %v1375, %v1742
    %1744 = vmatmul.f32.gmra.mxu0 %v1743
    %v1745 = vpop.f32.mrf.mxu0
    %v1746 = vadd.f32 %v1641, %v1745
    %v1747 = vand.u32 %v1378, 4294901760
    %v1748 = vsub.f32 %v1378, %v1747
    %1749 = vmatmul.f32.gmra.mxu0 %v1748
    %v1750 = vpop.f32.mrf.mxu0
    %v1751 = vadd.f32 %v1645, %v1750
    %v1752 = vand.u32 %v1381, 4294901760
    %v1753 = vsub.f32 %v1381, %v1752
    %1754 = vmatmul.f32.gmra.mxu0 %v1753
    %v1755 = vpop.f32.mrf.mxu0
    %v1756 = vadd.f32 %v1649, %v1755
    %v1757 = vand.u32 %v1384, 4294901760
    %v1758 = vsub.f32 %v1384, %v1757
    %1759 = vmatmul.f32.gmra.mxu0 %v1758
    %v1760 = vpop.f32.mrf.mxu0
    %v1761 = vadd.f32 %v1653, %v1760
    %v1762 = vand.u32 %v1387, 4294901760
    %v1763 = vsub.f32 %v1387, %v1762
    %1764 = vmatmul.f32.gmra.mxu0 %v1763
    %v1765 = vpop.f32.mrf.mxu0
    %v1766 = vadd.f32 %v1657, %v1765
    %v1767 = vand.u32 %v1390, 4294901760
    %v1768 = vsub.f32 %v1390, %v1767
    %1769 = vmatmul.f32.gmra.mxu0 %v1768
    %v1770 = vpop.f32.mrf.mxu0
    %v1771 = vadd.f32 %v1661, %v1770
    %v1772 = vand.u32 %v1393, 4294901760
    %v1773 = vsub.f32 %v1393, %v1772
    %1774 = vmatmul.f32.gmra.mxu0 %v1773
    %v1775 = vpop.f32.mrf.mxu0
    %v1776 = vadd.f32 %v1665, %v1775
    %v1777 = vand.u32 %v1396, 4294901760
    %v1778 = vsub.f32 %v1396, %v1777
    %1779 = vmatmul.f32.gmra.mxu0 %v1778
    %v1780 = vpop.f32.mrf.mxu0
    %v1781 = vadd.f32 %v1669, %v1780
    %v1782 = vand.u32 %v1399, 4294901760
    %v1783 = vsub.f32 %v1399, %v1782
    %1784 = vmatmul.f32.gmra.mxu0 %v1783
    %v1785 = vpop.f32.mrf.mxu0
    %v1786 = vadd.f32 %v1673, %v1785
    %1787 = vdwg.mxu0
    %1788 = vmatpush.msra.mxu0 0.0
    %1789 = vmatpush.msra.mxu0 0.0
    %1790 = vmatpush.msra.mxu0 0.0
    %1791 = vmatpush.msra.mxu0 0.0
    %1792 = vmatpush.msra.mxu0 0.0
    %1793 = vmatpush.msra.mxu0 0.0
    %1794 = vmatpush.msra.mxu0 0.0
    %1795 = vmatpush.msra.mxu0 0.0
    %v1796 = vand.u32 %v1352, 4294901760
    %1797 = vmatpush.msra.mxu0 %v1796
    %v1798 = vand.u32 %v1351, 4294901760
    %1799 = vmatpush.msra.mxu0 %v1798
    %v1800 = vand.u32 %v1350, 4294901760
    %1801 = vmatpush.msra.mxu0 %v1800
    %v1802 = vand.u32 %v1349, 4294901760
    %1803 = vmatpush.msra.mxu0 %v1802
    %v1804 = vand.u32 %v1348, 4294901760
    %1805 = vmatpush.msra.mxu0 %v1804
    %v1806 = vand.u32 %v1347, 4294901760
    %1807 = vmatpush.msra.mxu0 %v1806
    %v1808 = vand.u32 %v1346, 4294901760
    %1809 = vmatpush.msra.mxu0 %v1808
    %v1810 = vand.u32 %v1345, 4294901760
    %1811 = vmatpush.msra.mxu0 %v1810
    %v1812 = vand.u32 %v1354, 4294901760
    %v1813 = vsub.f32 %v1354, %v1812
    %v1814 = vand.u32 %v1813, 4294901760
    %1815 = vmatmul.f32.gmra.mxu0 %v1814
    %v1816 = vpop.f32.mrf.mxu0
    %v1817 = vadd.f32 %v1711, %v1816
    %v1818 = vand.u32 %v1357, 4294901760
    %v1819 = vsub.f32 %v1357, %v1818
    %v1820 = vand.u32 %v1819, 4294901760
    %1821 = vmatmul.f32.gmra.mxu0 %v1820
    %v1822 = vpop.f32.mrf.mxu0
    %v1823 = vadd.f32 %v1716, %v1822
    %v1824 = vand.u32 %v1360, 4294901760
    %v1825 = vsub.f32 %v1360, %v1824
    %v1826 = vand.u32 %v1825, 4294901760
    %1827 = vmatmul.f32.gmra.mxu0 %v1826
    %v1828 = vpop.f32.mrf.mxu0
    %v1829 = vadd.f32 %v1721, %v1828
    %v1830 = vand.u32 %v1363, 4294901760
    %v1831 = vsub.f32 %v1363, %v1830
    %v1832 = vand.u32 %v1831, 4294901760
    %1833 = vmatmul.f32.gmra.mxu0 %v1832
    %v1834 = vpop.f32.mrf.mxu0
    %v1835 = vadd.f32 %v1726, %v1834
    %v1836 = vand.u32 %v1366, 4294901760
    %v1837 = vsub.f32 %v1366, %v1836
    %v1838 = vand.u32 %v1837, 4294901760
    %1839 = vmatmul.f32.gmra.mxu0 %v1838
    %v1840 = vpop.f32.mrf.mxu0
    %v1841 = vadd.f32 %v1731, %v1840
    %v1842 = vand.u32 %v1369, 4294901760
    %v1843 = vsub.f32 %v1369, %v1842
    %v1844 = vand.u32 %v1843, 4294901760
    %1845 = vmatmul.f32.gmra.mxu0 %v1844
    %v1846 = vpop.f32.mrf.mxu0
    %v1847 = vadd.f32 %v1736, %v1846
    %v1848 = vand.u32 %v1372, 4294901760
    %v1849 = vsub.f32 %v1372, %v1848
    %v1850 = vand.u32 %v1849, 4294901760
    %1851 = vmatmul.f32.gmra.mxu0 %v1850
    %v1852 = vpop.f32.mrf.mxu0
    %v1853 = vadd.f32 %v1741, %v1852
    %v1854 = vand.u32 %v1375, 4294901760
    %v1855 = vsub.f32 %v1375, %v1854
    %v1856 = vand.u32 %v1855, 4294901760
    %1857 = vmatmul.f32.gmra.mxu0 %v1856
    %v1858 = vpop.f32.mrf.mxu0
    %v1859 = vadd.f32 %v1746, %v1858
    %v1860 = vand.u32 %v1378, 4294901760
    %v1861 = vsub.f32 %v1378, %v1860
    %v1862 = vand.u32 %v1861, 4294901760
    %1863 = vmatmul.f32.gmra.mxu0 %v1862
    %v1864 = vpop.f32.mrf.mxu0
    %v1865 = vadd.f32 %v1751, %v1864
    %v1866 = vand.u32 %v1381, 4294901760
    %v1867 = vsub.f32 %v1381, %v1866
    %v1868 = vand.u32 %v1867, 4294901760
    %1869 = vmatmul.f32.gmra.mxu0 %v1868
    %v1870 = vpop.f32.mrf.mxu0
    %v1871 = vadd.f32 %v1756, %v1870
    %v1872 = vand.u32 %v1384, 4294901760
    %v1873 = vsub.f32 %v1384, %v1872
    %v1874 = vand.u32 %v1873, 4294901760
    %1875 = vmatmul.f32.gmra.mxu0 %v1874
    %v1876 = vpop.f32.mrf.mxu0
    %v1877 = vadd.f32 %v1761, %v1876
    %v1878 = vand.u32 %v1387, 4294901760
    %v1879 = vsub.f32 %v1387, %v1878
    %v1880 = vand.u32 %v1879, 4294901760
    %1881 = vmatmul.f32.gmra.mxu0 %v1880
    %v1882 = vpop.f32.mrf.mxu0
    %v1883 = vadd.f32 %v1766, %v1882
    %v1884 = vand.u32 %v1390, 4294901760
    %v1885 = vsub.f32 %v1390, %v1884
    %v1886 = vand.u32 %v1885, 4294901760
    %1887 = vmatmul.f32.gmra.mxu0 %v1886
    %v1888 = vpop.f32.mrf.mxu0
    %v1889 = vadd.f32 %v1771, %v1888
    %v1890 = vand.u32 %v1393, 4294901760
    %v1891 = vsub.f32 %v1393, %v1890
    %v1892 = vand.u32 %v1891, 4294901760
    %1893 = vmatmul.f32.gmra.mxu0 %v1892
    %v1894 = vpop.f32.mrf.mxu0
    %v1895 = vadd.f32 %v1776, %v1894
    %v1896 = vand.u32 %v1396, 4294901760
    %v1897 = vsub.f32 %v1396, %v1896
    %v1898 = vand.u32 %v1897, 4294901760
    %1899 = vmatmul.f32.gmra.mxu0 %v1898
    %v1900 = vpop.f32.mrf.mxu0
    %v1901 = vadd.f32 %v1781, %v1900
    %v1902 = vand.u32 %v1399, 4294901760
    %v1903 = vsub.f32 %v1399, %v1902
    %v1904 = vand.u32 %v1903, 4294901760
    %1905 = vmatmul.f32.gmra.mxu0 %v1904
    %v1906 = vpop.f32.mrf.mxu0
    %v1907 = vadd.f32 %v1786, %v1906
    %1908 = vdwg.mxu0
    %1909 = vmatpush.msra.mxu0 0.0
    %1910 = vmatpush.msra.mxu0 0.0
    %1911 = vmatpush.msra.mxu0 0.0
    %1912 = vmatpush.msra.mxu0 0.0
    %1913 = vmatpush.msra.mxu0 0.0
    %1914 = vmatpush.msra.mxu0 0.0
    %1915 = vmatpush.msra.mxu0 0.0
    %1916 = vmatpush.msra.mxu0 0.0
    %v1917 = vand.u32 %v1352, 4294901760
    %v1918 = vsub.f32 %v1352, %v1917
    %v1919 = vand.u32 %v1918, 4294901760
    %1920 = vmatpush.msra.mxu0 %v1919
    %v1921 = vand.u32 %v1351, 4294901760
    %v1922 = vsub.f32 %v1351, %v1921
    %v1923 = vand.u32 %v1922, 4294901760
    %1924 = vmatpush.msra.mxu0 %v1923
    %v1925 = vand.u32 %v1350, 4294901760
    %v1926 = vsub.f32 %v1350, %v1925
    %v1927 = vand.u32 %v1926, 4294901760
    %1928 = vmatpush.msra.mxu0 %v1927
    %v1929 = vand.u32 %v1349, 4294901760
    %v1930 = vsub.f32 %v1349, %v1929
    %v1931 = vand.u32 %v1930, 4294901760
    %1932 = vmatpush.msra.mxu0 %v1931
    %v1933 = vand.u32 %v1348, 4294901760
    %v1934 = vsub.f32 %v1348, %v1933
    %v1935 = vand.u32 %v1934, 4294901760
    %1936 = vmatpush.msra.mxu0 %v1935
    %v1937 = vand.u32 %v1347, 4294901760
    %v1938 = vsub.f32 %v1347, %v1937
    %v1939 = vand.u32 %v1938, 4294901760
    %1940 = vmatpush.msra.mxu0 %v1939
    %v1941 = vand.u32 %v1346, 4294901760
    %v1942 = vsub.f32 %v1346, %v1941
    %v1943 = vand.u32 %v1942, 4294901760
    %1944 = vmatpush.msra.mxu0 %v1943
    %v1945 = vand.u32 %v1345, 4294901760
    %v1946 = vsub.f32 %v1345, %v1945
    %v1947 = vand.u32 %v1946, 4294901760
    %1948 = vmatpush.msra.mxu0 %v1947
    %v1949 = vand.u32 %v1354, 4294901760
    %1950 = vmatmul.f32.gmra.mxu0 %v1949
    %v1951 = vpop.f32.mrf.mxu0
    %v1952 = vadd.f32 %v1817, %v1951
    %v1953 = vand.u32 %v1357, 4294901760
    %1954 = vmatmul.f32.gmra.mxu0 %v1953
    %v1955 = vpop.f32.mrf.mxu0
    %v1956 = vadd.f32 %v1823, %v1955
    %v1957 = vand.u32 %v1360, 4294901760
    %1958 = vmatmul.f32.gmra.mxu0 %v1957
    %v1959 = vpop.f32.mrf.mxu0
    %v1960 = vadd.f32 %v1829, %v1959
    %v1961 = vand.u32 %v1363, 4294901760
    %1962 = vmatmul.f32.gmra.mxu0 %v1961
    %v1963 = vpop.f32.mrf.mxu0
    %v1964 = vadd.f32 %v1835, %v1963
    %v1965 = vand.u32 %v1366, 4294901760
    %1966 = vmatmul.f32.gmra.mxu0 %v1965
    %v1967 = vpop.f32.mrf.mxu0
    %v1968 = vadd.f32 %v1841, %v1967
    %v1969 = vand.u32 %v1369, 4294901760
    %1970 = vmatmul.f32.gmra.mxu0 %v1969
    %v1971 = vpop.f32.mrf.mxu0
    %v1972 = vadd.f32 %v1847, %v1971
    %v1973 = vand.u32 %v1372, 4294901760
    %1974 = vmatmul.f32.gmra.mxu0 %v1973
    %v1975 = vpop.f32.mrf.mxu0
    %v1976 = vadd.f32 %v1853, %v1975
    %v1977 = vand.u32 %v1375, 4294901760
    %1978 = vmatmul.f32.gmra.mxu0 %v1977
    %v1979 = vpop.f32.mrf.mxu0
    %v1980 = vadd.f32 %v1859, %v1979
    %v1981 = vand.u32 %v1378, 4294901760
    %1982 = vmatmul.f32.gmra.mxu0 %v1981
    %v1983 = vpop.f32.mrf.mxu0
    %v1984 = vadd.f32 %v1865, %v1983
    %v1985 = vand.u32 %v1381, 4294901760
    %1986 = vmatmul.f32.gmra.mxu0 %v1985
    %v1987 = vpop.f32.mrf.mxu0
    %v1988 = vadd.f32 %v1871, %v1987
    %v1989 = vand.u32 %v1384, 4294901760
    %1990 = vmatmul.f32.gmra.mxu0 %v1989
    %v1991 = vpop.f32.mrf.mxu0
    %v1992 = vadd.f32 %v1877, %v1991
    %v1993 = vand.u32 %v1387, 4294901760
    %1994 = vmatmul.f32.gmra.mxu0 %v1993
    %v1995 = vpop.f32.mrf.mxu0
    %v1996 = vadd.f32 %v1883, %v1995
    %v1997 = vand.u32 %v1390, 4294901760
    %1998 = vmatmul.f32.gmra.mxu0 %v1997
    %v1999 = vpop.f32.mrf.mxu0
    %v2000 = vadd.f32 %v1889, %v1999
    %v2001 = vand.u32 %v1393, 4294901760
    %2002 = vmatmul.f32.gmra.mxu0 %v2001
    %v2003 = vpop.f32.mrf.mxu0
    %v2004 = vadd.f32 %v1895, %v2003
    %v2005 = vand.u32 %v1396, 4294901760
    %2006 = vmatmul.f32.gmra.mxu0 %v2005
    %v2007 = vpop.f32.mrf.mxu0
    %v2008 = vadd.f32 %v1901, %v2007
    %v2009 = vand.u32 %v1399, 4294901760
    %2010 = vmatmul.f32.gmra.mxu0 %v2009
    %v2011 = vpop.f32.mrf.mxu0
    %v2012 = vadd.f32 %v1907, %v2011
    %2013 = vdwg.mxu0
    %2014 = vmatpush.msra.mxu0 0.0
    %2015 = vmatpush.msra.mxu0 0.0
    %2016 = vmatpush.msra.mxu0 0.0
    %2017 = vmatpush.msra.mxu0 0.0
    %2018 = vmatpush.msra.mxu0 0.0
    %2019 = vmatpush.msra.mxu0 0.0
    %2020 = vmatpush.msra.mxu0 0.0
    %2021 = vmatpush.msra.mxu0 0.0
    %v2022 = vand.u32 %v1352, 4294901760
    %2023 = vmatpush.msra.mxu0 %v2022
    %v2024 = vand.u32 %v1351, 4294901760
    %2025 = vmatpush.msra.mxu0 %v2024
    %v2026 = vand.u32 %v1350, 4294901760
    %2027 = vmatpush.msra.mxu0 %v2026
    %v2028 = vand.u32 %v1349, 4294901760
    %2029 = vmatpush.msra.mxu0 %v2028
    %v2030 = vand.u32 %v1348, 4294901760
    %2031 = vmatpush.msra.mxu0 %v2030
    %v2032 = vand.u32 %v1347, 4294901760
    %2033 = vmatpush.msra.mxu0 %v2032
    %v2034 = vand.u32 %v1346, 4294901760
    %2035 = vmatpush.msra.mxu0 %v2034
    %v2036 = vand.u32 %v1345, 4294901760
    %2037 = vmatpush.msra.mxu0 %v2036
    %v2038 = vand.u32 %v1354, 4294901760
    %2039 = vmatmul.f32.gmra.mxu0 %v2038
    %v2040 = vpop.f32.mrf.mxu0
    %v2041 = vadd.f32 %v1952, %v2040
    %v2042 = vand.u32 %v1357, 4294901760
    %2043 = vmatmul.f32.gmra.mxu0 %v2042
    %v2044 = vpop.f32.mrf.mxu0
    %v2045 = vadd.f32 %v1956, %v2044
    %v2046 = vand.u32 %v1360, 4294901760
    %2047 = vmatmul.f32.gmra.mxu0 %v2046
    %v2048 = vpop.f32.mrf.mxu0
    %v2049 = vadd.f32 %v1960, %v2048
    %v2050 = vand.u32 %v1363, 4294901760
    %2051 = vmatmul.f32.gmra.mxu0 %v2050
    %v2052 = vpop.f32.mrf.mxu0
    %v2053 = vadd.f32 %v1964, %v2052
    %v2054 = vand.u32 %v1366, 4294901760
    %2055 = vmatmul.f32.gmra.mxu0 %v2054
    %v2056 = vpop.f32.mrf.mxu0
    %v2057 = vadd.f32 %v1968, %v2056
    %v2058 = vand.u32 %v1369, 4294901760
    %2059 = vmatmul.f32.gmra.mxu0 %v2058
    %v2060 = vpop.f32.mrf.mxu0
    %v2061 = vadd.f32 %v1972, %v2060
    %v2062 = vand.u32 %v1372, 4294901760
    %2063 = vmatmul.f32.gmra.mxu0 %v2062
    %v2064 = vpop.f32.mrf.mxu0
    %v2065 = vadd.f32 %v1976, %v2064
    %v2066 = vand.u32 %v1375, 4294901760
    %2067 = vmatmul.f32.gmra.mxu0 %v2066
    %v2068 = vpop.f32.mrf.mxu0
    %v2069 = vadd.f32 %v1980, %v2068
    %v2070 = vand.u32 %v1378, 4294901760
    %2071 = vmatmul.f32.gmra.mxu0 %v2070
    %v2072 = vpop.f32.mrf.mxu0
    %v2073 = vadd.f32 %v1984, %v2072
    %v2074 = vand.u32 %v1381, 4294901760
    %2075 = vmatmul.f32.gmra.mxu0 %v2074
    %v2076 = vpop.f32.mrf.mxu0
    %v2077 = vadd.f32 %v1988, %v2076
    %v2078 = vand.u32 %v1384, 4294901760
    %2079 = vmatmul.f32.gmra.mxu0 %v2078
    %v2080 = vpop.f32.mrf.mxu0
    %v2081 = vadd.f32 %v1992, %v2080
    %v2082 = vand.u32 %v1387, 4294901760
    %2083 = vmatmul.f32.gmra.mxu0 %v2082
    %v2084 = vpop.f32.mrf.mxu0
    %v2085 = vadd.f32 %v1996, %v2084
    %v2086 = vand.u32 %v1390, 4294901760
    %2087 = vmatmul.f32.gmra.mxu0 %v2086
    %v2088 = vpop.f32.mrf.mxu0
    %v2089 = vadd.f32 %v2000, %v2088
    %v2090 = vand.u32 %v1393, 4294901760
    %2091 = vmatmul.f32.gmra.mxu0 %v2090
    %v2092 = vpop.f32.mrf.mxu0
    %v2093 = vadd.f32 %v2004, %v2092
    %v2094 = vand.u32 %v1396, 4294901760
    %2095 = vmatmul.f32.gmra.mxu0 %v2094
    %v2096 = vpop.f32.mrf.mxu0
    %v2097 = vadd.f32 %v2008, %v2096
    %v2098 = vand.u32 %v1399, 4294901760
    %2099 = vmatmul.f32.gmra.mxu0 %v2098
    %v2100 = vpop.f32.mrf.mxu0
    %v2101 = vadd.f32 %v2012, %v2100
    %2102 = vdwg.mxu0
    %v2103 = vld [vmem:[%s7] sm:$0xff]
    %v2104 = vld [vmem:[%s7 + $0x8] sm:$0xff]
    %v2105 = vld [vmem:[%s7 + $0x10] sm:$0xff]
    %v2106 = vld [vmem:[%s7 + $0x18] sm:$0xff]
    %v2107 = vld [vmem:[%s7 + $0x20] sm:$0xff]
    %v2108 = vld [vmem:[%s7 + $0x28] sm:$0xff]
    %v2109 = vld [vmem:[%s7 + $0x30] sm:$0xff]
    %v2110 = vld [vmem:[%s7 + $0x38] sm:$0xff]
    %v2111 = vld [vmem:[%s7 + $0x40] sm:$0xff]
    %v2112 = vld [vmem:[%s7 + $0x48] sm:$0xff]
    %v2113 = vld [vmem:[%s7 + $0x50] sm:$0xff]
    %v2114 = vld [vmem:[%s7 + $0x58] sm:$0xff]
    %v2115 = vld [vmem:[%s7 + $0x60] sm:$0xff]
    %v2116 = vld [vmem:[%s7 + $0x68] sm:$0xff]
    %v2117 = vld [vmem:[%s7 + $0x70] sm:$0xff]
    %v2118 = vld [vmem:[%s7 + $0x78] sm:$0xff]
    %v2119 = vld [vmem:[%s8] sm:$0xff]
    %v2120 = vld [vmem:[%s8 + $0x8] sm:$0xff]
    %v2121 = vld [vmem:[%s8 + $0x10] sm:$0xff]
    %v2122 = vld [vmem:[%s8 + $0x18] sm:$0xff]
    %v2123 = vld [vmem:[%s8 + $0x20] sm:$0xff]
    %v2124 = vld [vmem:[%s8 + $0x28] sm:$0xff]
    %v2125 = vld [vmem:[%s8 + $0x30] sm:$0xff]
    %v2126 = vld [vmem:[%s8 + $0x38] sm:$0xff]
    %v2127 = vld [vmem:[%s8 + $0x40] sm:$0xff]
    %v2128 = vld [vmem:[%s8 + $0x48] sm:$0xff]
    %v2129 = vld [vmem:[%s8 + $0x50] sm:$0xff]
    %v2130 = vld [vmem:[%s8 + $0x58] sm:$0xff]
    %v2131 = vld [vmem:[%s8 + $0x60] sm:$0xff]
    %v2132 = vld [vmem:[%s8 + $0x68] sm:$0xff]
    %v2133 = vld [vmem:[%s8 + $0x70] sm:$0xff]
    %v2134 = vld [vmem:[%s8 + $0x78] sm:$0xff]
    %v2135 = vadd.f32 %v2103, %v2119
    %v2136 = vadd.f32 %v2104, %v2120
    %v2137 = vadd.f32 %v2105, %v2121
    %v2138 = vadd.f32 %v2106, %v2122
    %v2139 = vadd.f32 %v2107, %v2123
    %v2140 = vadd.f32 %v2108, %v2124
    %v2141 = vadd.f32 %v2109, %v2125
    %v2142 = vadd.f32 %v2110, %v2126
    %v2143 = vadd.f32 %v2111, %v2127
    %v2144 = vadd.f32 %v2112, %v2128
    %v2145 = vadd.f32 %v2113, %v2129
    %v2146 = vadd.f32 %v2114, %v2130
    %v2147 = vadd.f32 %v2115, %v2131
    %v2148 = vadd.f32 %v2116, %v2132
    %v2149 = vadd.f32 %v2117, %v2133
    %v2150 = vadd.f32 %v2118, %v2134
    %v2151 = vadd.f32 %v2135, %v2041
    %v2152 = vadd.f32 %v2136, %v2045
    %v2153 = vadd.f32 %v2137, %v2049
    %v2154 = vadd.f32 %v2138, %v2053
    %v2155 = vadd.f32 %v2139, %v2057
    %v2156 = vadd.f32 %v2140, %v2061
    %v2157 = vadd.f32 %v2141, %v2065
    %v2158 = vadd.f32 %v2142, %v2069
    %v2159 = vadd.f32 %v2143, %v2073
    %v2160 = vadd.f32 %v2144, %v2077
    %v2161 = vadd.f32 %v2145, %v2081
    %v2162 = vadd.f32 %v2146, %v2085
    %v2163 = vadd.f32 %v2147, %v2089
    %v2164 = vadd.f32 %v2148, %v2093
    %v2165 = vadd.f32 %v2149, %v2097
    %v2166 = vadd.f32 %v2150, %v2101
    %vm2167 = vcmask 261120
    %2168 = vst.msk [vmem:[#allocation2] sm:$0xff] %vm2167, %v2151
    %2169 = vst.msk [vmem:[#allocation2 + $0x8] sm:$0xff] %vm2167, %v2152
    %2170 = vst.msk [vmem:[#allocation2 + $0x10] sm:$0xff] %vm2167, %v2153
    %2171 = vst.msk [vmem:[#allocation2 + $0x18] sm:$0xff] %vm2167, %v2154
    %2172 = vst.msk [vmem:[#allocation2 + $0x20] sm:$0xff] %vm2167, %v2155
    %2173 = vst.msk [vmem:[#allocation2 + $0x28] sm:$0xff] %vm2167, %v2156
    %2174 = vst.msk [vmem:[#allocation2 + $0x30] sm:$0xff] %vm2167, %v2157
    %2175 = vst.msk [vmem:[#allocation2 + $0x38] sm:$0xff] %vm2167, %v2158
    %2176 = vst.msk [vmem:[#allocation2 + $0x40] sm:$0xff] %vm2167, %v2159
    %2177 = vst.msk [vmem:[#allocation2 + $0x48] sm:$0xff] %vm2167, %v2160
    %2178 = vst.msk [vmem:[#allocation2 + $0x50] sm:$0xff] %vm2167, %v2161
    %2179 = vst.msk [vmem:[#allocation2 + $0x58] sm:$0xff] %vm2167, %v2162
    %2180 = vst.msk [vmem:[#allocation2 + $0x60] sm:$0xff] %vm2167, %v2163
    %2181 = vst.msk [vmem:[#allocation2 + $0x68] sm:$0xff] %vm2167, %v2164
    %2182 = vst.msk [vmem:[#allocation2 + $0x70] sm:$0xff] %vm2167, %v2165
    %2183 = vst.msk [vmem:[#allocation2 + $0x78] sm:$0xff] %vm2167, %v2166
    // Predicated region
    $region38: #{cssf_vss_layer_forward.5} parent=1 // pred_check
      _
    $region39: #{cssf_vss_layer_forward.5} parent=1 // pred_check_branch
      %2185 = sbr.rel (0) target = $region41
    $region40: #{cssf_vss_layer_forward.5} parent=1 // pred_region
      %2187 = vsyncadd [#allocation3], 0
      %s2188 = sshll.u32 [#allocation2], 4
      %s2189 = int_to_ptr.vmem [resolvable:$true] %s2188
      %s2190 = sshll.u32 %s9, 4
      %s2191 = int_to_ptr.hbm [resolvable:$true] %s2190
      %2196 = dma.vmem_to_hbm [thread:$0]  %s2189, 2048, %s2191, [#allocation3], 128, 128, 8
    $region41: #{cssf_vss_layer_forward.5} parent=1 // pred_fallthru
      _
    // Predicated region
    $region42: #{cssf_vss_layer_forward.5} parent=1 // pred_check
      _
    $region43: #{cssf_vss_layer_forward.5} parent=1 // pred_check_branch
      %2198 = sbr.rel (0) target = $region45
    $region44: #{cssf_vss_layer_forward.5} parent=1 // pred_region
      %2200 = dma.done [#allocation3], 2048
    $region45: #{cssf_vss_layer_forward.5} parent=1 // pred_fallthru
      _
    %2201 = vsyncpa [#allocation3], 1

</llo_original>
